<compile_context>
chip_gen: v6e
topology: v6e:2x2x1
jax: 0.10.0
libtpu: 0.0.40
codegen_flags: <defaults>
</compile_context>

<pallas_src>
import functools
import math

import jax
import jax.numpy as jnp
from jax import lax
from jax.experimental import pallas as pl
from jax.experimental.pallas import tpu as pltpu


# ----------------------------- Pallas kernel -------------------------------
def _encoder_block_kernel(x_ref, gamma_ref, beta_ref,
                          wqkv_ref, bqkv_ref,
                          wo_ref, bo_ref,
                          w1_ref, b1_ref, w2_ref, b2_ref,
                          o_ref, qkv_sc,
                          *, num_heads, approx_softmax):
    # One grid step == block_b batch elements.  x_ref block is (bt, S, D).
    bt, S, D = x_ref.shape
    dh = D // num_heads
    scale = 1.0 / math.sqrt(dh)
    cdt = wqkv_ref.dtype                       # MXU operand dtype (f32 or bf16)

    # Flatten (bt, S, D) -> (bt*S, D) so every dense matmul sees bt*S rows.
    x = x_ref[...].reshape(bt * S, D).astype(jnp.float32)
    gamma = gamma_ref[...].astype(jnp.float32)              # (1, D)
    beta = beta_ref[...].astype(jnp.float32)                 # (1, D)

    def layer_norm(v):                                       # stats in f32
        mu = jnp.mean(v, axis=-1, keepdims=True)
        var = jnp.mean((v - mu) * (v - mu), axis=-1, keepdims=True)
        return (v - mu) * lax.rsqrt(var + 1e-5) * gamma + beta

    # ---- first LayerNorm (shared params with second LN, as in the module) ----
    xn = layer_norm(x)

    # ---- fused QKV projection: one (bt*S, D) @ (D, 3D) matmul ----
    qkv = jnp.dot(xn.astype(cdt), wqkv_ref[...],
                  preferred_element_type=jnp.float32) + bqkv_ref[...].astype(jnp.float32)

    # Stage biased QKV (q pre-scaled by 1/sqrt(dh)) in ONE compute-dtype VMEM
    # scratch; the head loop slices from this ref, bounding the live vreg set.
    # Both stores below are lane-dense (widths D and 2D, multiples of 128 in
    # realistic configs) -- no masked store passes.
    qkv_sc[:, :, :D] = (qkv[:, :D] * scale).reshape(bt, S, D).astype(cdt)
    qkv_sc[:, :, D:] = qkv[:, D:].reshape(bt, S, 2 * D).astype(cdt)

    # ---- multi-head self-attention with the out-projection folded in ----
    #   att @ Wo = sum_h att_h @ Wo[h*dh:(h+1)*dh, :]
    # -> each head's (bt*S, dh) output feeds an MXU matmul immediately; no
    #    lane-masked stores into a (bt,S,D) scratch and no scratch round-trip.
    att = jnp.zeros((bt * S, D), jnp.float32)
    for h in range(num_heads):                               # static unroll
        q_h = qkv_sc[:, :, h * dh:(h + 1) * dh]              # (bt, S, dh), cdt
        k_h = qkv_sc[:, :, D + h * dh:D + (h + 1) * dh]
        v_h = qkv_sc[:, :, 2 * D + h * dh:2 * D + (h + 1) * dh]

        s = jnp.einsum('bqd,bkd->bqk', q_h, k_h,
                       preferred_element_type=jnp.float32)   # (bt, S, S)
        s = s - jnp.max(s, axis=-1, keepdims=True)
        p = jnp.exp(s)
        denom = jnp.sum(p, axis=-1, keepdims=True)
        if approx_softmax:
            p = p * pl.reciprocal(denom, approx=True)        # EUP slot, ~free
        else:
            p = p / denom
        o_h = jnp.einsum('bqk,bkd->bqd', p.astype(cdt), v_h,
                         preferred_element_type=jnp.float32)  # (bt, S, dh)
        att = att + jnp.dot(o_h.reshape(bt * S, dh).astype(cdt),
                            wo_ref[h * dh:(h + 1) * dh, :],
                            preferred_element_type=jnp.float32)

    # ---- first residual (out-proj bias added once) ----
    x1 = att + bo_ref[...].astype(jnp.float32) + x

    # ---- second LayerNorm (same gamma/beta, matching the shared nn.LayerNorm) ----
    x1n = layer_norm(x1)

    # ---- MLP: Linear(D, 4D) -> GELU(exact) -> Linear(4D, D) ----
    h1 = jnp.dot(x1n.astype(cdt), w1_ref[...],
                 preferred_element_type=jnp.float32) + b1_ref[...].astype(jnp.float32)
    h1 = 0.5 * h1 * (1.0 + lax.erf(h1 * 0.7071067811865476))
    # (optional vreg relief on v6e/v7x: run the GELU in bf16; kept f32 here.)
    h2 = jnp.dot(h1.astype(cdt), w2_ref[...],
                 preferred_element_type=jnp.float32) + b2_ref[...].astype(jnp.float32)

    # ---- second residual ----
    o_ref[...] = (h2 + x1).reshape(bt, S, D).astype(o_ref.dtype)


# ------------------------------ JAX wrapper ---------------------------------
def prepare_encoder_params(params, compute_dtype=jnp.float32):
    """One-time weight preparation.  Call at parameter-load time, NOT per forward.

    Fuses Q/K/V weights into a single (D, 3D) matrix, normalizes bias shapes to
    (1, N), and casts the big weight matrices to `compute_dtype` (use
    jnp.bfloat16 on v5e/v6e/v7x: the MXU takes bf16 operands on all of them;
    all element-wise math stays f32 in-kernel)."""
    as2d = lambda v: v.reshape(1, -1)
    return {
        "gamma": as2d(params["gamma"]).astype(jnp.float32),
        "beta":  as2d(params["beta"]).astype(jnp.float32),
        "wqkv": jnp.concatenate([params["wq"], params["wk"], params["wv"]],
                                axis=-1).astype(compute_dtype),          # (D, 3D)
        "bqkv": as2d(jnp.concatenate([params["bq"].reshape(-1),
                                      params["bk"].reshape(-1),
                                      params["bv"].reshape(-1)],
                                     axis=-1)).astype(jnp.float32),      # (1, 3D)
        "wo": params["wo"].astype(compute_dtype),
        "bo": as2d(params["bo"]).astype(jnp.float32),
        "w1": params["w1"].astype(compute_dtype),
        "b1": as2d(params["b1"]).astype(jnp.float32),
        "w2": params["w2"].astype(compute_dtype),
        "b2": as2d(params["b2"]).astype(jnp.float32),
    }


def _vmem_budget():
    """(vmem_limit_bytes, target_rows) sized for the local TPU generation."""
    cap = None
    try:
        info = pltpu.get_tpu_info()
        for name in ("vmem_capacity_bytes", "vmem_size_bytes", "vmem_bytes"):
            cap = getattr(info, name, None)
            if cap:
                break
    except Exception:
        cap = None
    if cap is None:
        cap = 64 * 1024 * 1024                 # conservative (v7x-sized) fallback
    if cap >= 96 * 1024 * 1024:                # v5e / v6e: 128 MiB physical VMEM
        return 100 * 1024 * 1024, 1024
    return 56 * 1024 * 1024, 512               # v7x: 64 MiB per TensorCore


def _pick_block_b(batch, seq, target_rows):
    """Largest divisor bt of `batch` with bt*seq <= target_rows, preferring
    choices that leave >= 2 grid steps (so the 'parallel' batch-chunk axis can
    shard across megacore / v7x's two TensorCores).  For realistic ViT configs
    aim for bt*seq >= 256 (v5e) / 512 (v6e, v7x) to keep the MXU M-dim tall."""
    divisors = [d for d in range(1, batch + 1) if batch % d == 0]
    fits = [d for d in divisors if d * seq <= target_rows]
    if not fits:
        return 1
    multi_step = [d for d in fits if batch // d >= 2]
    return max(multi_step) if multi_step else max(fits)


def encoder_block(emb_patches, params, num_heads, *,
                  block_b=None,
                  batch_first=False,
                  vmem_limit_bytes=None,
                  target_rows=None,
                  single_buffer_weights=True):
    """Fused ViT EncoderBlock forward.

    emb_patches: (S, B, D) seq-first like the PyTorch module (default), or
                 (B, S, D) if batch_first=True (skips the two transposes).
                 Passing a bf16 array halves the per-step x/output HBM<->VMEM DMA
                 (LayerNorm math is still f32 in-kernel).
    params: output of prepare_encoder_params() (prepared once at load time).
            Raw per-projection params are accepted and prepared on the fly,
            but that re-materializes weights every call -- avoid in hot loops.
    """
    if "wqkv" not in params:        # allow raw params, but prefer pre-prepared
        params = prepare_encoder_params(params)

    if batch_first:
        x = emb_patches
        B, S, D = x.shape
    else:
        S, B, D = emb_patches.shape
        x = jnp.transpose(emb_patches, (1, 0, 2))            # (B, S, D)
    assert D % num_heads == 0, "latent_size must be divisible by num_heads"
    Dh = 4 * D

    compute_dtype = params["wqkv"].dtype
    approx = compute_dtype != jnp.float32     # exact divide in f32 mode

    default_limit, default_rows = _vmem_budget()
    if vmem_limit_bytes is None:
        vmem_limit_bytes = default_limit
    if target_rows is None:
        target_rows = default_rows

    bt = block_b if block_b is not None else _pick_block_b(B, S, target_rows)
    assert B % bt == 0, "block_b must divide the batch size"

    def _build(single_buffer):
        if single_buffer:
            # Constant index_map -> single-buffer the resident weights/biases
            # (default double-buffering would just double their VMEM footprint).
            const2d = lambda shape: pl.BlockSpec(shape, lambda b: (0, 0),
                                                 pipeline_mode=pl.Buffered(1))
        else:
            const2d = lambda shape: pl.BlockSpec(shape, lambda b: (0, 0))
        return pl.pallas_call(
            functools.partial(_encoder_block_kernel,
                              num_heads=num_heads, approx_softmax=approx),
            out_shape=jax.ShapeDtypeStruct((B, S, D), x.dtype),
            grid_spec=pltpu.PrefetchScalarGridSpec(
                num_scalar_prefetch=0,
                grid=(B // bt,),
                in_specs=[
                    pl.BlockSpec((bt, S, D), lambda b: (b, 0, 0)),   # x (streamed)
                    const2d((1, D)),       # gamma
                    const2d((1, D)),       # beta
                    const2d((D, 3 * D)),   # Wqkv (pre-transposed: x @ W)
                    const2d((1, 3 * D)),   # bqkv
                    const2d((D, D)),       # Wo
                    const2d((1, D)),       # bo
                    const2d((D, Dh)),      # W1
                    const2d((1, Dh)),      # b1
                    const2d((Dh, D)),      # W2
                    const2d((1, D)),       # b2
                ],
                out_specs=pl.BlockSpec((bt, S, D), lambda b: (b, 0, 0)),
                # Single compute-dtype scratch staging scaled-q / k / v.
                scratch_shapes=[pltpu.VMEM((bt, S, 3 * D), compute_dtype)],
            ),
            compiler_params=pltpu.CompilerParams(
                dimension_semantics=("parallel",),
                vmem_limit_bytes=vmem_limit_bytes),
        )

    args = (x,
            params["gamma"], params["beta"],
            params["wqkv"], params["bqkv"],
            params["wo"], params["bo"],
            params["w1"], params["b1"], params["w2"], params["b2"])

    if single_buffer_weights:
        try:
            out = _build(True)(*args)
        except Exception:
            # Older JAX without BlockSpec pipeline_mode / Buffered(1) support:
            # fall back to default (double-buffered) weight blocks.
            out = _build(False)(*args)
    else:
        out = _build(False)(*args)

    return out if batch_first else jnp.transpose(out, (1, 0, 2))   # back to (S, B, D)


# --------------------------- pure-JAX reference ------------------------------
def encoder_block_ref(emb_patches, params, num_heads):
    S, B, D = emb_patches.shape
    dh = D // num_heads
    x = jnp.transpose(emb_patches, (1, 0, 2)).astype(jnp.float32)

    def ln(v):
        mu = jnp.mean(v, axis=-1, keepdims=True)
        var = jnp.mean((v - mu) ** 2, axis=-1, keepdims=True)
        return (v - mu) * lax.rsqrt(var + 1e-5) * params["gamma"] + params["beta"]

    xn = ln(x)
    q = xn @ params["wq"] + params["bq"]
    k = xn @ params["wk"] + params["bk"]
    v = xn @ params["wv"] + params["bv"]
    q = q.reshape(B, S, num_heads, dh).transpose(0, 2, 1, 3)
    k = k.reshape(B, S, num_heads, dh).transpose(0, 2, 1, 3)
    v = v.reshape(B, S, num_heads, dh).transpose(0, 2, 1, 3)
    s = jnp.einsum("bhqd,bhkd->bhqk", q, k) / math.sqrt(dh)
    p = jax.nn.softmax(s, axis=-1)
    att = jnp.einsum("bhqk,bhkd->bhqd", p, v).transpose(0, 2, 1, 3).reshape(B, S, D)
    att = att @ params["wo"] + params["bo"]
    x1 = att + x
    h1 = ln(x1) @ params["w1"] + params["b1"]
    h1 = 0.5 * h1 * (1.0 + lax.erf(h1 * 0.7071067811865476))
    out = h1 @ params["w2"] + params["b2"] + x1
    return jnp.transpose(out, (1, 0, 2))


# --------------------------------- main --------------------------------------
if __name__ == "__main__":
    # Small but lane-friendly config: D multiple of 128, S multiple of 8.
    # (Real ViT configs should target bt*S >= 256-512 rows per grid step.)
    S, B, D, H = 16, 4, 128, 4
    Dh = 4 * D

    key = jax.random.PRNGKey(0)
    ks = jax.random.split(key, 16)
    nrm = lambda k, shape, s=0.05: (s * jax.random.normal(k, shape)).astype(jnp.float32)

    params = {
        "gamma": jnp.ones((1, D), jnp.float32) + nrm(ks[0], (1, D), 0.01),
        "beta":  nrm(ks[1], (1, D), 0.01),
        # projection weights stored pre-transposed so kernel does x @ W
        "wq": nrm(ks[2], (D, D)),  "wk": nrm(ks[3], (D, D)),  "wv": nrm(ks[4], (D, D)),
        "bq": nrm(ks[5], (1, D)),  "bk": nrm(ks[6], (1, D)),  "bv": nrm(ks[7], (1, D)),
        "wo": nrm(ks[8], (D, D)),  "bo": nrm(ks[9], (1, D)),
        "w1": nrm(ks[10], (D, Dh)), "b1": nrm(ks[11], (1, Dh)),
        "w2": nrm(ks[12], (Dh, D)), "b2": nrm(ks[13], (1, D)),
    }

    emb_patches = jax.random.normal(ks[14], (S, B, D), jnp.float32)

    with jax.default_matmul_precision("highest"):
        ref = encoder_block_ref(emb_patches, params, H)

    # Weight prep (QKV fusion + casts) is done ONCE, outside the forward path.
    params_f32 = prepare_encoder_params(params, compute_dtype=jnp.float32)
    params_bf16 = prepare_encoder_params(params, compute_dtype=jnp.bfloat16)

    # f32 compute path (exact softmax divide) — tight check.
    out_f32 = jax.block_until_ready(
        encoder_block(emb_patches, params_f32, H, block_b=2))
    assert out_f32.shape == (S, B, D)
    err_f32 = jnp.max(jnp.abs(out_f32 - ref))
    assert jnp.allclose(out_f32, ref, atol=1e-3, rtol=1e-3), \
        f"f32 max abs err {err_f32}"

    # bf16 MXU-operand path (recommended on v5e/v6e/v7x) — loose check.
    out_bf16 = jax.block_until_ready(
        encoder_block(emb_patches, params_bf16, H, block_b=2))
    err_bf16 = jnp.max(jnp.abs(out_bf16 - ref))
    assert jnp.allclose(out_bf16, ref, atol=5e-2, rtol=5e-2), \
        f"bf16 max abs err {err_bf16}"

    print("KERNEL_OK")
</pallas_src>

<mosaic_0001>
module attributes {stable_mosaic.version = 11 : i64} {
  func.func @_encoder_block_kernel(%arg0: i32, %arg1: memref<2x16x128xf32, #tpu.memory_space<vmem>>, %arg2: memref<1x128xf32, #tpu.memory_space<vmem>>, %arg3: memref<1x128xf32, #tpu.memory_space<vmem>>, %arg4: memref<128x384xf32, #tpu.memory_space<vmem>>, %arg5: memref<1x384xf32, #tpu.memory_space<vmem>>, %arg6: memref<128x128xf32, #tpu.memory_space<vmem>>, %arg7: memref<1x128xf32, #tpu.memory_space<vmem>>, %arg8: memref<128x512xf32, #tpu.memory_space<vmem>>, %arg9: memref<1x512xf32, #tpu.memory_space<vmem>>, %arg10: memref<512x128xf32, #tpu.memory_space<vmem>>, %arg11: memref<1x128xf32, #tpu.memory_space<vmem>>, %arg12: memref<2x16x128xf32, #tpu.memory_space<vmem>>, %arg13: memref<2x16x384xf32, #tpu.memory_space<vmem>>) attributes {dimension_semantics = [#tpu.dimension_semantics<parallel>], iteration_bounds = array<i64: 2>, scalar_prefetch = 0 : i64, scratch_operands = 1 : i64, tpu.core_type = #tpu.core_type<tc>, window_params = [{transform_indices = @transform_0, window_bounds = array<i64: 2, 16, 128>}, {pipeline_mode = #tpu.pipeline_mode<synchronous>, transform_indices = @transform_1, window_bounds = array<i64: 1, 128>}, {pipeline_mode = #tpu.pipeline_mode<synchronous>, transform_indices = @transform_2, window_bounds = array<i64: 1, 128>}, {pipeline_mode = #tpu.pipeline_mode<synchronous>, transform_indices = @transform_3, window_bounds = array<i64: 128, 384>}, {pipeline_mode = #tpu.pipeline_mode<synchronous>, transform_indices = @transform_4, window_bounds = array<i64: 1, 384>}, {pipeline_mode = #tpu.pipeline_mode<synchronous>, transform_indices = @transform_5, window_bounds = array<i64: 128, 128>}, {pipeline_mode = #tpu.pipeline_mode<synchronous>, transform_indices = @transform_6, window_bounds = array<i64: 1, 128>}, {pipeline_mode = #tpu.pipeline_mode<synchronous>, transform_indices = @transform_7, window_bounds = array<i64: 128, 512>}, {pipeline_mode = #tpu.pipeline_mode<synchronous>, transform_indices = @transform_8, window_bounds = array<i64: 1, 512>}, {pipeline_mode = #tpu.pipeline_mode<synchronous>, transform_indices = @transform_9, window_bounds = array<i64: 512, 128>}, {pipeline_mode = #tpu.pipeline_mode<synchronous>, transform_indices = @transform_10, window_bounds = array<i64: 1, 128>}, {transform_indices = @transform_11, window_bounds = array<i64: 2, 16, 128>}]} {
    %c0 = arith.constant 0 : index
    %c0_0 = arith.constant 0 : index
    %c0_1 = arith.constant 0 : index
    %0 = vector.load %arg1[%c0, %c0_0, %c0_1] : memref<2x16x128xf32, #tpu.memory_space<vmem>>, vector<2x16x128xf32>
    %1 = vector.shape_cast %0 : vector<2x16x128xf32> to vector<32x128xf32>
    %c0_2 = arith.constant 0 : index
    %c0_3 = arith.constant 0 : index
    %2 = vector.load %arg2[%c0_2, %c0_3] : memref<1x128xf32, #tpu.memory_space<vmem>>, vector<1x128xf32>
    %c0_4 = arith.constant 0 : index
    %c0_5 = arith.constant 0 : index
    %3 = vector.load %arg3[%c0_4, %c0_5] : memref<1x128xf32, #tpu.memory_space<vmem>>, vector<1x128xf32>
    %cst = arith.constant dense<0.000000e+00> : vector<32xf32>
    %4 = vector.multi_reduction <add>, %1, %cst [1] : vector<32x128xf32> to vector<32xf32>
    %5 = vector.shape_cast %4 : vector<32xf32> to vector<32x1xf32>
    %cst_6 = arith.constant 1.280000e+02 : f32
    %6 = vector.broadcast %cst_6 : f32 to vector<32x1xf32>
    %7 = arith.divf %5, %6 : vector<32x1xf32>
    %8 = vector.broadcast %7 : vector<32x1xf32> to vector<32x128xf32>
    %9 = arith.subf %1, %8 : vector<32x128xf32>
    %10 = vector.broadcast %7 : vector<32x1xf32> to vector<32x128xf32>
    %11 = arith.subf %1, %10 : vector<32x128xf32>
    %12 = arith.mulf %9, %11 : vector<32x128xf32>
    %cst_7 = arith.constant dense<0.000000e+00> : vector<32xf32>
    %13 = vector.multi_reduction <add>, %12, %cst_7 [1] : vector<32x128xf32> to vector<32xf32>
    %14 = vector.shape_cast %13 : vector<32xf32> to vector<32x1xf32>
    %cst_8 = arith.constant 1.280000e+02 : f32
    %15 = vector.broadcast %cst_8 : f32 to vector<32x1xf32>
    %16 = arith.divf %14, %15 : vector<32x1xf32>
    %17 = vector.broadcast %7 : vector<32x1xf32> to vector<32x128xf32>
    %18 = arith.subf %1, %17 : vector<32x128xf32>
    %cst_9 = arith.constant 9.99999974E-6 : f32
    %19 = vector.broadcast %cst_9 : f32 to vector<32x1xf32>
    %20 = arith.addf %16, %19 : vector<32x1xf32>
    %21 = math.rsqrt %20 : vector<32x1xf32>
    %22 = vector.broadcast %21 : vector<32x1xf32> to vector<32x128xf32>
    %23 = arith.mulf %18, %22 : vector<32x128xf32>
    %24 = vector.broadcast %2 : vector<1x128xf32> to vector<32x128xf32>
    %25 = arith.mulf %23, %24 : vector<32x128xf32>
    %26 = vector.broadcast %3 : vector<1x128xf32> to vector<32x128xf32>
    %27 = arith.addf %25, %26 : vector<32x128xf32>
    %c0_10 = arith.constant 0 : index
    %c0_11 = arith.constant 0 : index
    %28 = vector.load %arg4[%c0_10, %c0_11] : memref<128x384xf32, #tpu.memory_space<vmem>>, vector<128x384xf32>
    %cst_12 = arith.constant dense<0.000000e+00> : vector<32x384xf32>
    %29 = tpu.matmul %27, %28, %cst_12 {dimension_numbers = #tpu.dot_dimension_numbers<[1], [0], [0], [1], [0, 0, 1, 1], [], []>} : vector<32x128xf32>, vector<128x384xf32>, vector<32x384xf32> -> vector<32x384xf32>
    %c0_13 = arith.constant 0 : index
    %c0_14 = arith.constant 0 : index
    %30 = vector.load %arg5[%c0_13, %c0_14] : memref<1x384xf32, #tpu.memory_space<vmem>>, vector<1x384xf32>
    %31 = vector.broadcast %30 : vector<1x384xf32> to vector<32x384xf32>
    %32 = arith.addf %29, %31 : vector<32x384xf32>
    %33 = vector.extract_strided_slice %32 {offsets = [0, 0], sizes = [32, 128], strides = [1, 1]} : vector<32x384xf32> to vector<32x128xf32>
    %cst_15 = arith.constant 0.176776692 : f32
    %34 = vector.broadcast %cst_15 : f32 to vector<32x128xf32>
    %35 = arith.mulf %33, %34 : vector<32x128xf32>
    %36 = vector.shape_cast %35 : vector<32x128xf32> to vector<2x16x128xf32>
    %c0_16 = arith.constant 0 : index
    %c0_17 = arith.constant 0 : index
    %c0_18 = arith.constant 0 : index
    %37 = vector.load %arg13[%c0_16, %c0_17, %c0_18] : memref<2x16x384xf32, #tpu.memory_space<vmem>>, vector<2x16x128xf32>
    tpu.vector_store %arg13[%c0_16, %c0_17, %c0_18], %36 {strides = array<i32>} : memref<2x16x384xf32, #tpu.memory_space<vmem>>, vector<2x16x128xf32>,
    %38 = vector.extract_strided_slice %32 {offsets = [0, 128], sizes = [32, 256], strides = [1, 1]} : vector<32x384xf32> to vector<32x256xf32>
    %39 = vector.shape_cast %38 : vector<32x256xf32> to vector<2x16x256xf32>
    %c0_19 = arith.constant 0 : index
    %c0_20 = arith.constant 0 : index
    %c128 = arith.constant 128 : index
    %40 = vector.load %arg13[%c0_19, %c0_20, %c128] : memref<2x16x384xf32, #tpu.memory_space<vmem>>, vector<2x16x256xf32>
    tpu.vector_store %arg13[%c0_19, %c0_20, %c128], %39 {strides = array<i32>} : memref<2x16x384xf32, #tpu.memory_space<vmem>>, vector<2x16x256xf32>,
    %cst_21 = arith.constant 0.000000e+00 : f32
    %41 = vector.broadcast %cst_21 : f32 to vector<32x128xf32>
    %c0_22 = arith.constant 0 : index
    %c0_23 = arith.constant 0 : index
    %c0_24 = arith.constant 0 : index
    %42 = vector.load %arg13[%c0_22, %c0_23, %c0_24] : memref<2x16x384xf32, #tpu.memory_space<vmem>>, vector<2x16x32xf32>
    %c0_25 = arith.constant 0 : index
    %c0_26 = arith.constant 0 : index
    %c128_27 = arith.constant 128 : index
    %43 = vector.load %arg13[%c0_25, %c0_26, %c128_27] : memref<2x16x384xf32, #tpu.memory_space<vmem>>, vector<2x16x32xf32>
    %c0_28 = arith.constant 0 : index
    %c0_29 = arith.constant 0 : index
    %c256 = arith.constant 256 : index
    %44 = vector.load %arg13[%c0_28, %c0_29, %c256] : memref<2x16x384xf32, #tpu.memory_space<vmem>>, vector<2x16x32xf32>
    "tpu.trace_start"() <{level = 10 : i32, message = "bqd,bkd->bqk"}> : () -> ()
    %cst_30 = arith.constant dense<0.000000e+00> : vector<2x16x16xf32>
    %45 = tpu.matmul %42, %43, %cst_30 {dimension_numbers = #tpu.dot_dimension_numbers<[2], [2], [1], [1], [0, 0, 0, 1, 1, 1], [0], [0]>} : vector<2x16x32xf32>, vector<2x16x32xf32>, vector<2x16x16xf32> -> vector<2x16x16xf32>
    "tpu.trace_stop"() : () -> ()
    %cst_31 = arith.constant dense<0xFF800000> : vector<2x16xf32>
    %46 = vector.multi_reduction <maximumf>, %45, %cst_31 [2] : vector<2x16x16xf32> to vector<2x16xf32>
    %47 = vector.shape_cast %46 : vector<2x16xf32> to vector<2x16x1xf32>
    %48 = vector.broadcast %47 : vector<2x16x1xf32> to vector<2x16x16xf32>
    %49 = arith.subf %45, %48 : vector<2x16x16xf32>
    %50 = math.exp %49 : vector<2x16x16xf32>
    %cst_32 = arith.constant dense<0.000000e+00> : vector<2x16xf32>
    %51 = vector.multi_reduction <add>, %50, %cst_32 [2] : vector<2x16x16xf32> to vector<2x16xf32>
    %52 = vector.shape_cast %51 : vector<2x16xf32> to vector<2x16x1xf32>
    %53 = vector.broadcast %52 : vector<2x16x1xf32> to vector<2x16x16xf32>
    %54 = arith.divf %50, %53 : vector<2x16x16xf32>
    "tpu.trace_start"() <{level = 10 : i32, message = "bqk,bkd->bqd"}> : () -> ()
    %cst_33 = arith.constant dense<0.000000e+00> : vector<2x16x32xf32>
    %55 = tpu.matmul %54, %44, %cst_33 {dimension_numbers = #tpu.dot_dimension_numbers<[2], [1], [1], [2], [0, 0, 0, 1, 1, 2], [0], [0]>} : vector<2x16x16xf32>, vector<2x16x32xf32>, vector<2x16x32xf32> -> vector<2x16x32xf32>
    "tpu.trace_stop"() : () -> ()
    %56 = vector.shape_cast %55 : vector<2x16x32xf32> to vector<32x32xf32>
    %c0_34 = arith.constant 0 : index
    %c0_35 = arith.constant 0 : index
    %57 = vector.load %arg6[%c0_34, %c0_35] : memref<128x128xf32, #tpu.memory_space<vmem>>, vector<32x128xf32>
    %cst_36 = arith.constant dense<0.000000e+00> : vector<32x128xf32>
    %58 = tpu.matmul %56, %57, %cst_36 {dimension_numbers = #tpu.dot_dimension_numbers<[1], [0], [0], [1], [0, 0, 1, 1], [], []>} : vector<32x32xf32>, vector<32x128xf32>, vector<32x128xf32> -> vector<32x128xf32>
    %59 = arith.addf %41, %58 : vector<32x128xf32>
    %c0_37 = arith.constant 0 : index
    %c0_38 = arith.constant 0 : index
    %c32 = arith.constant 32 : index
    %60 = vector.load %arg13[%c0_37, %c0_38, %c32] : memref<2x16x384xf32, #tpu.memory_space<vmem>>, vector<2x16x32xf32>
    %c0_39 = arith.constant 0 : index
    %c0_40 = arith.constant 0 : index
    %c160 = arith.constant 160 : index
    %61 = vector.load %arg13[%c0_39, %c0_40, %c160] : memref<2x16x384xf32, #tpu.memory_space<vmem>>, vector<2x16x32xf32>
    %c0_41 = arith.constant 0 : index
    %c0_42 = arith.constant 0 : index
    %c288 = arith.constant 288 : index
    %62 = vector.load %arg13[%c0_41, %c0_42, %c288] : memref<2x16x384xf32, #tpu.memory_space<vmem>>, vector<2x16x32xf32>
    "tpu.trace_start"() <{level = 10 : i32, message = "bqd,bkd->bqk"}> : () -> ()
    %cst_43 = arith.constant dense<0.000000e+00> : vector<2x16x16xf32>
    %63 = tpu.matmul %60, %61, %cst_43 {dimension_numbers = #tpu.dot_dimension_numbers<[2], [2], [1], [1], [0, 0, 0, 1, 1, 1], [0], [0]>} : vector<2x16x32xf32>, vector<2x16x32xf32>, vector<2x16x16xf32> -> vector<2x16x16xf32>
    "tpu.trace_stop"() : () -> ()
    %cst_44 = arith.constant dense<0xFF800000> : vector<2x16xf32>
    %64 = vector.multi_reduction <maximumf>, %63, %cst_44 [2] : vector<2x16x16xf32> to vector<2x16xf32>
    %65 = vector.shape_cast %64 : vector<2x16xf32> to vector<2x16x1xf32>
    %66 = vector.broadcast %65 : vector<2x16x1xf32> to vector<2x16x16xf32>
    %67 = arith.subf %63, %66 : vector<2x16x16xf32>
    %68 = math.exp %67 : vector<2x16x16xf32>
    %cst_45 = arith.constant dense<0.000000e+00> : vector<2x16xf32>
    %69 = vector.multi_reduction <add>, %68, %cst_45 [2] : vector<2x16x16xf32> to vector<2x16xf32>
    %70 = vector.shape_cast %69 : vector<2x16xf32> to vector<2x16x1xf32>
    %71 = vector.broadcast %70 : vector<2x16x1xf32> to vector<2x16x16xf32>
    %72 = arith.divf %68, %71 : vector<2x16x16xf32>
    "tpu.trace_start"() <{level = 10 : i32, message = "bqk,bkd->bqd"}> : () -> ()
    %cst_46 = arith.constant dense<0.000000e+00> : vector<2x16x32xf32>
    %73 = tpu.matmul %72, %62, %cst_46 {dimension_numbers = #tpu.dot_dimension_numbers<[2], [1], [1], [2], [0, 0, 0, 1, 1, 2], [0], [0]>} : vector<2x16x16xf32>, vector<2x16x32xf32>, vector<2x16x32xf32> -> vector<2x16x32xf32>
    "tpu.trace_stop"() : () -> ()
    %74 = vector.shape_cast %73 : vector<2x16x32xf32> to vector<32x32xf32>
    %c32_47 = arith.constant 32 : index
    %c0_48 = arith.constant 0 : index
    %75 = vector.load %arg6[%c32_47, %c0_48] : memref<128x128xf32, #tpu.memory_space<vmem>>, vector<32x128xf32>
    %cst_49 = arith.constant dense<0.000000e+00> : vector<32x128xf32>
    %76 = tpu.matmul %74, %75, %cst_49 {dimension_numbers = #tpu.dot_dimension_numbers<[1], [0], [0], [1], [0, 0, 1, 1], [], []>} : vector<32x32xf32>, vector<32x128xf32>, vector<32x128xf32> -> vector<32x128xf32>
    %77 = arith.addf %59, %76 : vector<32x128xf32>
    %c0_50 = arith.constant 0 : index
    %c0_51 = arith.constant 0 : index
    %c64 = arith.constant 64 : index
    %78 = vector.load %arg13[%c0_50, %c0_51, %c64] : memref<2x16x384xf32, #tpu.memory_space<vmem>>, vector<2x16x32xf32>
    %c0_52 = arith.constant 0 : index
    %c0_53 = arith.constant 0 : index
    %c192 = arith.constant 192 : index
    %79 = vector.load %arg13[%c0_52, %c0_53, %c192] : memref<2x16x384xf32, #tpu.memory_space<vmem>>, vector<2x16x32xf32>
    %c0_54 = arith.constant 0 : index
    %c0_55 = arith.constant 0 : index
    %c320 = arith.constant 320 : index
    %80 = vector.load %arg13[%c0_54, %c0_55, %c320] : memref<2x16x384xf32, #tpu.memory_space<vmem>>, vector<2x16x32xf32>
    "tpu.trace_start"() <{level = 10 : i32, message = "bqd,bkd->bqk"}> : () -> ()
    %cst_56 = arith.constant dense<0.000000e+00> : vector<2x16x16xf32>
    %81 = tpu.matmul %78, %79, %cst_56 {dimension_numbers = #tpu.dot_dimension_numbers<[2], [2], [1], [1], [0, 0, 0, 1, 1, 1], [0], [0]>} : vector<2x16x32xf32>, vector<2x16x32xf32>, vector<2x16x16xf32> -> vector<2x16x16xf32>
    "tpu.trace_stop"() : () -> ()
    %cst_57 = arith.constant dense<0xFF800000> : vector<2x16xf32>
    %82 = vector.multi_reduction <maximumf>, %81, %cst_57 [2] : vector<2x16x16xf32> to vector<2x16xf32>
    %83 = vector.shape_cast %82 : vector<2x16xf32> to vector<2x16x1xf32>
    %84 = vector.broadcast %83 : vector<2x16x1xf32> to vector<2x16x16xf32>
    %85 = arith.subf %81, %84 : vector<2x16x16xf32>
    %86 = math.exp %85 : vector<2x16x16xf32>
    %cst_58 = arith.constant dense<0.000000e+00> : vector<2x16xf32>
    %87 = vector.multi_reduction <add>, %86, %cst_58 [2] : vector<2x16x16xf32> to vector<2x16xf32>
    %88 = vector.shape_cast %87 : vector<2x16xf32> to vector<2x16x1xf32>
    %89 = vector.broadcast %88 : vector<2x16x1xf32> to vector<2x16x16xf32>
    %90 = arith.divf %86, %89 : vector<2x16x16xf32>
    "tpu.trace_start"() <{level = 10 : i32, message = "bqk,bkd->bqd"}> : () -> ()
    %cst_59 = arith.constant dense<0.000000e+00> : vector<2x16x32xf32>
    %91 = tpu.matmul %90, %80, %cst_59 {dimension_numbers = #tpu.dot_dimension_numbers<[2], [1], [1], [2], [0, 0, 0, 1, 1, 2], [0], [0]>} : vector<2x16x16xf32>, vector<2x16x32xf32>, vector<2x16x32xf32> -> vector<2x16x32xf32>
    "tpu.trace_stop"() : () -> ()
    %92 = vector.shape_cast %91 : vector<2x16x32xf32> to vector<32x32xf32>
    %c64_60 = arith.constant 64 : index
    %c0_61 = arith.constant 0 : index
    %93 = vector.load %arg6[%c64_60, %c0_61] : memref<128x128xf32, #tpu.memory_space<vmem>>, vector<32x128xf32>
    %cst_62 = arith.constant dense<0.000000e+00> : vector<32x128xf32>
    %94 = tpu.matmul %92, %93, %cst_62 {dimension_numbers = #tpu.dot_dimension_numbers<[1], [0], [0], [1], [0, 0, 1, 1], [], []>} : vector<32x32xf32>, vector<32x128xf32>, vector<32x128xf32> -> vector<32x128xf32>
    %95 = arith.addf %77, %94 : vector<32x128xf32>
    %c0_63 = arith.constant 0 : index
    %c0_64 = arith.constant 0 : index
    %c96 = arith.constant 96 : index
    %96 = vector.load %arg13[%c0_63, %c0_64, %c96] : memref<2x16x384xf32, #tpu.memory_space<vmem>>, vector<2x16x32xf32>
    %c0_65 = arith.constant 0 : index
    %c0_66 = arith.constant 0 : index
    %c224 = arith.constant 224 : index
    %97 = vector.load %arg13[%c0_65, %c0_66, %c224] : memref<2x16x384xf32, #tpu.memory_space<vmem>>, vector<2x16x32xf32>
    %c0_67 = arith.constant 0 : index
    %c0_68 = arith.constant 0 : index
    %c352 = arith.constant 352 : index
    %98 = vector.load %arg13[%c0_67, %c0_68, %c352] : memref<2x16x384xf32, #tpu.memory_space<vmem>>, vector<2x16x32xf32>
    "tpu.trace_start"() <{level = 10 : i32, message = "bqd,bkd->bqk"}> : () -> ()
    %cst_69 = arith.constant dense<0.000000e+00> : vector<2x16x16xf32>
    %99 = tpu.matmul %96, %97, %cst_69 {dimension_numbers = #tpu.dot_dimension_numbers<[2], [2], [1], [1], [0, 0, 0, 1, 1, 1], [0], [0]>} : vector<2x16x32xf32>, vector<2x16x32xf32>, vector<2x16x16xf32> -> vector<2x16x16xf32>
    "tpu.trace_stop"() : () -> ()
    %cst_70 = arith.constant dense<0xFF800000> : vector<2x16xf32>
    %100 = vector.multi_reduction <maximumf>, %99, %cst_70 [2] : vector<2x16x16xf32> to vector<2x16xf32>
    %101 = vector.shape_cast %100 : vector<2x16xf32> to vector<2x16x1xf32>
    %102 = vector.broadcast %101 : vector<2x16x1xf32> to vector<2x16x16xf32>
    %103 = arith.subf %99, %102 : vector<2x16x16xf32>
    %104 = math.exp %103 : vector<2x16x16xf32>
    %cst_71 = arith.constant dense<0.000000e+00> : vector<2x16xf32>
    %105 = vector.multi_reduction <add>, %104, %cst_71 [2] : vector<2x16x16xf32> to vector<2x16xf32>
    %106 = vector.shape_cast %105 : vector<2x16xf32> to vector<2x16x1xf32>
    %107 = vector.broadcast %106 : vector<2x16x1xf32> to vector<2x16x16xf32>
    %108 = arith.divf %104, %107 : vector<2x16x16xf32>
    "tpu.trace_start"() <{level = 10 : i32, message = "bqk,bkd->bqd"}> : () -> ()
    %cst_72 = arith.constant dense<0.000000e+00> : vector<2x16x32xf32>
    %109 = tpu.matmul %108, %98, %cst_72 {dimension_numbers = #tpu.dot_dimension_numbers<[2], [1], [1], [2], [0, 0, 0, 1, 1, 2], [0], [0]>} : vector<2x16x16xf32>, vector<2x16x32xf32>, vector<2x16x32xf32> -> vector<2x16x32xf32>
    "tpu.trace_stop"() : () -> ()
    %110 = vector.shape_cast %109 : vector<2x16x32xf32> to vector<32x32xf32>
    %c96_73 = arith.constant 96 : index
    %c0_74 = arith.constant 0 : index
    %111 = vector.load %arg6[%c96_73, %c0_74] : memref<128x128xf32, #tpu.memory_space<vmem>>, vector<32x128xf32>
    %cst_75 = arith.constant dense<0.000000e+00> : vector<32x128xf32>
    %112 = tpu.matmul %110, %111, %cst_75 {dimension_numbers = #tpu.dot_dimension_numbers<[1], [0], [0], [1], [0, 0, 1, 1], [], []>} : vector<32x32xf32>, vector<32x128xf32>, vector<32x128xf32> -> vector<32x128xf32>
    %113 = arith.addf %95, %112 : vector<32x128xf32>
    %c0_76 = arith.constant 0 : index
    %c0_77 = arith.constant 0 : index
    %114 = vector.load %arg7[%c0_76, %c0_77] : memref<1x128xf32, #tpu.memory_space<vmem>>, vector<1x128xf32>
    %115 = vector.broadcast %114 : vector<1x128xf32> to vector<32x128xf32>
    %116 = arith.addf %113, %115 : vector<32x128xf32>
    %117 = arith.addf %116, %1 : vector<32x128xf32>
    %cst_78 = arith.constant dense<0.000000e+00> : vector<32xf32>
    %118 = vector.multi_reduction <add>, %117, %cst_78 [1] : vector<32x128xf32> to vector<32xf32>
    %119 = vector.shape_cast %118 : vector<32xf32> to vector<32x1xf32>
    %cst_79 = arith.constant 1.280000e+02 : f32
    %120 = vector.broadcast %cst_79 : f32 to vector<32x1xf32>
    %121 = arith.divf %119, %120 : vector<32x1xf32>
    %122 = vector.broadcast %121 : vector<32x1xf32> to vector<32x128xf32>
    %123 = arith.subf %117, %122 : vector<32x128xf32>
    %124 = vector.broadcast %121 : vector<32x1xf32> to vector<32x128xf32>
    %125 = arith.subf %117, %124 : vector<32x128xf32>
    %126 = arith.mulf %123, %125 : vector<32x128xf32>
    %cst_80 = arith.constant dense<0.000000e+00> : vector<32xf32>
    %127 = vector.multi_reduction <add>, %126, %cst_80 [1] : vector<32x128xf32> to vector<32xf32>
    %128 = vector.shape_cast %127 : vector<32xf32> to vector<32x1xf32>
    %cst_81 = arith.constant 1.280000e+02 : f32
    %129 = vector.broadcast %cst_81 : f32 to vector<32x1xf32>
    %130 = arith.divf %128, %129 : vector<32x1xf32>
    %131 = vector.broadcast %121 : vector<32x1xf32> to vector<32x128xf32>
    %132 = arith.subf %117, %131 : vector<32x128xf32>
    %cst_82 = arith.constant 9.99999974E-6 : f32
    %133 = vector.broadcast %cst_82 : f32 to vector<32x1xf32>
    %134 = arith.addf %130, %133 : vector<32x1xf32>
    %135 = math.rsqrt %134 : vector<32x1xf32>
    %136 = vector.broadcast %135 : vector<32x1xf32> to vector<32x128xf32>
    %137 = arith.mulf %132, %136 : vector<32x128xf32>
    %138 = vector.broadcast %2 : vector<1x128xf32> to vector<32x128xf32>
    %139 = arith.mulf %137, %138 : vector<32x128xf32>
    %140 = vector.broadcast %3 : vector<1x128xf32> to vector<32x128xf32>
    %141 = arith.addf %139, %140 : vector<32x128xf32>
    %c0_83 = arith.constant 0 : index
    %c0_84 = arith.constant 0 : index
    %142 = vector.load %arg8[%c0_83, %c0_84] : memref<128x512xf32, #tpu.memory_space<vmem>>, vector<128x512xf32>
    %cst_85 = arith.constant dense<0.000000e+00> : vector<32x512xf32>
    %143 = tpu.matmul %141, %142, %cst_85 {dimension_numbers = #tpu.dot_dimension_numbers<[1], [0], [0], [1], [0, 0, 1, 1], [], []>} : vector<32x128xf32>, vector<128x512xf32>, vector<32x512xf32> -> vector<32x512xf32>
    %c0_86 = arith.constant 0 : index
    %c0_87 = arith.constant 0 : index
    %144 = vector.load %arg9[%c0_86, %c0_87] : memref<1x512xf32, #tpu.memory_space<vmem>>, vector<1x512xf32>
    %145 = vector.broadcast %144 : vector<1x512xf32> to vector<32x512xf32>
    %146 = arith.addf %143, %145 : vector<32x512xf32>
    %cst_88 = arith.constant 5.000000e-01 : f32
    %147 = vector.broadcast %cst_88 : f32 to vector<32x512xf32>
    %148 = arith.mulf %147, %146 : vector<32x512xf32>
    %cst_89 = arith.constant 0.707106769 : f32
    %149 = vector.broadcast %cst_89 : f32 to vector<32x512xf32>
    %150 = arith.mulf %146, %149 : vector<32x512xf32>
    %151 = math.erf %150 : vector<32x512xf32>
    %cst_90 = arith.constant 1.000000e+00 : f32
    %152 = vector.broadcast %cst_90 : f32 to vector<32x512xf32>
    %153 = arith.addf %152, %151 : vector<32x512xf32>
    %154 = arith.mulf %148, %153 : vector<32x512xf32>
    %c0_91 = arith.constant 0 : index
    %c0_92 = arith.constant 0 : index
    %155 = vector.load %arg10[%c0_91, %c0_92] : memref<512x128xf32, #tpu.memory_space<vmem>>, vector<512x128xf32>
    %cst_93 = arith.constant dense<0.000000e+00> : vector<32x128xf32>
    %156 = tpu.matmul %154, %155, %cst_93 {dimension_numbers = #tpu.dot_dimension_numbers<[1], [0], [0], [1], [0, 0, 1, 1], [], []>} : vector<32x512xf32>, vector<512x128xf32>, vector<32x128xf32> -> vector<32x128xf32>
    %c0_94 = arith.constant 0 : index
    %c0_95 = arith.constant 0 : index
    %157 = vector.load %arg11[%c0_94, %c0_95] : memref<1x128xf32, #tpu.memory_space<vmem>>, vector<1x128xf32>
    %158 = vector.broadcast %157 : vector<1x128xf32> to vector<32x128xf32>
    %159 = arith.addf %156, %158 : vector<32x128xf32>
    %160 = arith.addf %159, %117 : vector<32x128xf32>
    %161 = vector.shape_cast %160 : vector<32x128xf32> to vector<2x16x128xf32>
    %c0_96 = arith.constant 0 : index
    %c0_97 = arith.constant 0 : index
    %c0_98 = arith.constant 0 : index
    %162 = vector.load %arg12[%c0_96, %c0_97, %c0_98] : memref<2x16x128xf32, #tpu.memory_space<vmem>>, vector<2x16x128xf32>
    tpu.vector_store %arg12[%c0_96, %c0_97, %c0_98], %161 {strides = array<i32>} : memref<2x16x128xf32, #tpu.memory_space<vmem>>, vector<2x16x128xf32>,
    return
  }
  func.func @transform_0(%arg0: i32) -> (i32, i32, i32) {
    %c0_i32 = arith.constant 0 : i32
    %c0_i32_0 = arith.constant 0 : i32
    %c0_i32_1 = arith.constant 0 : i32
    return %arg0, %c0_i32, %c0_i32_0 : i32, i32, i32
  }
  func.func @transform_1(%arg0: i32) -> (i32, i32) {
    %c0_i32 = arith.constant 0 : i32
    %c0_i32_0 = arith.constant 0 : i32
    %c0_i32_1 = arith.constant 0 : i32
    return %c0_i32, %c0_i32_0 : i32, i32
  }
  func.func @transform_2(%arg0: i32) -> (i32, i32) {
    %c0_i32 = arith.constant 0 : i32
    %c0_i32_0 = arith.constant 0 : i32
    %c0_i32_1 = arith.constant 0 : i32
    return %c0_i32, %c0_i32_0 : i32, i32
  }
  func.func @transform_3(%arg0: i32) -> (i32, i32) {
    %c0_i32 = arith.constant 0 : i32
    %c0_i32_0 = arith.constant 0 : i32
    %c0_i32_1 = arith.constant 0 : i32
    return %c0_i32, %c0_i32_0 : i32, i32
  }
  func.func @transform_4(%arg0: i32) -> (i32, i32) {
    %c0_i32 = arith.constant 0 : i32
    %c0_i32_0 = arith.constant 0 : i32
    %c0_i32_1 = arith.constant 0 : i32
    return %c0_i32, %c0_i32_0 : i32, i32
  }
  func.func @transform_5(%arg0: i32) -> (i32, i32) {
    %c0_i32 = arith.constant 0 : i32
    %c0_i32_0 = arith.constant 0 : i32
    %c0_i32_1 = arith.constant 0 : i32
    return %c0_i32, %c0_i32_0 : i32, i32
  }
  func.func @transform_6(%arg0: i32) -> (i32, i32) {
    %c0_i32 = arith.constant 0 : i32
    %c0_i32_0 = arith.constant 0 : i32
    %c0_i32_1 = arith.constant 0 : i32
    return %c0_i32, %c0_i32_0 : i32, i32
  }
  func.func @transform_7(%arg0: i32) -> (i32, i32) {
    %c0_i32 = arith.constant 0 : i32
    %c0_i32_0 = arith.constant 0 : i32
    %c0_i32_1 = arith.constant 0 : i32
    return %c0_i32, %c0_i32_0 : i32, i32
  }
  func.func @transform_8(%arg0: i32) -> (i32, i32) {
    %c0_i32 = arith.constant 0 : i32
    %c0_i32_0 = arith.constant 0 : i32
    %c0_i32_1 = arith.constant 0 : i32
    return %c0_i32, %c0_i32_0 : i32, i32
  }
  func.func @transform_9(%arg0: i32) -> (i32, i32) {
    %c0_i32 = arith.constant 0 : i32
    %c0_i32_0 = arith.constant 0 : i32
    %c0_i32_1 = arith.constant 0 : i32
    return %c0_i32, %c0_i32_0 : i32, i32
  }
  func.func @transform_10(%arg0: i32) -> (i32, i32) {
    %c0_i32 = arith.constant 0 : i32
    %c0_i32_0 = arith.constant 0 : i32
    %c0_i32_1 = arith.constant 0 : i32
    return %c0_i32, %c0_i32_0 : i32, i32
  }
  func.func @transform_11(%arg0: i32) -> (i32, i32, i32) {
    %c0_i32 = arith.constant 0 : i32
    %c0_i32_0 = arith.constant 0 : i32
    %c0_i32_1 = arith.constant 0 : i32
    return %arg0, %c0_i32, %c0_i32_0 : i32, i32, i32
  }
}

module attributes {stable_mosaic.version = 11 : i64} {
  func.func @_encoder_block_kernel(%arg0: i32, %arg1: memref<2x16x128xf32, #tpu.memory_space<vmem>>, %arg2: memref<1x128xf32, #tpu.memory_space<vmem>>, %arg3: memref<1x128xf32, #tpu.memory_space<vmem>>, %arg4: memref<128x384xf32, #tpu.memory_space<vmem>>, %arg5: memref<1x384xf32, #tpu.memory_space<vmem>>, %arg6: memref<128x128xf32, #tpu.memory_space<vmem>>, %arg7: memref<1x128xf32, #tpu.memory_space<vmem>>, %arg8: memref<128x512xf32, #tpu.memory_space<vmem>>, %arg9: memref<1x512xf32, #tpu.memory_space<vmem>>, %arg10: memref<512x128xf32, #tpu.memory_space<vmem>>, %arg11: memref<1x128xf32, #tpu.memory_space<vmem>>, %arg12: memref<2x16x128xf32, #tpu.memory_space<vmem>>, %arg13: memref<2x16x384xf32, #tpu.memory_space<vmem>>) attributes {dimension_semantics = [#tpu.dimension_semantics<parallel>], iteration_bounds = array<i64: 2>, scalar_prefetch = 0 : i64, scratch_operands = 1 : i64, tpu.core_type = #tpu.core_type<tc>, window_params = [{transform_indices = @transform_0, window_bounds = array<i64: 2, 16, 128>}, {pipeline_mode = #tpu.pipeline_mode<synchronous>, transform_indices = @transform_1, window_bounds = array<i64: 1, 128>}, {pipeline_mode = #tpu.pipeline_mode<synchronous>, transform_indices = @transform_2, window_bounds = array<i64: 1, 128>}, {pipeline_mode = #tpu.pipeline_mode<synchronous>, transform_indices = @transform_3, window_bounds = array<i64: 128, 384>}, {pipeline_mode = #tpu.pipeline_mode<synchronous>, transform_indices = @transform_4, window_bounds = array<i64: 1, 384>}, {pipeline_mode = #tpu.pipeline_mode<synchronous>, transform_indices = @transform_5, window_bounds = array<i64: 128, 128>}, {pipeline_mode = #tpu.pipeline_mode<synchronous>, transform_indices = @transform_6, window_bounds = array<i64: 1, 128>}, {pipeline_mode = #tpu.pipeline_mode<synchronous>, transform_indices = @transform_7, window_bounds = array<i64: 128, 512>}, {pipeline_mode = #tpu.pipeline_mode<synchronous>, transform_indices = @transform_8, window_bounds = array<i64: 1, 512>}, {pipeline_mode = #tpu.pipeline_mode<synchronous>, transform_indices = @transform_9, window_bounds = array<i64: 512, 128>}, {pipeline_mode = #tpu.pipeline_mode<synchronous>, transform_indices = @transform_10, window_bounds = array<i64: 1, 128>}, {transform_indices = @transform_11, window_bounds = array<i64: 2, 16, 128>}]} {
    %c0 = arith.constant 0 : index
    %c0_0 = arith.constant 0 : index
    %c0_1 = arith.constant 0 : index
    %0 = vector.load %arg1[%c0, %c0_0, %c0_1] : memref<2x16x128xf32, #tpu.memory_space<vmem>>, vector<2x16x128xf32>
    %1 = vector.shape_cast %0 : vector<2x16x128xf32> to vector<32x128xf32>
    %c0_2 = arith.constant 0 : index
    %c0_3 = arith.constant 0 : index
    %2 = vector.load %arg2[%c0_2, %c0_3] : memref<1x128xf32, #tpu.memory_space<vmem>>, vector<1x128xf32>
    %c0_4 = arith.constant 0 : index
    %c0_5 = arith.constant 0 : index
    %3 = vector.load %arg3[%c0_4, %c0_5] : memref<1x128xf32, #tpu.memory_space<vmem>>, vector<1x128xf32>
    %cst = arith.constant dense<0.000000e+00> : vector<32xf32>
    %4 = vector.multi_reduction <add>, %1, %cst [1] : vector<32x128xf32> to vector<32xf32>
    %5 = vector.shape_cast %4 : vector<32xf32> to vector<32x1xf32>
    %cst_6 = arith.constant 1.280000e+02 : f32
    %6 = vector.broadcast %cst_6 : f32 to vector<32x1xf32>
    %7 = arith.divf %5, %6 : vector<32x1xf32>
    %8 = vector.broadcast %7 : vector<32x1xf32> to vector<32x128xf32>
    %9 = arith.subf %1, %8 : vector<32x128xf32>
    %10 = vector.broadcast %7 : vector<32x1xf32> to vector<32x128xf32>
    %11 = arith.subf %1, %10 : vector<32x128xf32>
    %12 = arith.mulf %9, %11 : vector<32x128xf32>
    %cst_7 = arith.constant dense<0.000000e+00> : vector<32xf32>
    %13 = vector.multi_reduction <add>, %12, %cst_7 [1] : vector<32x128xf32> to vector<32xf32>
    %14 = vector.shape_cast %13 : vector<32xf32> to vector<32x1xf32>
    %cst_8 = arith.constant 1.280000e+02 : f32
    %15 = vector.broadcast %cst_8 : f32 to vector<32x1xf32>
    %16 = arith.divf %14, %15 : vector<32x1xf32>
    %17 = vector.broadcast %7 : vector<32x1xf32> to vector<32x128xf32>
    %18 = arith.subf %1, %17 : vector<32x128xf32>
    %cst_9 = arith.constant 9.99999974E-6 : f32
    %19 = vector.broadcast %cst_9 : f32 to vector<32x1xf32>
    %20 = arith.addf %16, %19 : vector<32x1xf32>
    %21 = math.rsqrt %20 : vector<32x1xf32>
    %22 = vector.broadcast %21 : vector<32x1xf32> to vector<32x128xf32>
    %23 = arith.mulf %18, %22 : vector<32x128xf32>
    %24 = vector.broadcast %2 : vector<1x128xf32> to vector<32x128xf32>
    %25 = arith.mulf %23, %24 : vector<32x128xf32>
    %26 = vector.broadcast %3 : vector<1x128xf32> to vector<32x128xf32>
    %27 = arith.addf %25, %26 : vector<32x128xf32>
    %c0_10 = arith.constant 0 : index
    %c0_11 = arith.constant 0 : index
    %28 = vector.load %arg4[%c0_10, %c0_11] : memref<128x384xf32, #tpu.memory_space<vmem>>, vector<128x384xf32>
    %cst_12 = arith.constant dense<0.000000e+00> : vector<32x384xf32>
    %29 = tpu.matmul %27, %28, %cst_12 {dimension_numbers = #tpu.dot_dimension_numbers<[1], [0], [0], [1], [0, 0, 1, 1], [], []>} : vector<32x128xf32>, vector<128x384xf32>, vector<32x384xf32> -> vector<32x384xf32>
    %c0_13 = arith.constant 0 : index
    %c0_14 = arith.constant 0 : index
    %30 = vector.load %arg5[%c0_13, %c0_14] : memref<1x384xf32, #tpu.memory_space<vmem>>, vector<1x384xf32>
    %31 = vector.broadcast %30 : vector<1x384xf32> to vector<32x384xf32>
    %32 = arith.addf %29, %31 : vector<32x384xf32>
    %33 = vector.extract_strided_slice %32 {offsets = [0, 0], sizes = [32, 128], strides = [1, 1]} : vector<32x384xf32> to vector<32x128xf32>
    %cst_15 = arith.constant 0.176776692 : f32
    %34 = vector.broadcast %cst_15 : f32 to vector<32x128xf32>
    %35 = arith.mulf %33, %34 : vector<32x128xf32>
    %36 = vector.shape_cast %35 : vector<32x128xf32> to vector<2x16x128xf32>
    %c0_16 = arith.constant 0 : index
    %c0_17 = arith.constant 0 : index
    %c0_18 = arith.constant 0 : index
    %37 = vector.load %arg13[%c0_16, %c0_17, %c0_18] : memref<2x16x384xf32, #tpu.memory_space<vmem>>, vector<2x16x128xf32>
    tpu.vector_store %arg13[%c0_16, %c0_17, %c0_18], %36 {strides = array<i32>} : memref<2x16x384xf32, #tpu.memory_space<vmem>>, vector<2x16x128xf32>,
    %38 = vector.extract_strided_slice %32 {offsets = [0, 128], sizes = [32, 256], strides = [1, 1]} : vector<32x384xf32> to vector<32x256xf32>
    %39 = vector.shape_cast %38 : vector<32x256xf32> to vector<2x16x256xf32>
    %c0_19 = arith.constant 0 : index
    %c0_20 = arith.constant 0 : index
    %c128 = arith.constant 128 : index
    %40 = vector.load %arg13[%c0_19, %c0_20, %c128] : memref<2x16x384xf32, #tpu.memory_space<vmem>>, vector<2x16x256xf32>
    tpu.vector_store %arg13[%c0_19, %c0_20, %c128], %39 {strides = array<i32>} : memref<2x16x384xf32, #tpu.memory_space<vmem>>, vector<2x16x256xf32>,
    %cst_21 = arith.constant 0.000000e+00 : f32
    %41 = vector.broadcast %cst_21 : f32 to vector<32x128xf32>
    %c0_22 = arith.constant 0 : index
    %c0_23 = arith.constant 0 : index
    %c0_24 = arith.constant 0 : index
    %42 = vector.load %arg13[%c0_22, %c0_23, %c0_24] : memref<2x16x384xf32, #tpu.memory_space<vmem>>, vector<2x16x32xf32>
    %c0_25 = arith.constant 0 : index
    %c0_26 = arith.constant 0 : index
    %c128_27 = arith.constant 128 : index
    %43 = vector.load %arg13[%c0_25, %c0_26, %c128_27] : memref<2x16x384xf32, #tpu.memory_space<vmem>>, vector<2x16x32xf32>
    %c0_28 = arith.constant 0 : index
    %c0_29 = arith.constant 0 : index
    %c256 = arith.constant 256 : index
    %44 = vector.load %arg13[%c0_28, %c0_29, %c256] : memref<2x16x384xf32, #tpu.memory_space<vmem>>, vector<2x16x32xf32>
    "tpu.trace_start"() <{level = 10 : i32, message = "bqd,bkd->bqk"}> : () -> ()
    %cst_30 = arith.constant dense<0.000000e+00> : vector<2x16x16xf32>
    %45 = tpu.matmul %42, %43, %cst_30 {dimension_numbers = #tpu.dot_dimension_numbers<[2], [2], [1], [1], [0, 0, 0, 1, 1, 1], [0], [0]>} : vector<2x16x32xf32>, vector<2x16x32xf32>, vector<2x16x16xf32> -> vector<2x16x16xf32>
    "tpu.trace_stop"() : () -> ()
    %cst_31 = arith.constant dense<0xFF800000> : vector<2x16xf32>
    %46 = vector.multi_reduction <maximumf>, %45, %cst_31 [2] : vector<2x16x16xf32> to vector<2x16xf32>
    %47 = vector.shape_cast %46 : vector<2x16xf32> to vector<2x16x1xf32>
    %48 = vector.broadcast %47 : vector<2x16x1xf32> to vector<2x16x16xf32>
    %49 = arith.subf %45, %48 : vector<2x16x16xf32>
    %50 = math.exp %49 : vector<2x16x16xf32>
    %cst_32 = arith.constant dense<0.000000e+00> : vector<2x16xf32>
    %51 = vector.multi_reduction <add>, %50, %cst_32 [2] : vector<2x16x16xf32> to vector<2x16xf32>
    %52 = vector.shape_cast %51 : vector<2x16xf32> to vector<2x16x1xf32>
    %53 = vector.broadcast %52 : vector<2x16x1xf32> to vector<2x16x16xf32>
    %54 = arith.divf %50, %53 : vector<2x16x16xf32>
    "tpu.trace_start"() <{level = 10 : i32, message = "bqk,bkd->bqd"}> : () -> ()
    %cst_33 = arith.constant dense<0.000000e+00> : vector<2x16x32xf32>
    %55 = tpu.matmul %54, %44, %cst_33 {dimension_numbers = #tpu.dot_dimension_numbers<[2], [1], [1], [2], [0, 0, 0, 1, 1, 2], [0], [0]>} : vector<2x16x16xf32>, vector<2x16x32xf32>, vector<2x16x32xf32> -> vector<2x16x32xf32>
    "tpu.trace_stop"() : () -> ()
    %56 = vector.shape_cast %55 : vector<2x16x32xf32> to vector<32x32xf32>
    %c0_34 = arith.constant 0 : index
    %c0_35 = arith.constant 0 : index
    %57 = vector.load %arg6[%c0_34, %c0_35] : memref<128x128xf32, #tpu.memory_space<vmem>>, vector<32x128xf32>
    %cst_36 = arith.constant dense<0.000000e+00> : vector<32x128xf32>
    %58 = tpu.matmul %56, %57, %cst_36 {dimension_numbers = #tpu.dot_dimension_numbers<[1], [0], [0], [1], [0, 0, 1, 1], [], []>} : vector<32x32xf32>, vector<32x128xf32>, vector<32x128xf32> -> vector<32x128xf32>
    %59 = arith.addf %41, %58 : vector<32x128xf32>
    %c0_37 = arith.constant 0 : index
    %c0_38 = arith.constant 0 : index
    %c32 = arith.constant 32 : index
    %60 = vector.load %arg13[%c0_37, %c0_38, %c32] : memref<2x16x384xf32, #tpu.memory_space<vmem>>, vector<2x16x32xf32>
    %c0_39 = arith.constant 0 : index
    %c0_40 = arith.constant 0 : index
    %c160 = arith.constant 160 : index
    %61 = vector.load %arg13[%c0_39, %c0_40, %c160] : memref<2x16x384xf32, #tpu.memory_space<vmem>>, vector<2x16x32xf32>
    %c0_41 = arith.constant 0 : index
    %c0_42 = arith.constant 0 : index
    %c288 = arith.constant 288 : index
    %62 = vector.load %arg13[%c0_41, %c0_42, %c288] : memref<2x16x384xf32, #tpu.memory_space<vmem>>, vector<2x16x32xf32>
    "tpu.trace_start"() <{level = 10 : i32, message = "bqd,bkd->bqk"}> : () -> ()
    %cst_43 = arith.constant dense<0.000000e+00> : vector<2x16x16xf32>
    %63 = tpu.matmul %60, %61, %cst_43 {dimension_numbers = #tpu.dot_dimension_numbers<[2], [2], [1], [1], [0, 0, 0, 1, 1, 1], [0], [0]>} : vector<2x16x32xf32>, vector<2x16x32xf32>, vector<2x16x16xf32> -> vector<2x16x16xf32>
    "tpu.trace_stop"() : () -> ()
    %cst_44 = arith.constant dense<0xFF800000> : vector<2x16xf32>
    %64 = vector.multi_reduction <maximumf>, %63, %cst_44 [2] : vector<2x16x16xf32> to vector<2x16xf32>
    %65 = vector.shape_cast %64 : vector<2x16xf32> to vector<2x16x1xf32>
    %66 = vector.broadcast %65 : vector<2x16x1xf32> to vector<2x16x16xf32>
    %67 = arith.subf %63, %66 : vector<2x16x16xf32>
    %68 = math.exp %67 : vector<2x16x16xf32>
    %cst_45 = arith.constant dense<0.000000e+00> : vector<2x16xf32>
    %69 = vector.multi_reduction <add>, %68, %cst_45 [2] : vector<2x16x16xf32> to vector<2x16xf32>
    %70 = vector.shape_cast %69 : vector<2x16xf32> to vector<2x16x1xf32>
    %71 = vector.broadcast %70 : vector<2x16x1xf32> to vector<2x16x16xf32>
    %72 = arith.divf %68, %71 : vector<2x16x16xf32>
    "tpu.trace_start"() <{level = 10 : i32, message = "bqk,bkd->bqd"}> : () -> ()
    %cst_46 = arith.constant dense<0.000000e+00> : vector<2x16x32xf32>
    %73 = tpu.matmul %72, %62, %cst_46 {dimension_numbers = #tpu.dot_dimension_numbers<[2], [1], [1], [2], [0, 0, 0, 1, 1, 2], [0], [0]>} : vector<2x16x16xf32>, vector<2x16x32xf32>, vector<2x16x32xf32> -> vector<2x16x32xf32>
    "tpu.trace_stop"() : () -> ()
    %74 = vector.shape_cast %73 : vector<2x16x32xf32> to vector<32x32xf32>
    %c32_47 = arith.constant 32 : index
    %c0_48 = arith.constant 0 : index
    %75 = vector.load %arg6[%c32_47, %c0_48] : memref<128x128xf32, #tpu.memory_space<vmem>>, vector<32x128xf32>
    %cst_49 = arith.constant dense<0.000000e+00> : vector<32x128xf32>
    %76 = tpu.matmul %74, %75, %cst_49 {dimension_numbers = #tpu.dot_dimension_numbers<[1], [0], [0], [1], [0, 0, 1, 1], [], []>} : vector<32x32xf32>, vector<32x128xf32>, vector<32x128xf32> -> vector<32x128xf32>
    %77 = arith.addf %59, %76 : vector<32x128xf32>
    %c0_50 = arith.constant 0 : index
    %c0_51 = arith.constant 0 : index
    %c64 = arith.constant 64 : index
    %78 = vector.load %arg13[%c0_50, %c0_51, %c64] : memref<2x16x384xf32, #tpu.memory_space<vmem>>, vector<2x16x32xf32>
    %c0_52 = arith.constant 0 : index
    %c0_53 = arith.constant 0 : index
    %c192 = arith.constant 192 : index
    %79 = vector.load %arg13[%c0_52, %c0_53, %c192] : memref<2x16x384xf32, #tpu.memory_space<vmem>>, vector<2x16x32xf32>
    %c0_54 = arith.constant 0 : index
    %c0_55 = arith.constant 0 : index
    %c320 = arith.constant 320 : index
    %80 = vector.load %arg13[%c0_54, %c0_55, %c320] : memref<2x16x384xf32, #tpu.memory_space<vmem>>, vector<2x16x32xf32>
    "tpu.trace_start"() <{level = 10 : i32, message = "bqd,bkd->bqk"}> : () -> ()
    %cst_56 = arith.constant dense<0.000000e+00> : vector<2x16x16xf32>
    %81 = tpu.matmul %78, %79, %cst_56 {dimension_numbers = #tpu.dot_dimension_numbers<[2], [2], [1], [1], [0, 0, 0, 1, 1, 1], [0], [0]>} : vector<2x16x32xf32>, vector<2x16x32xf32>, vector<2x16x16xf32> -> vector<2x16x16xf32>
    "tpu.trace_stop"() : () -> ()
    %cst_57 = arith.constant dense<0xFF800000> : vector<2x16xf32>
    %82 = vector.multi_reduction <maximumf>, %81, %cst_57 [2] : vector<2x16x16xf32> to vector<2x16xf32>
    %83 = vector.shape_cast %82 : vector<2x16xf32> to vector<2x16x1xf32>
    %84 = vector.broadcast %83 : vector<2x16x1xf32> to vector<2x16x16xf32>
    %85 = arith.subf %81, %84 : vector<2x16x16xf32>
    %86 = math.exp %85 : vector<2x16x16xf32>
    %cst_58 = arith.constant dense<0.000000e+00> : vector<2x16xf32>
    %87 = vector.multi_reduction <add>, %86, %cst_58 [2] : vector<2x16x16xf32> to vector<2x16xf32>
    %88 = vector.shape_cast %87 : vector<2x16xf32> to vector<2x16x1xf32>
    %89 = vector.broadcast %88 : vector<2x16x1xf32> to vector<2x16x16xf32>
    %90 = arith.divf %86, %89 : vector<2x16x16xf32>
    "tpu.trace_start"() <{level = 10 : i32, message = "bqk,bkd->bqd"}> : () -> ()
    %cst_59 = arith.constant dense<0.000000e+00> : vector<2x16x32xf32>
    %91 = tpu.matmul %90, %80, %cst_59 {dimension_numbers = #tpu.dot_dimension_numbers<[2], [1], [1], [2], [0, 0, 0, 1, 1, 2], [0], [0]>} : vector<2x16x16xf32>, vector<2x16x32xf32>, vector<2x16x32xf32> -> vector<2x16x32xf32>
    "tpu.trace_stop"() : () -> ()
    %92 = vector.shape_cast %91 : vector<2x16x32xf32> to vector<32x32xf32>
    %c64_60 = arith.constant 64 : index
    %c0_61 = arith.constant 0 : index
    %93 = vector.load %arg6[%c64_60, %c0_61] : memref<128x128xf32, #tpu.memory_space<vmem>>, vector<32x128xf32>
    %cst_62 = arith.constant dense<0.000000e+00> : vector<32x128xf32>
    %94 = tpu.matmul %92, %93, %cst_62 {dimension_numbers = #tpu.dot_dimension_numbers<[1], [0], [0], [1], [0, 0, 1, 1], [], []>} : vector<32x32xf32>, vector<32x128xf32>, vector<32x128xf32> -> vector<32x128xf32>
    %95 = arith.addf %77, %94 : vector<32x128xf32>
    %c0_63 = arith.constant 0 : index
    %c0_64 = arith.constant 0 : index
    %c96 = arith.constant 96 : index
    %96 = vector.load %arg13[%c0_63, %c0_64, %c96] : memref<2x16x384xf32, #tpu.memory_space<vmem>>, vector<2x16x32xf32>
    %c0_65 = arith.constant 0 : index
    %c0_66 = arith.constant 0 : index
    %c224 = arith.constant 224 : index
    %97 = vector.load %arg13[%c0_65, %c0_66, %c224] : memref<2x16x384xf32, #tpu.memory_space<vmem>>, vector<2x16x32xf32>
    %c0_67 = arith.constant 0 : index
    %c0_68 = arith.constant 0 : index
    %c352 = arith.constant 352 : index
    %98 = vector.load %arg13[%c0_67, %c0_68, %c352] : memref<2x16x384xf32, #tpu.memory_space<vmem>>, vector<2x16x32xf32>
    "tpu.trace_start"() <{level = 10 : i32, message = "bqd,bkd->bqk"}> : () -> ()
    %cst_69 = arith.constant dense<0.000000e+00> : vector<2x16x16xf32>
    %99 = tpu.matmul %96, %97, %cst_69 {dimension_numbers = #tpu.dot_dimension_numbers<[2], [2], [1], [1], [0, 0, 0, 1, 1, 1], [0], [0]>} : vector<2x16x32xf32>, vector<2x16x32xf32>, vector<2x16x16xf32> -> vector<2x16x16xf32>
    "tpu.trace_stop"() : () -> ()
    %cst_70 = arith.constant dense<0xFF800000> : vector<2x16xf32>
    %100 = vector.multi_reduction <maximumf>, %99, %cst_70 [2] : vector<2x16x16xf32> to vector<2x16xf32>
    %101 = vector.shape_cast %100 : vector<2x16xf32> to vector<2x16x1xf32>
    %102 = vector.broadcast %101 : vector<2x16x1xf32> to vector<2x16x16xf32>
    %103 = arith.subf %99, %102 : vector<2x16x16xf32>
    %104 = math.exp %103 : vector<2x16x16xf32>
    %cst_71 = arith.constant dense<0.000000e+00> : vector<2x16xf32>
    %105 = vector.multi_reduction <add>, %104, %cst_71 [2] : vector<2x16x16xf32> to vector<2x16xf32>
    %106 = vector.shape_cast %105 : vector<2x16xf32> to vector<2x16x1xf32>
    %107 = vector.broadcast %106 : vector<2x16x1xf32> to vector<2x16x16xf32>
    %108 = arith.divf %104, %107 : vector<2x16x16xf32>
    "tpu.trace_start"() <{level = 10 : i32, message = "bqk,bkd->bqd"}> : () -> ()
    %cst_72 = arith.constant dense<0.000000e+00> : vector<2x16x32xf32>
    %109 = tpu.matmul %108, %98, %cst_72 {dimension_numbers = #tpu.dot_dimension_numbers<[2], [1], [1], [2], [0, 0, 0, 1, 1, 2], [0], [0]>} : vector<2x16x16xf32>, vector<2x16x32xf32>, vector<2x16x32xf32> -> vector<2x16x32xf32>
    "tpu.trace_stop"() : () -> ()
    %110 = vector.shape_cast %109 : vector<2x16x32xf32> to vector<32x32xf32>
    %c96_73 = arith.constant 96 : index
    %c0_74 = arith.constant 0 : index
    %111 = vector.load %arg6[%c96_73, %c0_74] : memref<128x128xf32, #tpu.memory_space<vmem>>, vector<32x128xf32>
    %cst_75 = arith.constant dense<0.000000e+00> : vector<32x128xf32>
    %112 = tpu.matmul %110, %111, %cst_75 {dimension_numbers = #tpu.dot_dimension_numbers<[1], [0], [0], [1], [0, 0, 1, 1], [], []>} : vector<32x32xf32>, vector<32x128xf32>, vector<32x128xf32> -> vector<32x128xf32>
    %113 = arith.addf %95, %112 : vector<32x128xf32>
    %c0_76 = arith.constant 0 : index
    %c0_77 = arith.constant 0 : index
    %114 = vector.load %arg7[%c0_76, %c0_77] : memref<1x128xf32, #tpu.memory_space<vmem>>, vector<1x128xf32>
    %115 = vector.broadcast %114 : vector<1x128xf32> to vector<32x128xf32>
    %116 = arith.addf %113, %115 : vector<32x128xf32>
    %117 = arith.addf %116, %1 : vector<32x128xf32>
    %cst_78 = arith.constant dense<0.000000e+00> : vector<32xf32>
    %118 = vector.multi_reduction <add>, %117, %cst_78 [1] : vector<32x128xf32> to vector<32xf32>
    %119 = vector.shape_cast %118 : vector<32xf32> to vector<32x1xf32>
    %cst_79 = arith.constant 1.280000e+02 : f32
    %120 = vector.broadcast %cst_79 : f32 to vector<32x1xf32>
    %121 = arith.divf %119, %120 : vector<32x1xf32>
    %122 = vector.broadcast %121 : vector<32x1xf32> to vector<32x128xf32>
    %123 = arith.subf %117, %122 : vector<32x128xf32>
    %124 = vector.broadcast %121 : vector<32x1xf32> to vector<32x128xf32>
    %125 = arith.subf %117, %124 : vector<32x128xf32>
    %126 = arith.mulf %123, %125 : vector<32x128xf32>
    %cst_80 = arith.constant dense<0.000000e+00> : vector<32xf32>
    %127 = vector.multi_reduction <add>, %126, %cst_80 [1] : vector<32x128xf32> to vector<32xf32>
    %128 = vector.shape_cast %127 : vector<32xf32> to vector<32x1xf32>
    %cst_81 = arith.constant 1.280000e+02 : f32
    %129 = vector.broadcast %cst_81 : f32 to vector<32x1xf32>
    %130 = arith.divf %128, %129 : vector<32x1xf32>
    %131 = vector.broadcast %121 : vector<32x1xf32> to vector<32x128xf32>
    %132 = arith.subf %117, %131 : vector<32x128xf32>
    %cst_82 = arith.constant 9.99999974E-6 : f32
    %133 = vector.broadcast %cst_82 : f32 to vector<32x1xf32>
    %134 = arith.addf %130, %133 : vector<32x1xf32>
    %135 = math.rsqrt %134 : vector<32x1xf32>
    %136 = vector.broadcast %135 : vector<32x1xf32> to vector<32x128xf32>
    %137 = arith.mulf %132, %136 : vector<32x128xf32>
    %138 = vector.broadcast %2 : vector<1x128xf32> to vector<32x128xf32>
    %139 = arith.mulf %137, %138 : vector<32x128xf32>
    %140 = vector.broadcast %3 : vector<1x128xf32> to vector<32x128xf32>
    %141 = arith.addf %139, %140 : vector<32x128xf32>
    %c0_83 = arith.constant 0 : index
    %c0_84 = arith.constant 0 : index
    %142 = vector.load %arg8[%c0_83, %c0_84] : memref<128x512xf32, #tpu.memory_space<vmem>>, vector<128x512xf32>
    %cst_85 = arith.constant dense<0.000000e+00> : vector<32x512xf32>
    %143 = tpu.matmul %141, %142, %cst_85 {dimension_numbers = #tpu.dot_dimension_numbers<[1], [0], [0], [1], [0, 0, 1, 1], [], []>} : vector<32x128xf32>, vector<128x512xf32>, vector<32x512xf32> -> vector<32x512xf32>
    %c0_86 = arith.constant 0 : index
    %c0_87 = arith.constant 0 : index
    %144 = vector.load %arg9[%c0_86, %c0_87] : memref<1x512xf32, #tpu.memory_space<vmem>>, vector<1x512xf32>
    %145 = vector.broadcast %144 : vector<1x512xf32> to vector<32x512xf32>
    %146 = arith.addf %143, %145 : vector<32x512xf32>
    %cst_88 = arith.constant 5.000000e-01 : f32
    %147 = vector.broadcast %cst_88 : f32 to vector<32x512xf32>
    %148 = arith.mulf %147, %146 : vector<32x512xf32>
    %cst_89 = arith.constant 0.707106769 : f32
    %149 = vector.broadcast %cst_89 : f32 to vector<32x512xf32>
    %150 = arith.mulf %146, %149 : vector<32x512xf32>
    %151 = math.erf %150 : vector<32x512xf32>
    %cst_90 = arith.constant 1.000000e+00 : f32
    %152 = vector.broadcast %cst_90 : f32 to vector<32x512xf32>
    %153 = arith.addf %152, %151 : vector<32x512xf32>
    %154 = arith.mulf %148, %153 : vector<32x512xf32>
    %c0_91 = arith.constant 0 : index
    %c0_92 = arith.constant 0 : index
    %155 = vector.load %arg10[%c0_91, %c0_92] : memref<512x128xf32, #tpu.memory_space<vmem>>, vector<512x128xf32>
    %cst_93 = arith.constant dense<0.000000e+00> : vector<32x128xf32>
    %156 = tpu.matmul %154, %155, %cst_93 {dimension_numbers = #tpu.dot_dimension_numbers<[1], [0], [0], [1], [0, 0, 1, 1], [], []>} : vector<32x512xf32>, vector<512x128xf32>, vector<32x128xf32> -> vector<32x128xf32>
    %c0_94 = arith.constant 0 : index
    %c0_95 = arith.constant 0 : index
    %157 = vector.load %arg11[%c0_94, %c0_95] : memref<1x128xf32, #tpu.memory_space<vmem>>, vector<1x128xf32>
    %158 = vector.broadcast %157 : vector<1x128xf32> to vector<32x128xf32>
    %159 = arith.addf %156, %158 : vector<32x128xf32>
    %160 = arith.addf %159, %117 : vector<32x128xf32>
    %161 = vector.shape_cast %160 : vector<32x128xf32> to vector<2x16x128xf32>
    %c0_96 = arith.constant 0 : index
    %c0_97 = arith.constant 0 : index
    %c0_98 = arith.constant 0 : index
    %162 = vector.load %arg12[%c0_96, %c0_97, %c0_98] : memref<2x16x128xf32, #tpu.memory_space<vmem>>, vector<2x16x128xf32>
    tpu.vector_store %arg12[%c0_96, %c0_97, %c0_98], %161 {strides = array<i32>} : memref<2x16x128xf32, #tpu.memory_space<vmem>>, vector<2x16x128xf32>,
    return
  }
  func.func @transform_0(%arg0: i32) -> (i32, i32, i32) {
    %c0_i32 = arith.constant 0 : i32
    %c0_i32_0 = arith.constant 0 : i32
    %c0_i32_1 = arith.constant 0 : i32
    return %arg0, %c0_i32, %c0_i32_0 : i32, i32, i32
  }
  func.func @transform_1(%arg0: i32) -> (i32, i32) {
    %c0_i32 = arith.constant 0 : i32
    %c0_i32_0 = arith.constant 0 : i32
    %c0_i32_1 = arith.constant 0 : i32
    return %c0_i32, %c0_i32_0 : i32, i32
  }
  func.func @transform_2(%arg0: i32) -> (i32, i32) {
    %c0_i32 = arith.constant 0 : i32
    %c0_i32_0 = arith.constant 0 : i32
    %c0_i32_1 = arith.constant 0 : i32
    return %c0_i32, %c0_i32_0 : i32, i32
  }
  func.func @transform_3(%arg0: i32) -> (i32, i32) {
    %c0_i32 = arith.constant 0 : i32
    %c0_i32_0 = arith.constant 0 : i32
    %c0_i32_1 = arith.constant 0 : i32
    return %c0_i32, %c0_i32_0 : i32, i32
  }
  func.func @transform_4(%arg0: i32) -> (i32, i32) {
    %c0_i32 = arith.constant 0 : i32
    %c0_i32_0 = arith.constant 0 : i32
    %c0_i32_1 = arith.constant 0 : i32
    return %c0_i32, %c0_i32_0 : i32, i32
  }
  func.func @transform_5(%arg0: i32) -> (i32, i32) {
    %c0_i32 = arith.constant 0 : i32
    %c0_i32_0 = arith.constant 0 : i32
    %c0_i32_1 = arith.constant 0 : i32
    return %c0_i32, %c0_i32_0 : i32, i32
  }
  func.func @transform_6(%arg0: i32) -> (i32, i32) {
    %c0_i32 = arith.constant 0 : i32
    %c0_i32_0 = arith.constant 0 : i32
    %c0_i32_1 = arith.constant 0 : i32
    return %c0_i32, %c0_i32_0 : i32, i32
  }
  func.func @transform_7(%arg0: i32) -> (i32, i32) {
    %c0_i32 = arith.constant 0 : i32
    %c0_i32_0 = arith.constant 0 : i32
    %c0_i32_1 = arith.constant 0 : i32
    return %c0_i32, %c0_i32_0 : i32, i32
  }
  func.func @transform_8(%arg0: i32) -> (i32, i32) {
    %c0_i32 = arith.constant 0 : i32
    %c0_i32_0 = arith.constant 0 : i32
    %c0_i32_1 = arith.constant 0 : i32
    return %c0_i32, %c0_i32_0 : i32, i32
  }
  func.func @transform_9(%arg0: i32) -> (i32, i32) {
    %c0_i32 = arith.constant 0 : i32
    %c0_i32_0 = arith.constant 0 : i32
    %c0_i32_1 = arith.constant 0 : i32
    return %c0_i32, %c0_i32_0 : i32, i32
  }
  func.func @transform_10(%arg0: i32) -> (i32, i32) {
    %c0_i32 = arith.constant 0 : i32
    %c0_i32_0 = arith.constant 0 : i32
    %c0_i32_1 = arith.constant 0 : i32
    return %c0_i32, %c0_i32_0 : i32, i32
  }
  func.func @transform_11(%arg0: i32) -> (i32, i32, i32) {
    %c0_i32 = arith.constant 0 : i32
    %c0_i32_0 = arith.constant 0 : i32
    %c0_i32_1 = arith.constant 0 : i32
    return %arg0, %c0_i32, %c0_i32_0 : i32, i32, i32
  }
}

</mosaic_0001>

<llo_original>
// kernel: tpu_custom_call.1
$region0: #{tpu_custom_call.1}
  #allocation0 [shape = 'u32[]', space=smem, size = 0x4, offset = 0x4, fixed_abs, tag = 'smem constant byte address 0x4 - core index']
  #allocation1 [shape = 'u32[144,128]{1,0:T(1,128)}', space=vmem, size = 0x12000, scoped, tag = 'internal scratch']
  #allocation2 [shape = 'f32[2,16,384]{2,1,0:T(8,128)}', space=vmem, size = 0xc000, scoped, tag = 'scratch operand']
  %s0 = inlined_call_operand.hbm [shape: f32[4,16,128], index: 0, kind: input, shape index: {}]
  %s1 = inlined_call_operand.hbm [shape: f32[1,128], index: 1, kind: input, shape index: {}]
  %s2 = inlined_call_operand.hbm [shape: f32[1,128], index: 2, kind: input, shape index: {}]
  %s3 = inlined_call_operand.hbm [shape: f32[128,384], index: 3, kind: input, shape index: {}]
  %s4 = inlined_call_operand.vmem [shape: f32[1,384], index: 4, kind: input, shape index: {}]
  %s5 = inlined_call_operand.hbm [shape: f32[128,128], index: 5, kind: input, shape index: {}]
  %s6 = inlined_call_operand.vmem [shape: f32[1,128], index: 6, kind: input, shape index: {}]
  %s7 = inlined_call_operand.hbm [shape: f32[128,512], index: 7, kind: input, shape index: {}]
  %s8 = inlined_call_operand.vmem [shape: f32[1,512], index: 8, kind: input, shape index: {}]
  %s9 = inlined_call_operand.hbm [shape: f32[512,128], index: 9, kind: input, shape index: {}]
  %s10 = inlined_call_operand.vmem [shape: f32[1,128], index: 10, kind: input, shape index: {}]
  %s11 = inlined_call_operand.hbm [shape: f32[4,16,128], index: 11, kind: output, shape index: {}]
  %s12 = sld [smem:[#allocation0]]
  $region105: #{tpu_custom_call.1} parent=0
    _
  %s14 = ssub.s32 1, %s12
  %s15 = scalar_select 0, %s14, %s12
  $region1: #{tpu_custom_call.1} parent=0
    #allocation3 [shape = 'u8[32768]{0}', space=vmem, size = 0x8000, scoped, tag = 'input window, operand 0']
    #allocation4 [shape = 's32[2]{0}', space=sflag, size = 0x8, scoped, tag = 'scoped memory for tpu_custom_call.1']
    #allocation5 [shape = 's32[2]{0}', space=sflag, size = 0x8, scoped, tag = 'scoped memory for tpu_custom_call.1']
    #allocation6 [shape = 'u8[512]{0}', space=vmem, size = 0x400, scoped, tag = 'input window, operand 1, single buffered']
    #allocation7 [shape = 's32[1]{0}', space=sflag, size = 0x4, scoped, tag = 'scoped memory for tpu_custom_call.1']
    #allocation8 [shape = 'u8[512]{0}', space=vmem, size = 0x400, scoped, tag = 'input window, operand 2, single buffered']
    #allocation9 [shape = 'u8[196608]{0}', space=vmem, size = 0x30000, scoped, tag = 'input window, operand 3, single buffered']
    #allocation10 [shape = 's32[1]{0}', space=sflag, size = 0x4, scoped, tag = 'scoped memory for tpu_custom_call.1']
    #allocation11 [shape = 'u8[65536]{0}', space=vmem, size = 0x10000, scoped, tag = 'input window, operand 5, single buffered']
    #allocation12 [shape = 'u8[262144]{0}', space=vmem, size = 0x40000, scoped, tag = 'input window, operand 7, single buffered']
    #allocation13 [shape = 's32[1]{0}', space=sflag, size = 0x4, scoped, tag = 'scoped memory for tpu_custom_call.1']
    #allocation14 [shape = 'u8[262144]{0}', space=vmem, size = 0x40000, scoped, tag = 'input window, operand 9, single buffered']
    #allocation15 [shape = 'u8[32768]{0}', space=vmem, size = 0x8000, scoped, tag = 'output window, operand 0']
    %16 = vsyncpa [#allocation4], 0
    %s17 = scalar_lea.sflag [#allocation4], 1
    %18 = vsyncpa %s17, 0
    %19 = vsyncpa [#allocation7], 0
    %20 = vsyncpa [#allocation10], 0
    %21 = vsyncpa [#allocation13], 0
    %22 = vsyncpa [#allocation5], 0
    %s23 = scalar_lea.sflag [#allocation5], 1
    %24 = vsyncpa %s23, 0
    loop: start=0, step=1, limit=4
    $region2: #{tpu_custom_call.1} parent=1 // loop_pre_header
      _
    $region3: #{tpu_custom_call.1} parent=1 // loop_header
      %s26 = sphi 0, %s30
      %p27 = scmp.ge.s32.totalorder %s26, 4
      %s36 = sphi 0, %s38
      %s39 = sphi 0, %s36
      %s40 = sphi 0, %s39
      %s56 = sphi 0, %s40
      %s60 = sphi 0, %s60
      %s62 = sphi 0, %s60
      %s63 = sphi 0, %s62
      %s77 = sphi 0, %s63
      %s81 = sphi 0, %s81
      %s83 = sphi 0, %s81
      %s84 = sphi 0, %s83
      %s98 = sphi 0, %s84
      %s102 = sphi 0, %s102
      %s104 = sphi 0, %s102
      %s105 = sphi 0, %s104
      %s119 = sphi 0, %s105
      %s123 = sphi 0, %s123
      %s125 = sphi 0, %s123
      %s126 = sphi 0, %s125
      %s140 = sphi 0, %s126
      %s144 = sphi 0, %s144
      %s146 = sphi 0, %s144
      %s147 = sphi 0, %s146
      %s161 = sphi 0, %s147
      %s165 = sphi 0, %s165
      %s167 = sphi 0, %s165
      %s168 = sphi 0, %s167
      %s182 = sphi 0, %s168
      %s186 = sphi 0, %s186
      %s188 = sphi 0, %s186
      %s189 = sphi 0, %s188
      %s203 = sphi 0, %s189
      %s207 = sphi 0, %s207
      %s209 = sphi 0, %s207
      %s210 = sphi 0, %s209
      %s224 = sphi 0, %s210
      %s228 = sphi 0, %s228
      %s230 = sphi 0, %s228
      %s231 = sphi 0, %s230
      %s245 = sphi 0, %s231
      %s249 = sphi 0, %s249
      %s251 = sphi 0, %s249
      %s252 = sphi 0, %s251
      %s266 = sphi 0, %s252
      %s272 = sphi 0, %s274
      %s275 = sphi 0, %s272
      %s276 = sphi 0, %s275
      %s292 = sphi 0, %s276
    $region4: #{tpu_custom_call.1} parent=1 // loop_header_branch
      %29 = sbr.rel (%p27) target = $region8
    $region5: #{tpu_custom_call.1} parent=1 // loop_body
      %s31 = ssub.s32 %s26, 1
      %s32 = ssub.s32 %s26, 2
      %s33 = sadd.s32 %s26, 1
      %s34 = ssub.s32 %s26, %s33
      %p35 = scmp.eq.s32.totalorder %s34, 0
      %s37 = sadd.s32 %s36, 1
      %s38 = scalar_select %p35, %s36, %s37
      %p41 = pneg %p35
      %p42 = scmp.eq.s32.totalorder %s26, 1
      %p43 = por %p41, %p42
      %p44 = scmp.ne.s32.totalorder %s36, %s39
      %p45 = scmp.eq.s32.totalorder %s26, 0
      %p46 = por %p44, %p45
      %p47 = scmp.ne.s32.totalorder %s36, %s39
      %p48 = scmp.eq.s32.totalorder %s31, 1
      %p49 = por %p47, %p48
      %p50 = scmp.ne.s32.totalorder %s39, %s40
      %p51 = scmp.eq.s32.totalorder %s31, 0
      %p52 = por %p50, %p51
      %p53 = scmp.ne.s32.totalorder %s39, %s40
      %p54 = scmp.eq.s32.totalorder %s32, 1
      %p55 = por %p53, %p54
      %p57 = scmp.ne.s32.totalorder %s40, %s56
      %p58 = scmp.eq.s32.totalorder %s32, 0
      %p59 = por %p57, %p58
      %s61 = sadd.s32 %s60, 1
      %p64 = scmp.eq.s32.totalorder %s26, 1
      %p65 = scmp.ne.s32.totalorder %s60, %s62
      %p66 = scmp.eq.s32.totalorder %s26, 0
      %p67 = por %p65, %p66
      %p68 = scmp.ne.s32.totalorder %s60, %s62
      %p69 = scmp.eq.s32.totalorder %s31, 1
      %p70 = por %p68, %p69
      %p71 = scmp.ne.s32.totalorder %s62, %s63
      %p72 = scmp.eq.s32.totalorder %s31, 0
      %p73 = por %p71, %p72
      %p74 = scmp.ne.s32.totalorder %s62, %s63
      %p75 = scmp.eq.s32.totalorder %s32, 1
      %p76 = por %p74, %p75
      %p78 = scmp.ne.s32.totalorder %s63, %s77
      %p79 = scmp.eq.s32.totalorder %s32, 0
      %p80 = por %p78, %p79
      %s82 = sadd.s32 %s81, 1
      %p85 = scmp.eq.s32.totalorder %s26, 1
      %p86 = scmp.ne.s32.totalorder %s81, %s83
      %p87 = scmp.eq.s32.totalorder %s26, 0
      %p88 = por %p86, %p87
      %p89 = scmp.ne.s32.totalorder %s81, %s83
      %p90 = scmp.eq.s32.totalorder %s31, 1
      %p91 = por %p89, %p90
      %p92 = scmp.ne.s32.totalorder %s83, %s84
      %p93 = scmp.eq.s32.totalorder %s31, 0
      %p94 = por %p92, %p93
      %p95 = scmp.ne.s32.totalorder %s83, %s84
      %p96 = scmp.eq.s32.totalorder %s32, 1
      %p97 = por %p95, %p96
      %p99 = scmp.ne.s32.totalorder %s84, %s98
      %p100 = scmp.eq.s32.totalorder %s32, 0
      %p101 = por %p99, %p100
      %s103 = sadd.s32 %s102, 1
      %p106 = scmp.eq.s32.totalorder %s26, 1
      %p107 = scmp.ne.s32.totalorder %s102, %s104
      %p108 = scmp.eq.s32.totalorder %s26, 0
      %p109 = por %p107, %p108
      %p110 = scmp.ne.s32.totalorder %s102, %s104
      %p111 = scmp.eq.s32.totalorder %s31, 1
      %p112 = por %p110, %p111
      %p113 = scmp.ne.s32.totalorder %s104, %s105
      %p114 = scmp.eq.s32.totalorder %s31, 0
      %p115 = por %p113, %p114
      %p116 = scmp.ne.s32.totalorder %s104, %s105
      %p117 = scmp.eq.s32.totalorder %s32, 1
      %p118 = por %p116, %p117
      %p120 = scmp.ne.s32.totalorder %s105, %s119
      %p121 = scmp.eq.s32.totalorder %s32, 0
      %p122 = por %p120, %p121
      %s124 = sadd.s32 %s123, 1
      %p127 = scmp.eq.s32.totalorder %s26, 1
      %p128 = scmp.ne.s32.totalorder %s123, %s125
      %p129 = scmp.eq.s32.totalorder %s26, 0
      %p130 = por %p128, %p129
      %p131 = scmp.ne.s32.totalorder %s123, %s125
      %p132 = scmp.eq.s32.totalorder %s31, 1
      %p133 = por %p131, %p132
      %p134 = scmp.ne.s32.totalorder %s125, %s126
      %p135 = scmp.eq.s32.totalorder %s31, 0
      %p136 = por %p134, %p135
      %p137 = scmp.ne.s32.totalorder %s125, %s126
      %p138 = scmp.eq.s32.totalorder %s32, 1
      %p139 = por %p137, %p138
      %p141 = scmp.ne.s32.totalorder %s126, %s140
      %p142 = scmp.eq.s32.totalorder %s32, 0
      %p143 = por %p141, %p142
      %s145 = sadd.s32 %s144, 1
      %p148 = scmp.eq.s32.totalorder %s26, 1
      %p149 = scmp.ne.s32.totalorder %s144, %s146
      %p150 = scmp.eq.s32.totalorder %s26, 0
      %p151 = por %p149, %p150
      %p152 = scmp.ne.s32.totalorder %s144, %s146
      %p153 = scmp.eq.s32.totalorder %s31, 1
      %p154 = por %p152, %p153
      %p155 = scmp.ne.s32.totalorder %s146, %s147
      %p156 = scmp.eq.s32.totalorder %s31, 0
      %p157 = por %p155, %p156
      %p158 = scmp.ne.s32.totalorder %s146, %s147
      %p159 = scmp.eq.s32.totalorder %s32, 1
      %p160 = por %p158, %p159
      %p162 = scmp.ne.s32.totalorder %s147, %s161
      %p163 = scmp.eq.s32.totalorder %s32, 0
      %p164 = por %p162, %p163
      %s166 = sadd.s32 %s165, 1
      %p169 = scmp.eq.s32.totalorder %s26, 1
      %p170 = scmp.ne.s32.totalorder %s165, %s167
      %p171 = scmp.eq.s32.totalorder %s26, 0
      %p172 = por %p170, %p171
      %p173 = scmp.ne.s32.totalorder %s165, %s167
      %p174 = scmp.eq.s32.totalorder %s31, 1
      %p175 = por %p173, %p174
      %p176 = scmp.ne.s32.totalorder %s167, %s168
      %p177 = scmp.eq.s32.totalorder %s31, 0
      %p178 = por %p176, %p177
      %p179 = scmp.ne.s32.totalorder %s167, %s168
      %p180 = scmp.eq.s32.totalorder %s32, 1
      %p181 = por %p179, %p180
      %p183 = scmp.ne.s32.totalorder %s168, %s182
      %p184 = scmp.eq.s32.totalorder %s32, 0
      %p185 = por %p183, %p184
      %s187 = sadd.s32 %s186, 1
      %p190 = scmp.eq.s32.totalorder %s26, 1
      %p191 = scmp.ne.s32.totalorder %s186, %s188
      %p192 = scmp.eq.s32.totalorder %s26, 0
      %p193 = por %p191, %p192
      %p194 = scmp.ne.s32.totalorder %s186, %s188
      %p195 = scmp.eq.s32.totalorder %s31, 1
      %p196 = por %p194, %p195
      %p197 = scmp.ne.s32.totalorder %s188, %s189
      %p198 = scmp.eq.s32.totalorder %s31, 0
      %p199 = por %p197, %p198
      %p200 = scmp.ne.s32.totalorder %s188, %s189
      %p201 = scmp.eq.s32.totalorder %s32, 1
      %p202 = por %p200, %p201
      %p204 = scmp.ne.s32.totalorder %s189, %s203
      %p205 = scmp.eq.s32.totalorder %s32, 0
      %p206 = por %p204, %p205
      %s208 = sadd.s32 %s207, 1
      %p211 = scmp.eq.s32.totalorder %s26, 1
      %p212 = scmp.ne.s32.totalorder %s207, %s209
      %p213 = scmp.eq.s32.totalorder %s26, 0
      %p214 = por %p212, %p213
      %p215 = scmp.ne.s32.totalorder %s207, %s209
      %p216 = scmp.eq.s32.totalorder %s31, 1
      %p217 = por %p215, %p216
      %p218 = scmp.ne.s32.totalorder %s209, %s210
      %p219 = scmp.eq.s32.totalorder %s31, 0
      %p220 = por %p218, %p219
      %p221 = scmp.ne.s32.totalorder %s209, %s210
      %p222 = scmp.eq.s32.totalorder %s32, 1
      %p223 = por %p221, %p222
      %p225 = scmp.ne.s32.totalorder %s210, %s224
      %p226 = scmp.eq.s32.totalorder %s32, 0
      %p227 = por %p225, %p226
      %s229 = sadd.s32 %s228, 1
      %p232 = scmp.eq.s32.totalorder %s26, 1
      %p233 = scmp.ne.s32.totalorder %s228, %s230
      %p234 = scmp.eq.s32.totalorder %s26, 0
      %p235 = por %p233, %p234
      %p236 = scmp.ne.s32.totalorder %s228, %s230
      %p237 = scmp.eq.s32.totalorder %s31, 1
      %p238 = por %p236, %p237
      %p239 = scmp.ne.s32.totalorder %s230, %s231
      %p240 = scmp.eq.s32.totalorder %s31, 0
      %p241 = por %p239, %p240
      %p242 = scmp.ne.s32.totalorder %s230, %s231
      %p243 = scmp.eq.s32.totalorder %s32, 1
      %p244 = por %p242, %p243
      %p246 = scmp.ne.s32.totalorder %s231, %s245
      %p247 = scmp.eq.s32.totalorder %s32, 0
      %p248 = por %p246, %p247
      %s250 = sadd.s32 %s249, 1
      %p253 = scmp.eq.s32.totalorder %s26, 1
      %p254 = scmp.ne.s32.totalorder %s249, %s251
      %p255 = scmp.eq.s32.totalorder %s26, 0
      %p256 = por %p254, %p255
      %p257 = scmp.ne.s32.totalorder %s249, %s251
      %p258 = scmp.eq.s32.totalorder %s31, 1
      %p259 = por %p257, %p258
      %p260 = scmp.ne.s32.totalorder %s251, %s252
      %p261 = scmp.eq.s32.totalorder %s31, 0
      %p262 = por %p260, %p261
      %p263 = scmp.ne.s32.totalorder %s251, %s252
      %p264 = scmp.eq.s32.totalorder %s32, 1
      %p265 = por %p263, %p264
      %p267 = scmp.ne.s32.totalorder %s252, %s266
      %p268 = scmp.eq.s32.totalorder %s32, 0
      %p269 = por %p267, %p268
      %s270 = ssub.s32 %s26, %s33
      %p271 = scmp.eq.s32.totalorder %s270, 0
      %s273 = sadd.s32 %s272, 1
      %s274 = scalar_select %p271, %s272, %s273
      %p277 = pneg %p271
      %p278 = scmp.eq.s32.totalorder %s26, 1
      %p279 = por %p277, %p278
      %p280 = scmp.ne.s32.totalorder %s272, %s275
      %p281 = scmp.eq.s32.totalorder %s26, 0
      %p282 = por %p280, %p281
      %p283 = scmp.ne.s32.totalorder %s272, %s275
      %p284 = scmp.eq.s32.totalorder %s31, 1
      %p285 = por %p283, %p284
      %p286 = scmp.ne.s32.totalorder %s275, %s276
      %p287 = scmp.eq.s32.totalorder %s31, 0
      %p288 = por %p286, %p287
      %p289 = scmp.ne.s32.totalorder %s275, %s276
      %p290 = scmp.eq.s32.totalorder %s32, 1
      %p291 = por %p289, %p290
      %p293 = scmp.ne.s32.totalorder %s276, %s292
      %p294 = scmp.eq.s32.totalorder %s32, 0
      %p295 = por %p293, %p294
      %p296 = scmp.le.s32.totalorder 1, %s26
      %p297 = scmp.lt.s32.totalorder %s26, 3
      %p298 = pnand %p296, %p297
      %p299 = pneg %p298
      // Predicated region
      $region9: #{tpu_custom_call.1} parent=5 // pred_check
        _
      $region10: #{tpu_custom_call.1} parent=5 // pred_check_branch
        %301 = sbr.rel (%p298) target = $region12
      $region11: #{tpu_custom_call.1} parent=5 // pred_region
        %s302 = ssub.s32 %s26, 1
        // Predicated region
        $region13: #{tpu_custom_call.1} parent=11 // pred_check
          %p303 = pneg %p73
        $region14: #{tpu_custom_call.1} parent=11 // pred_check_branch
          %305 = sbr.rel (%p303) target = $region16
        $region15: #{tpu_custom_call.1} parent=11 // pred_region
          %s307 = ssub.s32 16, 16
          %308 = vsyncadd [#allocation7], %s307
          %s310 = sshll.u32 [#allocation6], 4
          %s311 = int_to_ptr.vmem [resolvable:$true] %s310
          %313 = dma.hbm_to_vmem [thread:$0]  %s1, 16, %s311, [#allocation7]
        $region16: #{tpu_custom_call.1} parent=11 // pred_fallthru
          _
        // Predicated region
        $region17: #{tpu_custom_call.1} parent=11 // pred_check
          %p314 = pneg %p94
        $region18: #{tpu_custom_call.1} parent=11 // pred_check_branch
          %316 = sbr.rel (%p314) target = $region20
        $region19: #{tpu_custom_call.1} parent=11 // pred_region
          %s318 = ssub.s32 16, 16
          %319 = vsyncadd [#allocation7], %s318
          %s321 = sshll.u32 [#allocation8], 4
          %s322 = int_to_ptr.vmem [resolvable:$true] %s321
          %324 = dma.hbm_to_vmem [thread:$0]  %s2, 16, %s322, [#allocation7]
        $region20: #{tpu_custom_call.1} parent=11 // pred_fallthru
          _
        // Predicated region
        $region21: #{tpu_custom_call.1} parent=11 // pred_check
          %p325 = pneg %p115
        $region22: #{tpu_custom_call.1} parent=11 // pred_check_branch
          %327 = sbr.rel (%p325) target = $region24
        $region23: #{tpu_custom_call.1} parent=11 // pred_region
          %s329 = ssub.s32 6144, 6144
          %330 = vsyncadd [#allocation10], %s329
          %s331 = sshll.u32 [#allocation9], 4
          %s332 = int_to_ptr.vmem [resolvable:$true] %s331
          %337 = dma.hbm_to_vmem [thread:$0]  %s3, 6144, %s332, [#allocation10], 384, 384, 24
        $region24: #{tpu_custom_call.1} parent=11 // pred_fallthru
          _
        // Predicated region
        $region25: #{tpu_custom_call.1} parent=11 // pred_check
          %p338 = pneg %p136
        $region26: #{tpu_custom_call.1} parent=11 // pred_check_branch
          %340 = sbr.rel (%p338) target = $region28
        $region27: #{tpu_custom_call.1} parent=11 // pred_region
          _
        $region28: #{tpu_custom_call.1} parent=11 // pred_fallthru
          _
        // Predicated region
        $region29: #{tpu_custom_call.1} parent=11 // pred_check
          %p341 = pneg %p157
        $region30: #{tpu_custom_call.1} parent=11 // pred_check_branch
          %343 = sbr.rel (%p341) target = $region32
        $region31: #{tpu_custom_call.1} parent=11 // pred_region
          %s345 = ssub.s32 2048, 2048
          %346 = vsyncadd [#allocation10], %s345
          %s347 = sshll.u32 [#allocation11], 4
          %s348 = int_to_ptr.vmem [resolvable:$true] %s347
          %353 = dma.hbm_to_vmem [thread:$0]  %s5, 2048, %s348, [#allocation10], 128, 128, 8
        $region32: #{tpu_custom_call.1} parent=11 // pred_fallthru
          _
        // Predicated region
        $region33: #{tpu_custom_call.1} parent=11 // pred_check
          %p354 = pneg %p178
        $region34: #{tpu_custom_call.1} parent=11 // pred_check_branch
          %356 = sbr.rel (%p354) target = $region36
        $region35: #{tpu_custom_call.1} parent=11 // pred_region
          _
        $region36: #{tpu_custom_call.1} parent=11 // pred_fallthru
          _
        // Predicated region
        $region37: #{tpu_custom_call.1} parent=11 // pred_check
          %p357 = pneg %p199
        $region38: #{tpu_custom_call.1} parent=11 // pred_check_branch
          %359 = sbr.rel (%p357) target = $region40
        $region39: #{tpu_custom_call.1} parent=11 // pred_region
          %s361 = ssub.s32 8192, 8192
          %362 = vsyncadd [#allocation13], %s361
          %s363 = sshll.u32 [#allocation12], 4
          %s364 = int_to_ptr.vmem [resolvable:$true] %s363
          %369 = dma.hbm_to_vmem [thread:$0]  %s7, 8192, %s364, [#allocation13], 512, 512, 32
        $region40: #{tpu_custom_call.1} parent=11 // pred_fallthru
          _
        // Predicated region
        $region41: #{tpu_custom_call.1} parent=11 // pred_check
          %p370 = pneg %p220
        $region42: #{tpu_custom_call.1} parent=11 // pred_check_branch
          %372 = sbr.rel (%p370) target = $region44
        $region43: #{tpu_custom_call.1} parent=11 // pred_region
          _
        $region44: #{tpu_custom_call.1} parent=11 // pred_fallthru
          _
        // Predicated region
        $region45: #{tpu_custom_call.1} parent=11 // pred_check
          %p373 = pneg %p241
        $region46: #{tpu_custom_call.1} parent=11 // pred_check_branch
          %375 = sbr.rel (%p373) target = $region48
        $region47: #{tpu_custom_call.1} parent=11 // pred_region
          %s377 = ssub.s32 8192, 8192
          %378 = vsyncadd [#allocation13], %s377
          %s379 = sshll.u32 [#allocation14], 4
          %s380 = int_to_ptr.vmem [resolvable:$true] %s379
          %385 = dma.hbm_to_vmem [thread:$0]  %s9, 8192, %s380, [#allocation13], 128, 128, 8
        $region48: #{tpu_custom_call.1} parent=11 // pred_fallthru
          _
        // Predicated region
        $region49: #{tpu_custom_call.1} parent=11 // pred_check
          %p386 = pneg %p262
        $region50: #{tpu_custom_call.1} parent=11 // pred_check_branch
          %388 = sbr.rel (%p386) target = $region52
        $region51: #{tpu_custom_call.1} parent=11 // pred_region
          _
        $region52: #{tpu_custom_call.1} parent=11 // pred_fallthru
          _
      $region12: #{tpu_custom_call.1} parent=5 // pred_fallthru
        _
      %p389 = scmp.lt.s32.totalorder %s26, 2
      // Predicated region
      $region53: #{tpu_custom_call.1} parent=5 // pred_check
        %p390 = pneg %p389
      $region54: #{tpu_custom_call.1} parent=5 // pred_check_branch
        %392 = sbr.rel (%p390) target = $region56
      $region55: #{tpu_custom_call.1} parent=5 // pred_region
        // Predicated region
        $region57: #{tpu_custom_call.1} parent=55 // pred_check
          %p393 = pneg %p46
        $region58: #{tpu_custom_call.1} parent=55 // pred_check_branch
          %395 = sbr.rel (%p393) target = $region60
        $region59: #{tpu_custom_call.1} parent=55 // pred_region
          %s396 = sand.u32 %s36, 1
          %s397 = scalar_lea.sflag [#allocation4], %s396
          %s398 = sand.u32 %s36, 1
          %s399 = smul.addr %s398, 32
          %s400 = scalar_lea.vmem [#allocation3], %s399
          %s401 = smul.u32 2, %s26
          %s403 = ssub.s32 512, 512
          %404 = vsyncadd %s397, %s403
          %s405 = smul.addr %s401, 2
          %s406 = smul.addr %s405, 128
          %s407 = scalar_lea.hbm %s0, %s406
          %s408 = sshll.u32 %s400, 4
          %s409 = int_to_ptr.vmem [resolvable:$true] %s408
          %414 = dma.hbm_to_vmem [thread:$0]  %s407, 512, %s409, %s397, 128, 128, 8
        $region60: #{tpu_custom_call.1} parent=55 // pred_fallthru
          _
      $region56: #{tpu_custom_call.1} parent=5 // pred_fallthru
        _
      %p415 = scmp.le.s32.totalorder 1, %s26
      %p416 = scmp.lt.s32.totalorder %s26, 3
      %p417 = pnand %p415, %p416
      %p418 = pneg %p417
      // Predicated region
      $region61: #{tpu_custom_call.1} parent=5 // pred_check
        _
      $region62: #{tpu_custom_call.1} parent=5 // pred_check_branch
        %420 = sbr.rel (%p417) target = $region64
      $region63: #{tpu_custom_call.1} parent=5 // pred_region
        %s421 = ssub.s32 %s26, 1
        %s422 = sand.u32 %s39, 1
        %s423 = scalar_lea.sflag [#allocation4], %s422
        %s424 = sand.u32 %s39, 1
        %s425 = smul.addr %s424, 32
        %s426 = scalar_lea.vmem [#allocation3], %s425
        // Predicated region
        $region65: #{tpu_custom_call.1} parent=63 // pred_check
          %p427 = pneg %p52
        $region66: #{tpu_custom_call.1} parent=63 // pred_check_branch
          %429 = sbr.rel (%p427) target = $region68
        $region67: #{tpu_custom_call.1} parent=63 // pred_region
          %430 = dma.done %s423, 512
        $region68: #{tpu_custom_call.1} parent=63 // pred_fallthru
          _
        // Predicated region
        $region69: #{tpu_custom_call.1} parent=63 // pred_check
          %p431 = pneg %p73
        $region70: #{tpu_custom_call.1} parent=63 // pred_check_branch
          %433 = sbr.rel (%p431) target = $region72
        $region71: #{tpu_custom_call.1} parent=63 // pred_region
          %434 = dma.done [#allocation7], 16
        $region72: #{tpu_custom_call.1} parent=63 // pred_fallthru
          _
        // Predicated region
        $region73: #{tpu_custom_call.1} parent=63 // pred_check
          %p435 = pneg %p94
        $region74: #{tpu_custom_call.1} parent=63 // pred_check_branch
          %437 = sbr.rel (%p435) target = $region76
        $region75: #{tpu_custom_call.1} parent=63 // pred_region
          %438 = dma.done [#allocation7], 16
        $region76: #{tpu_custom_call.1} parent=63 // pred_fallthru
          _
        // Predicated region
        $region77: #{tpu_custom_call.1} parent=63 // pred_check
          %p439 = pneg %p115
        $region78: #{tpu_custom_call.1} parent=63 // pred_check_branch
          %441 = sbr.rel (%p439) target = $region80
        $region79: #{tpu_custom_call.1} parent=63 // pred_region
          %442 = dma.done [#allocation10], 6144
        $region80: #{tpu_custom_call.1} parent=63 // pred_fallthru
          _
        // Predicated region
        $region81: #{tpu_custom_call.1} parent=63 // pred_check
          %p443 = pneg %p157
        $region82: #{tpu_custom_call.1} parent=63 // pred_check_branch
          %445 = sbr.rel (%p443) target = $region84
        $region83: #{tpu_custom_call.1} parent=63 // pred_region
          %446 = dma.done [#allocation10], 2048
        $region84: #{tpu_custom_call.1} parent=63 // pred_fallthru
          _
        // Predicated region
        $region85: #{tpu_custom_call.1} parent=63 // pred_check
          %p447 = pneg %p199
        $region86: #{tpu_custom_call.1} parent=63 // pred_check_branch
          %449 = sbr.rel (%p447) target = $region88
        $region87: #{tpu_custom_call.1} parent=63 // pred_region
          %450 = dma.done [#allocation13], 8192
        $region88: #{tpu_custom_call.1} parent=63 // pred_fallthru
          _
        // Predicated region
        $region89: #{tpu_custom_call.1} parent=63 // pred_check
          %p451 = pneg %p241
        $region90: #{tpu_custom_call.1} parent=63 // pred_check_branch
          %453 = sbr.rel (%p451) target = $region92
        $region91: #{tpu_custom_call.1} parent=63 // pred_region
          %454 = dma.done [#allocation13], 8192
        $region92: #{tpu_custom_call.1} parent=63 // pred_fallthru
          _
        %s455 = sand.u32 %s39, 1
        %s456 = scalar_lea.sflag [#allocation4], %s455
        %s457 = sand.u32 %s39, 1
        %s458 = smul.addr %s457, 32
        %s459 = scalar_lea.vmem [#allocation3], %s458
        %p460 = pneg %p52
        %p461 = pneg %p49
        %p462 = pneg %p73
        %p463 = pneg %p70
        %p464 = pneg %p94
        %p465 = pneg %p91
        %p466 = pneg %p115
        %p467 = pneg %p112
        %p468 = pneg %p136
        %p469 = pneg %p133
        %p470 = pneg %p157
        %p471 = pneg %p154
        %p472 = pneg %p178
        %p473 = pneg %p175
        %p474 = pneg %p199
        %p475 = pneg %p196
        %p476 = pneg %p220
        %p477 = pneg %p217
        %p478 = pneg %p241
        %p479 = pneg %p238
        %p480 = pneg %p262
        %p481 = pneg %p259
        %p482 = pneg %p288
        %p483 = pneg %p285
        %s484 = sand.u32 %s275, 1
        %s485 = scalar_lea.sflag [#allocation5], %s484
        %s486 = sand.u32 %s275, 1
        %s487 = smul.addr %s486, 32
        %s488 = scalar_lea.vmem [#allocation15], %s487
        %s489 = smul.u32 2, %s31
        %s490 = smul.u32 2, %s31
        %v491 = vld [vmem:[%s426] sm:$0xff]
        %v492 = vld [vmem:[%s426 + $0x8] sm:$0xff]
        %v493 = vld [vmem:[%s426 + $0x10] sm:$0xff]
        %v494 = vld [vmem:[%s426 + $0x18] sm:$0xff]
        %v495 = vld [vmem:[#allocation6] sm:$0x1]
        %v496 = vld [vmem:[#allocation8] sm:$0x1]
        %497 = vadd.xlane.f32.xlu0 %v491
        %v498 = vpop.xlane.xlu0 %497
        %499 = vadd.xlane.f32.xlu0 %v492
        %v500 = vpop.xlane.xlu0 %499
        %501 = vadd.xlane.f32.xlu0 %v493
        %v502 = vpop.xlane.xlu0 %501
        %503 = vadd.xlane.f32.xlu0 %v494
        %v504 = vpop.xlane.xlu0 %503
        %v505 = vrcp.pop 128.0
        %v506 = vmul.f32 %v498, %v505
        %v507 = vmul.f32 %v500, %v505
        %v508 = vmul.f32 %v502, %v505
        %v509 = vmul.f32 %v504, %v505
        %v510 = vsub.f32 %v491, %v506
        %v511 = vsub.f32 %v492, %v507
        %v512 = vsub.f32 %v493, %v508
        %v513 = vsub.f32 %v494, %v509
        %v514 = vmul.f32 %v510, %v510
        %v515 = vmul.f32 %v511, %v511
        %v516 = vmul.f32 %v512, %v512
        %v517 = vmul.f32 %v513, %v513
        %518 = vadd.xlane.f32.xlu0 %v514
        %v519 = vpop.xlane.xlu0 %518
        %520 = vadd.xlane.f32.xlu0 %v515
        %v521 = vpop.xlane.xlu0 %520
        %522 = vadd.xlane.f32.xlu0 %v516
        %v523 = vpop.xlane.xlu0 %522
        %524 = vadd.xlane.f32.xlu0 %v517
        %v525 = vpop.xlane.xlu0 %524
        %v526 = vmul.f32 %v519, %v505
        %v527 = vmul.f32 %v521, %v505
        %v528 = vmul.f32 %v523, %v505
        %v529 = vmul.f32 %v525, %v505
        %v530 = vadd.f32 %v526, 1e-05
        %v531 = vadd.f32 %v527, 1e-05
        %v532 = vadd.f32 %v528, 1e-05
        %v533 = vadd.f32 %v529, 1e-05
        %v534 = vrsqrt.pop %v530
        %v535 = vrsqrt.pop %v531
        %v536 = vrsqrt.pop %v532
        %v537 = vrsqrt.pop %v533
        %v538 = vmul.f32 %v510, %v534
        %v539 = vmul.f32 %v511, %v535
        %v540 = vmul.f32 %v512, %v536
        %v541 = vmul.f32 %v513, %v537
        %v543 = vlaneseq
        %v544 = vshrl.u32 %v543, 7
        %v545 = vsub.s32 0, %v544
        %v546 = vrot.slane %v495, %v545
        %v548 = vmul.f32 %v538, %v546
        %v549 = vmul.f32 %v539, %v546
        %v550 = vmul.f32 %v540, %v546
        %v551 = vmul.f32 %v541, %v546
        %v553 = vlaneseq
        %v554 = vshrl.u32 %v553, 7
        %v555 = vsub.s32 0, %v554
        %v556 = vrot.slane %v496, %v555
        %v558 = vadd.f32 %v548, %v556
        %v559 = vadd.f32 %v549, %v556
        %v560 = vadd.f32 %v550, %v556
        %v561 = vadd.f32 %v551, %v556
        %v562 = vld [vmem:[#allocation9] sm:$0xff]
        %v563 = vld [vmem:[#allocation9 + $0x8] sm:$0xff]
        %v564 = vld [vmem:[#allocation9 + $0x10] sm:$0xff]
        %v565 = vld [vmem:[#allocation9 + $0x18] sm:$0xff]
        %v566 = vld [vmem:[#allocation9 + $0x20] sm:$0xff]
        %v567 = vld [vmem:[#allocation9 + $0x28] sm:$0xff]
        %v568 = vld [vmem:[#allocation9 + $0x30] sm:$0xff]
        %v569 = vld [vmem:[#allocation9 + $0x38] sm:$0xff]
        %v570 = vld [vmem:[#allocation9 + $0x40] sm:$0xff]
        %v571 = vld [vmem:[#allocation9 + $0x48] sm:$0xff]
        %v572 = vld [vmem:[#allocation9 + $0x50] sm:$0xff]
        %v573 = vld [vmem:[#allocation9 + $0x58] sm:$0xff]
        %v574 = vld [vmem:[#allocation9 + $0x60] sm:$0xff]
        %v575 = vld [vmem:[#allocation9 + $0x68] sm:$0xff]
        %v576 = vld [vmem:[#allocation9 + $0x70] sm:$0xff]
        %v577 = vld [vmem:[#allocation9 + $0x78] sm:$0xff]
        %v578 = vld [vmem:[#allocation9 + $0x80] sm:$0xff]
        %v579 = vld [vmem:[#allocation9 + $0x88] sm:$0xff]
        %v580 = vld [vmem:[#allocation9 + $0x90] sm:$0xff]
        %v581 = vld [vmem:[#allocation9 + $0x98] sm:$0xff]
        %v582 = vld [vmem:[#allocation9 + $0xa0] sm:$0xff]
        %v583 = vld [vmem:[#allocation9 + $0xa8] sm:$0xff]
        %v584 = vld [vmem:[#allocation9 + $0xb0] sm:$0xff]
        %v585 = vld [vmem:[#allocation9 + $0xb8] sm:$0xff]
        %v586 = vld [vmem:[#allocation9 + $0xc0] sm:$0xff]
        %v587 = vld [vmem:[#allocation9 + $0xc8] sm:$0xff]
        %v588 = vld [vmem:[#allocation9 + $0xd0] sm:$0xff]
        %v589 = vld [vmem:[#allocation9 + $0xd8] sm:$0xff]
        %v590 = vld [vmem:[#allocation9 + $0xe0] sm:$0xff]
        %v591 = vld [vmem:[#allocation9 + $0xe8] sm:$0xff]
        %v592 = vld [vmem:[#allocation9 + $0xf0] sm:$0xff]
        %v593 = vld [vmem:[#allocation9 + $0xf8] sm:$0xff]
        %v594 = vld [vmem:[#allocation9 + $0x100] sm:$0xff]
        %v595 = vld [vmem:[#allocation9 + $0x108] sm:$0xff]
        %v596 = vld [vmem:[#allocation9 + $0x110] sm:$0xff]
        %v597 = vld [vmem:[#allocation9 + $0x118] sm:$0xff]
        %v598 = vld [vmem:[#allocation9 + $0x120] sm:$0xff]
        %v599 = vld [vmem:[#allocation9 + $0x128] sm:$0xff]
        %v600 = vld [vmem:[#allocation9 + $0x130] sm:$0xff]
        %v601 = vld [vmem:[#allocation9 + $0x138] sm:$0xff]
        %v602 = vld [vmem:[#allocation9 + $0x140] sm:$0xff]
        %v603 = vld [vmem:[#allocation9 + $0x148] sm:$0xff]
        %v604 = vld [vmem:[#allocation9 + $0x150] sm:$0xff]
        %v605 = vld [vmem:[#allocation9 + $0x158] sm:$0xff]
        %v606 = vld [vmem:[#allocation9 + $0x160] sm:$0xff]
        %v607 = vld [vmem:[#allocation9 + $0x168] sm:$0xff]
        %v608 = vld [vmem:[#allocation9 + $0x170] sm:$0xff]
        %v609 = vld [vmem:[#allocation9 + $0x178] sm:$0xff]
        %v610 = vld [vmem:[%s4] sm:$0x7]
        %v612 = vlaneseq
        %v613 = vshrl.u32 %v612, 7
        %v614 = vsub.s32 0, %v613
        %v615 = vrot.slane %v610, %v614
        %v616 = vlaneseq
        %v617 = vshrl.u32 %v616, 7
        %v618 = vsub.s32 1, %v617
        %v619 = vrot.slane %v610, %v618
        %v620 = vlaneseq
        %v621 = vshrl.u32 %v620, 7
        %v622 = vsub.s32 2, %v621
        %v623 = vrot.slane %v610, %v622
        %627 = vmatprep.subr.mxu0 %v608
        %628 = vmatpush1.msra.mxu0 %v607
        %629 = vmatprep.subr.mxu0 %v605
        %630 = vmatpush1.msra.mxu0 %v604
        %631 = vmatprep.subr.mxu0 %v602
        %632 = vmatpush1.msra.mxu0 %v601
        %633 = vmatprep.subr.mxu0 %v599
        %634 = vmatpush1.msra.mxu0 %v598
        %635 = vmatprep.subr.mxu0 %v596
        %636 = vmatpush1.msra.mxu0 %v595
        %637 = vmatprep.subr.mxu0 %v593
        %638 = vmatpush1.msra.mxu0 %v592
        %639 = vmatprep.subr.mxu0 %v590
        %640 = vmatpush1.msra.mxu0 %v589
        %641 = vmatprep.subr.mxu0 %v587
        %642 = vmatpush1.msra.mxu0 %v586
        %643 = vmatprep.subr.mxu0 %v584
        %644 = vmatpush1.msra.mxu0 %v583
        %645 = vmatprep.subr.mxu0 %v581
        %646 = vmatpush1.msra.mxu0 %v580
        %647 = vmatprep.subr.mxu0 %v578
        %648 = vmatpush1.msra.mxu0 %v577
        %649 = vmatprep.subr.mxu0 %v575
        %650 = vmatpush1.msra.mxu0 %v574
        %651 = vmatprep.subr.mxu0 %v572
        %652 = vmatpush1.msra.mxu0 %v571
        %653 = vmatprep.subr.mxu0 %v569
        %654 = vmatpush1.msra.mxu0 %v568
        %655 = vmatprep.subr.mxu0 %v566
        %656 = vmatpush1.msra.mxu0 %v565
        %657 = vmatprep.subr.mxu0 %v563
        %658 = vmatpush1.msra.mxu0 %v562
        %659 = vmatprep.subr.mxu0 0.0
        %660 = vmatpush2.msra.mxu0 0.0
        %661 = vmatprep.subr.mxu0 0.0
        %662 = vmatpush2.msra.mxu0 0.0
        %663 = vmatprep.subr.mxu0 0.0
        %664 = vmatpush2.msra.mxu0 0.0
        %665 = vmatprep.subr.mxu0 0.0
        %666 = vmatpush2.msra.mxu0 0.0
        %667 = vmatprep.subr.mxu0 0.0
        %668 = vmatpush2.msra.mxu0 0.0
        %669 = vmatprep.subr.mxu0 0.0
        %670 = vmatpush2.msra.mxu0 0.0
        %671 = vmatprep.subr.mxu0 0.0
        %672 = vmatpush2.msra.mxu0 0.0
        %673 = vmatprep.subr.mxu0 0.0
        %674 = vmatpush2.msra.mxu0 0.0
        %675 = vmatprep.subr.mxu0 0.0
        %676 = vmatpush2.msra.mxu0 0.0
        %677 = vmatprep.subr.mxu0 0.0
        %678 = vmatpush2.msra.mxu0 0.0
        %679 = vmatprep.subr.mxu0 0.0
        %680 = vmatpush2.msra.mxu0 0.0
        %681 = vmatprep.subr.mxu0 0.0
        %682 = vmatpush2.msra.mxu0 0.0
        %683 = vmatprep.subr.mxu0 0.0
        %684 = vmatpush2.msra.mxu0 0.0
        %685 = vmatprep.subr.mxu0 0.0
        %686 = vmatpush2.msra.mxu0 0.0
        %687 = vmatprep.subr.mxu0 0.0
        %688 = vmatpush2.msra.mxu0 0.0
        %689 = vmatprep.subr.mxu0 0.0
        %690 = vmatpush2.msra.mxu0 0.0
        %691 = vmatprep.mubr.f32.mxu0 0.0
        %692 = vmatmul.mubr.f32.gmra.mxu0 %v558
        %v693 = vpop.f32.mrf.mxu0
        %v694 = vadd.f32 %v615, %v693
        %v695 = vpop.f32.mrf.mxu0
        %v696 = vadd.f32 %v619, %v695
        %697 = vmatprep.mubr.f32.mxu0 0.0
        %698 = vmatmul.mubr.f32.gmra.mxu0 %v559
        %v699 = vpop.f32.mrf.mxu0
        %v700 = vadd.f32 %v615, %v699
        %v701 = vpop.f32.mrf.mxu0
        %v702 = vadd.f32 %v619, %v701
        %703 = vmatprep.mubr.f32.mxu0 0.0
        %704 = vmatmul.mubr.f32.gmra.mxu0 %v560
        %v705 = vpop.f32.mrf.mxu0
        %v706 = vadd.f32 %v615, %v705
        %v707 = vpop.f32.mrf.mxu0
        %v708 = vadd.f32 %v619, %v707
        %709 = vmatprep.mubr.f32.mxu0 0.0
        %710 = vmatmul.mubr.f32.gmra.mxu0 %v561
        %v711 = vpop.f32.mrf.mxu0
        %v712 = vadd.f32 %v615, %v711
        %v713 = vpop.f32.mrf.mxu0
        %v714 = vadd.f32 %v619, %v713
        %715 = vdwg.mxu0
        %716 = vmatprep.subr.mxu0 0.0
        %717 = vmatpush1.msra.mxu0 %v609
        %718 = vmatprep.subr.mxu0 0.0
        %719 = vmatpush1.msra.mxu0 %v606
        %720 = vmatprep.subr.mxu0 0.0
        %721 = vmatpush1.msra.mxu0 %v603
        %722 = vmatprep.subr.mxu0 0.0
        %723 = vmatpush1.msra.mxu0 %v600
        %724 = vmatprep.subr.mxu0 0.0
        %725 = vmatpush1.msra.mxu0 %v597
        %726 = vmatprep.subr.mxu0 0.0
        %727 = vmatpush1.msra.mxu0 %v594
        %728 = vmatprep.subr.mxu0 0.0
        %729 = vmatpush1.msra.mxu0 %v591
        %730 = vmatprep.subr.mxu0 0.0
        %731 = vmatpush1.msra.mxu0 %v588
        %732 = vmatprep.subr.mxu0 0.0
        %733 = vmatpush1.msra.mxu0 %v585
        %734 = vmatprep.subr.mxu0 0.0
        %735 = vmatpush1.msra.mxu0 %v582
        %736 = vmatprep.subr.mxu0 0.0
        %737 = vmatpush1.msra.mxu0 %v579
        %738 = vmatprep.subr.mxu0 0.0
        %739 = vmatpush1.msra.mxu0 %v576
        %740 = vmatprep.subr.mxu0 0.0
        %741 = vmatpush1.msra.mxu0 %v573
        %742 = vmatprep.subr.mxu0 0.0
        %743 = vmatpush1.msra.mxu0 %v570
        %744 = vmatprep.subr.mxu0 0.0
        %745 = vmatpush1.msra.mxu0 %v567
        %746 = vmatprep.subr.mxu0 0.0
        %747 = vmatpush1.msra.mxu0 %v564
        %748 = vmatprep.subr.mxu0 0.0
        %749 = vmatpush2.msra.mxu0 0.0
        %750 = vmatprep.subr.mxu0 0.0
        %751 = vmatpush2.msra.mxu0 0.0
        %752 = vmatprep.subr.mxu0 0.0
        %753 = vmatpush2.msra.mxu0 0.0
        %754 = vmatprep.subr.mxu0 0.0
        %755 = vmatpush2.msra.mxu0 0.0
        %756 = vmatprep.subr.mxu0 0.0
        %757 = vmatpush2.msra.mxu0 0.0
        %758 = vmatprep.subr.mxu0 0.0
        %759 = vmatpush2.msra.mxu0 0.0
        %760 = vmatprep.subr.mxu0 0.0
        %761 = vmatpush2.msra.mxu0 0.0
        %762 = vmatprep.subr.mxu0 0.0
        %763 = vmatpush2.msra.mxu0 0.0
        %764 = vmatprep.subr.mxu0 0.0
        %765 = vmatpush2.msra.mxu0 0.0
        %766 = vmatprep.subr.mxu0 0.0
        %767 = vmatpush2.msra.mxu0 0.0
        %768 = vmatprep.subr.mxu0 0.0
        %769 = vmatpush2.msra.mxu0 0.0
        %770 = vmatprep.subr.mxu0 0.0
        %771 = vmatpush2.msra.mxu0 0.0
        %772 = vmatprep.subr.mxu0 0.0
        %773 = vmatpush2.msra.mxu0 0.0
        %774 = vmatprep.subr.mxu0 0.0
        %775 = vmatpush2.msra.mxu0 0.0
        %776 = vmatprep.subr.mxu0 0.0
        %777 = vmatpush2.msra.mxu0 0.0
        %778 = vmatprep.subr.mxu0 0.0
        %779 = vmatpush2.msra.mxu0 0.0
        %780 = vmatprep.mubr.f32.mxu0 0.0
        %781 = vmatmul.mubr.f32.gmra.mxu0 %v558
        %v782 = vpop.f32.mrf.mxu0
        %v783 = vadd.f32 %v623, %v782
        %v784 = vpop.f32.mrf.mxu0
        %785 = vmatprep.mubr.f32.mxu0 0.0
        %786 = vmatmul.mubr.f32.gmra.mxu0 %v559
        %v787 = vpop.f32.mrf.mxu0
        %v788 = vadd.f32 %v623, %v787
        %v789 = vpop.f32.mrf.mxu0
        %790 = vmatprep.mubr.f32.mxu0 0.0
        %791 = vmatmul.mubr.f32.gmra.mxu0 %v560
        %v792 = vpop.f32.mrf.mxu0
        %v793 = vadd.f32 %v623, %v792
        %v794 = vpop.f32.mrf.mxu0
        %795 = vmatprep.mubr.f32.mxu0 0.0
        %796 = vmatmul.mubr.f32.gmra.mxu0 %v561
        %v797 = vpop.f32.mrf.mxu0
        %v798 = vadd.f32 %v623, %v797
        %v799 = vpop.f32.mrf.mxu0
        %800 = vdwg.mxu0
        %v801 = vmul.f32 %v694, 0.17677669
        %v802 = vmul.f32 %v700, 0.17677669
        %v803 = vmul.f32 %v706, 0.17677669
        %v804 = vmul.f32 %v712, 0.17677669
        %805 = vst [vmem:[#allocation2] sm:$0xff] %v801
        %806 = vst [vmem:[#allocation2 + $0x18] sm:$0xff] %v802
        %807 = vst [vmem:[#allocation2 + $0x30] sm:$0xff] %v803
        %808 = vst [vmem:[#allocation2 + $0x48] sm:$0xff] %v804
        %809 = vst [vmem:[#allocation2 + $0x8] sm:$0xff] %v696
        %810 = vst [vmem:[#allocation2 + $0x10] sm:$0xff] %v783
        %811 = vst [vmem:[#allocation2 + $0x20] sm:$0xff] %v702
        %812 = vst [vmem:[#allocation2 + $0x28] sm:$0xff] %v788
        %813 = vst [vmem:[#allocation2 + $0x38] sm:$0xff] %v708
        %814 = vst [vmem:[#allocation2 + $0x40] sm:$0xff] %v793
        %815 = vst [vmem:[#allocation2 + $0x50] sm:$0xff] %v714
        %816 = vst [vmem:[#allocation2 + $0x58] sm:$0xff] %v798
        %v817 = vld [vmem:[#allocation2] sm:$0xff]
        %v818 = vld [vmem:[#allocation2 + $0x18] sm:$0xff]
        %v819 = vld [vmem:[#allocation2 + $0x30] sm:$0xff]
        %v820 = vld [vmem:[#allocation2 + $0x48] sm:$0xff]
        %v821 = vld [vmem:[#allocation2 + $0x8] sm:$0xff]
        %v822 = vld [vmem:[#allocation2 + $0x20] sm:$0xff]
        %v823 = vld [vmem:[#allocation2 + $0x38] sm:$0xff]
        %v824 = vld [vmem:[#allocation2 + $0x50] sm:$0xff]
        %v825 = vld [vmem:[#allocation2 + $0x10] sm:$0xff]
        %v826 = vld [vmem:[#allocation2 + $0x28] sm:$0xff]
        %v827 = vld [vmem:[#allocation2 + $0x40] sm:$0xff]
        %v828 = vld [vmem:[#allocation2 + $0x58] sm:$0xff]
        %vm829 = vcmask 261120
        %v831 = vsel %vm829, %v817, 0
        %v834 = vsel %vm829, %v818, 0
        %v837 = vsel %vm829, %v821, 0
        %v840 = vsel %vm829, %v822, 0
        %842 = vmatprep.subr.mxu0 0.0
        %843 = vmatpush1.xpose.msra.mxu0 0.0
        %844 = vmatprep.subr.mxu0 0.0
        %845 = vmatpush1.xpose.msra.mxu0 0.0
        %846 = vmatprep.subr.mxu0 0.0
        %847 = vmatpush1.xpose.msra.mxu0 0.0
        %848 = vmatprep.subr.mxu0 0.0
        %849 = vmatpush1.xpose.msra.mxu0 0.0
        %850 = vmatprep.subr.mxu0 0.0
        %851 = vmatpush1.xpose.msra.mxu0 0.0
        %852 = vmatprep.subr.mxu0 0.0
        %853 = vmatpush1.xpose.msra.mxu0 0.0
        %854 = vmatprep.subr.mxu0 0.0
        %855 = vmatpush1.xpose.msra.mxu0 0.0
        %856 = vmatprep.subr.mxu0 0.0
        %857 = vmatpush1.xpose.msra.mxu0 0.0
        %858 = vmatprep.subr.mxu0 0.0
        %859 = vmatpush1.xpose.msra.mxu0 0.0
        %860 = vmatprep.subr.mxu0 0.0
        %861 = vmatpush1.xpose.msra.mxu0 0.0
        %862 = vmatprep.subr.mxu0 0.0
        %863 = vmatpush1.xpose.msra.mxu0 0.0
        %864 = vmatprep.subr.mxu0 0.0
        %865 = vmatpush1.xpose.msra.mxu0 0.0
        %866 = vmatprep.subr.mxu0 0.0
        %867 = vmatpush1.xpose.msra.mxu0 0.0
        %868 = vmatprep.subr.mxu0 0.0
        %869 = vmatpush1.xpose.msra.mxu0 0.0
        %870 = vmatprep.subr.mxu0 0.0
        %871 = vmatpush1.xpose.msra.mxu0 %v840
        %872 = vmatprep.subr.mxu0 0.0
        %873 = vmatpush1.xpose.msra.mxu0 %v837
        %874 = vmatprep.subr.mxu0 0.0
        %875 = vmatpush2.xpose.msra.mxu0 0.0
        %876 = vmatprep.subr.mxu0 0.0
        %877 = vmatpush2.xpose.msra.mxu0 0.0
        %878 = vmatprep.subr.mxu0 0.0
        %879 = vmatpush2.xpose.msra.mxu0 0.0
        %880 = vmatprep.subr.mxu0 0.0
        %881 = vmatpush2.xpose.msra.mxu0 0.0
        %882 = vmatprep.subr.mxu0 0.0
        %883 = vmatpush2.xpose.msra.mxu0 0.0
        %884 = vmatprep.subr.mxu0 0.0
        %885 = vmatpush2.xpose.msra.mxu0 0.0
        %886 = vmatprep.subr.mxu0 0.0
        %887 = vmatpush2.xpose.msra.mxu0 0.0
        %888 = vmatprep.subr.mxu0 0.0
        %889 = vmatpush2.xpose.msra.mxu0 0.0
        %890 = vmatprep.subr.mxu0 0.0
        %891 = vmatpush2.xpose.msra.mxu0 0.0
        %892 = vmatprep.subr.mxu0 0.0
        %893 = vmatpush2.xpose.msra.mxu0 0.0
        %894 = vmatprep.subr.mxu0 0.0
        %895 = vmatpush2.xpose.msra.mxu0 0.0
        %896 = vmatprep.subr.mxu0 0.0
        %897 = vmatpush2.xpose.msra.mxu0 0.0
        %898 = vmatprep.subr.mxu0 0.0
        %899 = vmatpush2.xpose.msra.mxu0 0.0
        %900 = vmatprep.subr.mxu0 0.0
        %901 = vmatpush2.xpose.msra.mxu0 0.0
        %902 = vmatprep.subr.mxu0 0.0
        %903 = vmatpush2.xpose.msra.mxu0 0.0
        %904 = vmatprep.subr.mxu0 0.0
        %905 = vmatpush2.xpose.msra.mxu0 0.0
        %906 = vmatprep.mubr.f32.mxu0 0.0
        %907 = vmatmul.mubr.f32.gmra.mxu0 %v831
        %v908 = vpop.f32.mrf.mxu0
        %v909 = vadd.f32 0.0, %v908
        %v910 = vpop.f32.mrf.mxu0
        %911 = vmatprep.mubr.f32.mxu0 0.0
        %912 = vmatmul.mubr.f32.gmra.mxu0 %v834
        %v913 = vpop.f32.mrf.mxu0
        %v914 = vadd.f32 0.0, %v913
        %v915 = vpop.f32.mrf.mxu0
        %916 = vdwg.mxu0
        %v918 = vsel %vm829, %v819, 0
        %v921 = vsel %vm829, %v820, 0
        %v924 = vsel %vm829, %v823, 0
        %v927 = vsel %vm829, %v824, 0
        %929 = vmatprep.subr.mxu0 0.0
        %930 = vmatpush1.xpose.msra.mxu0 0.0
        %931 = vmatprep.subr.mxu0 0.0
        %932 = vmatpush1.xpose.msra.mxu0 0.0
        %933 = vmatprep.subr.mxu0 0.0
        %934 = vmatpush1.xpose.msra.mxu0 0.0
        %935 = vmatprep.subr.mxu0 0.0
        %936 = vmatpush1.xpose.msra.mxu0 0.0
        %937 = vmatprep.subr.mxu0 0.0
        %938 = vmatpush1.xpose.msra.mxu0 0.0
        %939 = vmatprep.subr.mxu0 0.0
        %940 = vmatpush1.xpose.msra.mxu0 0.0
        %941 = vmatprep.subr.mxu0 0.0
        %942 = vmatpush1.xpose.msra.mxu0 0.0
        %943 = vmatprep.subr.mxu0 0.0
        %944 = vmatpush1.xpose.msra.mxu0 0.0
        %945 = vmatprep.subr.mxu0 0.0
        %946 = vmatpush1.xpose.msra.mxu0 0.0
        %947 = vmatprep.subr.mxu0 0.0
        %948 = vmatpush1.xpose.msra.mxu0 0.0
        %949 = vmatprep.subr.mxu0 0.0
        %950 = vmatpush1.xpose.msra.mxu0 0.0
        %951 = vmatprep.subr.mxu0 0.0
        %952 = vmatpush1.xpose.msra.mxu0 0.0
        %953 = vmatprep.subr.mxu0 0.0
        %954 = vmatpush1.xpose.msra.mxu0 0.0
        %955 = vmatprep.subr.mxu0 0.0
        %956 = vmatpush1.xpose.msra.mxu0 0.0
        %957 = vmatprep.subr.mxu0 0.0
        %958 = vmatpush1.xpose.msra.mxu0 %v927
        %959 = vmatprep.subr.mxu0 0.0
        %960 = vmatpush1.xpose.msra.mxu0 %v924
        %961 = vmatprep.subr.mxu0 0.0
        %962 = vmatpush2.xpose.msra.mxu0 0.0
        %963 = vmatprep.subr.mxu0 0.0
        %964 = vmatpush2.xpose.msra.mxu0 0.0
        %965 = vmatprep.subr.mxu0 0.0
        %966 = vmatpush2.xpose.msra.mxu0 0.0
        %967 = vmatprep.subr.mxu0 0.0
        %968 = vmatpush2.xpose.msra.mxu0 0.0
        %969 = vmatprep.subr.mxu0 0.0
        %970 = vmatpush2.xpose.msra.mxu0 0.0
        %971 = vmatprep.subr.mxu0 0.0
        %972 = vmatpush2.xpose.msra.mxu0 0.0
        %973 = vmatprep.subr.mxu0 0.0
        %974 = vmatpush2.xpose.msra.mxu0 0.0
        %975 = vmatprep.subr.mxu0 0.0
        %976 = vmatpush2.xpose.msra.mxu0 0.0
        %977 = vmatprep.subr.mxu0 0.0
        %978 = vmatpush2.xpose.msra.mxu0 0.0
        %979 = vmatprep.subr.mxu0 0.0
        %980 = vmatpush2.xpose.msra.mxu0 0.0
        %981 = vmatprep.subr.mxu0 0.0
        %982 = vmatpush2.xpose.msra.mxu0 0.0
        %983 = vmatprep.subr.mxu0 0.0
        %984 = vmatpush2.xpose.msra.mxu0 0.0
        %985 = vmatprep.subr.mxu0 0.0
        %986 = vmatpush2.xpose.msra.mxu0 0.0
        %987 = vmatprep.subr.mxu0 0.0
        %988 = vmatpush2.xpose.msra.mxu0 0.0
        %989 = vmatprep.subr.mxu0 0.0
        %990 = vmatpush2.xpose.msra.mxu0 0.0
        %991 = vmatprep.subr.mxu0 0.0
        %992 = vmatpush2.xpose.msra.mxu0 0.0
        %993 = vmatprep.mubr.f32.mxu0 0.0
        %994 = vmatmul.mubr.f32.gmra.mxu0 %v918
        %v995 = vpop.f32.mrf.mxu0
        %v996 = vadd.f32 0.0, %v995
        %v997 = vpop.f32.mrf.mxu0
        %998 = vmatprep.mubr.f32.mxu0 0.0
        %999 = vmatmul.mubr.f32.gmra.mxu0 %v921
        %v1000 = vpop.f32.mrf.mxu0
        %v1001 = vadd.f32 0.0, %v1000
        %v1002 = vpop.f32.mrf.mxu0
        %1003 = vdwg.mxu0
        %vm1004 = vcmask 130048
        %v1005 = vsel %vm1004, %v909, -inf
        %1006 = vmax.xlane.f32.xlu0 %v1005
        %v1007 = vpop.xlane.xlu0 %1006
        %v1008 = vsel %vm1004, %v914, -inf
        %1009 = vmax.xlane.f32.xlu0 %v1008
        %v1010 = vpop.xlane.xlu0 %1009
        %v1011 = vsel %vm1004, %v996, -inf
        %1012 = vmax.xlane.f32.xlu0 %v1011
        %v1013 = vpop.xlane.xlu0 %1012
        %v1014 = vsel %vm1004, %v1001, -inf
        %1015 = vmax.xlane.f32.xlu0 %v1014
        %v1016 = vpop.xlane.xlu0 %1015
        %v1017 = vsub.f32 %v909, %v1007
        %v1018 = vsub.f32 %v914, %v1010
        %v1019 = vsub.f32 %v996, %v1013
        %v1020 = vsub.f32 %v1001, %v1016
        %v1021 = vmul.f32 %v1017, 1.442695
        %v1022 = vpow.pop %v1021
        %v1023 = vmul.f32 %v1018, 1.442695
        %v1024 = vpow.pop %v1023
        %v1025 = vmul.f32 %v1019, 1.442695
        %v1026 = vpow.pop %v1025
        %v1027 = vmul.f32 %v1020, 1.442695
        %v1028 = vpow.pop %v1027
        %v1029 = vsel %vm1004, %v1022, 0.0
        %1030 = vadd.xlane.f32.xlu0 %v1029
        %v1031 = vpop.xlane.xlu0 %1030
        %v1032 = vsel %vm1004, %v1024, 0.0
        %1033 = vadd.xlane.f32.xlu0 %v1032
        %v1034 = vpop.xlane.xlu0 %1033
        %v1035 = vsel %vm1004, %v1026, 0.0
        %1036 = vadd.xlane.f32.xlu0 %v1035
        %v1037 = vpop.xlane.xlu0 %1036
        %v1038 = vsel %vm1004, %v1028, 0.0
        %1039 = vadd.xlane.f32.xlu0 %v1038
        %v1040 = vpop.xlane.xlu0 %1039
        %v1041 = vrcp.pop %v1031
        %v1042 = vmul.f32 %v1022, %v1041
        %v1043 = vrcp.pop %v1034
        %v1044 = vmul.f32 %v1024, %v1043
        %v1045 = vrcp.pop %v1037
        %v1046 = vmul.f32 %v1026, %v1045
        %v1047 = vrcp.pop %v1040
        %v1048 = vmul.f32 %v1028, %v1047
        %v1050 = vsel %vm1004, %v1042, 0
        %v1053 = vsel %vm1004, %v1044, 0
        %1055 = vmatprep.subr.mxu0 0.0
        %1056 = vmatpush1.msra.mxu0 0.0
        %1057 = vmatprep.subr.mxu0 0.0
        %1058 = vmatpush1.msra.mxu0 0.0
        %1059 = vmatprep.subr.mxu0 0.0
        %1060 = vmatpush1.msra.mxu0 0.0
        %1061 = vmatprep.subr.mxu0 0.0
        %1062 = vmatpush1.msra.mxu0 0.0
        %1063 = vmatprep.subr.mxu0 0.0
        %1064 = vmatpush1.msra.mxu0 0.0
        %1065 = vmatprep.subr.mxu0 0.0
        %1066 = vmatpush1.msra.mxu0 0.0
        %1067 = vmatprep.subr.mxu0 0.0
        %1068 = vmatpush1.msra.mxu0 0.0
        %1069 = vmatprep.subr.mxu0 0.0
        %1070 = vmatpush1.msra.mxu0 0.0
        %1071 = vmatprep.subr.mxu0 0.0
        %1072 = vmatpush1.msra.mxu0 0.0
        %1073 = vmatprep.subr.mxu0 0.0
        %1074 = vmatpush1.msra.mxu0 0.0
        %1075 = vmatprep.subr.mxu0 0.0
        %1076 = vmatpush1.msra.mxu0 0.0
        %1077 = vmatprep.subr.mxu0 0.0
        %1078 = vmatpush1.msra.mxu0 0.0
        %1079 = vmatprep.subr.mxu0 0.0
        %1080 = vmatpush1.msra.mxu0 0.0
        %1081 = vmatprep.subr.mxu0 0.0
        %1082 = vmatpush1.msra.mxu0 0.0
        %1083 = vmatprep.subr.mxu0 0.0
        %1084 = vmatpush1.msra.mxu0 %v826
        %1085 = vmatprep.subr.mxu0 0.0
        %1086 = vmatpush1.msra.mxu0 %v825
        %1087 = vmatprep.subr.mxu0 0.0
        %1088 = vmatpush2.msra.mxu0 0.0
        %1089 = vmatprep.subr.mxu0 0.0
        %1090 = vmatpush2.msra.mxu0 0.0
        %1091 = vmatprep.subr.mxu0 0.0
        %1092 = vmatpush2.msra.mxu0 0.0
        %1093 = vmatprep.subr.mxu0 0.0
        %1094 = vmatpush2.msra.mxu0 0.0
        %1095 = vmatprep.subr.mxu0 0.0
        %1096 = vmatpush2.msra.mxu0 0.0
        %1097 = vmatprep.subr.mxu0 0.0
        %1098 = vmatpush2.msra.mxu0 0.0
        %1099 = vmatprep.subr.mxu0 0.0
        %1100 = vmatpush2.msra.mxu0 0.0
        %1101 = vmatprep.subr.mxu0 0.0
        %1102 = vmatpush2.msra.mxu0 0.0
        %1103 = vmatprep.subr.mxu0 0.0
        %1104 = vmatpush2.msra.mxu0 0.0
        %1105 = vmatprep.subr.mxu0 0.0
        %1106 = vmatpush2.msra.mxu0 0.0
        %1107 = vmatprep.subr.mxu0 0.0
        %1108 = vmatpush2.msra.mxu0 0.0
        %1109 = vmatprep.subr.mxu0 0.0
        %1110 = vmatpush2.msra.mxu0 0.0
        %1111 = vmatprep.subr.mxu0 0.0
        %1112 = vmatpush2.msra.mxu0 0.0
        %1113 = vmatprep.subr.mxu0 0.0
        %1114 = vmatpush2.msra.mxu0 0.0
        %1115 = vmatprep.subr.mxu0 0.0
        %1116 = vmatpush2.msra.mxu0 0.0
        %1117 = vmatprep.subr.mxu0 0.0
        %1118 = vmatpush2.msra.mxu0 0.0
        %1119 = vmatprep.mubr.f32.mxu0 0.0
        %1120 = vmatmul.mubr.f32.gmra.mxu0 %v1050
        %v1121 = vpop.f32.mrf.mxu0
        %v1122 = vadd.f32 0.0, %v1121
        %v1123 = vpop.f32.mrf.mxu0
        %1124 = vmatprep.mubr.f32.mxu0 0.0
        %1125 = vmatmul.mubr.f32.gmra.mxu0 %v1053
        %v1126 = vpop.f32.mrf.mxu0
        %v1127 = vadd.f32 0.0, %v1126
        %v1128 = vpop.f32.mrf.mxu0
        %1129 = vdwg.mxu0
        %v1131 = vsel %vm1004, %v1046, 0
        %v1134 = vsel %vm1004, %v1048, 0
        %1136 = vmatprep.subr.mxu0 0.0
        %1137 = vmatpush1.msra.mxu0 0.0
        %1138 = vmatprep.subr.mxu0 0.0
        %1139 = vmatpush1.msra.mxu0 0.0
        %1140 = vmatprep.subr.mxu0 0.0
        %1141 = vmatpush1.msra.mxu0 0.0
        %1142 = vmatprep.subr.mxu0 0.0
        %1143 = vmatpush1.msra.mxu0 0.0
        %1144 = vmatprep.subr.mxu0 0.0
        %1145 = vmatpush1.msra.mxu0 0.0
        %1146 = vmatprep.subr.mxu0 0.0
        %1147 = vmatpush1.msra.mxu0 0.0
        %1148 = vmatprep.subr.mxu0 0.0
        %1149 = vmatpush1.msra.mxu0 0.0
        %1150 = vmatprep.subr.mxu0 0.0
        %1151 = vmatpush1.msra.mxu0 0.0
        %1152 = vmatprep.subr.mxu0 0.0
        %1153 = vmatpush1.msra.mxu0 0.0
        %1154 = vmatprep.subr.mxu0 0.0
        %1155 = vmatpush1.msra.mxu0 0.0
        %1156 = vmatprep.subr.mxu0 0.0
        %1157 = vmatpush1.msra.mxu0 0.0
        %1158 = vmatprep.subr.mxu0 0.0
        %1159 = vmatpush1.msra.mxu0 0.0
        %1160 = vmatprep.subr.mxu0 0.0
        %1161 = vmatpush1.msra.mxu0 0.0
        %1162 = vmatprep.subr.mxu0 0.0
        %1163 = vmatpush1.msra.mxu0 0.0
        %1164 = vmatprep.subr.mxu0 0.0
        %1165 = vmatpush1.msra.mxu0 %v828
        %1166 = vmatprep.subr.mxu0 0.0
        %1167 = vmatpush1.msra.mxu0 %v827
        %1168 = vmatprep.subr.mxu0 0.0
        %1169 = vmatpush2.msra.mxu0 0.0
        %1170 = vmatprep.subr.mxu0 0.0
        %1171 = vmatpush2.msra.mxu0 0.0
        %1172 = vmatprep.subr.mxu0 0.0
        %1173 = vmatpush2.msra.mxu0 0.0
        %1174 = vmatprep.subr.mxu0 0.0
        %1175 = vmatpush2.msra.mxu0 0.0
        %1176 = vmatprep.subr.mxu0 0.0
        %1177 = vmatpush2.msra.mxu0 0.0
        %1178 = vmatprep.subr.mxu0 0.0
        %1179 = vmatpush2.msra.mxu0 0.0
        %1180 = vmatprep.subr.mxu0 0.0
        %1181 = vmatpush2.msra.mxu0 0.0
        %1182 = vmatprep.subr.mxu0 0.0
        %1183 = vmatpush2.msra.mxu0 0.0
        %1184 = vmatprep.subr.mxu0 0.0
        %1185 = vmatpush2.msra.mxu0 0.0
        %1186 = vmatprep.subr.mxu0 0.0
        %1187 = vmatpush2.msra.mxu0 0.0
        %1188 = vmatprep.subr.mxu0 0.0
        %1189 = vmatpush2.msra.mxu0 0.0
        %1190 = vmatprep.subr.mxu0 0.0
        %1191 = vmatpush2.msra.mxu0 0.0
        %1192 = vmatprep.subr.mxu0 0.0
        %1193 = vmatpush2.msra.mxu0 0.0
        %1194 = vmatprep.subr.mxu0 0.0
        %1195 = vmatpush2.msra.mxu0 0.0
        %1196 = vmatprep.subr.mxu0 0.0
        %1197 = vmatpush2.msra.mxu0 0.0
        %1198 = vmatprep.subr.mxu0 0.0
        %1199 = vmatpush2.msra.mxu0 0.0
        %1200 = vmatprep.mubr.f32.mxu0 0.0
        %1201 = vmatmul.mubr.f32.gmra.mxu0 %v1131
        %v1202 = vpop.f32.mrf.mxu0
        %v1203 = vadd.f32 0.0, %v1202
        %v1204 = vpop.f32.mrf.mxu0
        %1205 = vmatprep.mubr.f32.mxu0 0.0
        %1206 = vmatmul.mubr.f32.gmra.mxu0 %v1134
        %v1207 = vpop.f32.mrf.mxu0
        %v1208 = vadd.f32 0.0, %v1207
        %v1209 = vpop.f32.mrf.mxu0
        %1210 = vdwg.mxu0
        %v1211 = vld [vmem:[#allocation11] sm:$0xff]
        %v1212 = vld [vmem:[#allocation11 + $0x8] sm:$0xff]
        %v1213 = vld [vmem:[#allocation11 + $0x10] sm:$0xff]
        %v1214 = vld [vmem:[#allocation11 + $0x18] sm:$0xff]
        %v1215 = vld [vmem:[#allocation2] sm:$0xff]
        %v1216 = vld [vmem:[#allocation2 + $0x18] sm:$0xff]
        %v1217 = vld [vmem:[#allocation2 + $0x30] sm:$0xff]
        %v1218 = vld [vmem:[#allocation2 + $0x48] sm:$0xff]
        %v1219 = vld [vmem:[#allocation2 + $0x8] sm:$0xff]
        %v1220 = vld [vmem:[#allocation2 + $0x20] sm:$0xff]
        %v1221 = vld [vmem:[#allocation2 + $0x38] sm:$0xff]
        %v1222 = vld [vmem:[#allocation2 + $0x50] sm:$0xff]
        %v1223 = vld [vmem:[#allocation2 + $0x10] sm:$0xff]
        %v1224 = vld [vmem:[#allocation2 + $0x28] sm:$0xff]
        %v1225 = vld [vmem:[#allocation2 + $0x40] sm:$0xff]
        %v1226 = vld [vmem:[#allocation2 + $0x58] sm:$0xff]
        %1229 = vrot.lane.b32.xlu0 %v1215, 96
        %v1230 = vpop.permute.xlu0 %1229
        %1231 = vrot.lane.b32.xlu0 %v1216, 96
        %v1232 = vpop.permute.xlu0 %1231
        %1235 = vrot.lane.b32.xlu0 %v1219, 96
        %v1236 = vpop.permute.xlu0 %1235
        %1237 = vrot.lane.b32.xlu0 %v1220, 96
        %v1238 = vpop.permute.xlu0 %1237
        %v1239 = vsel %vm829, %v1230, 0
        %v1241 = vsel %vm829, %v1232, 0
        %v1243 = vsel %vm829, %v1236, 0
        %v1245 = vsel %vm829, %v1238, 0
        %1247 = vmatprep.subr.mxu0 0.0
        %1248 = vmatpush1.xpose.msra.mxu0 0.0
        %1249 = vmatprep.subr.mxu0 0.0
        %1250 = vmatpush1.xpose.msra.mxu0 0.0
        %1251 = vmatprep.subr.mxu0 0.0
        %1252 = vmatpush1.xpose.msra.mxu0 0.0
        %1253 = vmatprep.subr.mxu0 0.0
        %1254 = vmatpush1.xpose.msra.mxu0 0.0
        %1255 = vmatprep.subr.mxu0 0.0
        %1256 = vmatpush1.xpose.msra.mxu0 0.0
        %1257 = vmatprep.subr.mxu0 0.0
        %1258 = vmatpush1.xpose.msra.mxu0 0.0
        %1259 = vmatprep.subr.mxu0 0.0
        %1260 = vmatpush1.xpose.msra.mxu0 0.0
        %1261 = vmatprep.subr.mxu0 0.0
        %1262 = vmatpush1.xpose.msra.mxu0 0.0
        %1263 = vmatprep.subr.mxu0 0.0
        %1264 = vmatpush1.xpose.msra.mxu0 0.0
        %1265 = vmatprep.subr.mxu0 0.0
        %1266 = vmatpush1.xpose.msra.mxu0 0.0
        %1267 = vmatprep.subr.mxu0 0.0
        %1268 = vmatpush1.xpose.msra.mxu0 0.0
        %1269 = vmatprep.subr.mxu0 0.0
        %1270 = vmatpush1.xpose.msra.mxu0 0.0
        %1271 = vmatprep.subr.mxu0 0.0
        %1272 = vmatpush1.xpose.msra.mxu0 0.0
        %1273 = vmatprep.subr.mxu0 0.0
        %1274 = vmatpush1.xpose.msra.mxu0 0.0
        %1275 = vmatprep.subr.mxu0 0.0
        %1276 = vmatpush1.xpose.msra.mxu0 %v1245
        %1277 = vmatprep.subr.mxu0 0.0
        %1278 = vmatpush1.xpose.msra.mxu0 %v1243
        %1279 = vmatprep.subr.mxu0 0.0
        %1280 = vmatpush2.xpose.msra.mxu0 0.0
        %1281 = vmatprep.subr.mxu0 0.0
        %1282 = vmatpush2.xpose.msra.mxu0 0.0
        %1283 = vmatprep.subr.mxu0 0.0
        %1284 = vmatpush2.xpose.msra.mxu0 0.0
        %1285 = vmatprep.subr.mxu0 0.0
        %1286 = vmatpush2.xpose.msra.mxu0 0.0
        %1287 = vmatprep.subr.mxu0 0.0
        %1288 = vmatpush2.xpose.msra.mxu0 0.0
        %1289 = vmatprep.subr.mxu0 0.0
        %1290 = vmatpush2.xpose.msra.mxu0 0.0
        %1291 = vmatprep.subr.mxu0 0.0
        %1292 = vmatpush2.xpose.msra.mxu0 0.0
        %1293 = vmatprep.subr.mxu0 0.0
        %1294 = vmatpush2.xpose.msra.mxu0 0.0
        %1295 = vmatprep.subr.mxu0 0.0
        %1296 = vmatpush2.xpose.msra.mxu0 0.0
        %1297 = vmatprep.subr.mxu0 0.0
        %1298 = vmatpush2.xpose.msra.mxu0 0.0
        %1299 = vmatprep.subr.mxu0 0.0
        %1300 = vmatpush2.xpose.msra.mxu0 0.0
        %1301 = vmatprep.subr.mxu0 0.0
        %1302 = vmatpush2.xpose.msra.mxu0 0.0
        %1303 = vmatprep.subr.mxu0 0.0
        %1304 = vmatpush2.xpose.msra.mxu0 0.0
        %1305 = vmatprep.subr.mxu0 0.0
        %1306 = vmatpush2.xpose.msra.mxu0 0.0
        %1307 = vmatprep.subr.mxu0 0.0
        %1308 = vmatpush2.xpose.msra.mxu0 0.0
        %1309 = vmatprep.subr.mxu0 0.0
        %1310 = vmatpush2.xpose.msra.mxu0 0.0
        %1311 = vmatprep.mubr.f32.mxu0 0.0
        %1312 = vmatmul.mubr.f32.gmra.mxu0 %v1239
        %v1313 = vpop.f32.mrf.mxu0
        %v1314 = vadd.f32 0.0, %v1313
        %v1315 = vpop.f32.mrf.mxu0
        %1316 = vmatprep.mubr.f32.mxu0 0.0
        %1317 = vmatmul.mubr.f32.gmra.mxu0 %v1241
        %v1318 = vpop.f32.mrf.mxu0
        %v1319 = vadd.f32 0.0, %v1318
        %v1320 = vpop.f32.mrf.mxu0
        %1321 = vdwg.mxu0
        %1324 = vrot.lane.b32.xlu0 %v1217, 96
        %v1325 = vpop.permute.xlu0 %1324
        %1326 = vrot.lane.b32.xlu0 %v1218, 96
        %v1327 = vpop.permute.xlu0 %1326
        %1330 = vrot.lane.b32.xlu0 %v1221, 96
        %v1331 = vpop.permute.xlu0 %1330
        %1332 = vrot.lane.b32.xlu0 %v1222, 96
        %v1333 = vpop.permute.xlu0 %1332
        %v1334 = vsel %vm829, %v1325, 0
        %v1336 = vsel %vm829, %v1327, 0
        %v1338 = vsel %vm829, %v1331, 0
        %v1340 = vsel %vm829, %v1333, 0
        %1342 = vmatprep.subr.mxu0 0.0
        %1343 = vmatpush1.xpose.msra.mxu0 0.0
        %1344 = vmatprep.subr.mxu0 0.0
        %1345 = vmatpush1.xpose.msra.mxu0 0.0
        %1346 = vmatprep.subr.mxu0 0.0
        %1347 = vmatpush1.xpose.msra.mxu0 0.0
        %1348 = vmatprep.subr.mxu0 0.0
        %1349 = vmatpush1.xpose.msra.mxu0 0.0
        %1350 = vmatprep.subr.mxu0 0.0
        %1351 = vmatpush1.xpose.msra.mxu0 0.0
        %1352 = vmatprep.subr.mxu0 0.0
        %1353 = vmatpush1.xpose.msra.mxu0 0.0
        %1354 = vmatprep.subr.mxu0 0.0
        %1355 = vmatpush1.xpose.msra.mxu0 0.0
        %1356 = vmatprep.subr.mxu0 0.0
        %1357 = vmatpush1.xpose.msra.mxu0 0.0
        %1358 = vmatprep.subr.mxu0 0.0
        %1359 = vmatpush1.xpose.msra.mxu0 0.0
        %1360 = vmatprep.subr.mxu0 0.0
        %1361 = vmatpush1.xpose.msra.mxu0 0.0
        %1362 = vmatprep.subr.mxu0 0.0
        %1363 = vmatpush1.xpose.msra.mxu0 0.0
        %1364 = vmatprep.subr.mxu0 0.0
        %1365 = vmatpush1.xpose.msra.mxu0 0.0
        %1366 = vmatprep.subr.mxu0 0.0
        %1367 = vmatpush1.xpose.msra.mxu0 0.0
        %1368 = vmatprep.subr.mxu0 0.0
        %1369 = vmatpush1.xpose.msra.mxu0 0.0
        %1370 = vmatprep.subr.mxu0 0.0
        %1371 = vmatpush1.xpose.msra.mxu0 %v1340
        %1372 = vmatprep.subr.mxu0 0.0
        %1373 = vmatpush1.xpose.msra.mxu0 %v1338
        %1374 = vmatprep.subr.mxu0 0.0
        %1375 = vmatpush2.xpose.msra.mxu0 0.0
        %1376 = vmatprep.subr.mxu0 0.0
        %1377 = vmatpush2.xpose.msra.mxu0 0.0
        %1378 = vmatprep.subr.mxu0 0.0
        %1379 = vmatpush2.xpose.msra.mxu0 0.0
        %1380 = vmatprep.subr.mxu0 0.0
        %1381 = vmatpush2.xpose.msra.mxu0 0.0
        %1382 = vmatprep.subr.mxu0 0.0
        %1383 = vmatpush2.xpose.msra.mxu0 0.0
        %1384 = vmatprep.subr.mxu0 0.0
        %1385 = vmatpush2.xpose.msra.mxu0 0.0
        %1386 = vmatprep.subr.mxu0 0.0
        %1387 = vmatpush2.xpose.msra.mxu0 0.0
        %1388 = vmatprep.subr.mxu0 0.0
        %1389 = vmatpush2.xpose.msra.mxu0 0.0
        %1390 = vmatprep.subr.mxu0 0.0
        %1391 = vmatpush2.xpose.msra.mxu0 0.0
        %1392 = vmatprep.subr.mxu0 0.0
        %1393 = vmatpush2.xpose.msra.mxu0 0.0
        %1394 = vmatprep.subr.mxu0 0.0
        %1395 = vmatpush2.xpose.msra.mxu0 0.0
        %1396 = vmatprep.subr.mxu0 0.0
        %1397 = vmatpush2.xpose.msra.mxu0 0.0
        %1398 = vmatprep.subr.mxu0 0.0
        %1399 = vmatpush2.xpose.msra.mxu0 0.0
        %1400 = vmatprep.subr.mxu0 0.0
        %1401 = vmatpush2.xpose.msra.mxu0 0.0
        %1402 = vmatprep.subr.mxu0 0.0
        %1403 = vmatpush2.xpose.msra.mxu0 0.0
        %1404 = vmatprep.subr.mxu0 0.0
        %1405 = vmatpush2.xpose.msra.mxu0 0.0
        %1406 = vmatprep.mubr.f32.mxu0 0.0
        %1407 = vmatmul.mubr.f32.gmra.mxu0 %v1334
        %v1408 = vpop.f32.mrf.mxu0
        %v1409 = vadd.f32 0.0, %v1408
        %v1410 = vpop.f32.mrf.mxu0
        %1411 = vmatprep.mubr.f32.mxu0 0.0
        %1412 = vmatmul.mubr.f32.gmra.mxu0 %v1336
        %v1413 = vpop.f32.mrf.mxu0
        %v1414 = vadd.f32 0.0, %v1413
        %v1415 = vpop.f32.mrf.mxu0
        %1416 = vdwg.mxu0
        %v1417 = vsel %vm1004, %v1314, -inf
        %1418 = vmax.xlane.f32.xlu0 %v1417
        %v1419 = vpop.xlane.xlu0 %1418
        %v1420 = vsel %vm1004, %v1319, -inf
        %1421 = vmax.xlane.f32.xlu0 %v1420
        %v1422 = vpop.xlane.xlu0 %1421
        %v1423 = vsel %vm1004, %v1409, -inf
        %1424 = vmax.xlane.f32.xlu0 %v1423
        %v1425 = vpop.xlane.xlu0 %1424
        %v1426 = vsel %vm1004, %v1414, -inf
        %1427 = vmax.xlane.f32.xlu0 %v1426
        %v1428 = vpop.xlane.xlu0 %1427
        %v1429 = vsub.f32 %v1314, %v1419
        %v1430 = vsub.f32 %v1319, %v1422
        %v1431 = vsub.f32 %v1409, %v1425
        %v1432 = vsub.f32 %v1414, %v1428
        %v1433 = vmul.f32 %v1429, 1.442695
        %v1434 = vpow.pop %v1433
        %v1435 = vmul.f32 %v1430, 1.442695
        %v1436 = vpow.pop %v1435
        %v1437 = vmul.f32 %v1431, 1.442695
        %v1438 = vpow.pop %v1437
        %v1439 = vmul.f32 %v1432, 1.442695
        %v1440 = vpow.pop %v1439
        %v1441 = vsel %vm1004, %v1434, 0.0
        %1442 = vadd.xlane.f32.xlu0 %v1441
        %v1443 = vpop.xlane.xlu0 %1442
        %v1444 = vsel %vm1004, %v1436, 0.0
        %1445 = vadd.xlane.f32.xlu0 %v1444
        %v1446 = vpop.xlane.xlu0 %1445
        %v1447 = vsel %vm1004, %v1438, 0.0
        %1448 = vadd.xlane.f32.xlu0 %v1447
        %v1449 = vpop.xlane.xlu0 %1448
        %v1450 = vsel %vm1004, %v1440, 0.0
        %1451 = vadd.xlane.f32.xlu0 %v1450
        %v1452 = vpop.xlane.xlu0 %1451
        %v1453 = vrcp.pop %v1443
        %v1454 = vmul.f32 %v1434, %v1453
        %v1455 = vrcp.pop %v1446
        %v1456 = vmul.f32 %v1436, %v1455
        %v1457 = vrcp.pop %v1449
        %v1458 = vmul.f32 %v1438, %v1457
        %v1459 = vrcp.pop %v1452
        %v1460 = vmul.f32 %v1440, %v1459
        %1463 = vrot.lane.b32.xlu0 %v1223, 96
        %v1464 = vpop.permute.xlu0 %1463
        %1465 = vrot.lane.b32.xlu0 %v1224, 96
        %v1466 = vpop.permute.xlu0 %1465
        %v1470 = vsel %vm1004, %v1454, 0
        %v1473 = vsel %vm1004, %v1456, 0
        %1475 = vmatprep.subr.mxu0 0.0
        %1476 = vmatpush1.msra.mxu0 0.0
        %1477 = vmatprep.subr.mxu0 0.0
        %1478 = vmatpush1.msra.mxu0 0.0
        %1479 = vmatprep.subr.mxu0 0.0
        %1480 = vmatpush1.msra.mxu0 0.0
        %1481 = vmatprep.subr.mxu0 0.0
        %1482 = vmatpush1.msra.mxu0 0.0
        %1483 = vmatprep.subr.mxu0 0.0
        %1484 = vmatpush1.msra.mxu0 0.0
        %1485 = vmatprep.subr.mxu0 0.0
        %1486 = vmatpush1.msra.mxu0 0.0
        %1487 = vmatprep.subr.mxu0 0.0
        %1488 = vmatpush1.msra.mxu0 0.0
        %1489 = vmatprep.subr.mxu0 0.0
        %1490 = vmatpush1.msra.mxu0 0.0
        %1491 = vmatprep.subr.mxu0 0.0
        %1492 = vmatpush1.msra.mxu0 0.0
        %1493 = vmatprep.subr.mxu0 0.0
        %1494 = vmatpush1.msra.mxu0 0.0
        %1495 = vmatprep.subr.mxu0 0.0
        %1496 = vmatpush1.msra.mxu0 0.0
        %1497 = vmatprep.subr.mxu0 0.0
        %1498 = vmatpush1.msra.mxu0 0.0
        %1499 = vmatprep.subr.mxu0 0.0
        %1500 = vmatpush1.msra.mxu0 0.0
        %1501 = vmatprep.subr.mxu0 0.0
        %1502 = vmatpush1.msra.mxu0 0.0
        %1503 = vmatprep.subr.mxu0 0.0
        %1504 = vmatpush1.msra.mxu0 %v1466
        %1505 = vmatprep.subr.mxu0 0.0
        %1506 = vmatpush1.msra.mxu0 %v1464
        %1507 = vmatprep.subr.mxu0 0.0
        %1508 = vmatpush2.msra.mxu0 0.0
        %1509 = vmatprep.subr.mxu0 0.0
        %1510 = vmatpush2.msra.mxu0 0.0
        %1511 = vmatprep.subr.mxu0 0.0
        %1512 = vmatpush2.msra.mxu0 0.0
        %1513 = vmatprep.subr.mxu0 0.0
        %1514 = vmatpush2.msra.mxu0 0.0
        %1515 = vmatprep.subr.mxu0 0.0
        %1516 = vmatpush2.msra.mxu0 0.0
        %1517 = vmatprep.subr.mxu0 0.0
        %1518 = vmatpush2.msra.mxu0 0.0
        %1519 = vmatprep.subr.mxu0 0.0
        %1520 = vmatpush2.msra.mxu0 0.0
        %1521 = vmatprep.subr.mxu0 0.0
        %1522 = vmatpush2.msra.mxu0 0.0
        %1523 = vmatprep.subr.mxu0 0.0
        %1524 = vmatpush2.msra.mxu0 0.0
        %1525 = vmatprep.subr.mxu0 0.0
        %1526 = vmatpush2.msra.mxu0 0.0
        %1527 = vmatprep.subr.mxu0 0.0
        %1528 = vmatpush2.msra.mxu0 0.0
        %1529 = vmatprep.subr.mxu0 0.0
        %1530 = vmatpush2.msra.mxu0 0.0
        %1531 = vmatprep.subr.mxu0 0.0
        %1532 = vmatpush2.msra.mxu0 0.0
        %1533 = vmatprep.subr.mxu0 0.0
        %1534 = vmatpush2.msra.mxu0 0.0
        %1535 = vmatprep.subr.mxu0 0.0
        %1536 = vmatpush2.msra.mxu0 0.0
        %1537 = vmatprep.subr.mxu0 0.0
        %1538 = vmatpush2.msra.mxu0 0.0
        %1539 = vmatprep.mubr.f32.mxu0 0.0
        %1540 = vmatmul.mubr.f32.gmra.mxu0 %v1470
        %v1541 = vpop.f32.mrf.mxu0
        %v1542 = vadd.f32 0.0, %v1541
        %v1543 = vpop.f32.mrf.mxu0
        %1544 = vmatprep.mubr.f32.mxu0 0.0
        %1545 = vmatmul.mubr.f32.gmra.mxu0 %v1473
        %v1546 = vpop.f32.mrf.mxu0
        %v1547 = vadd.f32 0.0, %v1546
        %v1548 = vpop.f32.mrf.mxu0
        %1549 = vdwg.mxu0
        %1552 = vrot.lane.b32.xlu0 %v1225, 96
        %v1553 = vpop.permute.xlu0 %1552
        %1554 = vrot.lane.b32.xlu0 %v1226, 96
        %v1555 = vpop.permute.xlu0 %1554
        %v1559 = vsel %vm1004, %v1458, 0
        %v1562 = vsel %vm1004, %v1460, 0
        %1564 = vmatprep.subr.mxu0 0.0
        %1565 = vmatpush1.msra.mxu0 0.0
        %1566 = vmatprep.subr.mxu0 0.0
        %1567 = vmatpush1.msra.mxu0 0.0
        %1568 = vmatprep.subr.mxu0 0.0
        %1569 = vmatpush1.msra.mxu0 0.0
        %1570 = vmatprep.subr.mxu0 0.0
        %1571 = vmatpush1.msra.mxu0 0.0
        %1572 = vmatprep.subr.mxu0 0.0
        %1573 = vmatpush1.msra.mxu0 0.0
        %1574 = vmatprep.subr.mxu0 0.0
        %1575 = vmatpush1.msra.mxu0 0.0
        %1576 = vmatprep.subr.mxu0 0.0
        %1577 = vmatpush1.msra.mxu0 0.0
        %1578 = vmatprep.subr.mxu0 0.0
        %1579 = vmatpush1.msra.mxu0 0.0
        %1580 = vmatprep.subr.mxu0 0.0
        %1581 = vmatpush1.msra.mxu0 0.0
        %1582 = vmatprep.subr.mxu0 0.0
        %1583 = vmatpush1.msra.mxu0 0.0
        %1584 = vmatprep.subr.mxu0 0.0
        %1585 = vmatpush1.msra.mxu0 0.0
        %1586 = vmatprep.subr.mxu0 0.0
        %1587 = vmatpush1.msra.mxu0 0.0
        %1588 = vmatprep.subr.mxu0 0.0
        %1589 = vmatpush1.msra.mxu0 0.0
        %1590 = vmatprep.subr.mxu0 0.0
        %1591 = vmatpush1.msra.mxu0 0.0
        %1592 = vmatprep.subr.mxu0 0.0
        %1593 = vmatpush1.msra.mxu0 %v1555
        %1594 = vmatprep.subr.mxu0 0.0
        %1595 = vmatpush1.msra.mxu0 %v1553
        %1596 = vmatprep.subr.mxu0 0.0
        %1597 = vmatpush2.msra.mxu0 0.0
        %1598 = vmatprep.subr.mxu0 0.0
        %1599 = vmatpush2.msra.mxu0 0.0
        %1600 = vmatprep.subr.mxu0 0.0
        %1601 = vmatpush2.msra.mxu0 0.0
        %1602 = vmatprep.subr.mxu0 0.0
        %1603 = vmatpush2.msra.mxu0 0.0
        %1604 = vmatprep.subr.mxu0 0.0
        %1605 = vmatpush2.msra.mxu0 0.0
        %1606 = vmatprep.subr.mxu0 0.0
        %1607 = vmatpush2.msra.mxu0 0.0
        %1608 = vmatprep.subr.mxu0 0.0
        %1609 = vmatpush2.msra.mxu0 0.0
        %1610 = vmatprep.subr.mxu0 0.0
        %1611 = vmatpush2.msra.mxu0 0.0
        %1612 = vmatprep.subr.mxu0 0.0
        %1613 = vmatpush2.msra.mxu0 0.0
        %1614 = vmatprep.subr.mxu0 0.0
        %1615 = vmatpush2.msra.mxu0 0.0
        %1616 = vmatprep.subr.mxu0 0.0
        %1617 = vmatpush2.msra.mxu0 0.0
        %1618 = vmatprep.subr.mxu0 0.0
        %1619 = vmatpush2.msra.mxu0 0.0
        %1620 = vmatprep.subr.mxu0 0.0
        %1621 = vmatpush2.msra.mxu0 0.0
        %1622 = vmatprep.subr.mxu0 0.0
        %1623 = vmatpush2.msra.mxu0 0.0
        %1624 = vmatprep.subr.mxu0 0.0
        %1625 = vmatpush2.msra.mxu0 0.0
        %1626 = vmatprep.subr.mxu0 0.0
        %1627 = vmatpush2.msra.mxu0 0.0
        %1628 = vmatprep.mubr.f32.mxu0 0.0
        %1629 = vmatmul.mubr.f32.gmra.mxu0 %v1559
        %v1630 = vpop.f32.mrf.mxu0
        %v1631 = vadd.f32 0.0, %v1630
        %v1632 = vpop.f32.mrf.mxu0
        %1633 = vmatprep.mubr.f32.mxu0 0.0
        %1634 = vmatmul.mubr.f32.gmra.mxu0 %v1562
        %v1635 = vpop.f32.mrf.mxu0
        %v1636 = vadd.f32 0.0, %v1635
        %v1637 = vpop.f32.mrf.mxu0
        %1638 = vdwg.mxu0
        %v1639 = vld [vmem:[#allocation11 + $0x20] sm:$0xff]
        %v1640 = vld [vmem:[#allocation11 + $0x28] sm:$0xff]
        %v1641 = vld [vmem:[#allocation11 + $0x30] sm:$0xff]
        %v1642 = vld [vmem:[#allocation11 + $0x38] sm:$0xff]
        %v1644 = vsel %vm829, %v1542, 0
        %v1647 = vsel %vm829, %v1547, 0
        %v1650 = vsel %vm829, %v1631, 0
        %v1653 = vsel %vm829, %v1636, 0
        %1655 = vmatprep.subr.mxu0 0.0
        %1656 = vmatpush1.msra.mxu0 0.0
        %1657 = vmatprep.subr.mxu0 0.0
        %1658 = vmatpush1.msra.mxu0 0.0
        %1659 = vmatprep.subr.mxu0 0.0
        %1660 = vmatpush1.msra.mxu0 0.0
        %1661 = vmatprep.subr.mxu0 0.0
        %1662 = vmatpush1.msra.mxu0 0.0
        %1663 = vmatprep.subr.mxu0 0.0
        %1664 = vmatpush1.msra.mxu0 0.0
        %1665 = vmatprep.subr.mxu0 0.0
        %1666 = vmatpush1.msra.mxu0 0.0
        %1667 = vmatprep.subr.mxu0 0.0
        %1668 = vmatpush1.msra.mxu0 0.0
        %1669 = vmatprep.subr.mxu0 0.0
        %1670 = vmatpush1.msra.mxu0 0.0
        %1671 = vmatprep.subr.mxu0 0.0
        %1672 = vmatpush1.msra.mxu0 0.0
        %1673 = vmatprep.subr.mxu0 0.0
        %1674 = vmatpush1.msra.mxu0 0.0
        %1675 = vmatprep.subr.mxu0 0.0
        %1676 = vmatpush1.msra.mxu0 0.0
        %1677 = vmatprep.subr.mxu0 0.0
        %1678 = vmatpush1.msra.mxu0 0.0
        %1679 = vmatprep.subr.mxu0 0.0
        %1680 = vmatpush1.msra.mxu0 %v1642
        %1681 = vmatprep.subr.mxu0 0.0
        %1682 = vmatpush1.msra.mxu0 %v1641
        %1683 = vmatprep.subr.mxu0 0.0
        %1684 = vmatpush1.msra.mxu0 %v1640
        %1685 = vmatprep.subr.mxu0 0.0
        %1686 = vmatpush1.msra.mxu0 %v1639
        %1687 = vmatprep.subr.mxu0 0.0
        %1688 = vmatpush2.msra.mxu0 0.0
        %1689 = vmatprep.subr.mxu0 0.0
        %1690 = vmatpush2.msra.mxu0 0.0
        %1691 = vmatprep.subr.mxu0 0.0
        %1692 = vmatpush2.msra.mxu0 0.0
        %1693 = vmatprep.subr.mxu0 0.0
        %1694 = vmatpush2.msra.mxu0 0.0
        %1695 = vmatprep.subr.mxu0 0.0
        %1696 = vmatpush2.msra.mxu0 0.0
        %1697 = vmatprep.subr.mxu0 0.0
        %1698 = vmatpush2.msra.mxu0 0.0
        %1699 = vmatprep.subr.mxu0 0.0
        %1700 = vmatpush2.msra.mxu0 0.0
        %1701 = vmatprep.subr.mxu0 0.0
        %1702 = vmatpush2.msra.mxu0 0.0
        %1703 = vmatprep.subr.mxu0 0.0
        %1704 = vmatpush2.msra.mxu0 0.0
        %1705 = vmatprep.subr.mxu0 0.0
        %1706 = vmatpush2.msra.mxu0 0.0
        %1707 = vmatprep.subr.mxu0 0.0
        %1708 = vmatpush2.msra.mxu0 0.0
        %1709 = vmatprep.subr.mxu0 0.0
        %1710 = vmatpush2.msra.mxu0 0.0
        %1711 = vmatprep.subr.mxu0 0.0
        %1712 = vmatpush2.msra.mxu0 0.0
        %1713 = vmatprep.subr.mxu0 0.0
        %1714 = vmatpush2.msra.mxu0 0.0
        %1715 = vmatprep.subr.mxu0 0.0
        %1716 = vmatpush2.msra.mxu0 0.0
        %1717 = vmatprep.subr.mxu0 0.0
        %1718 = vmatpush2.msra.mxu0 0.0
        %1719 = vmatprep.mubr.f32.mxu0 0.0
        %1720 = vmatmul.mubr.f32.gmra.mxu0 %v1644
        %v1721 = vpop.f32.mrf.mxu0
        %v1722 = vadd.f32 0.0, %v1721
        %v1723 = vpop.f32.mrf.mxu0
        %1724 = vmatprep.mubr.f32.mxu0 0.0
        %1725 = vmatmul.mubr.f32.gmra.mxu0 %v1647
        %v1726 = vpop.f32.mrf.mxu0
        %v1727 = vadd.f32 0.0, %v1726
        %v1728 = vpop.f32.mrf.mxu0
        %1729 = vmatprep.mubr.f32.mxu0 0.0
        %1730 = vmatmul.mubr.f32.gmra.mxu0 %v1650
        %v1731 = vpop.f32.mrf.mxu0
        %v1732 = vadd.f32 0.0, %v1731
        %v1733 = vpop.f32.mrf.mxu0
        %1734 = vmatprep.mubr.f32.mxu0 0.0
        %1735 = vmatmul.mubr.f32.gmra.mxu0 %v1653
        %v1736 = vpop.f32.mrf.mxu0
        %v1737 = vadd.f32 0.0, %v1736
        %v1738 = vpop.f32.mrf.mxu0
        %1739 = vdwg.mxu0
        %v1741 = vsel %vm829, %v1122, 0
        %v1744 = vsel %vm829, %v1127, 0
        %v1747 = vsel %vm829, %v1203, 0
        %v1750 = vsel %vm829, %v1208, 0
        %1752 = vmatprep.subr.mxu0 0.0
        %1753 = vmatpush1.msra.mxu0 0.0
        %1754 = vmatprep.subr.mxu0 0.0
        %1755 = vmatpush1.msra.mxu0 0.0
        %1756 = vmatprep.subr.mxu0 0.0
        %1757 = vmatpush1.msra.mxu0 0.0
        %1758 = vmatprep.subr.mxu0 0.0
        %1759 = vmatpush1.msra.mxu0 0.0
        %1760 = vmatprep.subr.mxu0 0.0
        %1761 = vmatpush1.msra.mxu0 0.0
        %1762 = vmatprep.subr.mxu0 0.0
        %1763 = vmatpush1.msra.mxu0 0.0
        %1764 = vmatprep.subr.mxu0 0.0
        %1765 = vmatpush1.msra.mxu0 0.0
        %1766 = vmatprep.subr.mxu0 0.0
        %1767 = vmatpush1.msra.mxu0 0.0
        %1768 = vmatprep.subr.mxu0 0.0
        %1769 = vmatpush1.msra.mxu0 0.0
        %1770 = vmatprep.subr.mxu0 0.0
        %1771 = vmatpush1.msra.mxu0 0.0
        %1772 = vmatprep.subr.mxu0 0.0
        %1773 = vmatpush1.msra.mxu0 0.0
        %1774 = vmatprep.subr.mxu0 0.0
        %1775 = vmatpush1.msra.mxu0 0.0
        %1776 = vmatprep.subr.mxu0 0.0
        %1777 = vmatpush1.msra.mxu0 %v1214
        %1778 = vmatprep.subr.mxu0 0.0
        %1779 = vmatpush1.msra.mxu0 %v1213
        %1780 = vmatprep.subr.mxu0 0.0
        %1781 = vmatpush1.msra.mxu0 %v1212
        %1782 = vmatprep.subr.mxu0 0.0
        %1783 = vmatpush1.msra.mxu0 %v1211
        %1784 = vmatprep.subr.mxu0 0.0
        %1785 = vmatpush2.msra.mxu0 0.0
        %1786 = vmatprep.subr.mxu0 0.0
        %1787 = vmatpush2.msra.mxu0 0.0
        %1788 = vmatprep.subr.mxu0 0.0
        %1789 = vmatpush2.msra.mxu0 0.0
        %1790 = vmatprep.subr.mxu0 0.0
        %1791 = vmatpush2.msra.mxu0 0.0
        %1792 = vmatprep.subr.mxu0 0.0
        %1793 = vmatpush2.msra.mxu0 0.0
        %1794 = vmatprep.subr.mxu0 0.0
        %1795 = vmatpush2.msra.mxu0 0.0
        %1796 = vmatprep.subr.mxu0 0.0
        %1797 = vmatpush2.msra.mxu0 0.0
        %1798 = vmatprep.subr.mxu0 0.0
        %1799 = vmatpush2.msra.mxu0 0.0
        %1800 = vmatprep.subr.mxu0 0.0
        %1801 = vmatpush2.msra.mxu0 0.0
        %1802 = vmatprep.subr.mxu0 0.0
        %1803 = vmatpush2.msra.mxu0 0.0
        %1804 = vmatprep.subr.mxu0 0.0
        %1805 = vmatpush2.msra.mxu0 0.0
        %1806 = vmatprep.subr.mxu0 0.0
        %1807 = vmatpush2.msra.mxu0 0.0
        %1808 = vmatprep.subr.mxu0 0.0
        %1809 = vmatpush2.msra.mxu0 0.0
        %1810 = vmatprep.subr.mxu0 0.0
        %1811 = vmatpush2.msra.mxu0 0.0
        %1812 = vmatprep.subr.mxu0 0.0
        %1813 = vmatpush2.msra.mxu0 0.0
        %1814 = vmatprep.subr.mxu0 0.0
        %1815 = vmatpush2.msra.mxu0 0.0
        %1816 = vmatprep.mubr.f32.mxu0 0.0
        %1817 = vmatmul.mubr.f32.gmra.mxu0 %v1741
        %v1818 = vpop.f32.mrf.mxu0
        %v1819 = vadd.f32 %v1722, %v1818
        %v1820 = vpop.f32.mrf.mxu0
        %1821 = vmatprep.mubr.f32.mxu0 0.0
        %1822 = vmatmul.mubr.f32.gmra.mxu0 %v1744
        %v1823 = vpop.f32.mrf.mxu0
        %v1824 = vadd.f32 %v1727, %v1823
        %v1825 = vpop.f32.mrf.mxu0
        %1826 = vmatprep.mubr.f32.mxu0 0.0
        %1827 = vmatmul.mubr.f32.gmra.mxu0 %v1747
        %v1828 = vpop.f32.mrf.mxu0
        %v1829 = vadd.f32 %v1732, %v1828
        %v1830 = vpop.f32.mrf.mxu0
        %1831 = vmatprep.mubr.f32.mxu0 0.0
        %1832 = vmatmul.mubr.f32.gmra.mxu0 %v1750
        %v1833 = vpop.f32.mrf.mxu0
        %v1834 = vadd.f32 %v1737, %v1833
        %v1835 = vpop.f32.mrf.mxu0
        %1836 = vdwg.mxu0
        %v1837 = vld [vmem:[#allocation2] sm:$0xff]
        %v1838 = vld [vmem:[#allocation2 + $0x18] sm:$0xff]
        %v1839 = vld [vmem:[#allocation2 + $0x30] sm:$0xff]
        %v1840 = vld [vmem:[#allocation2 + $0x48] sm:$0xff]
        %v1841 = vld [vmem:[#allocation2 + $0x8] sm:$0xff]
        %v1842 = vld [vmem:[#allocation2 + $0x20] sm:$0xff]
        %v1843 = vld [vmem:[#allocation2 + $0x38] sm:$0xff]
        %v1844 = vld [vmem:[#allocation2 + $0x50] sm:$0xff]
        %v1845 = vld [vmem:[#allocation2 + $0x10] sm:$0xff]
        %v1846 = vld [vmem:[#allocation2 + $0x28] sm:$0xff]
        %v1847 = vld [vmem:[#allocation2 + $0x40] sm:$0xff]
        %v1848 = vld [vmem:[#allocation2 + $0x58] sm:$0xff]
        %1851 = vrot.lane.b32.xlu0 %v1837, 64
        %v1852 = vpop.permute.xlu0 %1851
        %1853 = vrot.lane.b32.xlu0 %v1838, 64
        %v1854 = vpop.permute.xlu0 %1853
        %1857 = vrot.lane.b32.xlu0 %v1841, 64
        %v1858 = vpop.permute.xlu0 %1857
        %1859 = vrot.lane.b32.xlu0 %v1842, 64
        %v1860 = vpop.permute.xlu0 %1859
        %v1861 = vsel %vm829, %v1852, 0
        %v1863 = vsel %vm829, %v1854, 0
        %v1865 = vsel %vm829, %v1858, 0
        %v1867 = vsel %vm829, %v1860, 0
        %1869 = vmatprep.subr.mxu0 0.0
        %1870 = vmatpush1.xpose.msra.mxu0 0.0
        %1871 = vmatprep.subr.mxu0 0.0
        %1872 = vmatpush1.xpose.msra.mxu0 0.0
        %1873 = vmatprep.subr.mxu0 0.0
        %1874 = vmatpush1.xpose.msra.mxu0 0.0
        %1875 = vmatprep.subr.mxu0 0.0
        %1876 = vmatpush1.xpose.msra.mxu0 0.0
        %1877 = vmatprep.subr.mxu0 0.0
        %1878 = vmatpush1.xpose.msra.mxu0 0.0
        %1879 = vmatprep.subr.mxu0 0.0
        %1880 = vmatpush1.xpose.msra.mxu0 0.0
        %1881 = vmatprep.subr.mxu0 0.0
        %1882 = vmatpush1.xpose.msra.mxu0 0.0
        %1883 = vmatprep.subr.mxu0 0.0
        %1884 = vmatpush1.xpose.msra.mxu0 0.0
        %1885 = vmatprep.subr.mxu0 0.0
        %1886 = vmatpush1.xpose.msra.mxu0 0.0
        %1887 = vmatprep.subr.mxu0 0.0
        %1888 = vmatpush1.xpose.msra.mxu0 0.0
        %1889 = vmatprep.subr.mxu0 0.0
        %1890 = vmatpush1.xpose.msra.mxu0 0.0
        %1891 = vmatprep.subr.mxu0 0.0
        %1892 = vmatpush1.xpose.msra.mxu0 0.0
        %1893 = vmatprep.subr.mxu0 0.0
        %1894 = vmatpush1.xpose.msra.mxu0 0.0
        %1895 = vmatprep.subr.mxu0 0.0
        %1896 = vmatpush1.xpose.msra.mxu0 0.0
        %1897 = vmatprep.subr.mxu0 0.0
        %1898 = vmatpush1.xpose.msra.mxu0 %v1867
        %1899 = vmatprep.subr.mxu0 0.0
        %1900 = vmatpush1.xpose.msra.mxu0 %v1865
        %1901 = vmatprep.subr.mxu0 0.0
        %1902 = vmatpush2.xpose.msra.mxu0 0.0
        %1903 = vmatprep.subr.mxu0 0.0
        %1904 = vmatpush2.xpose.msra.mxu0 0.0
        %1905 = vmatprep.subr.mxu0 0.0
        %1906 = vmatpush2.xpose.msra.mxu0 0.0
        %1907 = vmatprep.subr.mxu0 0.0
        %1908 = vmatpush2.xpose.msra.mxu0 0.0
        %1909 = vmatprep.subr.mxu0 0.0
        %1910 = vmatpush2.xpose.msra.mxu0 0.0
        %1911 = vmatprep.subr.mxu0 0.0
        %1912 = vmatpush2.xpose.msra.mxu0 0.0
        %1913 = vmatprep.subr.mxu0 0.0
        %1914 = vmatpush2.xpose.msra.mxu0 0.0
        %1915 = vmatprep.subr.mxu0 0.0
        %1916 = vmatpush2.xpose.msra.mxu0 0.0
        %1917 = vmatprep.subr.mxu0 0.0
        %1918 = vmatpush2.xpose.msra.mxu0 0.0
        %1919 = vmatprep.subr.mxu0 0.0
        %1920 = vmatpush2.xpose.msra.mxu0 0.0
        %1921 = vmatprep.subr.mxu0 0.0
        %1922 = vmatpush2.xpose.msra.mxu0 0.0
        %1923 = vmatprep.subr.mxu0 0.0
        %1924 = vmatpush2.xpose.msra.mxu0 0.0
        %1925 = vmatprep.subr.mxu0 0.0
        %1926 = vmatpush2.xpose.msra.mxu0 0.0
        %1927 = vmatprep.subr.mxu0 0.0
        %1928 = vmatpush2.xpose.msra.mxu0 0.0
        %1929 = vmatprep.subr.mxu0 0.0
        %1930 = vmatpush2.xpose.msra.mxu0 0.0
        %1931 = vmatprep.subr.mxu0 0.0
        %1932 = vmatpush2.xpose.msra.mxu0 0.0
        %1933 = vmatprep.mubr.f32.mxu0 0.0
        %1934 = vmatmul.mubr.f32.gmra.mxu0 %v1861
        %v1935 = vpop.f32.mrf.mxu0
        %v1936 = vadd.f32 0.0, %v1935
        %v1937 = vpop.f32.mrf.mxu0
        %1938 = vmatprep.mubr.f32.mxu0 0.0
        %1939 = vmatmul.mubr.f32.gmra.mxu0 %v1863
        %v1940 = vpop.f32.mrf.mxu0
        %v1941 = vadd.f32 0.0, %v1940
        %v1942 = vpop.f32.mrf.mxu0
        %1943 = vdwg.mxu0
        %1946 = vrot.lane.b32.xlu0 %v1839, 64
        %v1947 = vpop.permute.xlu0 %1946
        %1948 = vrot.lane.b32.xlu0 %v1840, 64
        %v1949 = vpop.permute.xlu0 %1948
        %1952 = vrot.lane.b32.xlu0 %v1843, 64
        %v1953 = vpop.permute.xlu0 %1952
        %1954 = vrot.lane.b32.xlu0 %v1844, 64
        %v1955 = vpop.permute.xlu0 %1954
        %v1956 = vsel %vm829, %v1947, 0
        %v1958 = vsel %vm829, %v1949, 0
        %v1960 = vsel %vm829, %v1953, 0
        %v1962 = vsel %vm829, %v1955, 0
        %1964 = vmatprep.subr.mxu0 0.0
        %1965 = vmatpush1.xpose.msra.mxu0 0.0
        %1966 = vmatprep.subr.mxu0 0.0
        %1967 = vmatpush1.xpose.msra.mxu0 0.0
        %1968 = vmatprep.subr.mxu0 0.0
        %1969 = vmatpush1.xpose.msra.mxu0 0.0
        %1970 = vmatprep.subr.mxu0 0.0
        %1971 = vmatpush1.xpose.msra.mxu0 0.0
        %1972 = vmatprep.subr.mxu0 0.0
        %1973 = vmatpush1.xpose.msra.mxu0 0.0
        %1974 = vmatprep.subr.mxu0 0.0
        %1975 = vmatpush1.xpose.msra.mxu0 0.0
        %1976 = vmatprep.subr.mxu0 0.0
        %1977 = vmatpush1.xpose.msra.mxu0 0.0
        %1978 = vmatprep.subr.mxu0 0.0
        %1979 = vmatpush1.xpose.msra.mxu0 0.0
        %1980 = vmatprep.subr.mxu0 0.0
        %1981 = vmatpush1.xpose.msra.mxu0 0.0
        %1982 = vmatprep.subr.mxu0 0.0
        %1983 = vmatpush1.xpose.msra.mxu0 0.0
        %1984 = vmatprep.subr.mxu0 0.0
        %1985 = vmatpush1.xpose.msra.mxu0 0.0
        %1986 = vmatprep.subr.mxu0 0.0
        %1987 = vmatpush1.xpose.msra.mxu0 0.0
        %1988 = vmatprep.subr.mxu0 0.0
        %1989 = vmatpush1.xpose.msra.mxu0 0.0
        %1990 = vmatprep.subr.mxu0 0.0
        %1991 = vmatpush1.xpose.msra.mxu0 0.0
        %1992 = vmatprep.subr.mxu0 0.0
        %1993 = vmatpush1.xpose.msra.mxu0 %v1962
        %1994 = vmatprep.subr.mxu0 0.0
        %1995 = vmatpush1.xpose.msra.mxu0 %v1960
        %1996 = vmatprep.subr.mxu0 0.0
        %1997 = vmatpush2.xpose.msra.mxu0 0.0
        %1998 = vmatprep.subr.mxu0 0.0
        %1999 = vmatpush2.xpose.msra.mxu0 0.0
        %2000 = vmatprep.subr.mxu0 0.0
        %2001 = vmatpush2.xpose.msra.mxu0 0.0
        %2002 = vmatprep.subr.mxu0 0.0
        %2003 = vmatpush2.xpose.msra.mxu0 0.0
        %2004 = vmatprep.subr.mxu0 0.0
        %2005 = vmatpush2.xpose.msra.mxu0 0.0
        %2006 = vmatprep.subr.mxu0 0.0
        %2007 = vmatpush2.xpose.msra.mxu0 0.0
        %2008 = vmatprep.subr.mxu0 0.0
        %2009 = vmatpush2.xpose.msra.mxu0 0.0
        %2010 = vmatprep.subr.mxu0 0.0
        %2011 = vmatpush2.xpose.msra.mxu0 0.0
        %2012 = vmatprep.subr.mxu0 0.0
        %2013 = vmatpush2.xpose.msra.mxu0 0.0
        %2014 = vmatprep.subr.mxu0 0.0
        %2015 = vmatpush2.xpose.msra.mxu0 0.0
        %2016 = vmatprep.subr.mxu0 0.0
        %2017 = vmatpush2.xpose.msra.mxu0 0.0
        %2018 = vmatprep.subr.mxu0 0.0
        %2019 = vmatpush2.xpose.msra.mxu0 0.0
        %2020 = vmatprep.subr.mxu0 0.0
        %2021 = vmatpush2.xpose.msra.mxu0 0.0
        %2022 = vmatprep.subr.mxu0 0.0
        %2023 = vmatpush2.xpose.msra.mxu0 0.0
        %2024 = vmatprep.subr.mxu0 0.0
        %2025 = vmatpush2.xpose.msra.mxu0 0.0
        %2026 = vmatprep.subr.mxu0 0.0
        %2027 = vmatpush2.xpose.msra.mxu0 0.0
        %2028 = vmatprep.mubr.f32.mxu0 0.0
        %2029 = vmatmul.mubr.f32.gmra.mxu0 %v1956
        %v2030 = vpop.f32.mrf.mxu0
        %v2031 = vadd.f32 0.0, %v2030
        %v2032 = vpop.f32.mrf.mxu0
        %2033 = vmatprep.mubr.f32.mxu0 0.0
        %2034 = vmatmul.mubr.f32.gmra.mxu0 %v1958
        %v2035 = vpop.f32.mrf.mxu0
        %v2036 = vadd.f32 0.0, %v2035
        %v2037 = vpop.f32.mrf.mxu0
        %2038 = vdwg.mxu0
        %v2039 = vsel %vm1004, %v1936, -inf
        %2040 = vmax.xlane.f32.xlu0 %v2039
        %v2041 = vpop.xlane.xlu0 %2040
        %v2042 = vsel %vm1004, %v1941, -inf
        %2043 = vmax.xlane.f32.xlu0 %v2042
        %v2044 = vpop.xlane.xlu0 %2043
        %v2045 = vsel %vm1004, %v2031, -inf
        %2046 = vmax.xlane.f32.xlu0 %v2045
        %v2047 = vpop.xlane.xlu0 %2046
        %v2048 = vsel %vm1004, %v2036, -inf
        %2049 = vmax.xlane.f32.xlu0 %v2048
        %v2050 = vpop.xlane.xlu0 %2049
        %v2051 = vsub.f32 %v1936, %v2041
        %v2052 = vsub.f32 %v1941, %v2044
        %v2053 = vsub.f32 %v2031, %v2047
        %v2054 = vsub.f32 %v2036, %v2050
        %v2055 = vmul.f32 %v2051, 1.442695
        %v2056 = vpow.pop %v2055
        %v2057 = vmul.f32 %v2052, 1.442695
        %v2058 = vpow.pop %v2057
        %v2059 = vmul.f32 %v2053, 1.442695
        %v2060 = vpow.pop %v2059
        %v2061 = vmul.f32 %v2054, 1.442695
        %v2062 = vpow.pop %v2061
        %v2063 = vsel %vm1004, %v2056, 0.0
        %2064 = vadd.xlane.f32.xlu0 %v2063
        %v2065 = vpop.xlane.xlu0 %2064
        %v2066 = vsel %vm1004, %v2058, 0.0
        %2067 = vadd.xlane.f32.xlu0 %v2066
        %v2068 = vpop.xlane.xlu0 %2067
        %v2069 = vsel %vm1004, %v2060, 0.0
        %2070 = vadd.xlane.f32.xlu0 %v2069
        %v2071 = vpop.xlane.xlu0 %2070
        %v2072 = vsel %vm1004, %v2062, 0.0
        %2073 = vadd.xlane.f32.xlu0 %v2072
        %v2074 = vpop.xlane.xlu0 %2073
        %v2075 = vrcp.pop %v2065
        %v2076 = vmul.f32 %v2056, %v2075
        %v2077 = vrcp.pop %v2068
        %v2078 = vmul.f32 %v2058, %v2077
        %v2079 = vrcp.pop %v2071
        %v2080 = vmul.f32 %v2060, %v2079
        %v2081 = vrcp.pop %v2074
        %v2082 = vmul.f32 %v2062, %v2081
        %2085 = vrot.lane.b32.xlu0 %v1845, 64
        %v2086 = vpop.permute.xlu0 %2085
        %2087 = vrot.lane.b32.xlu0 %v1846, 64
        %v2088 = vpop.permute.xlu0 %2087
        %v2092 = vsel %vm1004, %v2076, 0
        %v2095 = vsel %vm1004, %v2078, 0
        %2097 = vmatprep.subr.mxu0 0.0
        %2098 = vmatpush1.msra.mxu0 0.0
        %2099 = vmatprep.subr.mxu0 0.0
        %2100 = vmatpush1.msra.mxu0 0.0
        %2101 = vmatprep.subr.mxu0 0.0
        %2102 = vmatpush1.msra.mxu0 0.0
        %2103 = vmatprep.subr.mxu0 0.0
        %2104 = vmatpush1.msra.mxu0 0.0
        %2105 = vmatprep.subr.mxu0 0.0
        %2106 = vmatpush1.msra.mxu0 0.0
        %2107 = vmatprep.subr.mxu0 0.0
        %2108 = vmatpush1.msra.mxu0 0.0
        %2109 = vmatprep.subr.mxu0 0.0
        %2110 = vmatpush1.msra.mxu0 0.0
        %2111 = vmatprep.subr.mxu0 0.0
        %2112 = vmatpush1.msra.mxu0 0.0
        %2113 = vmatprep.subr.mxu0 0.0
        %2114 = vmatpush1.msra.mxu0 0.0
        %2115 = vmatprep.subr.mxu0 0.0
        %2116 = vmatpush1.msra.mxu0 0.0
        %2117 = vmatprep.subr.mxu0 0.0
        %2118 = vmatpush1.msra.mxu0 0.0
        %2119 = vmatprep.subr.mxu0 0.0
        %2120 = vmatpush1.msra.mxu0 0.0
        %2121 = vmatprep.subr.mxu0 0.0
        %2122 = vmatpush1.msra.mxu0 0.0
        %2123 = vmatprep.subr.mxu0 0.0
        %2124 = vmatpush1.msra.mxu0 0.0
        %2125 = vmatprep.subr.mxu0 0.0
        %2126 = vmatpush1.msra.mxu0 %v2088
        %2127 = vmatprep.subr.mxu0 0.0
        %2128 = vmatpush1.msra.mxu0 %v2086
        %2129 = vmatprep.subr.mxu0 0.0
        %2130 = vmatpush2.msra.mxu0 0.0
        %2131 = vmatprep.subr.mxu0 0.0
        %2132 = vmatpush2.msra.mxu0 0.0
        %2133 = vmatprep.subr.mxu0 0.0
        %2134 = vmatpush2.msra.mxu0 0.0
        %2135 = vmatprep.subr.mxu0 0.0
        %2136 = vmatpush2.msra.mxu0 0.0
        %2137 = vmatprep.subr.mxu0 0.0
        %2138 = vmatpush2.msra.mxu0 0.0
        %2139 = vmatprep.subr.mxu0 0.0
        %2140 = vmatpush2.msra.mxu0 0.0
        %2141 = vmatprep.subr.mxu0 0.0
        %2142 = vmatpush2.msra.mxu0 0.0
        %2143 = vmatprep.subr.mxu0 0.0
        %2144 = vmatpush2.msra.mxu0 0.0
        %2145 = vmatprep.subr.mxu0 0.0
        %2146 = vmatpush2.msra.mxu0 0.0
        %2147 = vmatprep.subr.mxu0 0.0
        %2148 = vmatpush2.msra.mxu0 0.0
        %2149 = vmatprep.subr.mxu0 0.0
        %2150 = vmatpush2.msra.mxu0 0.0
        %2151 = vmatprep.subr.mxu0 0.0
        %2152 = vmatpush2.msra.mxu0 0.0
        %2153 = vmatprep.subr.mxu0 0.0
        %2154 = vmatpush2.msra.mxu0 0.0
        %2155 = vmatprep.subr.mxu0 0.0
        %2156 = vmatpush2.msra.mxu0 0.0
        %2157 = vmatprep.subr.mxu0 0.0
        %2158 = vmatpush2.msra.mxu0 0.0
        %2159 = vmatprep.subr.mxu0 0.0
        %2160 = vmatpush2.msra.mxu0 0.0
        %2161 = vmatprep.mubr.f32.mxu0 0.0
        %2162 = vmatmul.mubr.f32.gmra.mxu0 %v2092
        %v2163 = vpop.f32.mrf.mxu0
        %v2164 = vadd.f32 0.0, %v2163
        %v2165 = vpop.f32.mrf.mxu0
        %2166 = vmatprep.mubr.f32.mxu0 0.0
        %2167 = vmatmul.mubr.f32.gmra.mxu0 %v2095
        %v2168 = vpop.f32.mrf.mxu0
        %v2169 = vadd.f32 0.0, %v2168
        %v2170 = vpop.f32.mrf.mxu0
        %2171 = vdwg.mxu0
        %2174 = vrot.lane.b32.xlu0 %v1847, 64
        %v2175 = vpop.permute.xlu0 %2174
        %2176 = vrot.lane.b32.xlu0 %v1848, 64
        %v2177 = vpop.permute.xlu0 %2176
        %v2181 = vsel %vm1004, %v2080, 0
        %v2184 = vsel %vm1004, %v2082, 0
        %2186 = vmatprep.subr.mxu0 0.0
        %2187 = vmatpush1.msra.mxu0 0.0
        %2188 = vmatprep.subr.mxu0 0.0
        %2189 = vmatpush1.msra.mxu0 0.0
        %2190 = vmatprep.subr.mxu0 0.0
        %2191 = vmatpush1.msra.mxu0 0.0
        %2192 = vmatprep.subr.mxu0 0.0
        %2193 = vmatpush1.msra.mxu0 0.0
        %2194 = vmatprep.subr.mxu0 0.0
        %2195 = vmatpush1.msra.mxu0 0.0
        %2196 = vmatprep.subr.mxu0 0.0
        %2197 = vmatpush1.msra.mxu0 0.0
        %2198 = vmatprep.subr.mxu0 0.0
        %2199 = vmatpush1.msra.mxu0 0.0
        %2200 = vmatprep.subr.mxu0 0.0
        %2201 = vmatpush1.msra.mxu0 0.0
        %2202 = vmatprep.subr.mxu0 0.0
        %2203 = vmatpush1.msra.mxu0 0.0
        %2204 = vmatprep.subr.mxu0 0.0
        %2205 = vmatpush1.msra.mxu0 0.0
        %2206 = vmatprep.subr.mxu0 0.0
        %2207 = vmatpush1.msra.mxu0 0.0
        %2208 = vmatprep.subr.mxu0 0.0
        %2209 = vmatpush1.msra.mxu0 0.0
        %2210 = vmatprep.subr.mxu0 0.0
        %2211 = vmatpush1.msra.mxu0 0.0
        %2212 = vmatprep.subr.mxu0 0.0
        %2213 = vmatpush1.msra.mxu0 0.0
        %2214 = vmatprep.subr.mxu0 0.0
        %2215 = vmatpush1.msra.mxu0 %v2177
        %2216 = vmatprep.subr.mxu0 0.0
        %2217 = vmatpush1.msra.mxu0 %v2175
        %2218 = vmatprep.subr.mxu0 0.0
        %2219 = vmatpush2.msra.mxu0 0.0
        %2220 = vmatprep.subr.mxu0 0.0
        %2221 = vmatpush2.msra.mxu0 0.0
        %2222 = vmatprep.subr.mxu0 0.0
        %2223 = vmatpush2.msra.mxu0 0.0
        %2224 = vmatprep.subr.mxu0 0.0
        %2225 = vmatpush2.msra.mxu0 0.0
        %2226 = vmatprep.subr.mxu0 0.0
        %2227 = vmatpush2.msra.mxu0 0.0
        %2228 = vmatprep.subr.mxu0 0.0
        %2229 = vmatpush2.msra.mxu0 0.0
        %2230 = vmatprep.subr.mxu0 0.0
        %2231 = vmatpush2.msra.mxu0 0.0
        %2232 = vmatprep.subr.mxu0 0.0
        %2233 = vmatpush2.msra.mxu0 0.0
        %2234 = vmatprep.subr.mxu0 0.0
        %2235 = vmatpush2.msra.mxu0 0.0
        %2236 = vmatprep.subr.mxu0 0.0
        %2237 = vmatpush2.msra.mxu0 0.0
        %2238 = vmatprep.subr.mxu0 0.0
        %2239 = vmatpush2.msra.mxu0 0.0
        %2240 = vmatprep.subr.mxu0 0.0
        %2241 = vmatpush2.msra.mxu0 0.0
        %2242 = vmatprep.subr.mxu0 0.0
        %2243 = vmatpush2.msra.mxu0 0.0
        %2244 = vmatprep.subr.mxu0 0.0
        %2245 = vmatpush2.msra.mxu0 0.0
        %2246 = vmatprep.subr.mxu0 0.0
        %2247 = vmatpush2.msra.mxu0 0.0
        %2248 = vmatprep.subr.mxu0 0.0
        %2249 = vmatpush2.msra.mxu0 0.0
        %2250 = vmatprep.mubr.f32.mxu0 0.0
        %2251 = vmatmul.mubr.f32.gmra.mxu0 %v2181
        %v2252 = vpop.f32.mrf.mxu0
        %v2253 = vadd.f32 0.0, %v2252
        %v2254 = vpop.f32.mrf.mxu0
        %2255 = vmatprep.mubr.f32.mxu0 0.0
        %2256 = vmatmul.mubr.f32.gmra.mxu0 %v2184
        %v2257 = vpop.f32.mrf.mxu0
        %v2258 = vadd.f32 0.0, %v2257
        %v2259 = vpop.f32.mrf.mxu0
        %2260 = vdwg.mxu0
        %v2261 = vld [vmem:[#allocation11 + $0x40] sm:$0xff]
        %v2262 = vld [vmem:[#allocation11 + $0x48] sm:$0xff]
        %v2263 = vld [vmem:[#allocation11 + $0x50] sm:$0xff]
        %v2264 = vld [vmem:[#allocation11 + $0x58] sm:$0xff]
        %v2266 = vsel %vm829, %v2164, 0
        %v2269 = vsel %vm829, %v2169, 0
        %v2272 = vsel %vm829, %v2253, 0
        %v2275 = vsel %vm829, %v2258, 0
        %2277 = vmatprep.subr.mxu0 0.0
        %2278 = vmatpush1.msra.mxu0 0.0
        %2279 = vmatprep.subr.mxu0 0.0
        %2280 = vmatpush1.msra.mxu0 0.0
        %2281 = vmatprep.subr.mxu0 0.0
        %2282 = vmatpush1.msra.mxu0 0.0
        %2283 = vmatprep.subr.mxu0 0.0
        %2284 = vmatpush1.msra.mxu0 0.0
        %2285 = vmatprep.subr.mxu0 0.0
        %2286 = vmatpush1.msra.mxu0 0.0
        %2287 = vmatprep.subr.mxu0 0.0
        %2288 = vmatpush1.msra.mxu0 0.0
        %2289 = vmatprep.subr.mxu0 0.0
        %2290 = vmatpush1.msra.mxu0 0.0
        %2291 = vmatprep.subr.mxu0 0.0
        %2292 = vmatpush1.msra.mxu0 0.0
        %2293 = vmatprep.subr.mxu0 0.0
        %2294 = vmatpush1.msra.mxu0 0.0
        %2295 = vmatprep.subr.mxu0 0.0
        %2296 = vmatpush1.msra.mxu0 0.0
        %2297 = vmatprep.subr.mxu0 0.0
        %2298 = vmatpush1.msra.mxu0 0.0
        %2299 = vmatprep.subr.mxu0 0.0
        %2300 = vmatpush1.msra.mxu0 0.0
        %2301 = vmatprep.subr.mxu0 0.0
        %2302 = vmatpush1.msra.mxu0 %v2264
        %2303 = vmatprep.subr.mxu0 0.0
        %2304 = vmatpush1.msra.mxu0 %v2263
        %2305 = vmatprep.subr.mxu0 0.0
        %2306 = vmatpush1.msra.mxu0 %v2262
        %2307 = vmatprep.subr.mxu0 0.0
        %2308 = vmatpush1.msra.mxu0 %v2261
        %2309 = vmatprep.subr.mxu0 0.0
        %2310 = vmatpush2.msra.mxu0 0.0
        %2311 = vmatprep.subr.mxu0 0.0
        %2312 = vmatpush2.msra.mxu0 0.0
        %2313 = vmatprep.subr.mxu0 0.0
        %2314 = vmatpush2.msra.mxu0 0.0
        %2315 = vmatprep.subr.mxu0 0.0
        %2316 = vmatpush2.msra.mxu0 0.0
        %2317 = vmatprep.subr.mxu0 0.0
        %2318 = vmatpush2.msra.mxu0 0.0
        %2319 = vmatprep.subr.mxu0 0.0
        %2320 = vmatpush2.msra.mxu0 0.0
        %2321 = vmatprep.subr.mxu0 0.0
        %2322 = vmatpush2.msra.mxu0 0.0
        %2323 = vmatprep.subr.mxu0 0.0
        %2324 = vmatpush2.msra.mxu0 0.0
        %2325 = vmatprep.subr.mxu0 0.0
        %2326 = vmatpush2.msra.mxu0 0.0
        %2327 = vmatprep.subr.mxu0 0.0
        %2328 = vmatpush2.msra.mxu0 0.0
        %2329 = vmatprep.subr.mxu0 0.0
        %2330 = vmatpush2.msra.mxu0 0.0
        %2331 = vmatprep.subr.mxu0 0.0
        %2332 = vmatpush2.msra.mxu0 0.0
        %2333 = vmatprep.subr.mxu0 0.0
        %2334 = vmatpush2.msra.mxu0 0.0
        %2335 = vmatprep.subr.mxu0 0.0
        %2336 = vmatpush2.msra.mxu0 0.0
        %2337 = vmatprep.subr.mxu0 0.0
        %2338 = vmatpush2.msra.mxu0 0.0
        %2339 = vmatprep.subr.mxu0 0.0
        %2340 = vmatpush2.msra.mxu0 0.0
        %2341 = vmatprep.mubr.f32.mxu0 0.0
        %2342 = vmatmul.mubr.f32.gmra.mxu0 %v2266
        %v2343 = vpop.f32.mrf.mxu0
        %v2344 = vadd.f32 0.0, %v2343
        %v2345 = vpop.f32.mrf.mxu0
        %2346 = vmatprep.mubr.f32.mxu0 0.0
        %2347 = vmatmul.mubr.f32.gmra.mxu0 %v2269
        %v2348 = vpop.f32.mrf.mxu0
        %v2349 = vadd.f32 0.0, %v2348
        %v2350 = vpop.f32.mrf.mxu0
        %2351 = vmatprep.mubr.f32.mxu0 0.0
        %2352 = vmatmul.mubr.f32.gmra.mxu0 %v2272
        %v2353 = vpop.f32.mrf.mxu0
        %v2354 = vadd.f32 0.0, %v2353
        %v2355 = vpop.f32.mrf.mxu0
        %2356 = vmatprep.mubr.f32.mxu0 0.0
        %2357 = vmatmul.mubr.f32.gmra.mxu0 %v2275
        %v2358 = vpop.f32.mrf.mxu0
        %v2359 = vadd.f32 0.0, %v2358
        %v2360 = vpop.f32.mrf.mxu0
        %2361 = vdwg.mxu0
        %v2362 = vadd.f32 %v1819, %v2344
        %v2363 = vadd.f32 %v1824, %v2349
        %v2364 = vadd.f32 %v1829, %v2354
        %v2365 = vadd.f32 %v1834, %v2359
        %v2366 = vld [vmem:[#allocation2] sm:$0xff]
        %v2367 = vld [vmem:[#allocation2 + $0x18] sm:$0xff]
        %v2368 = vld [vmem:[#allocation2 + $0x30] sm:$0xff]
        %v2369 = vld [vmem:[#allocation2 + $0x48] sm:$0xff]
        %v2370 = vld [vmem:[#allocation2 + $0x8] sm:$0xff]
        %v2371 = vld [vmem:[#allocation2 + $0x20] sm:$0xff]
        %v2372 = vld [vmem:[#allocation2 + $0x38] sm:$0xff]
        %v2373 = vld [vmem:[#allocation2 + $0x50] sm:$0xff]
        %v2374 = vld [vmem:[#allocation2 + $0x10] sm:$0xff]
        %v2375 = vld [vmem:[#allocation2 + $0x28] sm:$0xff]
        %v2376 = vld [vmem:[#allocation2 + $0x40] sm:$0xff]
        %v2377 = vld [vmem:[#allocation2 + $0x58] sm:$0xff]
        %2380 = vrot.lane.b32.xlu0 %v2366, 32
        %v2381 = vpop.permute.xlu0 %2380
        %2382 = vrot.lane.b32.xlu0 %v2367, 32
        %v2383 = vpop.permute.xlu0 %2382
        %2386 = vrot.lane.b32.xlu0 %v2370, 32
        %v2387 = vpop.permute.xlu0 %2386
        %2388 = vrot.lane.b32.xlu0 %v2371, 32
        %v2389 = vpop.permute.xlu0 %2388
        %v2390 = vsel %vm829, %v2381, 0
        %v2392 = vsel %vm829, %v2383, 0
        %v2394 = vsel %vm829, %v2387, 0
        %v2396 = vsel %vm829, %v2389, 0
        %2398 = vmatprep.subr.mxu0 0.0
        %2399 = vmatpush1.xpose.msra.mxu0 0.0
        %2400 = vmatprep.subr.mxu0 0.0
        %2401 = vmatpush1.xpose.msra.mxu0 0.0
        %2402 = vmatprep.subr.mxu0 0.0
        %2403 = vmatpush1.xpose.msra.mxu0 0.0
        %2404 = vmatprep.subr.mxu0 0.0
        %2405 = vmatpush1.xpose.msra.mxu0 0.0
        %2406 = vmatprep.subr.mxu0 0.0
        %2407 = vmatpush1.xpose.msra.mxu0 0.0
        %2408 = vmatprep.subr.mxu0 0.0
        %2409 = vmatpush1.xpose.msra.mxu0 0.0
        %2410 = vmatprep.subr.mxu0 0.0
        %2411 = vmatpush1.xpose.msra.mxu0 0.0
        %2412 = vmatprep.subr.mxu0 0.0
        %2413 = vmatpush1.xpose.msra.mxu0 0.0
        %2414 = vmatprep.subr.mxu0 0.0
        %2415 = vmatpush1.xpose.msra.mxu0 0.0
        %2416 = vmatprep.subr.mxu0 0.0
        %2417 = vmatpush1.xpose.msra.mxu0 0.0
        %2418 = vmatprep.subr.mxu0 0.0
        %2419 = vmatpush1.xpose.msra.mxu0 0.0
        %2420 = vmatprep.subr.mxu0 0.0
        %2421 = vmatpush1.xpose.msra.mxu0 0.0
        %2422 = vmatprep.subr.mxu0 0.0
        %2423 = vmatpush1.xpose.msra.mxu0 0.0
        %2424 = vmatprep.subr.mxu0 0.0
        %2425 = vmatpush1.xpose.msra.mxu0 0.0
        %2426 = vmatprep.subr.mxu0 0.0
        %2427 = vmatpush1.xpose.msra.mxu0 %v2396
        %2428 = vmatprep.subr.mxu0 0.0
        %2429 = vmatpush1.xpose.msra.mxu0 %v2394
        %2430 = vmatprep.subr.mxu0 0.0
        %2431 = vmatpush2.xpose.msra.mxu0 0.0
        %2432 = vmatprep.subr.mxu0 0.0
        %2433 = vmatpush2.xpose.msra.mxu0 0.0
        %2434 = vmatprep.subr.mxu0 0.0
        %2435 = vmatpush2.xpose.msra.mxu0 0.0
        %2436 = vmatprep.subr.mxu0 0.0
        %2437 = vmatpush2.xpose.msra.mxu0 0.0
        %2438 = vmatprep.subr.mxu0 0.0
        %2439 = vmatpush2.xpose.msra.mxu0 0.0
        %2440 = vmatprep.subr.mxu0 0.0
        %2441 = vmatpush2.xpose.msra.mxu0 0.0
        %2442 = vmatprep.subr.mxu0 0.0
        %2443 = vmatpush2.xpose.msra.mxu0 0.0
        %2444 = vmatprep.subr.mxu0 0.0
        %2445 = vmatpush2.xpose.msra.mxu0 0.0
        %2446 = vmatprep.subr.mxu0 0.0
        %2447 = vmatpush2.xpose.msra.mxu0 0.0
        %2448 = vmatprep.subr.mxu0 0.0
        %2449 = vmatpush2.xpose.msra.mxu0 0.0
        %2450 = vmatprep.subr.mxu0 0.0
        %2451 = vmatpush2.xpose.msra.mxu0 0.0
        %2452 = vmatprep.subr.mxu0 0.0
        %2453 = vmatpush2.xpose.msra.mxu0 0.0
        %2454 = vmatprep.subr.mxu0 0.0
        %2455 = vmatpush2.xpose.msra.mxu0 0.0
        %2456 = vmatprep.subr.mxu0 0.0
        %2457 = vmatpush2.xpose.msra.mxu0 0.0
        %2458 = vmatprep.subr.mxu0 0.0
        %2459 = vmatpush2.xpose.msra.mxu0 0.0
        %2460 = vmatprep.subr.mxu0 0.0
        %2461 = vmatpush2.xpose.msra.mxu0 0.0
        %2462 = vmatprep.mubr.f32.mxu0 0.0
        %2463 = vmatmul.mubr.f32.gmra.mxu0 %v2390
        %v2464 = vpop.f32.mrf.mxu0
        %v2465 = vadd.f32 0.0, %v2464
        %v2466 = vpop.f32.mrf.mxu0
        %2467 = vmatprep.mubr.f32.mxu0 0.0
        %2468 = vmatmul.mubr.f32.gmra.mxu0 %v2392
        %v2469 = vpop.f32.mrf.mxu0
        %v2470 = vadd.f32 0.0, %v2469
        %v2471 = vpop.f32.mrf.mxu0
        %2472 = vdwg.mxu0
        %2475 = vrot.lane.b32.xlu0 %v2368, 32
        %v2476 = vpop.permute.xlu0 %2475
        %2477 = vrot.lane.b32.xlu0 %v2369, 32
        %v2478 = vpop.permute.xlu0 %2477
        %2481 = vrot.lane.b32.xlu0 %v2372, 32
        %v2482 = vpop.permute.xlu0 %2481
        %2483 = vrot.lane.b32.xlu0 %v2373, 32
        %v2484 = vpop.permute.xlu0 %2483
        %v2485 = vsel %vm829, %v2476, 0
        %v2487 = vsel %vm829, %v2478, 0
        %v2489 = vsel %vm829, %v2482, 0
        %v2491 = vsel %vm829, %v2484, 0
        %2493 = vmatprep.subr.mxu0 0.0
        %2494 = vmatpush1.xpose.msra.mxu0 0.0
        %2495 = vmatprep.subr.mxu0 0.0
        %2496 = vmatpush1.xpose.msra.mxu0 0.0
        %2497 = vmatprep.subr.mxu0 0.0
        %2498 = vmatpush1.xpose.msra.mxu0 0.0
        %2499 = vmatprep.subr.mxu0 0.0
        %2500 = vmatpush1.xpose.msra.mxu0 0.0
        %2501 = vmatprep.subr.mxu0 0.0
        %2502 = vmatpush1.xpose.msra.mxu0 0.0
        %2503 = vmatprep.subr.mxu0 0.0
        %2504 = vmatpush1.xpose.msra.mxu0 0.0
        %2505 = vmatprep.subr.mxu0 0.0
        %2506 = vmatpush1.xpose.msra.mxu0 0.0
        %2507 = vmatprep.subr.mxu0 0.0
        %2508 = vmatpush1.xpose.msra.mxu0 0.0
        %2509 = vmatprep.subr.mxu0 0.0
        %2510 = vmatpush1.xpose.msra.mxu0 0.0
        %2511 = vmatprep.subr.mxu0 0.0
        %2512 = vmatpush1.xpose.msra.mxu0 0.0
        %2513 = vmatprep.subr.mxu0 0.0
        %2514 = vmatpush1.xpose.msra.mxu0 0.0
        %2515 = vmatprep.subr.mxu0 0.0
        %2516 = vmatpush1.xpose.msra.mxu0 0.0
        %2517 = vmatprep.subr.mxu0 0.0
        %2518 = vmatpush1.xpose.msra.mxu0 0.0
        %2519 = vmatprep.subr.mxu0 0.0
        %2520 = vmatpush1.xpose.msra.mxu0 0.0
        %2521 = vmatprep.subr.mxu0 0.0
        %2522 = vmatpush1.xpose.msra.mxu0 %v2491
        %2523 = vmatprep.subr.mxu0 0.0
        %2524 = vmatpush1.xpose.msra.mxu0 %v2489
        %2525 = vmatprep.subr.mxu0 0.0
        %2526 = vmatpush2.xpose.msra.mxu0 0.0
        %2527 = vmatprep.subr.mxu0 0.0
        %2528 = vmatpush2.xpose.msra.mxu0 0.0
        %2529 = vmatprep.subr.mxu0 0.0
        %2530 = vmatpush2.xpose.msra.mxu0 0.0
        %2531 = vmatprep.subr.mxu0 0.0
        %2532 = vmatpush2.xpose.msra.mxu0 0.0
        %2533 = vmatprep.subr.mxu0 0.0
        %2534 = vmatpush2.xpose.msra.mxu0 0.0
        %2535 = vmatprep.subr.mxu0 0.0
        %2536 = vmatpush2.xpose.msra.mxu0 0.0
        %2537 = vmatprep.subr.mxu0 0.0
        %2538 = vmatpush2.xpose.msra.mxu0 0.0
        %2539 = vmatprep.subr.mxu0 0.0
        %2540 = vmatpush2.xpose.msra.mxu0 0.0
        %2541 = vmatprep.subr.mxu0 0.0
        %2542 = vmatpush2.xpose.msra.mxu0 0.0
        %2543 = vmatprep.subr.mxu0 0.0
        %2544 = vmatpush2.xpose.msra.mxu0 0.0
        %2545 = vmatprep.subr.mxu0 0.0
        %2546 = vmatpush2.xpose.msra.mxu0 0.0
        %2547 = vmatprep.subr.mxu0 0.0
        %2548 = vmatpush2.xpose.msra.mxu0 0.0
        %2549 = vmatprep.subr.mxu0 0.0
        %2550 = vmatpush2.xpose.msra.mxu0 0.0
        %2551 = vmatprep.subr.mxu0 0.0
        %2552 = vmatpush2.xpose.msra.mxu0 0.0
        %2553 = vmatprep.subr.mxu0 0.0
        %2554 = vmatpush2.xpose.msra.mxu0 0.0
        %2555 = vmatprep.subr.mxu0 0.0
        %2556 = vmatpush2.xpose.msra.mxu0 0.0
        %2557 = vmatprep.mubr.f32.mxu0 0.0
        %2558 = vmatmul.mubr.f32.gmra.mxu0 %v2485
        %v2559 = vpop.f32.mrf.mxu0
        %v2560 = vadd.f32 0.0, %v2559
        %v2561 = vpop.f32.mrf.mxu0
        %2562 = vmatprep.mubr.f32.mxu0 0.0
        %2563 = vmatmul.mubr.f32.gmra.mxu0 %v2487
        %v2564 = vpop.f32.mrf.mxu0
        %v2565 = vadd.f32 0.0, %v2564
        %v2566 = vpop.f32.mrf.mxu0
        %2567 = vdwg.mxu0
        %v2568 = vsel %vm1004, %v2465, -inf
        %2569 = vmax.xlane.f32.xlu0 %v2568
        %v2570 = vpop.xlane.xlu0 %2569
        %v2571 = vsel %vm1004, %v2470, -inf
        %2572 = vmax.xlane.f32.xlu0 %v2571
        %v2573 = vpop.xlane.xlu0 %2572
        %v2574 = vsel %vm1004, %v2560, -inf
        %2575 = vmax.xlane.f32.xlu0 %v2574
        %v2576 = vpop.xlane.xlu0 %2575
        %v2577 = vsel %vm1004, %v2565, -inf
        %2578 = vmax.xlane.f32.xlu0 %v2577
        %v2579 = vpop.xlane.xlu0 %2578
        %v2580 = vsub.f32 %v2465, %v2570
        %v2581 = vsub.f32 %v2470, %v2573
        %v2582 = vsub.f32 %v2560, %v2576
        %v2583 = vsub.f32 %v2565, %v2579
        %v2584 = vmul.f32 %v2580, 1.442695
        %v2585 = vpow.pop %v2584
        %v2586 = vmul.f32 %v2581, 1.442695
        %v2587 = vpow.pop %v2586
        %v2588 = vmul.f32 %v2582, 1.442695
        %v2589 = vpow.pop %v2588
        %v2590 = vmul.f32 %v2583, 1.442695
        %v2591 = vpow.pop %v2590
        %v2592 = vsel %vm1004, %v2585, 0.0
        %2593 = vadd.xlane.f32.xlu0 %v2592
        %v2594 = vpop.xlane.xlu0 %2593
        %v2595 = vsel %vm1004, %v2587, 0.0
        %2596 = vadd.xlane.f32.xlu0 %v2595
        %v2597 = vpop.xlane.xlu0 %2596
        %v2598 = vsel %vm1004, %v2589, 0.0
        %2599 = vadd.xlane.f32.xlu0 %v2598
        %v2600 = vpop.xlane.xlu0 %2599
        %v2601 = vsel %vm1004, %v2591, 0.0
        %2602 = vadd.xlane.f32.xlu0 %v2601
        %v2603 = vpop.xlane.xlu0 %2602
        %v2604 = vrcp.pop %v2594
        %v2605 = vmul.f32 %v2585, %v2604
        %v2606 = vrcp.pop %v2597
        %v2607 = vmul.f32 %v2587, %v2606
        %v2608 = vrcp.pop %v2600
        %v2609 = vmul.f32 %v2589, %v2608
        %v2610 = vrcp.pop %v2603
        %v2611 = vmul.f32 %v2591, %v2610
        %2614 = vrot.lane.b32.xlu0 %v2374, 32
        %v2615 = vpop.permute.xlu0 %2614
        %2616 = vrot.lane.b32.xlu0 %v2375, 32
        %v2617 = vpop.permute.xlu0 %2616
        %v2621 = vsel %vm1004, %v2605, 0
        %v2624 = vsel %vm1004, %v2607, 0
        %2626 = vmatprep.subr.mxu0 0.0
        %2627 = vmatpush1.msra.mxu0 0.0
        %2628 = vmatprep.subr.mxu0 0.0
        %2629 = vmatpush1.msra.mxu0 0.0
        %2630 = vmatprep.subr.mxu0 0.0
        %2631 = vmatpush1.msra.mxu0 0.0
        %2632 = vmatprep.subr.mxu0 0.0
        %2633 = vmatpush1.msra.mxu0 0.0
        %2634 = vmatprep.subr.mxu0 0.0
        %2635 = vmatpush1.msra.mxu0 0.0
        %2636 = vmatprep.subr.mxu0 0.0
        %2637 = vmatpush1.msra.mxu0 0.0
        %2638 = vmatprep.subr.mxu0 0.0
        %2639 = vmatpush1.msra.mxu0 0.0
        %2640 = vmatprep.subr.mxu0 0.0
        %2641 = vmatpush1.msra.mxu0 0.0
        %2642 = vmatprep.subr.mxu0 0.0
        %2643 = vmatpush1.msra.mxu0 0.0
        %2644 = vmatprep.subr.mxu0 0.0
        %2645 = vmatpush1.msra.mxu0 0.0
        %2646 = vmatprep.subr.mxu0 0.0
        %2647 = vmatpush1.msra.mxu0 0.0
        %2648 = vmatprep.subr.mxu0 0.0
        %2649 = vmatpush1.msra.mxu0 0.0
        %2650 = vmatprep.subr.mxu0 0.0
        %2651 = vmatpush1.msra.mxu0 0.0
        %2652 = vmatprep.subr.mxu0 0.0
        %2653 = vmatpush1.msra.mxu0 0.0
        %2654 = vmatprep.subr.mxu0 0.0
        %2655 = vmatpush1.msra.mxu0 %v2617
        %2656 = vmatprep.subr.mxu0 0.0
        %2657 = vmatpush1.msra.mxu0 %v2615
        %2658 = vmatprep.subr.mxu0 0.0
        %2659 = vmatpush2.msra.mxu0 0.0
        %2660 = vmatprep.subr.mxu0 0.0
        %2661 = vmatpush2.msra.mxu0 0.0
        %2662 = vmatprep.subr.mxu0 0.0
        %2663 = vmatpush2.msra.mxu0 0.0
        %2664 = vmatprep.subr.mxu0 0.0
        %2665 = vmatpush2.msra.mxu0 0.0
        %2666 = vmatprep.subr.mxu0 0.0
        %2667 = vmatpush2.msra.mxu0 0.0
        %2668 = vmatprep.subr.mxu0 0.0
        %2669 = vmatpush2.msra.mxu0 0.0
        %2670 = vmatprep.subr.mxu0 0.0
        %2671 = vmatpush2.msra.mxu0 0.0
        %2672 = vmatprep.subr.mxu0 0.0
        %2673 = vmatpush2.msra.mxu0 0.0
        %2674 = vmatprep.subr.mxu0 0.0
        %2675 = vmatpush2.msra.mxu0 0.0
        %2676 = vmatprep.subr.mxu0 0.0
        %2677 = vmatpush2.msra.mxu0 0.0
        %2678 = vmatprep.subr.mxu0 0.0
        %2679 = vmatpush2.msra.mxu0 0.0
        %2680 = vmatprep.subr.mxu0 0.0
        %2681 = vmatpush2.msra.mxu0 0.0
        %2682 = vmatprep.subr.mxu0 0.0
        %2683 = vmatpush2.msra.mxu0 0.0
        %2684 = vmatprep.subr.mxu0 0.0
        %2685 = vmatpush2.msra.mxu0 0.0
        %2686 = vmatprep.subr.mxu0 0.0
        %2687 = vmatpush2.msra.mxu0 0.0
        %2688 = vmatprep.subr.mxu0 0.0
        %2689 = vmatpush2.msra.mxu0 0.0
        %2690 = vmatprep.mubr.f32.mxu0 0.0
        %2691 = vmatmul.mubr.f32.gmra.mxu0 %v2621
        %v2692 = vpop.f32.mrf.mxu0
        %v2693 = vadd.f32 0.0, %v2692
        %v2694 = vpop.f32.mrf.mxu0
        %2695 = vmatprep.mubr.f32.mxu0 0.0
        %2696 = vmatmul.mubr.f32.gmra.mxu0 %v2624
        %v2697 = vpop.f32.mrf.mxu0
        %v2698 = vadd.f32 0.0, %v2697
        %v2699 = vpop.f32.mrf.mxu0
        %2700 = vdwg.mxu0
        %2703 = vrot.lane.b32.xlu0 %v2376, 32
        %v2704 = vpop.permute.xlu0 %2703
        %2705 = vrot.lane.b32.xlu0 %v2377, 32
        %v2706 = vpop.permute.xlu0 %2705
        %v2710 = vsel %vm1004, %v2609, 0
        %v2713 = vsel %vm1004, %v2611, 0
        %2715 = vmatprep.subr.mxu0 0.0
        %2716 = vmatpush1.msra.mxu0 0.0
        %2717 = vmatprep.subr.mxu0 0.0
        %2718 = vmatpush1.msra.mxu0 0.0
        %2719 = vmatprep.subr.mxu0 0.0
        %2720 = vmatpush1.msra.mxu0 0.0
        %2721 = vmatprep.subr.mxu0 0.0
        %2722 = vmatpush1.msra.mxu0 0.0
        %2723 = vmatprep.subr.mxu0 0.0
        %2724 = vmatpush1.msra.mxu0 0.0
        %2725 = vmatprep.subr.mxu0 0.0
        %2726 = vmatpush1.msra.mxu0 0.0
        %2727 = vmatprep.subr.mxu0 0.0
        %2728 = vmatpush1.msra.mxu0 0.0
        %2729 = vmatprep.subr.mxu0 0.0
        %2730 = vmatpush1.msra.mxu0 0.0
        %2731 = vmatprep.subr.mxu0 0.0
        %2732 = vmatpush1.msra.mxu0 0.0
        %2733 = vmatprep.subr.mxu0 0.0
        %2734 = vmatpush1.msra.mxu0 0.0
        %2735 = vmatprep.subr.mxu0 0.0
        %2736 = vmatpush1.msra.mxu0 0.0
        %2737 = vmatprep.subr.mxu0 0.0
        %2738 = vmatpush1.msra.mxu0 0.0
        %2739 = vmatprep.subr.mxu0 0.0
        %2740 = vmatpush1.msra.mxu0 0.0
        %2741 = vmatprep.subr.mxu0 0.0
        %2742 = vmatpush1.msra.mxu0 0.0
        %2743 = vmatprep.subr.mxu0 0.0
        %2744 = vmatpush1.msra.mxu0 %v2706
        %2745 = vmatprep.subr.mxu0 0.0
        %2746 = vmatpush1.msra.mxu0 %v2704
        %2747 = vmatprep.subr.mxu0 0.0
        %2748 = vmatpush2.msra.mxu0 0.0
        %2749 = vmatprep.subr.mxu0 0.0
        %2750 = vmatpush2.msra.mxu0 0.0
        %2751 = vmatprep.subr.mxu0 0.0
        %2752 = vmatpush2.msra.mxu0 0.0
        %2753 = vmatprep.subr.mxu0 0.0
        %2754 = vmatpush2.msra.mxu0 0.0
        %2755 = vmatprep.subr.mxu0 0.0
        %2756 = vmatpush2.msra.mxu0 0.0
        %2757 = vmatprep.subr.mxu0 0.0
        %2758 = vmatpush2.msra.mxu0 0.0
        %2759 = vmatprep.subr.mxu0 0.0
        %2760 = vmatpush2.msra.mxu0 0.0
        %2761 = vmatprep.subr.mxu0 0.0
        %2762 = vmatpush2.msra.mxu0 0.0
        %2763 = vmatprep.subr.mxu0 0.0
        %2764 = vmatpush2.msra.mxu0 0.0
        %2765 = vmatprep.subr.mxu0 0.0
        %2766 = vmatpush2.msra.mxu0 0.0
        %2767 = vmatprep.subr.mxu0 0.0
        %2768 = vmatpush2.msra.mxu0 0.0
        %2769 = vmatprep.subr.mxu0 0.0
        %2770 = vmatpush2.msra.mxu0 0.0
        %2771 = vmatprep.subr.mxu0 0.0
        %2772 = vmatpush2.msra.mxu0 0.0
        %2773 = vmatprep.subr.mxu0 0.0
        %2774 = vmatpush2.msra.mxu0 0.0
        %2775 = vmatprep.subr.mxu0 0.0
        %2776 = vmatpush2.msra.mxu0 0.0
        %2777 = vmatprep.subr.mxu0 0.0
        %2778 = vmatpush2.msra.mxu0 0.0
        %2779 = vmatprep.mubr.f32.mxu0 0.0
        %2780 = vmatmul.mubr.f32.gmra.mxu0 %v2710
        %v2781 = vpop.f32.mrf.mxu0
        %v2782 = vadd.f32 0.0, %v2781
        %v2783 = vpop.f32.mrf.mxu0
        %2784 = vmatprep.mubr.f32.mxu0 0.0
        %2785 = vmatmul.mubr.f32.gmra.mxu0 %v2713
        %v2786 = vpop.f32.mrf.mxu0
        %v2787 = vadd.f32 0.0, %v2786
        %v2788 = vpop.f32.mrf.mxu0
        %2789 = vdwg.mxu0
        %v2790 = vld [vmem:[#allocation11 + $0x60] sm:$0xff]
        %v2791 = vld [vmem:[#allocation11 + $0x68] sm:$0xff]
        %v2792 = vld [vmem:[#allocation11 + $0x70] sm:$0xff]
        %v2793 = vld [vmem:[#allocation11 + $0x78] sm:$0xff]
        %v2795 = vsel %vm829, %v2693, 0
        %v2798 = vsel %vm829, %v2698, 0
        %v2801 = vsel %vm829, %v2782, 0
        %v2804 = vsel %vm829, %v2787, 0
        %2806 = vmatprep.subr.mxu0 0.0
        %2807 = vmatpush1.msra.mxu0 0.0
        %2808 = vmatprep.subr.mxu0 0.0
        %2809 = vmatpush1.msra.mxu0 0.0
        %2810 = vmatprep.subr.mxu0 0.0
        %2811 = vmatpush1.msra.mxu0 0.0
        %2812 = vmatprep.subr.mxu0 0.0
        %2813 = vmatpush1.msra.mxu0 0.0
        %2814 = vmatprep.subr.mxu0 0.0
        %2815 = vmatpush1.msra.mxu0 0.0
        %2816 = vmatprep.subr.mxu0 0.0
        %2817 = vmatpush1.msra.mxu0 0.0
        %2818 = vmatprep.subr.mxu0 0.0
        %2819 = vmatpush1.msra.mxu0 0.0
        %2820 = vmatprep.subr.mxu0 0.0
        %2821 = vmatpush1.msra.mxu0 0.0
        %2822 = vmatprep.subr.mxu0 0.0
        %2823 = vmatpush1.msra.mxu0 0.0
        %2824 = vmatprep.subr.mxu0 0.0
        %2825 = vmatpush1.msra.mxu0 0.0
        %2826 = vmatprep.subr.mxu0 0.0
        %2827 = vmatpush1.msra.mxu0 0.0
        %2828 = vmatprep.subr.mxu0 0.0
        %2829 = vmatpush1.msra.mxu0 0.0
        %2830 = vmatprep.subr.mxu0 0.0
        %2831 = vmatpush1.msra.mxu0 %v2793
        %2832 = vmatprep.subr.mxu0 0.0
        %2833 = vmatpush1.msra.mxu0 %v2792
        %2834 = vmatprep.subr.mxu0 0.0
        %2835 = vmatpush1.msra.mxu0 %v2791
        %2836 = vmatprep.subr.mxu0 0.0
        %2837 = vmatpush1.msra.mxu0 %v2790
        %2838 = vmatprep.subr.mxu0 0.0
        %2839 = vmatpush2.msra.mxu0 0.0
        %2840 = vmatprep.subr.mxu0 0.0
        %2841 = vmatpush2.msra.mxu0 0.0
        %2842 = vmatprep.subr.mxu0 0.0
        %2843 = vmatpush2.msra.mxu0 0.0
        %2844 = vmatprep.subr.mxu0 0.0
        %2845 = vmatpush2.msra.mxu0 0.0
        %2846 = vmatprep.subr.mxu0 0.0
        %2847 = vmatpush2.msra.mxu0 0.0
        %2848 = vmatprep.subr.mxu0 0.0
        %2849 = vmatpush2.msra.mxu0 0.0
        %2850 = vmatprep.subr.mxu0 0.0
        %2851 = vmatpush2.msra.mxu0 0.0
        %2852 = vmatprep.subr.mxu0 0.0
        %2853 = vmatpush2.msra.mxu0 0.0
        %2854 = vmatprep.subr.mxu0 0.0
        %2855 = vmatpush2.msra.mxu0 0.0
        %2856 = vmatprep.subr.mxu0 0.0
        %2857 = vmatpush2.msra.mxu0 0.0
        %2858 = vmatprep.subr.mxu0 0.0
        %2859 = vmatpush2.msra.mxu0 0.0
        %2860 = vmatprep.subr.mxu0 0.0
        %2861 = vmatpush2.msra.mxu0 0.0
        %2862 = vmatprep.subr.mxu0 0.0
        %2863 = vmatpush2.msra.mxu0 0.0
        %2864 = vmatprep.subr.mxu0 0.0
        %2865 = vmatpush2.msra.mxu0 0.0
        %2866 = vmatprep.subr.mxu0 0.0
        %2867 = vmatpush2.msra.mxu0 0.0
        %2868 = vmatprep.subr.mxu0 0.0
        %2869 = vmatpush2.msra.mxu0 0.0
        %2870 = vmatprep.mubr.f32.mxu0 0.0
        %2871 = vmatmul.mubr.f32.gmra.mxu0 %v2795
        %v2872 = vpop.f32.mrf.mxu0
        %v2873 = vadd.f32 0.0, %v2872
        %v2874 = vpop.f32.mrf.mxu0
        %2875 = vmatprep.mubr.f32.mxu0 0.0
        %2876 = vmatmul.mubr.f32.gmra.mxu0 %v2798
        %v2877 = vpop.f32.mrf.mxu0
        %v2878 = vadd.f32 0.0, %v2877
        %v2879 = vpop.f32.mrf.mxu0
        %2880 = vmatprep.mubr.f32.mxu0 0.0
        %2881 = vmatmul.mubr.f32.gmra.mxu0 %v2801
        %v2882 = vpop.f32.mrf.mxu0
        %v2883 = vadd.f32 0.0, %v2882
        %v2884 = vpop.f32.mrf.mxu0
        %2885 = vmatprep.mubr.f32.mxu0 0.0
        %2886 = vmatmul.mubr.f32.gmra.mxu0 %v2804
        %v2887 = vpop.f32.mrf.mxu0
        %v2888 = vadd.f32 0.0, %v2887
        %v2889 = vpop.f32.mrf.mxu0
        %2890 = vdwg.mxu0
        %v2891 = vadd.f32 %v2362, %v2873
        %v2892 = vadd.f32 %v2363, %v2878
        %v2893 = vadd.f32 %v2364, %v2883
        %v2894 = vadd.f32 %v2365, %v2888
        %v2895 = vld [vmem:[%s6] sm:$0x1]
        %v2897 = vlaneseq
        %v2898 = vshrl.u32 %v2897, 7
        %v2899 = vsub.s32 0, %v2898
        %v2900 = vrot.slane %v2895, %v2899
        %v2902 = vadd.f32 %v2891, %v2900
        %v2903 = vadd.f32 %v2892, %v2900
        %v2904 = vadd.f32 %v2893, %v2900
        %v2905 = vadd.f32 %v2894, %v2900
        %v2906 = vadd.f32 %v2902, %v491
        %v2907 = vadd.f32 %v2903, %v492
        %v2908 = vadd.f32 %v2904, %v493
        %v2909 = vadd.f32 %v2905, %v494
        %2910 = vadd.xlane.f32.xlu0 %v2906
        %v2911 = vpop.xlane.xlu0 %2910
        %2912 = vadd.xlane.f32.xlu0 %v2907
        %v2913 = vpop.xlane.xlu0 %2912
        %2914 = vadd.xlane.f32.xlu0 %v2908
        %v2915 = vpop.xlane.xlu0 %2914
        %2916 = vadd.xlane.f32.xlu0 %v2909
        %v2917 = vpop.xlane.xlu0 %2916
        %v2918 = vmul.f32 %v2911, %v505
        %v2919 = vmul.f32 %v2913, %v505
        %v2920 = vmul.f32 %v2915, %v505
        %v2921 = vmul.f32 %v2917, %v505
        %v2922 = vsub.f32 %v2906, %v2918
        %v2923 = vsub.f32 %v2907, %v2919
        %v2924 = vsub.f32 %v2908, %v2920
        %v2925 = vsub.f32 %v2909, %v2921
        %v2926 = vmul.f32 %v2922, %v2922
        %v2927 = vmul.f32 %v2923, %v2923
        %v2928 = vmul.f32 %v2924, %v2924
        %v2929 = vmul.f32 %v2925, %v2925
        %2930 = vadd.xlane.f32.xlu0 %v2926
        %v2931 = vpop.xlane.xlu0 %2930
        %2932 = vadd.xlane.f32.xlu0 %v2927
        %v2933 = vpop.xlane.xlu0 %2932
        %2934 = vadd.xlane.f32.xlu0 %v2928
        %v2935 = vpop.xlane.xlu0 %2934
        %2936 = vadd.xlane.f32.xlu0 %v2929
        %v2937 = vpop.xlane.xlu0 %2936
        %v2938 = vmul.f32 %v2931, %v505
        %v2939 = vmul.f32 %v2933, %v505
        %v2940 = vmul.f32 %v2935, %v505
        %v2941 = vmul.f32 %v2937, %v505
        %v2942 = vadd.f32 %v2938, 1e-05
        %v2943 = vadd.f32 %v2939, 1e-05
        %v2944 = vadd.f32 %v2940, 1e-05
        %v2945 = vadd.f32 %v2941, 1e-05
        %v2946 = vrsqrt.pop %v2942
        %v2947 = vrsqrt.pop %v2943
        %v2948 = vrsqrt.pop %v2944
        %v2949 = vrsqrt.pop %v2945
        %v2950 = vmul.f32 %v2922, %v2946
        %v2951 = vmul.f32 %v2923, %v2947
        %v2952 = vmul.f32 %v2924, %v2948
        %v2953 = vmul.f32 %v2925, %v2949
        %v2954 = vmul.f32 %v2950, %v546
        %v2955 = vmul.f32 %v2951, %v546
        %v2956 = vmul.f32 %v2952, %v546
        %v2957 = vmul.f32 %v2953, %v546
        %v2958 = vadd.f32 %v2954, %v556
        %v2959 = vadd.f32 %v2955, %v556
        %v2960 = vadd.f32 %v2956, %v556
        %v2961 = vadd.f32 %v2957, %v556
        %v2962 = vld [vmem:[#allocation12] sm:$0xff]
        %v2963 = vld [vmem:[#allocation12 + $0x8] sm:$0xff]
        %v2964 = vld [vmem:[#allocation12 + $0x10] sm:$0xff]
        %v2965 = vld [vmem:[#allocation12 + $0x18] sm:$0xff]
        %v2966 = vld [vmem:[#allocation12 + $0x20] sm:$0xff]
        %v2967 = vld [vmem:[#allocation12 + $0x28] sm:$0xff]
        %v2968 = vld [vmem:[#allocation12 + $0x30] sm:$0xff]
        %v2969 = vld [vmem:[#allocation12 + $0x38] sm:$0xff]
        %v2970 = vld [vmem:[#allocation12 + $0x40] sm:$0xff]
        %v2971 = vld [vmem:[#allocation12 + $0x48] sm:$0xff]
        %v2972 = vld [vmem:[#allocation12 + $0x50] sm:$0xff]
        %v2973 = vld [vmem:[#allocation12 + $0x58] sm:$0xff]
        %v2974 = vld [vmem:[#allocation12 + $0x60] sm:$0xff]
        %v2975 = vld [vmem:[#allocation12 + $0x68] sm:$0xff]
        %v2976 = vld [vmem:[#allocation12 + $0x70] sm:$0xff]
        %v2977 = vld [vmem:[#allocation12 + $0x78] sm:$0xff]
        %v2978 = vld [vmem:[#allocation12 + $0x80] sm:$0xff]
        %v2979 = vld [vmem:[#allocation12 + $0x88] sm:$0xff]
        %v2980 = vld [vmem:[#allocation12 + $0x90] sm:$0xff]
        %v2981 = vld [vmem:[#allocation12 + $0x98] sm:$0xff]
        %v2982 = vld [vmem:[#allocation12 + $0xa0] sm:$0xff]
        %v2983 = vld [vmem:[#allocation12 + $0xa8] sm:$0xff]
        %v2984 = vld [vmem:[#allocation12 + $0xb0] sm:$0xff]
        %v2985 = vld [vmem:[#allocation12 + $0xb8] sm:$0xff]
        %v2986 = vld [vmem:[#allocation12 + $0xc0] sm:$0xff]
        %v2987 = vld [vmem:[#allocation12 + $0xc8] sm:$0xff]
        %v2988 = vld [vmem:[#allocation12 + $0xd0] sm:$0xff]
        %v2989 = vld [vmem:[#allocation12 + $0xd8] sm:$0xff]
        %v2990 = vld [vmem:[#allocation12 + $0xe0] sm:$0xff]
        %v2991 = vld [vmem:[#allocation12 + $0xe8] sm:$0xff]
        %v2992 = vld [vmem:[#allocation12 + $0xf0] sm:$0xff]
        %v2993 = vld [vmem:[#allocation12 + $0xf8] sm:$0xff]
        %v2994 = vld [vmem:[#allocation12 + $0x100] sm:$0xff]
        %v2995 = vld [vmem:[#allocation12 + $0x108] sm:$0xff]
        %v2996 = vld [vmem:[#allocation12 + $0x110] sm:$0xff]
        %v2997 = vld [vmem:[#allocation12 + $0x118] sm:$0xff]
        %v2998 = vld [vmem:[#allocation12 + $0x120] sm:$0xff]
        %v2999 = vld [vmem:[#allocation12 + $0x128] sm:$0xff]
        %v3000 = vld [vmem:[#allocation12 + $0x130] sm:$0xff]
        %v3001 = vld [vmem:[#allocation12 + $0x138] sm:$0xff]
        %v3002 = vld [vmem:[#allocation12 + $0x140] sm:$0xff]
        %v3003 = vld [vmem:[#allocation12 + $0x148] sm:$0xff]
        %v3004 = vld [vmem:[#allocation12 + $0x150] sm:$0xff]
        %v3005 = vld [vmem:[#allocation12 + $0x158] sm:$0xff]
        %v3006 = vld [vmem:[#allocation12 + $0x160] sm:$0xff]
        %v3007 = vld [vmem:[#allocation12 + $0x168] sm:$0xff]
        %v3008 = vld [vmem:[#allocation12 + $0x170] sm:$0xff]
        %v3009 = vld [vmem:[#allocation12 + $0x178] sm:$0xff]
        %v3010 = vld [vmem:[#allocation12 + $0x180] sm:$0xff]
        %v3011 = vld [vmem:[#allocation12 + $0x188] sm:$0xff]
        %v3012 = vld [vmem:[#allocation12 + $0x190] sm:$0xff]
        %v3013 = vld [vmem:[#allocation12 + $0x198] sm:$0xff]
        %v3014 = vld [vmem:[#allocation12 + $0x1a0] sm:$0xff]
        %v3015 = vld [vmem:[#allocation12 + $0x1a8] sm:$0xff]
        %v3016 = vld [vmem:[#allocation12 + $0x1b0] sm:$0xff]
        %v3017 = vld [vmem:[#allocation12 + $0x1b8] sm:$0xff]
        %v3018 = vld [vmem:[#allocation12 + $0x1c0] sm:$0xff]
        %v3019 = vld [vmem:[#allocation12 + $0x1c8] sm:$0xff]
        %v3020 = vld [vmem:[#allocation12 + $0x1d0] sm:$0xff]
        %v3021 = vld [vmem:[#allocation12 + $0x1d8] sm:$0xff]
        %v3022 = vld [vmem:[#allocation12 + $0x1e0] sm:$0xff]
        %v3023 = vld [vmem:[#allocation12 + $0x1e8] sm:$0xff]
        %v3024 = vld [vmem:[#allocation12 + $0x1f0] sm:$0xff]
        %v3025 = vld [vmem:[#allocation12 + $0x1f8] sm:$0xff]
        %v3026 = vld [vmem:[%s8] sm:$0xf]
        %v3028 = vlaneseq
        %v3029 = vshrl.u32 %v3028, 7
        %v3030 = vsub.s32 0, %v3029
        %v3031 = vrot.slane %v3026, %v3030
        %v3032 = vlaneseq
        %v3033 = vshrl.u32 %v3032, 7
        %v3034 = vsub.s32 1, %v3033
        %v3035 = vrot.slane %v3026, %v3034
        %v3036 = vlaneseq
        %v3037 = vshrl.u32 %v3036, 7
        %v3038 = vsub.s32 2, %v3037
        %v3039 = vrot.slane %v3026, %v3038
        %v3040 = vlaneseq
        %v3041 = vshrl.u32 %v3040, 7
        %v3042 = vsub.s32 3, %v3041
        %v3043 = vrot.slane %v3026, %v3042
        %3048 = vmatprep.subr.mxu0 %v3023
        %3049 = vmatpush1.msra.mxu0 %v3022
        %3050 = vmatprep.subr.mxu0 %v3019
        %3051 = vmatpush1.msra.mxu0 %v3018
        %3052 = vmatprep.subr.mxu0 %v3015
        %3053 = vmatpush1.msra.mxu0 %v3014
        %3054 = vmatprep.subr.mxu0 %v3011
        %3055 = vmatpush1.msra.mxu0 %v3010
        %3056 = vmatprep.subr.mxu0 %v3007
        %3057 = vmatpush1.msra.mxu0 %v3006
        %3058 = vmatprep.subr.mxu0 %v3003
        %3059 = vmatpush1.msra.mxu0 %v3002
        %3060 = vmatprep.subr.mxu0 %v2999
        %3061 = vmatpush1.msra.mxu0 %v2998
        %3062 = vmatprep.subr.mxu0 %v2995
        %3063 = vmatpush1.msra.mxu0 %v2994
        %3064 = vmatprep.subr.mxu0 %v2991
        %3065 = vmatpush1.msra.mxu0 %v2990
        %3066 = vmatprep.subr.mxu0 %v2987
        %3067 = vmatpush1.msra.mxu0 %v2986
        %3068 = vmatprep.subr.mxu0 %v2983
        %3069 = vmatpush1.msra.mxu0 %v2982
        %3070 = vmatprep.subr.mxu0 %v2979
        %3071 = vmatpush1.msra.mxu0 %v2978
        %3072 = vmatprep.subr.mxu0 %v2975
        %3073 = vmatpush1.msra.mxu0 %v2974
        %3074 = vmatprep.subr.mxu0 %v2971
        %3075 = vmatpush1.msra.mxu0 %v2970
        %3076 = vmatprep.subr.mxu0 %v2967
        %3077 = vmatpush1.msra.mxu0 %v2966
        %3078 = vmatprep.subr.mxu0 %v2963
        %3079 = vmatpush1.msra.mxu0 %v2962
        %3080 = vmatprep.subr.mxu0 0.0
        %3081 = vmatpush2.msra.mxu0 0.0
        %3082 = vmatprep.subr.mxu0 0.0
        %3083 = vmatpush2.msra.mxu0 0.0
        %3084 = vmatprep.subr.mxu0 0.0
        %3085 = vmatpush2.msra.mxu0 0.0
        %3086 = vmatprep.subr.mxu0 0.0
        %3087 = vmatpush2.msra.mxu0 0.0
        %3088 = vmatprep.subr.mxu0 0.0
        %3089 = vmatpush2.msra.mxu0 0.0
        %3090 = vmatprep.subr.mxu0 0.0
        %3091 = vmatpush2.msra.mxu0 0.0
        %3092 = vmatprep.subr.mxu0 0.0
        %3093 = vmatpush2.msra.mxu0 0.0
        %3094 = vmatprep.subr.mxu0 0.0
        %3095 = vmatpush2.msra.mxu0 0.0
        %3096 = vmatprep.subr.mxu0 0.0
        %3097 = vmatpush2.msra.mxu0 0.0
        %3098 = vmatprep.subr.mxu0 0.0
        %3099 = vmatpush2.msra.mxu0 0.0
        %3100 = vmatprep.subr.mxu0 0.0
        %3101 = vmatpush2.msra.mxu0 0.0
        %3102 = vmatprep.subr.mxu0 0.0
        %3103 = vmatpush2.msra.mxu0 0.0
        %3104 = vmatprep.subr.mxu0 0.0
        %3105 = vmatpush2.msra.mxu0 0.0
        %3106 = vmatprep.subr.mxu0 0.0
        %3107 = vmatpush2.msra.mxu0 0.0
        %3108 = vmatprep.subr.mxu0 0.0
        %3109 = vmatpush2.msra.mxu0 0.0
        %3110 = vmatprep.subr.mxu0 0.0
        %3111 = vmatpush2.msra.mxu0 0.0
        %3112 = vmatprep.mubr.f32.mxu0 0.0
        %3113 = vmatmul.mubr.f32.gmra.mxu0 %v2958
        %v3114 = vpop.f32.mrf.mxu0
        %v3115 = vadd.f32 %v3031, %v3114
        %v3116 = vpop.f32.mrf.mxu0
        %v3117 = vadd.f32 %v3035, %v3116
        %3118 = vmatprep.mubr.f32.mxu0 0.0
        %3119 = vmatmul.mubr.f32.gmra.mxu0 %v2959
        %v3120 = vpop.f32.mrf.mxu0
        %v3121 = vadd.f32 %v3031, %v3120
        %v3122 = vpop.f32.mrf.mxu0
        %v3123 = vadd.f32 %v3035, %v3122
        %3124 = vmatprep.mubr.f32.mxu0 0.0
        %3125 = vmatmul.mubr.f32.gmra.mxu0 %v2960
        %v3126 = vpop.f32.mrf.mxu0
        %v3127 = vadd.f32 %v3031, %v3126
        %v3128 = vpop.f32.mrf.mxu0
        %v3129 = vadd.f32 %v3035, %v3128
        %3130 = vmatprep.mubr.f32.mxu0 0.0
        %3131 = vmatmul.mubr.f32.gmra.mxu0 %v2961
        %v3132 = vpop.f32.mrf.mxu0
        %v3133 = vadd.f32 %v3031, %v3132
        %v3134 = vpop.f32.mrf.mxu0
        %v3135 = vadd.f32 %v3035, %v3134
        %3136 = vdwg.mxu0
        %3137 = vmatprep.subr.mxu0 %v3025
        %3138 = vmatpush1.msra.mxu0 %v3024
        %3139 = vmatprep.subr.mxu0 %v3021
        %3140 = vmatpush1.msra.mxu0 %v3020
        %3141 = vmatprep.subr.mxu0 %v3017
        %3142 = vmatpush1.msra.mxu0 %v3016
        %3143 = vmatprep.subr.mxu0 %v3013
        %3144 = vmatpush1.msra.mxu0 %v3012
        %3145 = vmatprep.subr.mxu0 %v3009
        %3146 = vmatpush1.msra.mxu0 %v3008
        %3147 = vmatprep.subr.mxu0 %v3005
        %3148 = vmatpush1.msra.mxu0 %v3004
        %3149 = vmatprep.subr.mxu0 %v3001
        %3150 = vmatpush1.msra.mxu0 %v3000
        %3151 = vmatprep.subr.mxu0 %v2997
        %3152 = vmatpush1.msra.mxu0 %v2996
        %3153 = vmatprep.subr.mxu0 %v2993
        %3154 = vmatpush1.msra.mxu0 %v2992
        %3155 = vmatprep.subr.mxu0 %v2989
        %3156 = vmatpush1.msra.mxu0 %v2988
        %3157 = vmatprep.subr.mxu0 %v2985
        %3158 = vmatpush1.msra.mxu0 %v2984
        %3159 = vmatprep.subr.mxu0 %v2981
        %3160 = vmatpush1.msra.mxu0 %v2980
        %3161 = vmatprep.subr.mxu0 %v2977
        %3162 = vmatpush1.msra.mxu0 %v2976
        %3163 = vmatprep.subr.mxu0 %v2973
        %3164 = vmatpush1.msra.mxu0 %v2972
        %3165 = vmatprep.subr.mxu0 %v2969
        %3166 = vmatpush1.msra.mxu0 %v2968
        %3167 = vmatprep.subr.mxu0 %v2965
        %3168 = vmatpush1.msra.mxu0 %v2964
        %3169 = vmatprep.subr.mxu0 0.0
        %3170 = vmatpush2.msra.mxu0 0.0
        %3171 = vmatprep.subr.mxu0 0.0
        %3172 = vmatpush2.msra.mxu0 0.0
        %3173 = vmatprep.subr.mxu0 0.0
        %3174 = vmatpush2.msra.mxu0 0.0
        %3175 = vmatprep.subr.mxu0 0.0
        %3176 = vmatpush2.msra.mxu0 0.0
        %3177 = vmatprep.subr.mxu0 0.0
        %3178 = vmatpush2.msra.mxu0 0.0
        %3179 = vmatprep.subr.mxu0 0.0
        %3180 = vmatpush2.msra.mxu0 0.0
        %3181 = vmatprep.subr.mxu0 0.0
        %3182 = vmatpush2.msra.mxu0 0.0
        %3183 = vmatprep.subr.mxu0 0.0
        %3184 = vmatpush2.msra.mxu0 0.0
        %3185 = vmatprep.subr.mxu0 0.0
        %3186 = vmatpush2.msra.mxu0 0.0
        %3187 = vmatprep.subr.mxu0 0.0
        %3188 = vmatpush2.msra.mxu0 0.0
        %3189 = vmatprep.subr.mxu0 0.0
        %3190 = vmatpush2.msra.mxu0 0.0
        %3191 = vmatprep.subr.mxu0 0.0
        %3192 = vmatpush2.msra.mxu0 0.0
        %3193 = vmatprep.subr.mxu0 0.0
        %3194 = vmatpush2.msra.mxu0 0.0
        %3195 = vmatprep.subr.mxu0 0.0
        %3196 = vmatpush2.msra.mxu0 0.0
        %3197 = vmatprep.subr.mxu0 0.0
        %3198 = vmatpush2.msra.mxu0 0.0
        %3199 = vmatprep.subr.mxu0 0.0
        %3200 = vmatpush2.msra.mxu0 0.0
        %3201 = vmatprep.mubr.f32.mxu0 0.0
        %3202 = vmatmul.mubr.f32.gmra.mxu0 %v2958
        %v3203 = vpop.f32.mrf.mxu0
        %v3204 = vadd.f32 %v3039, %v3203
        %v3205 = vpop.f32.mrf.mxu0
        %v3206 = vadd.f32 %v3043, %v3205
        %3207 = vmatprep.mubr.f32.mxu0 0.0
        %3208 = vmatmul.mubr.f32.gmra.mxu0 %v2959
        %v3209 = vpop.f32.mrf.mxu0
        %v3210 = vadd.f32 %v3039, %v3209
        %v3211 = vpop.f32.mrf.mxu0
        %v3212 = vadd.f32 %v3043, %v3211
        %3213 = vmatprep.mubr.f32.mxu0 0.0
        %3214 = vmatmul.mubr.f32.gmra.mxu0 %v2960
        %v3215 = vpop.f32.mrf.mxu0
        %v3216 = vadd.f32 %v3039, %v3215
        %v3217 = vpop.f32.mrf.mxu0
        %v3218 = vadd.f32 %v3043, %v3217
        %3219 = vmatprep.mubr.f32.mxu0 0.0
        %3220 = vmatmul.mubr.f32.gmra.mxu0 %v2961
        %v3221 = vpop.f32.mrf.mxu0
        %v3222 = vadd.f32 %v3039, %v3221
        %v3223 = vpop.f32.mrf.mxu0
        %v3224 = vadd.f32 %v3043, %v3223
        %3225 = vdwg.mxu0
        %v3226 = vmul.f32 %v3115, 0.5
        %v3227 = vmul.f32 %v3117, 0.5
        %v3228 = vmul.f32 %v3204, 0.5
        %v3229 = vmul.f32 %v3206, 0.5
        %v3230 = vmul.f32 %v3121, 0.5
        %v3231 = vmul.f32 %v3123, 0.5
        %v3232 = vmul.f32 %v3210, 0.5
        %v3233 = vmul.f32 %v3212, 0.5
        %v3234 = vmul.f32 %v3127, 0.5
        %v3235 = vmul.f32 %v3129, 0.5
        %v3236 = vmul.f32 %v3216, 0.5
        %v3237 = vmul.f32 %v3218, 0.5
        %v3238 = vmul.f32 %v3133, 0.5
        %v3239 = vmul.f32 %v3135, 0.5
        %v3240 = vmul.f32 %v3222, 0.5
        %v3241 = vmul.f32 %v3224, 0.5
        %v3242 = vmul.f32 %v3115, 0.70710677
        %v3243 = vmul.f32 %v3117, 0.70710677
        %v3244 = vmul.f32 %v3204, 0.70710677
        %v3245 = vmul.f32 %v3206, 0.70710677
        %v3246 = vmul.f32 %v3121, 0.70710677
        %v3247 = vmul.f32 %v3123, 0.70710677
        %v3248 = vmul.f32 %v3210, 0.70710677
        %v3249 = vmul.f32 %v3212, 0.70710677
        %v3250 = vmul.f32 %v3127, 0.70710677
        %v3251 = vmul.f32 %v3129, 0.70710677
        %v3252 = vmul.f32 %v3216, 0.70710677
        %v3253 = vmul.f32 %v3218, 0.70710677
        %v3254 = vmul.f32 %v3133, 0.70710677
        %v3255 = vmul.f32 %v3135, 0.70710677
        %v3256 = vmul.f32 %v3222, 0.70710677
        %v3257 = vmul.f32 %v3224, 0.70710677
        %v3258 = verf.f32.pop %v3242
        %v3259 = verf.f32.pop %v3243
        %v3260 = verf.f32.pop %v3244
        %v3261 = verf.f32.pop %v3245
        %v3262 = verf.f32.pop %v3246
        %v3263 = verf.f32.pop %v3247
        %v3264 = verf.f32.pop %v3248
        %v3265 = verf.f32.pop %v3249
        %v3266 = verf.f32.pop %v3250
        %v3267 = verf.f32.pop %v3251
        %v3268 = verf.f32.pop %v3252
        %v3269 = verf.f32.pop %v3253
        %v3270 = verf.f32.pop %v3254
        %v3271 = verf.f32.pop %v3255
        %v3272 = verf.f32.pop %v3256
        %v3273 = verf.f32.pop %v3257
        %v3274 = vadd.f32 %v3258, 1.0
        %v3275 = vadd.f32 %v3259, 1.0
        %v3276 = vadd.f32 %v3260, 1.0
        %v3277 = vadd.f32 %v3261, 1.0
        %v3278 = vadd.f32 %v3262, 1.0
        %v3279 = vadd.f32 %v3263, 1.0
        %v3280 = vadd.f32 %v3264, 1.0
        %v3281 = vadd.f32 %v3265, 1.0
        %v3282 = vadd.f32 %v3266, 1.0
        %v3283 = vadd.f32 %v3267, 1.0
        %v3284 = vadd.f32 %v3268, 1.0
        %v3285 = vadd.f32 %v3269, 1.0
        %v3286 = vadd.f32 %v3270, 1.0
        %v3287 = vadd.f32 %v3271, 1.0
        %v3288 = vadd.f32 %v3272, 1.0
        %v3289 = vadd.f32 %v3273, 1.0
        %v3290 = vmul.f32 %v3226, %v3274
        %v3291 = vmul.f32 %v3227, %v3275
        %v3292 = vmul.f32 %v3228, %v3276
        %v3293 = vmul.f32 %v3229, %v3277
        %v3294 = vmul.f32 %v3230, %v3278
        %v3295 = vmul.f32 %v3231, %v3279
        %v3296 = vmul.f32 %v3232, %v3280
        %v3297 = vmul.f32 %v3233, %v3281
        %v3298 = vmul.f32 %v3234, %v3282
        %v3299 = vmul.f32 %v3235, %v3283
        %v3300 = vmul.f32 %v3236, %v3284
        %v3301 = vmul.f32 %v3237, %v3285
        %v3302 = vmul.f32 %v3238, %v3286
        %v3303 = vmul.f32 %v3239, %v3287
        %v3304 = vmul.f32 %v3240, %v3288
        %v3305 = vmul.f32 %v3241, %v3289
        %v3306 = vld [vmem:[#allocation14] sm:$0xff]
        %v3307 = vld [vmem:[#allocation14 + $0x8] sm:$0xff]
        %v3308 = vld [vmem:[#allocation14 + $0x10] sm:$0xff]
        %v3309 = vld [vmem:[#allocation14 + $0x18] sm:$0xff]
        %v3310 = vld [vmem:[#allocation14 + $0x20] sm:$0xff]
        %v3311 = vld [vmem:[#allocation14 + $0x28] sm:$0xff]
        %v3312 = vld [vmem:[#allocation14 + $0x30] sm:$0xff]
        %v3313 = vld [vmem:[#allocation14 + $0x38] sm:$0xff]
        %v3314 = vld [vmem:[#allocation14 + $0x40] sm:$0xff]
        %v3315 = vld [vmem:[#allocation14 + $0x48] sm:$0xff]
        %v3316 = vld [vmem:[#allocation14 + $0x50] sm:$0xff]
        %v3317 = vld [vmem:[#allocation14 + $0x58] sm:$0xff]
        %v3318 = vld [vmem:[#allocation14 + $0x60] sm:$0xff]
        %v3319 = vld [vmem:[#allocation14 + $0x68] sm:$0xff]
        %v3320 = vld [vmem:[#allocation14 + $0x70] sm:$0xff]
        %v3321 = vld [vmem:[#allocation14 + $0x78] sm:$0xff]
        %v3322 = vld [vmem:[#allocation14 + $0x80] sm:$0xff]
        %v3323 = vld [vmem:[#allocation14 + $0x88] sm:$0xff]
        %v3324 = vld [vmem:[#allocation14 + $0x90] sm:$0xff]
        %v3325 = vld [vmem:[#allocation14 + $0x98] sm:$0xff]
        %v3326 = vld [vmem:[#allocation14 + $0xa0] sm:$0xff]
        %v3327 = vld [vmem:[#allocation14 + $0xa8] sm:$0xff]
        %v3328 = vld [vmem:[#allocation14 + $0xb0] sm:$0xff]
        %v3329 = vld [vmem:[#allocation14 + $0xb8] sm:$0xff]
        %v3330 = vld [vmem:[#allocation14 + $0xc0] sm:$0xff]
        %v3331 = vld [vmem:[#allocation14 + $0xc8] sm:$0xff]
        %v3332 = vld [vmem:[#allocation14 + $0xd0] sm:$0xff]
        %v3333 = vld [vmem:[#allocation14 + $0xd8] sm:$0xff]
        %v3334 = vld [vmem:[#allocation14 + $0xe0] sm:$0xff]
        %v3335 = vld [vmem:[#allocation14 + $0xe8] sm:$0xff]
        %v3336 = vld [vmem:[#allocation14 + $0xf0] sm:$0xff]
        %v3337 = vld [vmem:[#allocation14 + $0xf8] sm:$0xff]
        %v3338 = vld [vmem:[#allocation14 + $0x100] sm:$0xff]
        %v3339 = vld [vmem:[#allocation14 + $0x108] sm:$0xff]
        %v3340 = vld [vmem:[#allocation14 + $0x110] sm:$0xff]
        %v3341 = vld [vmem:[#allocation14 + $0x118] sm:$0xff]
        %v3342 = vld [vmem:[#allocation14 + $0x120] sm:$0xff]
        %v3343 = vld [vmem:[#allocation14 + $0x128] sm:$0xff]
        %v3344 = vld [vmem:[#allocation14 + $0x130] sm:$0xff]
        %v3345 = vld [vmem:[#allocation14 + $0x138] sm:$0xff]
        %v3346 = vld [vmem:[#allocation14 + $0x140] sm:$0xff]
        %v3347 = vld [vmem:[#allocation14 + $0x148] sm:$0xff]
        %v3348 = vld [vmem:[#allocation14 + $0x150] sm:$0xff]
        %v3349 = vld [vmem:[#allocation14 + $0x158] sm:$0xff]
        %v3350 = vld [vmem:[#allocation14 + $0x160] sm:$0xff]
        %v3351 = vld [vmem:[#allocation14 + $0x168] sm:$0xff]
        %v3352 = vld [vmem:[#allocation14 + $0x170] sm:$0xff]
        %v3353 = vld [vmem:[#allocation14 + $0x178] sm:$0xff]
        %v3354 = vld [vmem:[#allocation14 + $0x180] sm:$0xff]
        %v3355 = vld [vmem:[#allocation14 + $0x188] sm:$0xff]
        %v3356 = vld [vmem:[#allocation14 + $0x190] sm:$0xff]
        %v3357 = vld [vmem:[#allocation14 + $0x198] sm:$0xff]
        %v3358 = vld [vmem:[#allocation14 + $0x1a0] sm:$0xff]
        %v3359 = vld [vmem:[#allocation14 + $0x1a8] sm:$0xff]
        %v3360 = vld [vmem:[#allocation14 + $0x1b0] sm:$0xff]
        %v3361 = vld [vmem:[#allocation14 + $0x1b8] sm:$0xff]
        %v3362 = vld [vmem:[#allocation14 + $0x1c0] sm:$0xff]
        %v3363 = vld [vmem:[#allocation14 + $0x1c8] sm:$0xff]
        %v3364 = vld [vmem:[#allocation14 + $0x1d0] sm:$0xff]
        %v3365 = vld [vmem:[#allocation14 + $0x1d8] sm:$0xff]
        %v3366 = vld [vmem:[#allocation14 + $0x1e0] sm:$0xff]
        %v3367 = vld [vmem:[#allocation14 + $0x1e8] sm:$0xff]
        %v3368 = vld [vmem:[#allocation14 + $0x1f0] sm:$0xff]
        %v3369 = vld [vmem:[#allocation14 + $0x1f8] sm:$0xff]
        %v3370 = vld [vmem:[%s10] sm:$0x1]
        %v3372 = vlaneseq
        %v3373 = vshrl.u32 %v3372, 7
        %v3374 = vsub.s32 0, %v3373
        %v3375 = vrot.slane %v3370, %v3374
        %3377 = vmatprep.subr.mxu0 0.0
        %3378 = vmatpush1.msra.mxu0 %v3321
        %3379 = vmatprep.subr.mxu0 0.0
        %3380 = vmatpush1.msra.mxu0 %v3320
        %3381 = vmatprep.subr.mxu0 0.0
        %3382 = vmatpush1.msra.mxu0 %v3319
        %3383 = vmatprep.subr.mxu0 0.0
        %3384 = vmatpush1.msra.mxu0 %v3318
        %3385 = vmatprep.subr.mxu0 0.0
        %3386 = vmatpush1.msra.mxu0 %v3317
        %3387 = vmatprep.subr.mxu0 0.0
        %3388 = vmatpush1.msra.mxu0 %v3316
        %3389 = vmatprep.subr.mxu0 0.0
        %3390 = vmatpush1.msra.mxu0 %v3315
        %3391 = vmatprep.subr.mxu0 0.0
        %3392 = vmatpush1.msra.mxu0 %v3314
        %3393 = vmatprep.subr.mxu0 0.0
        %3394 = vmatpush1.msra.mxu0 %v3313
        %3395 = vmatprep.subr.mxu0 0.0
        %3396 = vmatpush1.msra.mxu0 %v3312
        %3397 = vmatprep.subr.mxu0 0.0
        %3398 = vmatpush1.msra.mxu0 %v3311
        %3399 = vmatprep.subr.mxu0 0.0
        %3400 = vmatpush1.msra.mxu0 %v3310
        %3401 = vmatprep.subr.mxu0 0.0
        %3402 = vmatpush1.msra.mxu0 %v3309
        %3403 = vmatprep.subr.mxu0 0.0
        %3404 = vmatpush1.msra.mxu0 %v3308
        %3405 = vmatprep.subr.mxu0 0.0
        %3406 = vmatpush1.msra.mxu0 %v3307
        %3407 = vmatprep.subr.mxu0 0.0
        %3408 = vmatpush1.msra.mxu0 %v3306
        %3409 = vmatprep.subr.mxu0 0.0
        %3410 = vmatpush2.msra.mxu0 %v3337
        %3411 = vmatprep.subr.mxu0 0.0
        %3412 = vmatpush2.msra.mxu0 %v3336
        %3413 = vmatprep.subr.mxu0 0.0
        %3414 = vmatpush2.msra.mxu0 %v3335
        %3415 = vmatprep.subr.mxu0 0.0
        %3416 = vmatpush2.msra.mxu0 %v3334
        %3417 = vmatprep.subr.mxu0 0.0
        %3418 = vmatpush2.msra.mxu0 %v3333
        %3419 = vmatprep.subr.mxu0 0.0
        %3420 = vmatpush2.msra.mxu0 %v3332
        %3421 = vmatprep.subr.mxu0 0.0
        %3422 = vmatpush2.msra.mxu0 %v3331
        %3423 = vmatprep.subr.mxu0 0.0
        %3424 = vmatpush2.msra.mxu0 %v3330
        %3425 = vmatprep.subr.mxu0 0.0
        %3426 = vmatpush2.msra.mxu0 %v3329
        %3427 = vmatprep.subr.mxu0 0.0
        %3428 = vmatpush2.msra.mxu0 %v3328
        %3429 = vmatprep.subr.mxu0 0.0
        %3430 = vmatpush2.msra.mxu0 %v3327
        %3431 = vmatprep.subr.mxu0 0.0
        %3432 = vmatpush2.msra.mxu0 %v3326
        %3433 = vmatprep.subr.mxu0 0.0
        %3434 = vmatpush2.msra.mxu0 %v3325
        %3435 = vmatprep.subr.mxu0 0.0
        %3436 = vmatpush2.msra.mxu0 %v3324
        %3437 = vmatprep.subr.mxu0 0.0
        %3438 = vmatpush2.msra.mxu0 %v3323
        %3439 = vmatprep.subr.mxu0 0.0
        %3440 = vmatpush2.msra.mxu0 %v3322
        %3441 = vmatprep.mubr.f32.mxu0 %v3291
        %3442 = vmatmul.mubr.f32.gmra.mxu0 %v3290
        %v3443 = vpop.f32.mrf.mxu0
        %v3444 = vadd.f32 %v3375, %v3443
        %v3445 = vpop.f32.mrf.mxu0
        %3446 = vmatprep.mubr.f32.mxu0 %v3295
        %3447 = vmatmul.mubr.f32.gmra.mxu0 %v3294
        %v3448 = vpop.f32.mrf.mxu0
        %v3449 = vadd.f32 %v3375, %v3448
        %v3450 = vpop.f32.mrf.mxu0
        %3451 = vmatprep.mubr.f32.mxu0 %v3299
        %3452 = vmatmul.mubr.f32.gmra.mxu0 %v3298
        %v3453 = vpop.f32.mrf.mxu0
        %v3454 = vadd.f32 %v3375, %v3453
        %v3455 = vpop.f32.mrf.mxu0
        %3456 = vmatprep.mubr.f32.mxu0 %v3303
        %3457 = vmatmul.mubr.f32.gmra.mxu0 %v3302
        %v3458 = vpop.f32.mrf.mxu0
        %v3459 = vadd.f32 %v3375, %v3458
        %v3460 = vpop.f32.mrf.mxu0
        %3461 = vdwg.mxu0
        %3462 = vmatprep.subr.mxu0 0.0
        %3463 = vmatpush1.msra.mxu0 %v3353
        %3464 = vmatprep.subr.mxu0 0.0
        %3465 = vmatpush1.msra.mxu0 %v3352
        %3466 = vmatprep.subr.mxu0 0.0
        %3467 = vmatpush1.msra.mxu0 %v3351
        %3468 = vmatprep.subr.mxu0 0.0
        %3469 = vmatpush1.msra.mxu0 %v3350
        %3470 = vmatprep.subr.mxu0 0.0
        %3471 = vmatpush1.msra.mxu0 %v3349
        %3472 = vmatprep.subr.mxu0 0.0
        %3473 = vmatpush1.msra.mxu0 %v3348
        %3474 = vmatprep.subr.mxu0 0.0
        %3475 = vmatpush1.msra.mxu0 %v3347
        %3476 = vmatprep.subr.mxu0 0.0
        %3477 = vmatpush1.msra.mxu0 %v3346
        %3478 = vmatprep.subr.mxu0 0.0
        %3479 = vmatpush1.msra.mxu0 %v3345
        %3480 = vmatprep.subr.mxu0 0.0
        %3481 = vmatpush1.msra.mxu0 %v3344
        %3482 = vmatprep.subr.mxu0 0.0
        %3483 = vmatpush1.msra.mxu0 %v3343
        %3484 = vmatprep.subr.mxu0 0.0
        %3485 = vmatpush1.msra.mxu0 %v3342
        %3486 = vmatprep.subr.mxu0 0.0
        %3487 = vmatpush1.msra.mxu0 %v3341
        %3488 = vmatprep.subr.mxu0 0.0
        %3489 = vmatpush1.msra.mxu0 %v3340
        %3490 = vmatprep.subr.mxu0 0.0
        %3491 = vmatpush1.msra.mxu0 %v3339
        %3492 = vmatprep.subr.mxu0 0.0
        %3493 = vmatpush1.msra.mxu0 %v3338
        %3494 = vmatprep.subr.mxu0 0.0
        %3495 = vmatpush2.msra.mxu0 %v3369
        %3496 = vmatprep.subr.mxu0 0.0
        %3497 = vmatpush2.msra.mxu0 %v3368
        %3498 = vmatprep.subr.mxu0 0.0
        %3499 = vmatpush2.msra.mxu0 %v3367
        %3500 = vmatprep.subr.mxu0 0.0
        %3501 = vmatpush2.msra.mxu0 %v3366
        %3502 = vmatprep.subr.mxu0 0.0
        %3503 = vmatpush2.msra.mxu0 %v3365
        %3504 = vmatprep.subr.mxu0 0.0
        %3505 = vmatpush2.msra.mxu0 %v3364
        %3506 = vmatprep.subr.mxu0 0.0
        %3507 = vmatpush2.msra.mxu0 %v3363
        %3508 = vmatprep.subr.mxu0 0.0
        %3509 = vmatpush2.msra.mxu0 %v3362
        %3510 = vmatprep.subr.mxu0 0.0
        %3511 = vmatpush2.msra.mxu0 %v3361
        %3512 = vmatprep.subr.mxu0 0.0
        %3513 = vmatpush2.msra.mxu0 %v3360
        %3514 = vmatprep.subr.mxu0 0.0
        %3515 = vmatpush2.msra.mxu0 %v3359
        %3516 = vmatprep.subr.mxu0 0.0
        %3517 = vmatpush2.msra.mxu0 %v3358
        %3518 = vmatprep.subr.mxu0 0.0
        %3519 = vmatpush2.msra.mxu0 %v3357
        %3520 = vmatprep.subr.mxu0 0.0
        %3521 = vmatpush2.msra.mxu0 %v3356
        %3522 = vmatprep.subr.mxu0 0.0
        %3523 = vmatpush2.msra.mxu0 %v3355
        %3524 = vmatprep.subr.mxu0 0.0
        %3525 = vmatpush2.msra.mxu0 %v3354
        %3526 = vmatprep.mubr.f32.mxu0 %v3293
        %3527 = vmatmul.mubr.f32.gmra.mxu0 %v3292
        %v3528 = vpop.f32.mrf.mxu0
        %v3529 = vadd.f32 %v3444, %v3528
        %v3530 = vpop.f32.mrf.mxu0
        %3531 = vmatprep.mubr.f32.mxu0 %v3297
        %3532 = vmatmul.mubr.f32.gmra.mxu0 %v3296
        %v3533 = vpop.f32.mrf.mxu0
        %v3534 = vadd.f32 %v3449, %v3533
        %v3535 = vpop.f32.mrf.mxu0
        %3536 = vmatprep.mubr.f32.mxu0 %v3301
        %3537 = vmatmul.mubr.f32.gmra.mxu0 %v3300
        %v3538 = vpop.f32.mrf.mxu0
        %v3539 = vadd.f32 %v3454, %v3538
        %v3540 = vpop.f32.mrf.mxu0
        %3541 = vmatprep.mubr.f32.mxu0 %v3305
        %3542 = vmatmul.mubr.f32.gmra.mxu0 %v3304
        %v3543 = vpop.f32.mrf.mxu0
        %v3544 = vadd.f32 %v3459, %v3543
        %v3545 = vpop.f32.mrf.mxu0
        %3546 = vdwg.mxu0
        %v3547 = vadd.f32 %v3529, %v2906
        %v3548 = vadd.f32 %v3534, %v2907
        %v3549 = vadd.f32 %v3539, %v2908
        %v3550 = vadd.f32 %v3544, %v2909
        %3551 = vst [vmem:[%s488] sm:$0xff] %v3547
        %3552 = vst [vmem:[%s488 + $0x8] sm:$0xff] %v3548
        %3553 = vst [vmem:[%s488 + $0x10] sm:$0xff] %v3549
        %3554 = vst [vmem:[%s488 + $0x18] sm:$0xff] %v3550
        %s3555 = sand.u32 %s275, 1
        %s3556 = scalar_lea.sflag [#allocation5], %s3555
        %s3557 = sand.u32 %s275, 1
        %s3558 = smul.addr %s3557, 32
        %s3559 = scalar_lea.vmem [#allocation15], %s3558
        // Predicated region
        $region93: #{tpu_custom_call.1} parent=63 // pred_check
          %p3560 = pneg %p285
        $region94: #{tpu_custom_call.1} parent=63 // pred_check_branch
          %3562 = sbr.rel (%p3560) target = $region96
        $region95: #{tpu_custom_call.1} parent=63 // pred_region
          %s3563 = smul.u32 2, %s31
          %s3565 = ssub.s32 512, 512
          %3566 = vsyncadd %s3556, %s3565
          %s3567 = smul.addr %s3563, 2
          %s3568 = smul.addr %s3567, 128
          %s3569 = scalar_lea.hbm %s11, %s3568
          %s3570 = sshll.u32 %s3559, 4
          %s3571 = int_to_ptr.vmem [resolvable:$true] %s3570
          %3576 = dma.vmem_to_hbm [thread:$0]  %s3571, 512, %s3569, %s3556, 128, 128, 8
        $region96: #{tpu_custom_call.1} parent=63 // pred_fallthru
          _
      $region64: #{tpu_custom_call.1} parent=5 // pred_fallthru
        _
      %p3577 = scmp.le.s32.totalorder 2, %s26
      // Predicated region
      $region97: #{tpu_custom_call.1} parent=5 // pred_check
        %p3578 = pneg %p3577
      $region98: #{tpu_custom_call.1} parent=5 // pred_check_branch
        %3580 = sbr.rel (%p3578) target = $region100
      $region99: #{tpu_custom_call.1} parent=5 // pred_region
        %s3581 = ssub.s32 %s26, 2
        // Predicated region
        $region101: #{tpu_custom_call.1} parent=99 // pred_check
          %p3582 = pneg %p291
        $region102: #{tpu_custom_call.1} parent=99 // pred_check_branch
          %3584 = sbr.rel (%p3582) target = $region104
        $region103: #{tpu_custom_call.1} parent=99 // pred_region
          %s3585 = sand.u32 %s276, 1
          %s3586 = scalar_lea.sflag [#allocation5], %s3585
          %s3587 = sand.u32 %s276, 1
          %s3588 = smul.addr %s3587, 32
          %s3589 = scalar_lea.vmem [#allocation15], %s3588
          %3590 = dma.done %s3586, 512
        $region104: #{tpu_custom_call.1} parent=99 // pred_fallthru
          _
      $region100: #{tpu_custom_call.1} parent=5 // pred_fallthru
        _
    $region6: #{tpu_custom_call.1} parent=1 // loop_footer
      %s30 = sadd.s32 1, %s26
    $region7: #{tpu_custom_call.1} parent=1 // loop_footer_branch
      %25 = sbr.rel target = $region3
    $region8: #{tpu_custom_call.1} parent=1 // loop_exit
      _
    %3591 = vsyncpa [#allocation4], 1
    %s3592 = scalar_lea.sflag [#allocation4], 1
    %3593 = vsyncpa %s3592, 1
    %3594 = vsyncpa [#allocation7], 1
    %3595 = vsyncpa [#allocation10], 1
    %3596 = vsyncpa [#allocation13], 1
    %3597 = vsyncpa [#allocation5], 1
    %s3598 = scalar_lea.sflag [#allocation5], 1
    %3599 = vsyncpa %s3598, 1

// kernel: tpu_custom_call.1
$region0: #{tpu_custom_call.1}
  #allocation0 [shape = 'u32[]', space=smem, size = 0x4, offset = 0x4, fixed_abs, tag = 'smem constant byte address 0x4 - core index']
  #allocation1 [shape = 'u32[144,128]{1,0:T(1,128)}', space=vmem, size = 0x12000, scoped, tag = 'internal scratch']
  #allocation2 [shape = 'f32[2,16,384]{2,1,0:T(8,128)}', space=vmem, size = 0xc000, scoped, tag = 'scratch operand']
  %s0 = inlined_call_operand.hbm [shape: f32[4,16,128], index: 0, kind: input, shape index: {}]
  %s1 = inlined_call_operand.hbm [shape: f32[1,128], index: 1, kind: input, shape index: {}]
  %s2 = inlined_call_operand.hbm [shape: f32[1,128], index: 2, kind: input, shape index: {}]
  %s3 = inlined_call_operand.hbm [shape: f32[128,384], index: 3, kind: input, shape index: {}]
  %s4 = inlined_call_operand.vmem [shape: f32[1,384], index: 4, kind: input, shape index: {}]
  %s5 = inlined_call_operand.hbm [shape: f32[128,128], index: 5, kind: input, shape index: {}]
  %s6 = inlined_call_operand.vmem [shape: f32[1,128], index: 6, kind: input, shape index: {}]
  %s7 = inlined_call_operand.hbm [shape: f32[128,512], index: 7, kind: input, shape index: {}]
  %s8 = inlined_call_operand.vmem [shape: f32[1,512], index: 8, kind: input, shape index: {}]
  %s9 = inlined_call_operand.hbm [shape: f32[512,128], index: 9, kind: input, shape index: {}]
  %s10 = inlined_call_operand.vmem [shape: f32[1,128], index: 10, kind: input, shape index: {}]
  %s11 = inlined_call_operand.hbm [shape: f32[4,16,128], index: 11, kind: output, shape index: {}]
  %s12 = sld [smem:[#allocation0]]
  $region105: #{tpu_custom_call.1} parent=0
    _
  %s14 = ssub.s32 1, %s12
  %s15 = scalar_select 0, %s14, %s12
  $region1: #{tpu_custom_call.1} parent=0
    #allocation3 [shape = 'u8[32768]{0}', space=vmem, size = 0x8000, scoped, tag = 'input window, operand 0']
    #allocation4 [shape = 's32[2]{0}', space=sflag, size = 0x8, scoped, tag = 'scoped memory for tpu_custom_call.1']
    #allocation5 [shape = 's32[2]{0}', space=sflag, size = 0x8, scoped, tag = 'scoped memory for tpu_custom_call.1']
    #allocation6 [shape = 'u8[512]{0}', space=vmem, size = 0x400, scoped, tag = 'input window, operand 1, single buffered']
    #allocation7 [shape = 's32[1]{0}', space=sflag, size = 0x4, scoped, tag = 'scoped memory for tpu_custom_call.1']
    #allocation8 [shape = 'u8[512]{0}', space=vmem, size = 0x400, scoped, tag = 'input window, operand 2, single buffered']
    #allocation9 [shape = 'u8[196608]{0}', space=vmem, size = 0x30000, scoped, tag = 'input window, operand 3, single buffered']
    #allocation10 [shape = 's32[1]{0}', space=sflag, size = 0x4, scoped, tag = 'scoped memory for tpu_custom_call.1']
    #allocation11 [shape = 'u8[65536]{0}', space=vmem, size = 0x10000, scoped, tag = 'input window, operand 5, single buffered']
    #allocation12 [shape = 'u8[262144]{0}', space=vmem, size = 0x40000, scoped, tag = 'input window, operand 7, single buffered']
    #allocation13 [shape = 's32[1]{0}', space=sflag, size = 0x4, scoped, tag = 'scoped memory for tpu_custom_call.1']
    #allocation14 [shape = 'u8[262144]{0}', space=vmem, size = 0x40000, scoped, tag = 'input window, operand 9, single buffered']
    #allocation15 [shape = 'u8[32768]{0}', space=vmem, size = 0x8000, scoped, tag = 'output window, operand 0']
    %16 = vsyncpa [#allocation4], 0
    %s17 = scalar_lea.sflag [#allocation4], 1
    %18 = vsyncpa %s17, 0
    %19 = vsyncpa [#allocation7], 0
    %20 = vsyncpa [#allocation10], 0
    %21 = vsyncpa [#allocation13], 0
    %22 = vsyncpa [#allocation5], 0
    %s23 = scalar_lea.sflag [#allocation5], 1
    %24 = vsyncpa %s23, 0
    loop: start=0, step=1, limit=4
    $region2: #{tpu_custom_call.1} parent=1 // loop_pre_header
      _
    $region3: #{tpu_custom_call.1} parent=1 // loop_header
      %s26 = sphi 0, %s30
      %p27 = scmp.ge.s32.totalorder %s26, 4
      %s36 = sphi 0, %s38
      %s39 = sphi 0, %s36
      %s40 = sphi 0, %s39
      %s56 = sphi 0, %s40
      %s60 = sphi 0, %s60
      %s62 = sphi 0, %s60
      %s63 = sphi 0, %s62
      %s77 = sphi 0, %s63
      %s81 = sphi 0, %s81
      %s83 = sphi 0, %s81
      %s84 = sphi 0, %s83
      %s98 = sphi 0, %s84
      %s102 = sphi 0, %s102
      %s104 = sphi 0, %s102
      %s105 = sphi 0, %s104
      %s119 = sphi 0, %s105
      %s123 = sphi 0, %s123
      %s125 = sphi 0, %s123
      %s126 = sphi 0, %s125
      %s140 = sphi 0, %s126
      %s144 = sphi 0, %s144
      %s146 = sphi 0, %s144
      %s147 = sphi 0, %s146
      %s161 = sphi 0, %s147
      %s165 = sphi 0, %s165
      %s167 = sphi 0, %s165
      %s168 = sphi 0, %s167
      %s182 = sphi 0, %s168
      %s186 = sphi 0, %s186
      %s188 = sphi 0, %s186
      %s189 = sphi 0, %s188
      %s203 = sphi 0, %s189
      %s207 = sphi 0, %s207
      %s209 = sphi 0, %s207
      %s210 = sphi 0, %s209
      %s224 = sphi 0, %s210
      %s228 = sphi 0, %s228
      %s230 = sphi 0, %s228
      %s231 = sphi 0, %s230
      %s245 = sphi 0, %s231
      %s249 = sphi 0, %s249
      %s251 = sphi 0, %s249
      %s252 = sphi 0, %s251
      %s266 = sphi 0, %s252
      %s272 = sphi 0, %s274
      %s275 = sphi 0, %s272
      %s276 = sphi 0, %s275
      %s292 = sphi 0, %s276
    $region4: #{tpu_custom_call.1} parent=1 // loop_header_branch
      %29 = sbr.rel (%p27) target = $region8
    $region5: #{tpu_custom_call.1} parent=1 // loop_body
      %s31 = ssub.s32 %s26, 1
      %s32 = ssub.s32 %s26, 2
      %s33 = sadd.s32 %s26, 1
      %s34 = ssub.s32 %s26, %s33
      %p35 = scmp.eq.s32.totalorder %s34, 0
      %s37 = sadd.s32 %s36, 1
      %s38 = scalar_select %p35, %s36, %s37
      %p41 = pneg %p35
      %p42 = scmp.eq.s32.totalorder %s26, 1
      %p43 = por %p41, %p42
      %p44 = scmp.ne.s32.totalorder %s36, %s39
      %p45 = scmp.eq.s32.totalorder %s26, 0
      %p46 = por %p44, %p45
      %p47 = scmp.ne.s32.totalorder %s36, %s39
      %p48 = scmp.eq.s32.totalorder %s31, 1
      %p49 = por %p47, %p48
      %p50 = scmp.ne.s32.totalorder %s39, %s40
      %p51 = scmp.eq.s32.totalorder %s31, 0
      %p52 = por %p50, %p51
      %p53 = scmp.ne.s32.totalorder %s39, %s40
      %p54 = scmp.eq.s32.totalorder %s32, 1
      %p55 = por %p53, %p54
      %p57 = scmp.ne.s32.totalorder %s40, %s56
      %p58 = scmp.eq.s32.totalorder %s32, 0
      %p59 = por %p57, %p58
      %s61 = sadd.s32 %s60, 1
      %p64 = scmp.eq.s32.totalorder %s26, 1
      %p65 = scmp.ne.s32.totalorder %s60, %s62
      %p66 = scmp.eq.s32.totalorder %s26, 0
      %p67 = por %p65, %p66
      %p68 = scmp.ne.s32.totalorder %s60, %s62
      %p69 = scmp.eq.s32.totalorder %s31, 1
      %p70 = por %p68, %p69
      %p71 = scmp.ne.s32.totalorder %s62, %s63
      %p72 = scmp.eq.s32.totalorder %s31, 0
      %p73 = por %p71, %p72
      %p74 = scmp.ne.s32.totalorder %s62, %s63
      %p75 = scmp.eq.s32.totalorder %s32, 1
      %p76 = por %p74, %p75
      %p78 = scmp.ne.s32.totalorder %s63, %s77
      %p79 = scmp.eq.s32.totalorder %s32, 0
      %p80 = por %p78, %p79
      %s82 = sadd.s32 %s81, 1
      %p85 = scmp.eq.s32.totalorder %s26, 1
      %p86 = scmp.ne.s32.totalorder %s81, %s83
      %p87 = scmp.eq.s32.totalorder %s26, 0
      %p88 = por %p86, %p87
      %p89 = scmp.ne.s32.totalorder %s81, %s83
      %p90 = scmp.eq.s32.totalorder %s31, 1
      %p91 = por %p89, %p90
      %p92 = scmp.ne.s32.totalorder %s83, %s84
      %p93 = scmp.eq.s32.totalorder %s31, 0
      %p94 = por %p92, %p93
      %p95 = scmp.ne.s32.totalorder %s83, %s84
      %p96 = scmp.eq.s32.totalorder %s32, 1
      %p97 = por %p95, %p96
      %p99 = scmp.ne.s32.totalorder %s84, %s98
      %p100 = scmp.eq.s32.totalorder %s32, 0
      %p101 = por %p99, %p100
      %s103 = sadd.s32 %s102, 1
      %p106 = scmp.eq.s32.totalorder %s26, 1
      %p107 = scmp.ne.s32.totalorder %s102, %s104
      %p108 = scmp.eq.s32.totalorder %s26, 0
      %p109 = por %p107, %p108
      %p110 = scmp.ne.s32.totalorder %s102, %s104
      %p111 = scmp.eq.s32.totalorder %s31, 1
      %p112 = por %p110, %p111
      %p113 = scmp.ne.s32.totalorder %s104, %s105
      %p114 = scmp.eq.s32.totalorder %s31, 0
      %p115 = por %p113, %p114
      %p116 = scmp.ne.s32.totalorder %s104, %s105
      %p117 = scmp.eq.s32.totalorder %s32, 1
      %p118 = por %p116, %p117
      %p120 = scmp.ne.s32.totalorder %s105, %s119
      %p121 = scmp.eq.s32.totalorder %s32, 0
      %p122 = por %p120, %p121
      %s124 = sadd.s32 %s123, 1
      %p127 = scmp.eq.s32.totalorder %s26, 1
      %p128 = scmp.ne.s32.totalorder %s123, %s125
      %p129 = scmp.eq.s32.totalorder %s26, 0
      %p130 = por %p128, %p129
      %p131 = scmp.ne.s32.totalorder %s123, %s125
      %p132 = scmp.eq.s32.totalorder %s31, 1
      %p133 = por %p131, %p132
      %p134 = scmp.ne.s32.totalorder %s125, %s126
      %p135 = scmp.eq.s32.totalorder %s31, 0
      %p136 = por %p134, %p135
      %p137 = scmp.ne.s32.totalorder %s125, %s126
      %p138 = scmp.eq.s32.totalorder %s32, 1
      %p139 = por %p137, %p138
      %p141 = scmp.ne.s32.totalorder %s126, %s140
      %p142 = scmp.eq.s32.totalorder %s32, 0
      %p143 = por %p141, %p142
      %s145 = sadd.s32 %s144, 1
      %p148 = scmp.eq.s32.totalorder %s26, 1
      %p149 = scmp.ne.s32.totalorder %s144, %s146
      %p150 = scmp.eq.s32.totalorder %s26, 0
      %p151 = por %p149, %p150
      %p152 = scmp.ne.s32.totalorder %s144, %s146
      %p153 = scmp.eq.s32.totalorder %s31, 1
      %p154 = por %p152, %p153
      %p155 = scmp.ne.s32.totalorder %s146, %s147
      %p156 = scmp.eq.s32.totalorder %s31, 0
      %p157 = por %p155, %p156
      %p158 = scmp.ne.s32.totalorder %s146, %s147
      %p159 = scmp.eq.s32.totalorder %s32, 1
      %p160 = por %p158, %p159
      %p162 = scmp.ne.s32.totalorder %s147, %s161
      %p163 = scmp.eq.s32.totalorder %s32, 0
      %p164 = por %p162, %p163
      %s166 = sadd.s32 %s165, 1
      %p169 = scmp.eq.s32.totalorder %s26, 1
      %p170 = scmp.ne.s32.totalorder %s165, %s167
      %p171 = scmp.eq.s32.totalorder %s26, 0
      %p172 = por %p170, %p171
      %p173 = scmp.ne.s32.totalorder %s165, %s167
      %p174 = scmp.eq.s32.totalorder %s31, 1
      %p175 = por %p173, %p174
      %p176 = scmp.ne.s32.totalorder %s167, %s168
      %p177 = scmp.eq.s32.totalorder %s31, 0
      %p178 = por %p176, %p177
      %p179 = scmp.ne.s32.totalorder %s167, %s168
      %p180 = scmp.eq.s32.totalorder %s32, 1
      %p181 = por %p179, %p180
      %p183 = scmp.ne.s32.totalorder %s168, %s182
      %p184 = scmp.eq.s32.totalorder %s32, 0
      %p185 = por %p183, %p184
      %s187 = sadd.s32 %s186, 1
      %p190 = scmp.eq.s32.totalorder %s26, 1
      %p191 = scmp.ne.s32.totalorder %s186, %s188
      %p192 = scmp.eq.s32.totalorder %s26, 0
      %p193 = por %p191, %p192
      %p194 = scmp.ne.s32.totalorder %s186, %s188
      %p195 = scmp.eq.s32.totalorder %s31, 1
      %p196 = por %p194, %p195
      %p197 = scmp.ne.s32.totalorder %s188, %s189
      %p198 = scmp.eq.s32.totalorder %s31, 0
      %p199 = por %p197, %p198
      %p200 = scmp.ne.s32.totalorder %s188, %s189
      %p201 = scmp.eq.s32.totalorder %s32, 1
      %p202 = por %p200, %p201
      %p204 = scmp.ne.s32.totalorder %s189, %s203
      %p205 = scmp.eq.s32.totalorder %s32, 0
      %p206 = por %p204, %p205
      %s208 = sadd.s32 %s207, 1
      %p211 = scmp.eq.s32.totalorder %s26, 1
      %p212 = scmp.ne.s32.totalorder %s207, %s209
      %p213 = scmp.eq.s32.totalorder %s26, 0
      %p214 = por %p212, %p213
      %p215 = scmp.ne.s32.totalorder %s207, %s209
      %p216 = scmp.eq.s32.totalorder %s31, 1
      %p217 = por %p215, %p216
      %p218 = scmp.ne.s32.totalorder %s209, %s210
      %p219 = scmp.eq.s32.totalorder %s31, 0
      %p220 = por %p218, %p219
      %p221 = scmp.ne.s32.totalorder %s209, %s210
      %p222 = scmp.eq.s32.totalorder %s32, 1
      %p223 = por %p221, %p222
      %p225 = scmp.ne.s32.totalorder %s210, %s224
      %p226 = scmp.eq.s32.totalorder %s32, 0
      %p227 = por %p225, %p226
      %s229 = sadd.s32 %s228, 1
      %p232 = scmp.eq.s32.totalorder %s26, 1
      %p233 = scmp.ne.s32.totalorder %s228, %s230
      %p234 = scmp.eq.s32.totalorder %s26, 0
      %p235 = por %p233, %p234
      %p236 = scmp.ne.s32.totalorder %s228, %s230
      %p237 = scmp.eq.s32.totalorder %s31, 1
      %p238 = por %p236, %p237
      %p239 = scmp.ne.s32.totalorder %s230, %s231
      %p240 = scmp.eq.s32.totalorder %s31, 0
      %p241 = por %p239, %p240
      %p242 = scmp.ne.s32.totalorder %s230, %s231
      %p243 = scmp.eq.s32.totalorder %s32, 1
      %p244 = por %p242, %p243
      %p246 = scmp.ne.s32.totalorder %s231, %s245
      %p247 = scmp.eq.s32.totalorder %s32, 0
      %p248 = por %p246, %p247
      %s250 = sadd.s32 %s249, 1
      %p253 = scmp.eq.s32.totalorder %s26, 1
      %p254 = scmp.ne.s32.totalorder %s249, %s251
      %p255 = scmp.eq.s32.totalorder %s26, 0
      %p256 = por %p254, %p255
      %p257 = scmp.ne.s32.totalorder %s249, %s251
      %p258 = scmp.eq.s32.totalorder %s31, 1
      %p259 = por %p257, %p258
      %p260 = scmp.ne.s32.totalorder %s251, %s252
      %p261 = scmp.eq.s32.totalorder %s31, 0
      %p262 = por %p260, %p261
      %p263 = scmp.ne.s32.totalorder %s251, %s252
      %p264 = scmp.eq.s32.totalorder %s32, 1
      %p265 = por %p263, %p264
      %p267 = scmp.ne.s32.totalorder %s252, %s266
      %p268 = scmp.eq.s32.totalorder %s32, 0
      %p269 = por %p267, %p268
      %s270 = ssub.s32 %s26, %s33
      %p271 = scmp.eq.s32.totalorder %s270, 0
      %s273 = sadd.s32 %s272, 1
      %s274 = scalar_select %p271, %s272, %s273
      %p277 = pneg %p271
      %p278 = scmp.eq.s32.totalorder %s26, 1
      %p279 = por %p277, %p278
      %p280 = scmp.ne.s32.totalorder %s272, %s275
      %p281 = scmp.eq.s32.totalorder %s26, 0
      %p282 = por %p280, %p281
      %p283 = scmp.ne.s32.totalorder %s272, %s275
      %p284 = scmp.eq.s32.totalorder %s31, 1
      %p285 = por %p283, %p284
      %p286 = scmp.ne.s32.totalorder %s275, %s276
      %p287 = scmp.eq.s32.totalorder %s31, 0
      %p288 = por %p286, %p287
      %p289 = scmp.ne.s32.totalorder %s275, %s276
      %p290 = scmp.eq.s32.totalorder %s32, 1
      %p291 = por %p289, %p290
      %p293 = scmp.ne.s32.totalorder %s276, %s292
      %p294 = scmp.eq.s32.totalorder %s32, 0
      %p295 = por %p293, %p294
      %p296 = scmp.le.s32.totalorder 1, %s26
      %p297 = scmp.lt.s32.totalorder %s26, 3
      %p298 = pnand %p296, %p297
      %p299 = pneg %p298
      // Predicated region
      $region9: #{tpu_custom_call.1} parent=5 // pred_check
        _
      $region10: #{tpu_custom_call.1} parent=5 // pred_check_branch
        %301 = sbr.rel (%p298) target = $region12
      $region11: #{tpu_custom_call.1} parent=5 // pred_region
        %s302 = ssub.s32 %s26, 1
        // Predicated region
        $region13: #{tpu_custom_call.1} parent=11 // pred_check
          %p303 = pneg %p73
        $region14: #{tpu_custom_call.1} parent=11 // pred_check_branch
          %305 = sbr.rel (%p303) target = $region16
        $region15: #{tpu_custom_call.1} parent=11 // pred_region
          %s307 = ssub.s32 16, 16
          %308 = vsyncadd [#allocation7], %s307
          %s310 = sshll.u32 [#allocation6], 4
          %s311 = int_to_ptr.vmem [resolvable:$true] %s310
          %313 = dma.hbm_to_vmem [thread:$0]  %s1, 16, %s311, [#allocation7]
        $region16: #{tpu_custom_call.1} parent=11 // pred_fallthru
          _
        // Predicated region
        $region17: #{tpu_custom_call.1} parent=11 // pred_check
          %p314 = pneg %p94
        $region18: #{tpu_custom_call.1} parent=11 // pred_check_branch
          %316 = sbr.rel (%p314) target = $region20
        $region19: #{tpu_custom_call.1} parent=11 // pred_region
          %s318 = ssub.s32 16, 16
          %319 = vsyncadd [#allocation7], %s318
          %s321 = sshll.u32 [#allocation8], 4
          %s322 = int_to_ptr.vmem [resolvable:$true] %s321
          %324 = dma.hbm_to_vmem [thread:$0]  %s2, 16, %s322, [#allocation7]
        $region20: #{tpu_custom_call.1} parent=11 // pred_fallthru
          _
        // Predicated region
        $region21: #{tpu_custom_call.1} parent=11 // pred_check
          %p325 = pneg %p115
        $region22: #{tpu_custom_call.1} parent=11 // pred_check_branch
          %327 = sbr.rel (%p325) target = $region24
        $region23: #{tpu_custom_call.1} parent=11 // pred_region
          %s329 = ssub.s32 6144, 6144
          %330 = vsyncadd [#allocation10], %s329
          %s331 = sshll.u32 [#allocation9], 4
          %s332 = int_to_ptr.vmem [resolvable:$true] %s331
          %337 = dma.hbm_to_vmem [thread:$0]  %s3, 6144, %s332, [#allocation10], 384, 384, 24
        $region24: #{tpu_custom_call.1} parent=11 // pred_fallthru
          _
        // Predicated region
        $region25: #{tpu_custom_call.1} parent=11 // pred_check
          %p338 = pneg %p136
        $region26: #{tpu_custom_call.1} parent=11 // pred_check_branch
          %340 = sbr.rel (%p338) target = $region28
        $region27: #{tpu_custom_call.1} parent=11 // pred_region
          _
        $region28: #{tpu_custom_call.1} parent=11 // pred_fallthru
          _
        // Predicated region
        $region29: #{tpu_custom_call.1} parent=11 // pred_check
          %p341 = pneg %p157
        $region30: #{tpu_custom_call.1} parent=11 // pred_check_branch
          %343 = sbr.rel (%p341) target = $region32
        $region31: #{tpu_custom_call.1} parent=11 // pred_region
          %s345 = ssub.s32 2048, 2048
          %346 = vsyncadd [#allocation10], %s345
          %s347 = sshll.u32 [#allocation11], 4
          %s348 = int_to_ptr.vmem [resolvable:$true] %s347
          %353 = dma.hbm_to_vmem [thread:$0]  %s5, 2048, %s348, [#allocation10], 128, 128, 8
        $region32: #{tpu_custom_call.1} parent=11 // pred_fallthru
          _
        // Predicated region
        $region33: #{tpu_custom_call.1} parent=11 // pred_check
          %p354 = pneg %p178
        $region34: #{tpu_custom_call.1} parent=11 // pred_check_branch
          %356 = sbr.rel (%p354) target = $region36
        $region35: #{tpu_custom_call.1} parent=11 // pred_region
          _
        $region36: #{tpu_custom_call.1} parent=11 // pred_fallthru
          _
        // Predicated region
        $region37: #{tpu_custom_call.1} parent=11 // pred_check
          %p357 = pneg %p199
        $region38: #{tpu_custom_call.1} parent=11 // pred_check_branch
          %359 = sbr.rel (%p357) target = $region40
        $region39: #{tpu_custom_call.1} parent=11 // pred_region
          %s361 = ssub.s32 8192, 8192
          %362 = vsyncadd [#allocation13], %s361
          %s363 = sshll.u32 [#allocation12], 4
          %s364 = int_to_ptr.vmem [resolvable:$true] %s363
          %369 = dma.hbm_to_vmem [thread:$0]  %s7, 8192, %s364, [#allocation13], 512, 512, 32
        $region40: #{tpu_custom_call.1} parent=11 // pred_fallthru
          _
        // Predicated region
        $region41: #{tpu_custom_call.1} parent=11 // pred_check
          %p370 = pneg %p220
        $region42: #{tpu_custom_call.1} parent=11 // pred_check_branch
          %372 = sbr.rel (%p370) target = $region44
        $region43: #{tpu_custom_call.1} parent=11 // pred_region
          _
        $region44: #{tpu_custom_call.1} parent=11 // pred_fallthru
          _
        // Predicated region
        $region45: #{tpu_custom_call.1} parent=11 // pred_check
          %p373 = pneg %p241
        $region46: #{tpu_custom_call.1} parent=11 // pred_check_branch
          %375 = sbr.rel (%p373) target = $region48
        $region47: #{tpu_custom_call.1} parent=11 // pred_region
          %s377 = ssub.s32 8192, 8192
          %378 = vsyncadd [#allocation13], %s377
          %s379 = sshll.u32 [#allocation14], 4
          %s380 = int_to_ptr.vmem [resolvable:$true] %s379
          %385 = dma.hbm_to_vmem [thread:$0]  %s9, 8192, %s380, [#allocation13], 128, 128, 8
        $region48: #{tpu_custom_call.1} parent=11 // pred_fallthru
          _
        // Predicated region
        $region49: #{tpu_custom_call.1} parent=11 // pred_check
          %p386 = pneg %p262
        $region50: #{tpu_custom_call.1} parent=11 // pred_check_branch
          %388 = sbr.rel (%p386) target = $region52
        $region51: #{tpu_custom_call.1} parent=11 // pred_region
          _
        $region52: #{tpu_custom_call.1} parent=11 // pred_fallthru
          _
      $region12: #{tpu_custom_call.1} parent=5 // pred_fallthru
        _
      %p389 = scmp.lt.s32.totalorder %s26, 2
      // Predicated region
      $region53: #{tpu_custom_call.1} parent=5 // pred_check
        %p390 = pneg %p389
      $region54: #{tpu_custom_call.1} parent=5 // pred_check_branch
        %392 = sbr.rel (%p390) target = $region56
      $region55: #{tpu_custom_call.1} parent=5 // pred_region
        // Predicated region
        $region57: #{tpu_custom_call.1} parent=55 // pred_check
          %p393 = pneg %p46
        $region58: #{tpu_custom_call.1} parent=55 // pred_check_branch
          %395 = sbr.rel (%p393) target = $region60
        $region59: #{tpu_custom_call.1} parent=55 // pred_region
          %s396 = sand.u32 %s36, 1
          %s397 = scalar_lea.sflag [#allocation4], %s396
          %s398 = sand.u32 %s36, 1
          %s399 = smul.addr %s398, 32
          %s400 = scalar_lea.vmem [#allocation3], %s399
          %s401 = smul.u32 2, %s26
          %s403 = ssub.s32 512, 512
          %404 = vsyncadd %s397, %s403
          %s405 = smul.addr %s401, 2
          %s406 = smul.addr %s405, 128
          %s407 = scalar_lea.hbm %s0, %s406
          %s408 = sshll.u32 %s400, 4
          %s409 = int_to_ptr.vmem [resolvable:$true] %s408
          %414 = dma.hbm_to_vmem [thread:$0]  %s407, 512, %s409, %s397, 128, 128, 8
        $region60: #{tpu_custom_call.1} parent=55 // pred_fallthru
          _
      $region56: #{tpu_custom_call.1} parent=5 // pred_fallthru
        _
      %p415 = scmp.le.s32.totalorder 1, %s26
      %p416 = scmp.lt.s32.totalorder %s26, 3
      %p417 = pnand %p415, %p416
      %p418 = pneg %p417
      // Predicated region
      $region61: #{tpu_custom_call.1} parent=5 // pred_check
        _
      $region62: #{tpu_custom_call.1} parent=5 // pred_check_branch
        %420 = sbr.rel (%p417) target = $region64
      $region63: #{tpu_custom_call.1} parent=5 // pred_region
        %s421 = ssub.s32 %s26, 1
        %s422 = sand.u32 %s39, 1
        %s423 = scalar_lea.sflag [#allocation4], %s422
        %s424 = sand.u32 %s39, 1
        %s425 = smul.addr %s424, 32
        %s426 = scalar_lea.vmem [#allocation3], %s425
        // Predicated region
        $region65: #{tpu_custom_call.1} parent=63 // pred_check
          %p427 = pneg %p52
        $region66: #{tpu_custom_call.1} parent=63 // pred_check_branch
          %429 = sbr.rel (%p427) target = $region68
        $region67: #{tpu_custom_call.1} parent=63 // pred_region
          %430 = dma.done %s423, 512
        $region68: #{tpu_custom_call.1} parent=63 // pred_fallthru
          _
        // Predicated region
        $region69: #{tpu_custom_call.1} parent=63 // pred_check
          %p431 = pneg %p73
        $region70: #{tpu_custom_call.1} parent=63 // pred_check_branch
          %433 = sbr.rel (%p431) target = $region72
        $region71: #{tpu_custom_call.1} parent=63 // pred_region
          %434 = dma.done [#allocation7], 16
        $region72: #{tpu_custom_call.1} parent=63 // pred_fallthru
          _
        // Predicated region
        $region73: #{tpu_custom_call.1} parent=63 // pred_check
          %p435 = pneg %p94
        $region74: #{tpu_custom_call.1} parent=63 // pred_check_branch
          %437 = sbr.rel (%p435) target = $region76
        $region75: #{tpu_custom_call.1} parent=63 // pred_region
          %438 = dma.done [#allocation7], 16
        $region76: #{tpu_custom_call.1} parent=63 // pred_fallthru
          _
        // Predicated region
        $region77: #{tpu_custom_call.1} parent=63 // pred_check
          %p439 = pneg %p115
        $region78: #{tpu_custom_call.1} parent=63 // pred_check_branch
          %441 = sbr.rel (%p439) target = $region80
        $region79: #{tpu_custom_call.1} parent=63 // pred_region
          %442 = dma.done [#allocation10], 6144
        $region80: #{tpu_custom_call.1} parent=63 // pred_fallthru
          _
        // Predicated region
        $region81: #{tpu_custom_call.1} parent=63 // pred_check
          %p443 = pneg %p157
        $region82: #{tpu_custom_call.1} parent=63 // pred_check_branch
          %445 = sbr.rel (%p443) target = $region84
        $region83: #{tpu_custom_call.1} parent=63 // pred_region
          %446 = dma.done [#allocation10], 2048
        $region84: #{tpu_custom_call.1} parent=63 // pred_fallthru
          _
        // Predicated region
        $region85: #{tpu_custom_call.1} parent=63 // pred_check
          %p447 = pneg %p199
        $region86: #{tpu_custom_call.1} parent=63 // pred_check_branch
          %449 = sbr.rel (%p447) target = $region88
        $region87: #{tpu_custom_call.1} parent=63 // pred_region
          %450 = dma.done [#allocation13], 8192
        $region88: #{tpu_custom_call.1} parent=63 // pred_fallthru
          _
        // Predicated region
        $region89: #{tpu_custom_call.1} parent=63 // pred_check
          %p451 = pneg %p241
        $region90: #{tpu_custom_call.1} parent=63 // pred_check_branch
          %453 = sbr.rel (%p451) target = $region92
        $region91: #{tpu_custom_call.1} parent=63 // pred_region
          %454 = dma.done [#allocation13], 8192
        $region92: #{tpu_custom_call.1} parent=63 // pred_fallthru
          _
        %s455 = sand.u32 %s39, 1
        %s456 = scalar_lea.sflag [#allocation4], %s455
        %s457 = sand.u32 %s39, 1
        %s458 = smul.addr %s457, 32
        %s459 = scalar_lea.vmem [#allocation3], %s458
        %p460 = pneg %p52
        %p461 = pneg %p49
        %p462 = pneg %p73
        %p463 = pneg %p70
        %p464 = pneg %p94
        %p465 = pneg %p91
        %p466 = pneg %p115
        %p467 = pneg %p112
        %p468 = pneg %p136
        %p469 = pneg %p133
        %p470 = pneg %p157
        %p471 = pneg %p154
        %p472 = pneg %p178
        %p473 = pneg %p175
        %p474 = pneg %p199
        %p475 = pneg %p196
        %p476 = pneg %p220
        %p477 = pneg %p217
        %p478 = pneg %p241
        %p479 = pneg %p238
        %p480 = pneg %p262
        %p481 = pneg %p259
        %p482 = pneg %p288
        %p483 = pneg %p285
        %s484 = sand.u32 %s275, 1
        %s485 = scalar_lea.sflag [#allocation5], %s484
        %s486 = sand.u32 %s275, 1
        %s487 = smul.addr %s486, 32
        %s488 = scalar_lea.vmem [#allocation15], %s487
        %s489 = smul.u32 2, %s31
        %s490 = smul.u32 2, %s31
        %v491 = vld [vmem:[%s426] sm:$0xff]
        %v492 = vld [vmem:[%s426 + $0x8] sm:$0xff]
        %v493 = vld [vmem:[%s426 + $0x10] sm:$0xff]
        %v494 = vld [vmem:[%s426 + $0x18] sm:$0xff]
        %v495 = vld [vmem:[#allocation6] sm:$0x1]
        %v496 = vld [vmem:[#allocation8] sm:$0x1]
        %497 = vadd.xlane.f32.xlu0 %v491
        %v498 = vpop.xlane.xlu0 %497
        %499 = vadd.xlane.f32.xlu0 %v492
        %v500 = vpop.xlane.xlu0 %499
        %501 = vadd.xlane.f32.xlu0 %v493
        %v502 = vpop.xlane.xlu0 %501
        %503 = vadd.xlane.f32.xlu0 %v494
        %v504 = vpop.xlane.xlu0 %503
        %v505 = vrcp.pop 128.0
        %v506 = vmul.f32 %v498, %v505
        %v507 = vmul.f32 %v500, %v505
        %v508 = vmul.f32 %v502, %v505
        %v509 = vmul.f32 %v504, %v505
        %v510 = vsub.f32 %v491, %v506
        %v511 = vsub.f32 %v492, %v507
        %v512 = vsub.f32 %v493, %v508
        %v513 = vsub.f32 %v494, %v509
        %v514 = vmul.f32 %v510, %v510
        %v515 = vmul.f32 %v511, %v511
        %v516 = vmul.f32 %v512, %v512
        %v517 = vmul.f32 %v513, %v513
        %518 = vadd.xlane.f32.xlu0 %v514
        %v519 = vpop.xlane.xlu0 %518
        %520 = vadd.xlane.f32.xlu0 %v515
        %v521 = vpop.xlane.xlu0 %520
        %522 = vadd.xlane.f32.xlu0 %v516
        %v523 = vpop.xlane.xlu0 %522
        %524 = vadd.xlane.f32.xlu0 %v517
        %v525 = vpop.xlane.xlu0 %524
        %v526 = vmul.f32 %v519, %v505
        %v527 = vmul.f32 %v521, %v505
        %v528 = vmul.f32 %v523, %v505
        %v529 = vmul.f32 %v525, %v505
        %v530 = vadd.f32 %v526, 1e-05
        %v531 = vadd.f32 %v527, 1e-05
        %v532 = vadd.f32 %v528, 1e-05
        %v533 = vadd.f32 %v529, 1e-05
        %v534 = vrsqrt.pop %v530
        %v535 = vrsqrt.pop %v531
        %v536 = vrsqrt.pop %v532
        %v537 = vrsqrt.pop %v533
        %v538 = vmul.f32 %v510, %v534
        %v539 = vmul.f32 %v511, %v535
        %v540 = vmul.f32 %v512, %v536
        %v541 = vmul.f32 %v513, %v537
        %v543 = vlaneseq
        %v544 = vshrl.u32 %v543, 7
        %v545 = vsub.s32 0, %v544
        %v546 = vrot.slane %v495, %v545
        %v548 = vmul.f32 %v538, %v546
        %v549 = vmul.f32 %v539, %v546
        %v550 = vmul.f32 %v540, %v546
        %v551 = vmul.f32 %v541, %v546
        %v553 = vlaneseq
        %v554 = vshrl.u32 %v553, 7
        %v555 = vsub.s32 0, %v554
        %v556 = vrot.slane %v496, %v555
        %v558 = vadd.f32 %v548, %v556
        %v559 = vadd.f32 %v549, %v556
        %v560 = vadd.f32 %v550, %v556
        %v561 = vadd.f32 %v551, %v556
        %v562 = vld [vmem:[#allocation9] sm:$0xff]
        %v563 = vld [vmem:[#allocation9 + $0x8] sm:$0xff]
        %v564 = vld [vmem:[#allocation9 + $0x10] sm:$0xff]
        %v565 = vld [vmem:[#allocation9 + $0x18] sm:$0xff]
        %v566 = vld [vmem:[#allocation9 + $0x20] sm:$0xff]
        %v567 = vld [vmem:[#allocation9 + $0x28] sm:$0xff]
        %v568 = vld [vmem:[#allocation9 + $0x30] sm:$0xff]
        %v569 = vld [vmem:[#allocation9 + $0x38] sm:$0xff]
        %v570 = vld [vmem:[#allocation9 + $0x40] sm:$0xff]
        %v571 = vld [vmem:[#allocation9 + $0x48] sm:$0xff]
        %v572 = vld [vmem:[#allocation9 + $0x50] sm:$0xff]
        %v573 = vld [vmem:[#allocation9 + $0x58] sm:$0xff]
        %v574 = vld [vmem:[#allocation9 + $0x60] sm:$0xff]
        %v575 = vld [vmem:[#allocation9 + $0x68] sm:$0xff]
        %v576 = vld [vmem:[#allocation9 + $0x70] sm:$0xff]
        %v577 = vld [vmem:[#allocation9 + $0x78] sm:$0xff]
        %v578 = vld [vmem:[#allocation9 + $0x80] sm:$0xff]
        %v579 = vld [vmem:[#allocation9 + $0x88] sm:$0xff]
        %v580 = vld [vmem:[#allocation9 + $0x90] sm:$0xff]
        %v581 = vld [vmem:[#allocation9 + $0x98] sm:$0xff]
        %v582 = vld [vmem:[#allocation9 + $0xa0] sm:$0xff]
        %v583 = vld [vmem:[#allocation9 + $0xa8] sm:$0xff]
        %v584 = vld [vmem:[#allocation9 + $0xb0] sm:$0xff]
        %v585 = vld [vmem:[#allocation9 + $0xb8] sm:$0xff]
        %v586 = vld [vmem:[#allocation9 + $0xc0] sm:$0xff]
        %v587 = vld [vmem:[#allocation9 + $0xc8] sm:$0xff]
        %v588 = vld [vmem:[#allocation9 + $0xd0] sm:$0xff]
        %v589 = vld [vmem:[#allocation9 + $0xd8] sm:$0xff]
        %v590 = vld [vmem:[#allocation9 + $0xe0] sm:$0xff]
        %v591 = vld [vmem:[#allocation9 + $0xe8] sm:$0xff]
        %v592 = vld [vmem:[#allocation9 + $0xf0] sm:$0xff]
        %v593 = vld [vmem:[#allocation9 + $0xf8] sm:$0xff]
        %v594 = vld [vmem:[#allocation9 + $0x100] sm:$0xff]
        %v595 = vld [vmem:[#allocation9 + $0x108] sm:$0xff]
        %v596 = vld [vmem:[#allocation9 + $0x110] sm:$0xff]
        %v597 = vld [vmem:[#allocation9 + $0x118] sm:$0xff]
        %v598 = vld [vmem:[#allocation9 + $0x120] sm:$0xff]
        %v599 = vld [vmem:[#allocation9 + $0x128] sm:$0xff]
        %v600 = vld [vmem:[#allocation9 + $0x130] sm:$0xff]
        %v601 = vld [vmem:[#allocation9 + $0x138] sm:$0xff]
        %v602 = vld [vmem:[#allocation9 + $0x140] sm:$0xff]
        %v603 = vld [vmem:[#allocation9 + $0x148] sm:$0xff]
        %v604 = vld [vmem:[#allocation9 + $0x150] sm:$0xff]
        %v605 = vld [vmem:[#allocation9 + $0x158] sm:$0xff]
        %v606 = vld [vmem:[#allocation9 + $0x160] sm:$0xff]
        %v607 = vld [vmem:[#allocation9 + $0x168] sm:$0xff]
        %v608 = vld [vmem:[#allocation9 + $0x170] sm:$0xff]
        %v609 = vld [vmem:[#allocation9 + $0x178] sm:$0xff]
        %v610 = vld [vmem:[%s4] sm:$0x7]
        %v612 = vlaneseq
        %v613 = vshrl.u32 %v612, 7
        %v614 = vsub.s32 0, %v613
        %v615 = vrot.slane %v610, %v614
        %v616 = vlaneseq
        %v617 = vshrl.u32 %v616, 7
        %v618 = vsub.s32 1, %v617
        %v619 = vrot.slane %v610, %v618
        %v620 = vlaneseq
        %v621 = vshrl.u32 %v620, 7
        %v622 = vsub.s32 2, %v621
        %v623 = vrot.slane %v610, %v622
        %627 = vmatprep.subr.mxu0 %v608
        %628 = vmatpush1.msra.mxu0 %v607
        %629 = vmatprep.subr.mxu0 %v605
        %630 = vmatpush1.msra.mxu0 %v604
        %631 = vmatprep.subr.mxu0 %v602
        %632 = vmatpush1.msra.mxu0 %v601
        %633 = vmatprep.subr.mxu0 %v599
        %634 = vmatpush1.msra.mxu0 %v598
        %635 = vmatprep.subr.mxu0 %v596
        %636 = vmatpush1.msra.mxu0 %v595
        %637 = vmatprep.subr.mxu0 %v593
        %638 = vmatpush1.msra.mxu0 %v592
        %639 = vmatprep.subr.mxu0 %v590
        %640 = vmatpush1.msra.mxu0 %v589
        %641 = vmatprep.subr.mxu0 %v587
        %642 = vmatpush1.msra.mxu0 %v586
        %643 = vmatprep.subr.mxu0 %v584
        %644 = vmatpush1.msra.mxu0 %v583
        %645 = vmatprep.subr.mxu0 %v581
        %646 = vmatpush1.msra.mxu0 %v580
        %647 = vmatprep.subr.mxu0 %v578
        %648 = vmatpush1.msra.mxu0 %v577
        %649 = vmatprep.subr.mxu0 %v575
        %650 = vmatpush1.msra.mxu0 %v574
        %651 = vmatprep.subr.mxu0 %v572
        %652 = vmatpush1.msra.mxu0 %v571
        %653 = vmatprep.subr.mxu0 %v569
        %654 = vmatpush1.msra.mxu0 %v568
        %655 = vmatprep.subr.mxu0 %v566
        %656 = vmatpush1.msra.mxu0 %v565
        %657 = vmatprep.subr.mxu0 %v563
        %658 = vmatpush1.msra.mxu0 %v562
        %659 = vmatprep.subr.mxu0 0.0
        %660 = vmatpush2.msra.mxu0 0.0
        %661 = vmatprep.subr.mxu0 0.0
        %662 = vmatpush2.msra.mxu0 0.0
        %663 = vmatprep.subr.mxu0 0.0
        %664 = vmatpush2.msra.mxu0 0.0
        %665 = vmatprep.subr.mxu0 0.0
        %666 = vmatpush2.msra.mxu0 0.0
        %667 = vmatprep.subr.mxu0 0.0
        %668 = vmatpush2.msra.mxu0 0.0
        %669 = vmatprep.subr.mxu0 0.0
        %670 = vmatpush2.msra.mxu0 0.0
        %671 = vmatprep.subr.mxu0 0.0
        %672 = vmatpush2.msra.mxu0 0.0
        %673 = vmatprep.subr.mxu0 0.0
        %674 = vmatpush2.msra.mxu0 0.0
        %675 = vmatprep.subr.mxu0 0.0
        %676 = vmatpush2.msra.mxu0 0.0
        %677 = vmatprep.subr.mxu0 0.0
        %678 = vmatpush2.msra.mxu0 0.0
        %679 = vmatprep.subr.mxu0 0.0
        %680 = vmatpush2.msra.mxu0 0.0
        %681 = vmatprep.subr.mxu0 0.0
        %682 = vmatpush2.msra.mxu0 0.0
        %683 = vmatprep.subr.mxu0 0.0
        %684 = vmatpush2.msra.mxu0 0.0
        %685 = vmatprep.subr.mxu0 0.0
        %686 = vmatpush2.msra.mxu0 0.0
        %687 = vmatprep.subr.mxu0 0.0
        %688 = vmatpush2.msra.mxu0 0.0
        %689 = vmatprep.subr.mxu0 0.0
        %690 = vmatpush2.msra.mxu0 0.0
        %691 = vmatprep.mubr.f32.mxu0 0.0
        %692 = vmatmul.mubr.f32.gmra.mxu0 %v558
        %v693 = vpop.f32.mrf.mxu0
        %v694 = vadd.f32 %v615, %v693
        %v695 = vpop.f32.mrf.mxu0
        %v696 = vadd.f32 %v619, %v695
        %697 = vmatprep.mubr.f32.mxu0 0.0
        %698 = vmatmul.mubr.f32.gmra.mxu0 %v559
        %v699 = vpop.f32.mrf.mxu0
        %v700 = vadd.f32 %v615, %v699
        %v701 = vpop.f32.mrf.mxu0
        %v702 = vadd.f32 %v619, %v701
        %703 = vmatprep.mubr.f32.mxu0 0.0
        %704 = vmatmul.mubr.f32.gmra.mxu0 %v560
        %v705 = vpop.f32.mrf.mxu0
        %v706 = vadd.f32 %v615, %v705
        %v707 = vpop.f32.mrf.mxu0
        %v708 = vadd.f32 %v619, %v707
        %709 = vmatprep.mubr.f32.mxu0 0.0
        %710 = vmatmul.mubr.f32.gmra.mxu0 %v561
        %v711 = vpop.f32.mrf.mxu0
        %v712 = vadd.f32 %v615, %v711
        %v713 = vpop.f32.mrf.mxu0
        %v714 = vadd.f32 %v619, %v713
        %715 = vdwg.mxu0
        %716 = vmatprep.subr.mxu0 0.0
        %717 = vmatpush1.msra.mxu0 %v609
        %718 = vmatprep.subr.mxu0 0.0
        %719 = vmatpush1.msra.mxu0 %v606
        %720 = vmatprep.subr.mxu0 0.0
        %721 = vmatpush1.msra.mxu0 %v603
        %722 = vmatprep.subr.mxu0 0.0
        %723 = vmatpush1.msra.mxu0 %v600
        %724 = vmatprep.subr.mxu0 0.0
        %725 = vmatpush1.msra.mxu0 %v597
        %726 = vmatprep.subr.mxu0 0.0
        %727 = vmatpush1.msra.mxu0 %v594
        %728 = vmatprep.subr.mxu0 0.0
        %729 = vmatpush1.msra.mxu0 %v591
        %730 = vmatprep.subr.mxu0 0.0
        %731 = vmatpush1.msra.mxu0 %v588
        %732 = vmatprep.subr.mxu0 0.0
        %733 = vmatpush1.msra.mxu0 %v585
        %734 = vmatprep.subr.mxu0 0.0
        %735 = vmatpush1.msra.mxu0 %v582
        %736 = vmatprep.subr.mxu0 0.0
        %737 = vmatpush1.msra.mxu0 %v579
        %738 = vmatprep.subr.mxu0 0.0
        %739 = vmatpush1.msra.mxu0 %v576
        %740 = vmatprep.subr.mxu0 0.0
        %741 = vmatpush1.msra.mxu0 %v573
        %742 = vmatprep.subr.mxu0 0.0
        %743 = vmatpush1.msra.mxu0 %v570
        %744 = vmatprep.subr.mxu0 0.0
        %745 = vmatpush1.msra.mxu0 %v567
        %746 = vmatprep.subr.mxu0 0.0
        %747 = vmatpush1.msra.mxu0 %v564
        %748 = vmatprep.subr.mxu0 0.0
        %749 = vmatpush2.msra.mxu0 0.0
        %750 = vmatprep.subr.mxu0 0.0
        %751 = vmatpush2.msra.mxu0 0.0
        %752 = vmatprep.subr.mxu0 0.0
        %753 = vmatpush2.msra.mxu0 0.0
        %754 = vmatprep.subr.mxu0 0.0
        %755 = vmatpush2.msra.mxu0 0.0
        %756 = vmatprep.subr.mxu0 0.0
        %757 = vmatpush2.msra.mxu0 0.0
        %758 = vmatprep.subr.mxu0 0.0
        %759 = vmatpush2.msra.mxu0 0.0
        %760 = vmatprep.subr.mxu0 0.0
        %761 = vmatpush2.msra.mxu0 0.0
        %762 = vmatprep.subr.mxu0 0.0
        %763 = vmatpush2.msra.mxu0 0.0
        %764 = vmatprep.subr.mxu0 0.0
        %765 = vmatpush2.msra.mxu0 0.0
        %766 = vmatprep.subr.mxu0 0.0
        %767 = vmatpush2.msra.mxu0 0.0
        %768 = vmatprep.subr.mxu0 0.0
        %769 = vmatpush2.msra.mxu0 0.0
        %770 = vmatprep.subr.mxu0 0.0
        %771 = vmatpush2.msra.mxu0 0.0
        %772 = vmatprep.subr.mxu0 0.0
        %773 = vmatpush2.msra.mxu0 0.0
        %774 = vmatprep.subr.mxu0 0.0
        %775 = vmatpush2.msra.mxu0 0.0
        %776 = vmatprep.subr.mxu0 0.0
        %777 = vmatpush2.msra.mxu0 0.0
        %778 = vmatprep.subr.mxu0 0.0
        %779 = vmatpush2.msra.mxu0 0.0
        %780 = vmatprep.mubr.f32.mxu0 0.0
        %781 = vmatmul.mubr.f32.gmra.mxu0 %v558
        %v782 = vpop.f32.mrf.mxu0
        %v783 = vadd.f32 %v623, %v782
        %v784 = vpop.f32.mrf.mxu0
        %785 = vmatprep.mubr.f32.mxu0 0.0
        %786 = vmatmul.mubr.f32.gmra.mxu0 %v559
        %v787 = vpop.f32.mrf.mxu0
        %v788 = vadd.f32 %v623, %v787
        %v789 = vpop.f32.mrf.mxu0
        %790 = vmatprep.mubr.f32.mxu0 0.0
        %791 = vmatmul.mubr.f32.gmra.mxu0 %v560
        %v792 = vpop.f32.mrf.mxu0
        %v793 = vadd.f32 %v623, %v792
        %v794 = vpop.f32.mrf.mxu0
        %795 = vmatprep.mubr.f32.mxu0 0.0
        %796 = vmatmul.mubr.f32.gmra.mxu0 %v561
        %v797 = vpop.f32.mrf.mxu0
        %v798 = vadd.f32 %v623, %v797
        %v799 = vpop.f32.mrf.mxu0
        %800 = vdwg.mxu0
        %v801 = vmul.f32 %v694, 0.17677669
        %v802 = vmul.f32 %v700, 0.17677669
        %v803 = vmul.f32 %v706, 0.17677669
        %v804 = vmul.f32 %v712, 0.17677669
        %805 = vst [vmem:[#allocation2] sm:$0xff] %v801
        %806 = vst [vmem:[#allocation2 + $0x18] sm:$0xff] %v802
        %807 = vst [vmem:[#allocation2 + $0x30] sm:$0xff] %v803
        %808 = vst [vmem:[#allocation2 + $0x48] sm:$0xff] %v804
        %809 = vst [vmem:[#allocation2 + $0x8] sm:$0xff] %v696
        %810 = vst [vmem:[#allocation2 + $0x10] sm:$0xff] %v783
        %811 = vst [vmem:[#allocation2 + $0x20] sm:$0xff] %v702
        %812 = vst [vmem:[#allocation2 + $0x28] sm:$0xff] %v788
        %813 = vst [vmem:[#allocation2 + $0x38] sm:$0xff] %v708
        %814 = vst [vmem:[#allocation2 + $0x40] sm:$0xff] %v793
        %815 = vst [vmem:[#allocation2 + $0x50] sm:$0xff] %v714
        %816 = vst [vmem:[#allocation2 + $0x58] sm:$0xff] %v798
        %v817 = vld [vmem:[#allocation2] sm:$0xff]
        %v818 = vld [vmem:[#allocation2 + $0x18] sm:$0xff]
        %v819 = vld [vmem:[#allocation2 + $0x30] sm:$0xff]
        %v820 = vld [vmem:[#allocation2 + $0x48] sm:$0xff]
        %v821 = vld [vmem:[#allocation2 + $0x8] sm:$0xff]
        %v822 = vld [vmem:[#allocation2 + $0x20] sm:$0xff]
        %v823 = vld [vmem:[#allocation2 + $0x38] sm:$0xff]
        %v824 = vld [vmem:[#allocation2 + $0x50] sm:$0xff]
        %v825 = vld [vmem:[#allocation2 + $0x10] sm:$0xff]
        %v826 = vld [vmem:[#allocation2 + $0x28] sm:$0xff]
        %v827 = vld [vmem:[#allocation2 + $0x40] sm:$0xff]
        %v828 = vld [vmem:[#allocation2 + $0x58] sm:$0xff]
        %vm829 = vcmask 261120
        %v831 = vsel %vm829, %v817, 0
        %v834 = vsel %vm829, %v818, 0
        %v837 = vsel %vm829, %v821, 0
        %v840 = vsel %vm829, %v822, 0
        %842 = vmatprep.subr.mxu0 0.0
        %843 = vmatpush1.xpose.msra.mxu0 0.0
        %844 = vmatprep.subr.mxu0 0.0
        %845 = vmatpush1.xpose.msra.mxu0 0.0
        %846 = vmatprep.subr.mxu0 0.0
        %847 = vmatpush1.xpose.msra.mxu0 0.0
        %848 = vmatprep.subr.mxu0 0.0
        %849 = vmatpush1.xpose.msra.mxu0 0.0
        %850 = vmatprep.subr.mxu0 0.0
        %851 = vmatpush1.xpose.msra.mxu0 0.0
        %852 = vmatprep.subr.mxu0 0.0
        %853 = vmatpush1.xpose.msra.mxu0 0.0
        %854 = vmatprep.subr.mxu0 0.0
        %855 = vmatpush1.xpose.msra.mxu0 0.0
        %856 = vmatprep.subr.mxu0 0.0
        %857 = vmatpush1.xpose.msra.mxu0 0.0
        %858 = vmatprep.subr.mxu0 0.0
        %859 = vmatpush1.xpose.msra.mxu0 0.0
        %860 = vmatprep.subr.mxu0 0.0
        %861 = vmatpush1.xpose.msra.mxu0 0.0
        %862 = vmatprep.subr.mxu0 0.0
        %863 = vmatpush1.xpose.msra.mxu0 0.0
        %864 = vmatprep.subr.mxu0 0.0
        %865 = vmatpush1.xpose.msra.mxu0 0.0
        %866 = vmatprep.subr.mxu0 0.0
        %867 = vmatpush1.xpose.msra.mxu0 0.0
        %868 = vmatprep.subr.mxu0 0.0
        %869 = vmatpush1.xpose.msra.mxu0 0.0
        %870 = vmatprep.subr.mxu0 0.0
        %871 = vmatpush1.xpose.msra.mxu0 %v840
        %872 = vmatprep.subr.mxu0 0.0
        %873 = vmatpush1.xpose.msra.mxu0 %v837
        %874 = vmatprep.subr.mxu0 0.0
        %875 = vmatpush2.xpose.msra.mxu0 0.0
        %876 = vmatprep.subr.mxu0 0.0
        %877 = vmatpush2.xpose.msra.mxu0 0.0
        %878 = vmatprep.subr.mxu0 0.0
        %879 = vmatpush2.xpose.msra.mxu0 0.0
        %880 = vmatprep.subr.mxu0 0.0
        %881 = vmatpush2.xpose.msra.mxu0 0.0
        %882 = vmatprep.subr.mxu0 0.0
        %883 = vmatpush2.xpose.msra.mxu0 0.0
        %884 = vmatprep.subr.mxu0 0.0
        %885 = vmatpush2.xpose.msra.mxu0 0.0
        %886 = vmatprep.subr.mxu0 0.0
        %887 = vmatpush2.xpose.msra.mxu0 0.0
        %888 = vmatprep.subr.mxu0 0.0
        %889 = vmatpush2.xpose.msra.mxu0 0.0
        %890 = vmatprep.subr.mxu0 0.0
        %891 = vmatpush2.xpose.msra.mxu0 0.0
        %892 = vmatprep.subr.mxu0 0.0
        %893 = vmatpush2.xpose.msra.mxu0 0.0
        %894 = vmatprep.subr.mxu0 0.0
        %895 = vmatpush2.xpose.msra.mxu0 0.0
        %896 = vmatprep.subr.mxu0 0.0
        %897 = vmatpush2.xpose.msra.mxu0 0.0
        %898 = vmatprep.subr.mxu0 0.0
        %899 = vmatpush2.xpose.msra.mxu0 0.0
        %900 = vmatprep.subr.mxu0 0.0
        %901 = vmatpush2.xpose.msra.mxu0 0.0
        %902 = vmatprep.subr.mxu0 0.0
        %903 = vmatpush2.xpose.msra.mxu0 0.0
        %904 = vmatprep.subr.mxu0 0.0
        %905 = vmatpush2.xpose.msra.mxu0 0.0
        %906 = vmatprep.mubr.f32.mxu0 0.0
        %907 = vmatmul.mubr.f32.gmra.mxu0 %v831
        %v908 = vpop.f32.mrf.mxu0
        %v909 = vadd.f32 0.0, %v908
        %v910 = vpop.f32.mrf.mxu0
        %911 = vmatprep.mubr.f32.mxu0 0.0
        %912 = vmatmul.mubr.f32.gmra.mxu0 %v834
        %v913 = vpop.f32.mrf.mxu0
        %v914 = vadd.f32 0.0, %v913
        %v915 = vpop.f32.mrf.mxu0
        %916 = vdwg.mxu0
        %v918 = vsel %vm829, %v819, 0
        %v921 = vsel %vm829, %v820, 0
        %v924 = vsel %vm829, %v823, 0
        %v927 = vsel %vm829, %v824, 0
        %929 = vmatprep.subr.mxu0 0.0
        %930 = vmatpush1.xpose.msra.mxu0 0.0
        %931 = vmatprep.subr.mxu0 0.0
        %932 = vmatpush1.xpose.msra.mxu0 0.0
        %933 = vmatprep.subr.mxu0 0.0
        %934 = vmatpush1.xpose.msra.mxu0 0.0
        %935 = vmatprep.subr.mxu0 0.0
        %936 = vmatpush1.xpose.msra.mxu0 0.0
        %937 = vmatprep.subr.mxu0 0.0
        %938 = vmatpush1.xpose.msra.mxu0 0.0
        %939 = vmatprep.subr.mxu0 0.0
        %940 = vmatpush1.xpose.msra.mxu0 0.0
        %941 = vmatprep.subr.mxu0 0.0
        %942 = vmatpush1.xpose.msra.mxu0 0.0
        %943 = vmatprep.subr.mxu0 0.0
        %944 = vmatpush1.xpose.msra.mxu0 0.0
        %945 = vmatprep.subr.mxu0 0.0
        %946 = vmatpush1.xpose.msra.mxu0 0.0
        %947 = vmatprep.subr.mxu0 0.0
        %948 = vmatpush1.xpose.msra.mxu0 0.0
        %949 = vmatprep.subr.mxu0 0.0
        %950 = vmatpush1.xpose.msra.mxu0 0.0
        %951 = vmatprep.subr.mxu0 0.0
        %952 = vmatpush1.xpose.msra.mxu0 0.0
        %953 = vmatprep.subr.mxu0 0.0
        %954 = vmatpush1.xpose.msra.mxu0 0.0
        %955 = vmatprep.subr.mxu0 0.0
        %956 = vmatpush1.xpose.msra.mxu0 0.0
        %957 = vmatprep.subr.mxu0 0.0
        %958 = vmatpush1.xpose.msra.mxu0 %v927
        %959 = vmatprep.subr.mxu0 0.0
        %960 = vmatpush1.xpose.msra.mxu0 %v924
        %961 = vmatprep.subr.mxu0 0.0
        %962 = vmatpush2.xpose.msra.mxu0 0.0
        %963 = vmatprep.subr.mxu0 0.0
        %964 = vmatpush2.xpose.msra.mxu0 0.0
        %965 = vmatprep.subr.mxu0 0.0
        %966 = vmatpush2.xpose.msra.mxu0 0.0
        %967 = vmatprep.subr.mxu0 0.0
        %968 = vmatpush2.xpose.msra.mxu0 0.0
        %969 = vmatprep.subr.mxu0 0.0
        %970 = vmatpush2.xpose.msra.mxu0 0.0
        %971 = vmatprep.subr.mxu0 0.0
        %972 = vmatpush2.xpose.msra.mxu0 0.0
        %973 = vmatprep.subr.mxu0 0.0
        %974 = vmatpush2.xpose.msra.mxu0 0.0
        %975 = vmatprep.subr.mxu0 0.0
        %976 = vmatpush2.xpose.msra.mxu0 0.0
        %977 = vmatprep.subr.mxu0 0.0
        %978 = vmatpush2.xpose.msra.mxu0 0.0
        %979 = vmatprep.subr.mxu0 0.0
        %980 = vmatpush2.xpose.msra.mxu0 0.0
        %981 = vmatprep.subr.mxu0 0.0
        %982 = vmatpush2.xpose.msra.mxu0 0.0
        %983 = vmatprep.subr.mxu0 0.0
        %984 = vmatpush2.xpose.msra.mxu0 0.0
        %985 = vmatprep.subr.mxu0 0.0
        %986 = vmatpush2.xpose.msra.mxu0 0.0
        %987 = vmatprep.subr.mxu0 0.0
        %988 = vmatpush2.xpose.msra.mxu0 0.0
        %989 = vmatprep.subr.mxu0 0.0
        %990 = vmatpush2.xpose.msra.mxu0 0.0
        %991 = vmatprep.subr.mxu0 0.0
        %992 = vmatpush2.xpose.msra.mxu0 0.0
        %993 = vmatprep.mubr.f32.mxu0 0.0
        %994 = vmatmul.mubr.f32.gmra.mxu0 %v918
        %v995 = vpop.f32.mrf.mxu0
        %v996 = vadd.f32 0.0, %v995
        %v997 = vpop.f32.mrf.mxu0
        %998 = vmatprep.mubr.f32.mxu0 0.0
        %999 = vmatmul.mubr.f32.gmra.mxu0 %v921
        %v1000 = vpop.f32.mrf.mxu0
        %v1001 = vadd.f32 0.0, %v1000
        %v1002 = vpop.f32.mrf.mxu0
        %1003 = vdwg.mxu0
        %vm1004 = vcmask 130048
        %v1005 = vsel %vm1004, %v909, -inf
        %1006 = vmax.xlane.f32.xlu0 %v1005
        %v1007 = vpop.xlane.xlu0 %1006
        %v1008 = vsel %vm1004, %v914, -inf
        %1009 = vmax.xlane.f32.xlu0 %v1008
        %v1010 = vpop.xlane.xlu0 %1009
        %v1011 = vsel %vm1004, %v996, -inf
        %1012 = vmax.xlane.f32.xlu0 %v1011
        %v1013 = vpop.xlane.xlu0 %1012
        %v1014 = vsel %vm1004, %v1001, -inf
        %1015 = vmax.xlane.f32.xlu0 %v1014
        %v1016 = vpop.xlane.xlu0 %1015
        %v1017 = vsub.f32 %v909, %v1007
        %v1018 = vsub.f32 %v914, %v1010
        %v1019 = vsub.f32 %v996, %v1013
        %v1020 = vsub.f32 %v1001, %v1016
        %v1021 = vmul.f32 %v1017, 1.442695
        %v1022 = vpow.pop %v1021
        %v1023 = vmul.f32 %v1018, 1.442695
        %v1024 = vpow.pop %v1023
        %v1025 = vmul.f32 %v1019, 1.442695
        %v1026 = vpow.pop %v1025
        %v1027 = vmul.f32 %v1020, 1.442695
        %v1028 = vpow.pop %v1027
        %v1029 = vsel %vm1004, %v1022, 0.0
        %1030 = vadd.xlane.f32.xlu0 %v1029
        %v1031 = vpop.xlane.xlu0 %1030
        %v1032 = vsel %vm1004, %v1024, 0.0
        %1033 = vadd.xlane.f32.xlu0 %v1032
        %v1034 = vpop.xlane.xlu0 %1033
        %v1035 = vsel %vm1004, %v1026, 0.0
        %1036 = vadd.xlane.f32.xlu0 %v1035
        %v1037 = vpop.xlane.xlu0 %1036
        %v1038 = vsel %vm1004, %v1028, 0.0
        %1039 = vadd.xlane.f32.xlu0 %v1038
        %v1040 = vpop.xlane.xlu0 %1039
        %v1041 = vrcp.pop %v1031
        %v1042 = vmul.f32 %v1022, %v1041
        %v1043 = vrcp.pop %v1034
        %v1044 = vmul.f32 %v1024, %v1043
        %v1045 = vrcp.pop %v1037
        %v1046 = vmul.f32 %v1026, %v1045
        %v1047 = vrcp.pop %v1040
        %v1048 = vmul.f32 %v1028, %v1047
        %v1050 = vsel %vm1004, %v1042, 0
        %v1053 = vsel %vm1004, %v1044, 0
        %1055 = vmatprep.subr.mxu0 0.0
        %1056 = vmatpush1.msra.mxu0 0.0
        %1057 = vmatprep.subr.mxu0 0.0
        %1058 = vmatpush1.msra.mxu0 0.0
        %1059 = vmatprep.subr.mxu0 0.0
        %1060 = vmatpush1.msra.mxu0 0.0
        %1061 = vmatprep.subr.mxu0 0.0
        %1062 = vmatpush1.msra.mxu0 0.0
        %1063 = vmatprep.subr.mxu0 0.0
        %1064 = vmatpush1.msra.mxu0 0.0
        %1065 = vmatprep.subr.mxu0 0.0
        %1066 = vmatpush1.msra.mxu0 0.0
        %1067 = vmatprep.subr.mxu0 0.0
        %1068 = vmatpush1.msra.mxu0 0.0
        %1069 = vmatprep.subr.mxu0 0.0
        %1070 = vmatpush1.msra.mxu0 0.0
        %1071 = vmatprep.subr.mxu0 0.0
        %1072 = vmatpush1.msra.mxu0 0.0
        %1073 = vmatprep.subr.mxu0 0.0
        %1074 = vmatpush1.msra.mxu0 0.0
        %1075 = vmatprep.subr.mxu0 0.0
        %1076 = vmatpush1.msra.mxu0 0.0
        %1077 = vmatprep.subr.mxu0 0.0
        %1078 = vmatpush1.msra.mxu0 0.0
        %1079 = vmatprep.subr.mxu0 0.0
        %1080 = vmatpush1.msra.mxu0 0.0
        %1081 = vmatprep.subr.mxu0 0.0
        %1082 = vmatpush1.msra.mxu0 0.0
        %1083 = vmatprep.subr.mxu0 0.0
        %1084 = vmatpush1.msra.mxu0 %v826
        %1085 = vmatprep.subr.mxu0 0.0
        %1086 = vmatpush1.msra.mxu0 %v825
        %1087 = vmatprep.subr.mxu0 0.0
        %1088 = vmatpush2.msra.mxu0 0.0
        %1089 = vmatprep.subr.mxu0 0.0
        %1090 = vmatpush2.msra.mxu0 0.0
        %1091 = vmatprep.subr.mxu0 0.0
        %1092 = vmatpush2.msra.mxu0 0.0
        %1093 = vmatprep.subr.mxu0 0.0
        %1094 = vmatpush2.msra.mxu0 0.0
        %1095 = vmatprep.subr.mxu0 0.0
        %1096 = vmatpush2.msra.mxu0 0.0
        %1097 = vmatprep.subr.mxu0 0.0
        %1098 = vmatpush2.msra.mxu0 0.0
        %1099 = vmatprep.subr.mxu0 0.0
        %1100 = vmatpush2.msra.mxu0 0.0
        %1101 = vmatprep.subr.mxu0 0.0
        %1102 = vmatpush2.msra.mxu0 0.0
        %1103 = vmatprep.subr.mxu0 0.0
        %1104 = vmatpush2.msra.mxu0 0.0
        %1105 = vmatprep.subr.mxu0 0.0
        %1106 = vmatpush2.msra.mxu0 0.0
        %1107 = vmatprep.subr.mxu0 0.0
        %1108 = vmatpush2.msra.mxu0 0.0
        %1109 = vmatprep.subr.mxu0 0.0
        %1110 = vmatpush2.msra.mxu0 0.0
        %1111 = vmatprep.subr.mxu0 0.0
        %1112 = vmatpush2.msra.mxu0 0.0
        %1113 = vmatprep.subr.mxu0 0.0
        %1114 = vmatpush2.msra.mxu0 0.0
        %1115 = vmatprep.subr.mxu0 0.0
        %1116 = vmatpush2.msra.mxu0 0.0
        %1117 = vmatprep.subr.mxu0 0.0
        %1118 = vmatpush2.msra.mxu0 0.0
        %1119 = vmatprep.mubr.f32.mxu0 0.0
        %1120 = vmatmul.mubr.f32.gmra.mxu0 %v1050
        %v1121 = vpop.f32.mrf.mxu0
        %v1122 = vadd.f32 0.0, %v1121
        %v1123 = vpop.f32.mrf.mxu0
        %1124 = vmatprep.mubr.f32.mxu0 0.0
        %1125 = vmatmul.mubr.f32.gmra.mxu0 %v1053
        %v1126 = vpop.f32.mrf.mxu0
        %v1127 = vadd.f32 0.0, %v1126
        %v1128 = vpop.f32.mrf.mxu0
        %1129 = vdwg.mxu0
        %v1131 = vsel %vm1004, %v1046, 0
        %v1134 = vsel %vm1004, %v1048, 0
        %1136 = vmatprep.subr.mxu0 0.0
        %1137 = vmatpush1.msra.mxu0 0.0
        %1138 = vmatprep.subr.mxu0 0.0
        %1139 = vmatpush1.msra.mxu0 0.0
        %1140 = vmatprep.subr.mxu0 0.0
        %1141 = vmatpush1.msra.mxu0 0.0
        %1142 = vmatprep.subr.mxu0 0.0
        %1143 = vmatpush1.msra.mxu0 0.0
        %1144 = vmatprep.subr.mxu0 0.0
        %1145 = vmatpush1.msra.mxu0 0.0
        %1146 = vmatprep.subr.mxu0 0.0
        %1147 = vmatpush1.msra.mxu0 0.0
        %1148 = vmatprep.subr.mxu0 0.0
        %1149 = vmatpush1.msra.mxu0 0.0
        %1150 = vmatprep.subr.mxu0 0.0
        %1151 = vmatpush1.msra.mxu0 0.0
        %1152 = vmatprep.subr.mxu0 0.0
        %1153 = vmatpush1.msra.mxu0 0.0
        %1154 = vmatprep.subr.mxu0 0.0
        %1155 = vmatpush1.msra.mxu0 0.0
        %1156 = vmatprep.subr.mxu0 0.0
        %1157 = vmatpush1.msra.mxu0 0.0
        %1158 = vmatprep.subr.mxu0 0.0
        %1159 = vmatpush1.msra.mxu0 0.0
        %1160 = vmatprep.subr.mxu0 0.0
        %1161 = vmatpush1.msra.mxu0 0.0
        %1162 = vmatprep.subr.mxu0 0.0
        %1163 = vmatpush1.msra.mxu0 0.0
        %1164 = vmatprep.subr.mxu0 0.0
        %1165 = vmatpush1.msra.mxu0 %v828
        %1166 = vmatprep.subr.mxu0 0.0
        %1167 = vmatpush1.msra.mxu0 %v827
        %1168 = vmatprep.subr.mxu0 0.0
        %1169 = vmatpush2.msra.mxu0 0.0
        %1170 = vmatprep.subr.mxu0 0.0
        %1171 = vmatpush2.msra.mxu0 0.0
        %1172 = vmatprep.subr.mxu0 0.0
        %1173 = vmatpush2.msra.mxu0 0.0
        %1174 = vmatprep.subr.mxu0 0.0
        %1175 = vmatpush2.msra.mxu0 0.0
        %1176 = vmatprep.subr.mxu0 0.0
        %1177 = vmatpush2.msra.mxu0 0.0
        %1178 = vmatprep.subr.mxu0 0.0
        %1179 = vmatpush2.msra.mxu0 0.0
        %1180 = vmatprep.subr.mxu0 0.0
        %1181 = vmatpush2.msra.mxu0 0.0
        %1182 = vmatprep.subr.mxu0 0.0
        %1183 = vmatpush2.msra.mxu0 0.0
        %1184 = vmatprep.subr.mxu0 0.0
        %1185 = vmatpush2.msra.mxu0 0.0
        %1186 = vmatprep.subr.mxu0 0.0
        %1187 = vmatpush2.msra.mxu0 0.0
        %1188 = vmatprep.subr.mxu0 0.0
        %1189 = vmatpush2.msra.mxu0 0.0
        %1190 = vmatprep.subr.mxu0 0.0
        %1191 = vmatpush2.msra.mxu0 0.0
        %1192 = vmatprep.subr.mxu0 0.0
        %1193 = vmatpush2.msra.mxu0 0.0
        %1194 = vmatprep.subr.mxu0 0.0
        %1195 = vmatpush2.msra.mxu0 0.0
        %1196 = vmatprep.subr.mxu0 0.0
        %1197 = vmatpush2.msra.mxu0 0.0
        %1198 = vmatprep.subr.mxu0 0.0
        %1199 = vmatpush2.msra.mxu0 0.0
        %1200 = vmatprep.mubr.f32.mxu0 0.0
        %1201 = vmatmul.mubr.f32.gmra.mxu0 %v1131
        %v1202 = vpop.f32.mrf.mxu0
        %v1203 = vadd.f32 0.0, %v1202
        %v1204 = vpop.f32.mrf.mxu0
        %1205 = vmatprep.mubr.f32.mxu0 0.0
        %1206 = vmatmul.mubr.f32.gmra.mxu0 %v1134
        %v1207 = vpop.f32.mrf.mxu0
        %v1208 = vadd.f32 0.0, %v1207
        %v1209 = vpop.f32.mrf.mxu0
        %1210 = vdwg.mxu0
        %v1211 = vld [vmem:[#allocation11] sm:$0xff]
        %v1212 = vld [vmem:[#allocation11 + $0x8] sm:$0xff]
        %v1213 = vld [vmem:[#allocation11 + $0x10] sm:$0xff]
        %v1214 = vld [vmem:[#allocation11 + $0x18] sm:$0xff]
        %v1215 = vld [vmem:[#allocation2] sm:$0xff]
        %v1216 = vld [vmem:[#allocation2 + $0x18] sm:$0xff]
        %v1217 = vld [vmem:[#allocation2 + $0x30] sm:$0xff]
        %v1218 = vld [vmem:[#allocation2 + $0x48] sm:$0xff]
        %v1219 = vld [vmem:[#allocation2 + $0x8] sm:$0xff]
        %v1220 = vld [vmem:[#allocation2 + $0x20] sm:$0xff]
        %v1221 = vld [vmem:[#allocation2 + $0x38] sm:$0xff]
        %v1222 = vld [vmem:[#allocation2 + $0x50] sm:$0xff]
        %v1223 = vld [vmem:[#allocation2 + $0x10] sm:$0xff]
        %v1224 = vld [vmem:[#allocation2 + $0x28] sm:$0xff]
        %v1225 = vld [vmem:[#allocation2 + $0x40] sm:$0xff]
        %v1226 = vld [vmem:[#allocation2 + $0x58] sm:$0xff]
        %1229 = vrot.lane.b32.xlu0 %v1215, 96
        %v1230 = vpop.permute.xlu0 %1229
        %1231 = vrot.lane.b32.xlu0 %v1216, 96
        %v1232 = vpop.permute.xlu0 %1231
        %1235 = vrot.lane.b32.xlu0 %v1219, 96
        %v1236 = vpop.permute.xlu0 %1235
        %1237 = vrot.lane.b32.xlu0 %v1220, 96
        %v1238 = vpop.permute.xlu0 %1237
        %v1239 = vsel %vm829, %v1230, 0
        %v1241 = vsel %vm829, %v1232, 0
        %v1243 = vsel %vm829, %v1236, 0
        %v1245 = vsel %vm829, %v1238, 0
        %1247 = vmatprep.subr.mxu0 0.0
        %1248 = vmatpush1.xpose.msra.mxu0 0.0
        %1249 = vmatprep.subr.mxu0 0.0
        %1250 = vmatpush1.xpose.msra.mxu0 0.0
        %1251 = vmatprep.subr.mxu0 0.0
        %1252 = vmatpush1.xpose.msra.mxu0 0.0
        %1253 = vmatprep.subr.mxu0 0.0
        %1254 = vmatpush1.xpose.msra.mxu0 0.0
        %1255 = vmatprep.subr.mxu0 0.0
        %1256 = vmatpush1.xpose.msra.mxu0 0.0
        %1257 = vmatprep.subr.mxu0 0.0
        %1258 = vmatpush1.xpose.msra.mxu0 0.0
        %1259 = vmatprep.subr.mxu0 0.0
        %1260 = vmatpush1.xpose.msra.mxu0 0.0
        %1261 = vmatprep.subr.mxu0 0.0
        %1262 = vmatpush1.xpose.msra.mxu0 0.0
        %1263 = vmatprep.subr.mxu0 0.0
        %1264 = vmatpush1.xpose.msra.mxu0 0.0
        %1265 = vmatprep.subr.mxu0 0.0
        %1266 = vmatpush1.xpose.msra.mxu0 0.0
        %1267 = vmatprep.subr.mxu0 0.0
        %1268 = vmatpush1.xpose.msra.mxu0 0.0
        %1269 = vmatprep.subr.mxu0 0.0
        %1270 = vmatpush1.xpose.msra.mxu0 0.0
        %1271 = vmatprep.subr.mxu0 0.0
        %1272 = vmatpush1.xpose.msra.mxu0 0.0
        %1273 = vmatprep.subr.mxu0 0.0
        %1274 = vmatpush1.xpose.msra.mxu0 0.0
        %1275 = vmatprep.subr.mxu0 0.0
        %1276 = vmatpush1.xpose.msra.mxu0 %v1245
        %1277 = vmatprep.subr.mxu0 0.0
        %1278 = vmatpush1.xpose.msra.mxu0 %v1243
        %1279 = vmatprep.subr.mxu0 0.0
        %1280 = vmatpush2.xpose.msra.mxu0 0.0
        %1281 = vmatprep.subr.mxu0 0.0
        %1282 = vmatpush2.xpose.msra.mxu0 0.0
        %1283 = vmatprep.subr.mxu0 0.0
        %1284 = vmatpush2.xpose.msra.mxu0 0.0
        %1285 = vmatprep.subr.mxu0 0.0
        %1286 = vmatpush2.xpose.msra.mxu0 0.0
        %1287 = vmatprep.subr.mxu0 0.0
        %1288 = vmatpush2.xpose.msra.mxu0 0.0
        %1289 = vmatprep.subr.mxu0 0.0
        %1290 = vmatpush2.xpose.msra.mxu0 0.0
        %1291 = vmatprep.subr.mxu0 0.0
        %1292 = vmatpush2.xpose.msra.mxu0 0.0
        %1293 = vmatprep.subr.mxu0 0.0
        %1294 = vmatpush2.xpose.msra.mxu0 0.0
        %1295 = vmatprep.subr.mxu0 0.0
        %1296 = vmatpush2.xpose.msra.mxu0 0.0
        %1297 = vmatprep.subr.mxu0 0.0
        %1298 = vmatpush2.xpose.msra.mxu0 0.0
        %1299 = vmatprep.subr.mxu0 0.0
        %1300 = vmatpush2.xpose.msra.mxu0 0.0
        %1301 = vmatprep.subr.mxu0 0.0
        %1302 = vmatpush2.xpose.msra.mxu0 0.0
        %1303 = vmatprep.subr.mxu0 0.0
        %1304 = vmatpush2.xpose.msra.mxu0 0.0
        %1305 = vmatprep.subr.mxu0 0.0
        %1306 = vmatpush2.xpose.msra.mxu0 0.0
        %1307 = vmatprep.subr.mxu0 0.0
        %1308 = vmatpush2.xpose.msra.mxu0 0.0
        %1309 = vmatprep.subr.mxu0 0.0
        %1310 = vmatpush2.xpose.msra.mxu0 0.0
        %1311 = vmatprep.mubr.f32.mxu0 0.0
        %1312 = vmatmul.mubr.f32.gmra.mxu0 %v1239
        %v1313 = vpop.f32.mrf.mxu0
        %v1314 = vadd.f32 0.0, %v1313
        %v1315 = vpop.f32.mrf.mxu0
        %1316 = vmatprep.mubr.f32.mxu0 0.0
        %1317 = vmatmul.mubr.f32.gmra.mxu0 %v1241
        %v1318 = vpop.f32.mrf.mxu0
        %v1319 = vadd.f32 0.0, %v1318
        %v1320 = vpop.f32.mrf.mxu0
        %1321 = vdwg.mxu0
        %1324 = vrot.lane.b32.xlu0 %v1217, 96
        %v1325 = vpop.permute.xlu0 %1324
        %1326 = vrot.lane.b32.xlu0 %v1218, 96
        %v1327 = vpop.permute.xlu0 %1326
        %1330 = vrot.lane.b32.xlu0 %v1221, 96
        %v1331 = vpop.permute.xlu0 %1330
        %1332 = vrot.lane.b32.xlu0 %v1222, 96
        %v1333 = vpop.permute.xlu0 %1332
        %v1334 = vsel %vm829, %v1325, 0
        %v1336 = vsel %vm829, %v1327, 0
        %v1338 = vsel %vm829, %v1331, 0
        %v1340 = vsel %vm829, %v1333, 0
        %1342 = vmatprep.subr.mxu0 0.0
        %1343 = vmatpush1.xpose.msra.mxu0 0.0
        %1344 = vmatprep.subr.mxu0 0.0
        %1345 = vmatpush1.xpose.msra.mxu0 0.0
        %1346 = vmatprep.subr.mxu0 0.0
        %1347 = vmatpush1.xpose.msra.mxu0 0.0
        %1348 = vmatprep.subr.mxu0 0.0
        %1349 = vmatpush1.xpose.msra.mxu0 0.0
        %1350 = vmatprep.subr.mxu0 0.0
        %1351 = vmatpush1.xpose.msra.mxu0 0.0
        %1352 = vmatprep.subr.mxu0 0.0
        %1353 = vmatpush1.xpose.msra.mxu0 0.0
        %1354 = vmatprep.subr.mxu0 0.0
        %1355 = vmatpush1.xpose.msra.mxu0 0.0
        %1356 = vmatprep.subr.mxu0 0.0
        %1357 = vmatpush1.xpose.msra.mxu0 0.0
        %1358 = vmatprep.subr.mxu0 0.0
        %1359 = vmatpush1.xpose.msra.mxu0 0.0
        %1360 = vmatprep.subr.mxu0 0.0
        %1361 = vmatpush1.xpose.msra.mxu0 0.0
        %1362 = vmatprep.subr.mxu0 0.0
        %1363 = vmatpush1.xpose.msra.mxu0 0.0
        %1364 = vmatprep.subr.mxu0 0.0
        %1365 = vmatpush1.xpose.msra.mxu0 0.0
        %1366 = vmatprep.subr.mxu0 0.0
        %1367 = vmatpush1.xpose.msra.mxu0 0.0
        %1368 = vmatprep.subr.mxu0 0.0
        %1369 = vmatpush1.xpose.msra.mxu0 0.0
        %1370 = vmatprep.subr.mxu0 0.0
        %1371 = vmatpush1.xpose.msra.mxu0 %v1340
        %1372 = vmatprep.subr.mxu0 0.0
        %1373 = vmatpush1.xpose.msra.mxu0 %v1338
        %1374 = vmatprep.subr.mxu0 0.0
        %1375 = vmatpush2.xpose.msra.mxu0 0.0
        %1376 = vmatprep.subr.mxu0 0.0
        %1377 = vmatpush2.xpose.msra.mxu0 0.0
        %1378 = vmatprep.subr.mxu0 0.0
        %1379 = vmatpush2.xpose.msra.mxu0 0.0
        %1380 = vmatprep.subr.mxu0 0.0
        %1381 = vmatpush2.xpose.msra.mxu0 0.0
        %1382 = vmatprep.subr.mxu0 0.0
        %1383 = vmatpush2.xpose.msra.mxu0 0.0
        %1384 = vmatprep.subr.mxu0 0.0
        %1385 = vmatpush2.xpose.msra.mxu0 0.0
        %1386 = vmatprep.subr.mxu0 0.0
        %1387 = vmatpush2.xpose.msra.mxu0 0.0
        %1388 = vmatprep.subr.mxu0 0.0
        %1389 = vmatpush2.xpose.msra.mxu0 0.0
        %1390 = vmatprep.subr.mxu0 0.0
        %1391 = vmatpush2.xpose.msra.mxu0 0.0
        %1392 = vmatprep.subr.mxu0 0.0
        %1393 = vmatpush2.xpose.msra.mxu0 0.0
        %1394 = vmatprep.subr.mxu0 0.0
        %1395 = vmatpush2.xpose.msra.mxu0 0.0
        %1396 = vmatprep.subr.mxu0 0.0
        %1397 = vmatpush2.xpose.msra.mxu0 0.0
        %1398 = vmatprep.subr.mxu0 0.0
        %1399 = vmatpush2.xpose.msra.mxu0 0.0
        %1400 = vmatprep.subr.mxu0 0.0
        %1401 = vmatpush2.xpose.msra.mxu0 0.0
        %1402 = vmatprep.subr.mxu0 0.0
        %1403 = vmatpush2.xpose.msra.mxu0 0.0
        %1404 = vmatprep.subr.mxu0 0.0
        %1405 = vmatpush2.xpose.msra.mxu0 0.0
        %1406 = vmatprep.mubr.f32.mxu0 0.0
        %1407 = vmatmul.mubr.f32.gmra.mxu0 %v1334
        %v1408 = vpop.f32.mrf.mxu0
        %v1409 = vadd.f32 0.0, %v1408
        %v1410 = vpop.f32.mrf.mxu0
        %1411 = vmatprep.mubr.f32.mxu0 0.0
        %1412 = vmatmul.mubr.f32.gmra.mxu0 %v1336
        %v1413 = vpop.f32.mrf.mxu0
        %v1414 = vadd.f32 0.0, %v1413
        %v1415 = vpop.f32.mrf.mxu0
        %1416 = vdwg.mxu0
        %v1417 = vsel %vm1004, %v1314, -inf
        %1418 = vmax.xlane.f32.xlu0 %v1417
        %v1419 = vpop.xlane.xlu0 %1418
        %v1420 = vsel %vm1004, %v1319, -inf
        %1421 = vmax.xlane.f32.xlu0 %v1420
        %v1422 = vpop.xlane.xlu0 %1421
        %v1423 = vsel %vm1004, %v1409, -inf
        %1424 = vmax.xlane.f32.xlu0 %v1423
        %v1425 = vpop.xlane.xlu0 %1424
        %v1426 = vsel %vm1004, %v1414, -inf
        %1427 = vmax.xlane.f32.xlu0 %v1426
        %v1428 = vpop.xlane.xlu0 %1427
        %v1429 = vsub.f32 %v1314, %v1419
        %v1430 = vsub.f32 %v1319, %v1422
        %v1431 = vsub.f32 %v1409, %v1425
        %v1432 = vsub.f32 %v1414, %v1428
        %v1433 = vmul.f32 %v1429, 1.442695
        %v1434 = vpow.pop %v1433
        %v1435 = vmul.f32 %v1430, 1.442695
        %v1436 = vpow.pop %v1435
        %v1437 = vmul.f32 %v1431, 1.442695
        %v1438 = vpow.pop %v1437
        %v1439 = vmul.f32 %v1432, 1.442695
        %v1440 = vpow.pop %v1439
        %v1441 = vsel %vm1004, %v1434, 0.0
        %1442 = vadd.xlane.f32.xlu0 %v1441
        %v1443 = vpop.xlane.xlu0 %1442
        %v1444 = vsel %vm1004, %v1436, 0.0
        %1445 = vadd.xlane.f32.xlu0 %v1444
        %v1446 = vpop.xlane.xlu0 %1445
        %v1447 = vsel %vm1004, %v1438, 0.0
        %1448 = vadd.xlane.f32.xlu0 %v1447
        %v1449 = vpop.xlane.xlu0 %1448
        %v1450 = vsel %vm1004, %v1440, 0.0
        %1451 = vadd.xlane.f32.xlu0 %v1450
        %v1452 = vpop.xlane.xlu0 %1451
        %v1453 = vrcp.pop %v1443
        %v1454 = vmul.f32 %v1434, %v1453
        %v1455 = vrcp.pop %v1446
        %v1456 = vmul.f32 %v1436, %v1455
        %v1457 = vrcp.pop %v1449
        %v1458 = vmul.f32 %v1438, %v1457
        %v1459 = vrcp.pop %v1452
        %v1460 = vmul.f32 %v1440, %v1459
        %1463 = vrot.lane.b32.xlu0 %v1223, 96
        %v1464 = vpop.permute.xlu0 %1463
        %1465 = vrot.lane.b32.xlu0 %v1224, 96
        %v1466 = vpop.permute.xlu0 %1465
        %v1470 = vsel %vm1004, %v1454, 0
        %v1473 = vsel %vm1004, %v1456, 0
        %1475 = vmatprep.subr.mxu0 0.0
        %1476 = vmatpush1.msra.mxu0 0.0
        %1477 = vmatprep.subr.mxu0 0.0
        %1478 = vmatpush1.msra.mxu0 0.0
        %1479 = vmatprep.subr.mxu0 0.0
        %1480 = vmatpush1.msra.mxu0 0.0
        %1481 = vmatprep.subr.mxu0 0.0
        %1482 = vmatpush1.msra.mxu0 0.0
        %1483 = vmatprep.subr.mxu0 0.0
        %1484 = vmatpush1.msra.mxu0 0.0
        %1485 = vmatprep.subr.mxu0 0.0
        %1486 = vmatpush1.msra.mxu0 0.0
        %1487 = vmatprep.subr.mxu0 0.0
        %1488 = vmatpush1.msra.mxu0 0.0
        %1489 = vmatprep.subr.mxu0 0.0
        %1490 = vmatpush1.msra.mxu0 0.0
        %1491 = vmatprep.subr.mxu0 0.0
        %1492 = vmatpush1.msra.mxu0 0.0
        %1493 = vmatprep.subr.mxu0 0.0
        %1494 = vmatpush1.msra.mxu0 0.0
        %1495 = vmatprep.subr.mxu0 0.0
        %1496 = vmatpush1.msra.mxu0 0.0
        %1497 = vmatprep.subr.mxu0 0.0
        %1498 = vmatpush1.msra.mxu0 0.0
        %1499 = vmatprep.subr.mxu0 0.0
        %1500 = vmatpush1.msra.mxu0 0.0
        %1501 = vmatprep.subr.mxu0 0.0
        %1502 = vmatpush1.msra.mxu0 0.0
        %1503 = vmatprep.subr.mxu0 0.0
        %1504 = vmatpush1.msra.mxu0 %v1466
        %1505 = vmatprep.subr.mxu0 0.0
        %1506 = vmatpush1.msra.mxu0 %v1464
        %1507 = vmatprep.subr.mxu0 0.0
        %1508 = vmatpush2.msra.mxu0 0.0
        %1509 = vmatprep.subr.mxu0 0.0
        %1510 = vmatpush2.msra.mxu0 0.0
        %1511 = vmatprep.subr.mxu0 0.0
        %1512 = vmatpush2.msra.mxu0 0.0
        %1513 = vmatprep.subr.mxu0 0.0
        %1514 = vmatpush2.msra.mxu0 0.0
        %1515 = vmatprep.subr.mxu0 0.0
        %1516 = vmatpush2.msra.mxu0 0.0
        %1517 = vmatprep.subr.mxu0 0.0
        %1518 = vmatpush2.msra.mxu0 0.0
        %1519 = vmatprep.subr.mxu0 0.0
        %1520 = vmatpush2.msra.mxu0 0.0
        %1521 = vmatprep.subr.mxu0 0.0
        %1522 = vmatpush2.msra.mxu0 0.0
        %1523 = vmatprep.subr.mxu0 0.0
        %1524 = vmatpush2.msra.mxu0 0.0
        %1525 = vmatprep.subr.mxu0 0.0
        %1526 = vmatpush2.msra.mxu0 0.0
        %1527 = vmatprep.subr.mxu0 0.0
        %1528 = vmatpush2.msra.mxu0 0.0
        %1529 = vmatprep.subr.mxu0 0.0
        %1530 = vmatpush2.msra.mxu0 0.0
        %1531 = vmatprep.subr.mxu0 0.0
        %1532 = vmatpush2.msra.mxu0 0.0
        %1533 = vmatprep.subr.mxu0 0.0
        %1534 = vmatpush2.msra.mxu0 0.0
        %1535 = vmatprep.subr.mxu0 0.0
        %1536 = vmatpush2.msra.mxu0 0.0
        %1537 = vmatprep.subr.mxu0 0.0
        %1538 = vmatpush2.msra.mxu0 0.0
        %1539 = vmatprep.mubr.f32.mxu0 0.0
        %1540 = vmatmul.mubr.f32.gmra.mxu0 %v1470
        %v1541 = vpop.f32.mrf.mxu0
        %v1542 = vadd.f32 0.0, %v1541
        %v1543 = vpop.f32.mrf.mxu0
        %1544 = vmatprep.mubr.f32.mxu0 0.0
        %1545 = vmatmul.mubr.f32.gmra.mxu0 %v1473
        %v1546 = vpop.f32.mrf.mxu0
        %v1547 = vadd.f32 0.0, %v1546
        %v1548 = vpop.f32.mrf.mxu0
        %1549 = vdwg.mxu0
        %1552 = vrot.lane.b32.xlu0 %v1225, 96
        %v1553 = vpop.permute.xlu0 %1552
        %1554 = vrot.lane.b32.xlu0 %v1226, 96
        %v1555 = vpop.permute.xlu0 %1554
        %v1559 = vsel %vm1004, %v1458, 0
        %v1562 = vsel %vm1004, %v1460, 0
        %1564 = vmatprep.subr.mxu0 0.0
        %1565 = vmatpush1.msra.mxu0 0.0
        %1566 = vmatprep.subr.mxu0 0.0
        %1567 = vmatpush1.msra.mxu0 0.0
        %1568 = vmatprep.subr.mxu0 0.0
        %1569 = vmatpush1.msra.mxu0 0.0
        %1570 = vmatprep.subr.mxu0 0.0
        %1571 = vmatpush1.msra.mxu0 0.0
        %1572 = vmatprep.subr.mxu0 0.0
        %1573 = vmatpush1.msra.mxu0 0.0
        %1574 = vmatprep.subr.mxu0 0.0
        %1575 = vmatpush1.msra.mxu0 0.0
        %1576 = vmatprep.subr.mxu0 0.0
        %1577 = vmatpush1.msra.mxu0 0.0
        %1578 = vmatprep.subr.mxu0 0.0
        %1579 = vmatpush1.msra.mxu0 0.0
        %1580 = vmatprep.subr.mxu0 0.0
        %1581 = vmatpush1.msra.mxu0 0.0
        %1582 = vmatprep.subr.mxu0 0.0
        %1583 = vmatpush1.msra.mxu0 0.0
        %1584 = vmatprep.subr.mxu0 0.0
        %1585 = vmatpush1.msra.mxu0 0.0
        %1586 = vmatprep.subr.mxu0 0.0
        %1587 = vmatpush1.msra.mxu0 0.0
        %1588 = vmatprep.subr.mxu0 0.0
        %1589 = vmatpush1.msra.mxu0 0.0
        %1590 = vmatprep.subr.mxu0 0.0
        %1591 = vmatpush1.msra.mxu0 0.0
        %1592 = vmatprep.subr.mxu0 0.0
        %1593 = vmatpush1.msra.mxu0 %v1555
        %1594 = vmatprep.subr.mxu0 0.0
        %1595 = vmatpush1.msra.mxu0 %v1553
        %1596 = vmatprep.subr.mxu0 0.0
        %1597 = vmatpush2.msra.mxu0 0.0
        %1598 = vmatprep.subr.mxu0 0.0
        %1599 = vmatpush2.msra.mxu0 0.0
        %1600 = vmatprep.subr.mxu0 0.0
        %1601 = vmatpush2.msra.mxu0 0.0
        %1602 = vmatprep.subr.mxu0 0.0
        %1603 = vmatpush2.msra.mxu0 0.0
        %1604 = vmatprep.subr.mxu0 0.0
        %1605 = vmatpush2.msra.mxu0 0.0
        %1606 = vmatprep.subr.mxu0 0.0
        %1607 = vmatpush2.msra.mxu0 0.0
        %1608 = vmatprep.subr.mxu0 0.0
        %1609 = vmatpush2.msra.mxu0 0.0
        %1610 = vmatprep.subr.mxu0 0.0
        %1611 = vmatpush2.msra.mxu0 0.0
        %1612 = vmatprep.subr.mxu0 0.0
        %1613 = vmatpush2.msra.mxu0 0.0
        %1614 = vmatprep.subr.mxu0 0.0
        %1615 = vmatpush2.msra.mxu0 0.0
        %1616 = vmatprep.subr.mxu0 0.0
        %1617 = vmatpush2.msra.mxu0 0.0
        %1618 = vmatprep.subr.mxu0 0.0
        %1619 = vmatpush2.msra.mxu0 0.0
        %1620 = vmatprep.subr.mxu0 0.0
        %1621 = vmatpush2.msra.mxu0 0.0
        %1622 = vmatprep.subr.mxu0 0.0
        %1623 = vmatpush2.msra.mxu0 0.0
        %1624 = vmatprep.subr.mxu0 0.0
        %1625 = vmatpush2.msra.mxu0 0.0
        %1626 = vmatprep.subr.mxu0 0.0
        %1627 = vmatpush2.msra.mxu0 0.0
        %1628 = vmatprep.mubr.f32.mxu0 0.0
        %1629 = vmatmul.mubr.f32.gmra.mxu0 %v1559
        %v1630 = vpop.f32.mrf.mxu0
        %v1631 = vadd.f32 0.0, %v1630
        %v1632 = vpop.f32.mrf.mxu0
        %1633 = vmatprep.mubr.f32.mxu0 0.0
        %1634 = vmatmul.mubr.f32.gmra.mxu0 %v1562
        %v1635 = vpop.f32.mrf.mxu0
        %v1636 = vadd.f32 0.0, %v1635
        %v1637 = vpop.f32.mrf.mxu0
        %1638 = vdwg.mxu0
        %v1639 = vld [vmem:[#allocation11 + $0x20] sm:$0xff]
        %v1640 = vld [vmem:[#allocation11 + $0x28] sm:$0xff]
        %v1641 = vld [vmem:[#allocation11 + $0x30] sm:$0xff]
        %v1642 = vld [vmem:[#allocation11 + $0x38] sm:$0xff]
        %v1644 = vsel %vm829, %v1542, 0
        %v1647 = vsel %vm829, %v1547, 0
        %v1650 = vsel %vm829, %v1631, 0
        %v1653 = vsel %vm829, %v1636, 0
        %1655 = vmatprep.subr.mxu0 0.0
        %1656 = vmatpush1.msra.mxu0 0.0
        %1657 = vmatprep.subr.mxu0 0.0
        %1658 = vmatpush1.msra.mxu0 0.0
        %1659 = vmatprep.subr.mxu0 0.0
        %1660 = vmatpush1.msra.mxu0 0.0
        %1661 = vmatprep.subr.mxu0 0.0
        %1662 = vmatpush1.msra.mxu0 0.0
        %1663 = vmatprep.subr.mxu0 0.0
        %1664 = vmatpush1.msra.mxu0 0.0
        %1665 = vmatprep.subr.mxu0 0.0
        %1666 = vmatpush1.msra.mxu0 0.0
        %1667 = vmatprep.subr.mxu0 0.0
        %1668 = vmatpush1.msra.mxu0 0.0
        %1669 = vmatprep.subr.mxu0 0.0
        %1670 = vmatpush1.msra.mxu0 0.0
        %1671 = vmatprep.subr.mxu0 0.0
        %1672 = vmatpush1.msra.mxu0 0.0
        %1673 = vmatprep.subr.mxu0 0.0
        %1674 = vmatpush1.msra.mxu0 0.0
        %1675 = vmatprep.subr.mxu0 0.0
        %1676 = vmatpush1.msra.mxu0 0.0
        %1677 = vmatprep.subr.mxu0 0.0
        %1678 = vmatpush1.msra.mxu0 0.0
        %1679 = vmatprep.subr.mxu0 0.0
        %1680 = vmatpush1.msra.mxu0 %v1642
        %1681 = vmatprep.subr.mxu0 0.0
        %1682 = vmatpush1.msra.mxu0 %v1641
        %1683 = vmatprep.subr.mxu0 0.0
        %1684 = vmatpush1.msra.mxu0 %v1640
        %1685 = vmatprep.subr.mxu0 0.0
        %1686 = vmatpush1.msra.mxu0 %v1639
        %1687 = vmatprep.subr.mxu0 0.0
        %1688 = vmatpush2.msra.mxu0 0.0
        %1689 = vmatprep.subr.mxu0 0.0
        %1690 = vmatpush2.msra.mxu0 0.0
        %1691 = vmatprep.subr.mxu0 0.0
        %1692 = vmatpush2.msra.mxu0 0.0
        %1693 = vmatprep.subr.mxu0 0.0
        %1694 = vmatpush2.msra.mxu0 0.0
        %1695 = vmatprep.subr.mxu0 0.0
        %1696 = vmatpush2.msra.mxu0 0.0
        %1697 = vmatprep.subr.mxu0 0.0
        %1698 = vmatpush2.msra.mxu0 0.0
        %1699 = vmatprep.subr.mxu0 0.0
        %1700 = vmatpush2.msra.mxu0 0.0
        %1701 = vmatprep.subr.mxu0 0.0
        %1702 = vmatpush2.msra.mxu0 0.0
        %1703 = vmatprep.subr.mxu0 0.0
        %1704 = vmatpush2.msra.mxu0 0.0
        %1705 = vmatprep.subr.mxu0 0.0
        %1706 = vmatpush2.msra.mxu0 0.0
        %1707 = vmatprep.subr.mxu0 0.0
        %1708 = vmatpush2.msra.mxu0 0.0
        %1709 = vmatprep.subr.mxu0 0.0
        %1710 = vmatpush2.msra.mxu0 0.0
        %1711 = vmatprep.subr.mxu0 0.0
        %1712 = vmatpush2.msra.mxu0 0.0
        %1713 = vmatprep.subr.mxu0 0.0
        %1714 = vmatpush2.msra.mxu0 0.0
        %1715 = vmatprep.subr.mxu0 0.0
        %1716 = vmatpush2.msra.mxu0 0.0
        %1717 = vmatprep.subr.mxu0 0.0
        %1718 = vmatpush2.msra.mxu0 0.0
        %1719 = vmatprep.mubr.f32.mxu0 0.0
        %1720 = vmatmul.mubr.f32.gmra.mxu0 %v1644
        %v1721 = vpop.f32.mrf.mxu0
        %v1722 = vadd.f32 0.0, %v1721
        %v1723 = vpop.f32.mrf.mxu0
        %1724 = vmatprep.mubr.f32.mxu0 0.0
        %1725 = vmatmul.mubr.f32.gmra.mxu0 %v1647
        %v1726 = vpop.f32.mrf.mxu0
        %v1727 = vadd.f32 0.0, %v1726
        %v1728 = vpop.f32.mrf.mxu0
        %1729 = vmatprep.mubr.f32.mxu0 0.0
        %1730 = vmatmul.mubr.f32.gmra.mxu0 %v1650
        %v1731 = vpop.f32.mrf.mxu0
        %v1732 = vadd.f32 0.0, %v1731
        %v1733 = vpop.f32.mrf.mxu0
        %1734 = vmatprep.mubr.f32.mxu0 0.0
        %1735 = vmatmul.mubr.f32.gmra.mxu0 %v1653
        %v1736 = vpop.f32.mrf.mxu0
        %v1737 = vadd.f32 0.0, %v1736
        %v1738 = vpop.f32.mrf.mxu0
        %1739 = vdwg.mxu0
        %v1741 = vsel %vm829, %v1122, 0
        %v1744 = vsel %vm829, %v1127, 0
        %v1747 = vsel %vm829, %v1203, 0
        %v1750 = vsel %vm829, %v1208, 0
        %1752 = vmatprep.subr.mxu0 0.0
        %1753 = vmatpush1.msra.mxu0 0.0
        %1754 = vmatprep.subr.mxu0 0.0
        %1755 = vmatpush1.msra.mxu0 0.0
        %1756 = vmatprep.subr.mxu0 0.0
        %1757 = vmatpush1.msra.mxu0 0.0
        %1758 = vmatprep.subr.mxu0 0.0
        %1759 = vmatpush1.msra.mxu0 0.0
        %1760 = vmatprep.subr.mxu0 0.0
        %1761 = vmatpush1.msra.mxu0 0.0
        %1762 = vmatprep.subr.mxu0 0.0
        %1763 = vmatpush1.msra.mxu0 0.0
        %1764 = vmatprep.subr.mxu0 0.0
        %1765 = vmatpush1.msra.mxu0 0.0
        %1766 = vmatprep.subr.mxu0 0.0
        %1767 = vmatpush1.msra.mxu0 0.0
        %1768 = vmatprep.subr.mxu0 0.0
        %1769 = vmatpush1.msra.mxu0 0.0
        %1770 = vmatprep.subr.mxu0 0.0
        %1771 = vmatpush1.msra.mxu0 0.0
        %1772 = vmatprep.subr.mxu0 0.0
        %1773 = vmatpush1.msra.mxu0 0.0
        %1774 = vmatprep.subr.mxu0 0.0
        %1775 = vmatpush1.msra.mxu0 0.0
        %1776 = vmatprep.subr.mxu0 0.0
        %1777 = vmatpush1.msra.mxu0 %v1214
        %1778 = vmatprep.subr.mxu0 0.0
        %1779 = vmatpush1.msra.mxu0 %v1213
        %1780 = vmatprep.subr.mxu0 0.0
        %1781 = vmatpush1.msra.mxu0 %v1212
        %1782 = vmatprep.subr.mxu0 0.0
        %1783 = vmatpush1.msra.mxu0 %v1211
        %1784 = vmatprep.subr.mxu0 0.0
        %1785 = vmatpush2.msra.mxu0 0.0
        %1786 = vmatprep.subr.mxu0 0.0
        %1787 = vmatpush2.msra.mxu0 0.0
        %1788 = vmatprep.subr.mxu0 0.0
        %1789 = vmatpush2.msra.mxu0 0.0
        %1790 = vmatprep.subr.mxu0 0.0
        %1791 = vmatpush2.msra.mxu0 0.0
        %1792 = vmatprep.subr.mxu0 0.0
        %1793 = vmatpush2.msra.mxu0 0.0
        %1794 = vmatprep.subr.mxu0 0.0
        %1795 = vmatpush2.msra.mxu0 0.0
        %1796 = vmatprep.subr.mxu0 0.0
        %1797 = vmatpush2.msra.mxu0 0.0
        %1798 = vmatprep.subr.mxu0 0.0
        %1799 = vmatpush2.msra.mxu0 0.0
        %1800 = vmatprep.subr.mxu0 0.0
        %1801 = vmatpush2.msra.mxu0 0.0
        %1802 = vmatprep.subr.mxu0 0.0
        %1803 = vmatpush2.msra.mxu0 0.0
        %1804 = vmatprep.subr.mxu0 0.0
        %1805 = vmatpush2.msra.mxu0 0.0
        %1806 = vmatprep.subr.mxu0 0.0
        %1807 = vmatpush2.msra.mxu0 0.0
        %1808 = vmatprep.subr.mxu0 0.0
        %1809 = vmatpush2.msra.mxu0 0.0
        %1810 = vmatprep.subr.mxu0 0.0
        %1811 = vmatpush2.msra.mxu0 0.0
        %1812 = vmatprep.subr.mxu0 0.0
        %1813 = vmatpush2.msra.mxu0 0.0
        %1814 = vmatprep.subr.mxu0 0.0
        %1815 = vmatpush2.msra.mxu0 0.0
        %1816 = vmatprep.mubr.f32.mxu0 0.0
        %1817 = vmatmul.mubr.f32.gmra.mxu0 %v1741
        %v1818 = vpop.f32.mrf.mxu0
        %v1819 = vadd.f32 %v1722, %v1818
        %v1820 = vpop.f32.mrf.mxu0
        %1821 = vmatprep.mubr.f32.mxu0 0.0
        %1822 = vmatmul.mubr.f32.gmra.mxu0 %v1744
        %v1823 = vpop.f32.mrf.mxu0
        %v1824 = vadd.f32 %v1727, %v1823
        %v1825 = vpop.f32.mrf.mxu0
        %1826 = vmatprep.mubr.f32.mxu0 0.0
        %1827 = vmatmul.mubr.f32.gmra.mxu0 %v1747
        %v1828 = vpop.f32.mrf.mxu0
        %v1829 = vadd.f32 %v1732, %v1828
        %v1830 = vpop.f32.mrf.mxu0
        %1831 = vmatprep.mubr.f32.mxu0 0.0
        %1832 = vmatmul.mubr.f32.gmra.mxu0 %v1750
        %v1833 = vpop.f32.mrf.mxu0
        %v1834 = vadd.f32 %v1737, %v1833
        %v1835 = vpop.f32.mrf.mxu0
        %1836 = vdwg.mxu0
        %v1837 = vld [vmem:[#allocation2] sm:$0xff]
        %v1838 = vld [vmem:[#allocation2 + $0x18] sm:$0xff]
        %v1839 = vld [vmem:[#allocation2 + $0x30] sm:$0xff]
        %v1840 = vld [vmem:[#allocation2 + $0x48] sm:$0xff]
        %v1841 = vld [vmem:[#allocation2 + $0x8] sm:$0xff]
        %v1842 = vld [vmem:[#allocation2 + $0x20] sm:$0xff]
        %v1843 = vld [vmem:[#allocation2 + $0x38] sm:$0xff]
        %v1844 = vld [vmem:[#allocation2 + $0x50] sm:$0xff]
        %v1845 = vld [vmem:[#allocation2 + $0x10] sm:$0xff]
        %v1846 = vld [vmem:[#allocation2 + $0x28] sm:$0xff]
        %v1847 = vld [vmem:[#allocation2 + $0x40] sm:$0xff]
        %v1848 = vld [vmem:[#allocation2 + $0x58] sm:$0xff]
        %1851 = vrot.lane.b32.xlu0 %v1837, 64
        %v1852 = vpop.permute.xlu0 %1851
        %1853 = vrot.lane.b32.xlu0 %v1838, 64
        %v1854 = vpop.permute.xlu0 %1853
        %1857 = vrot.lane.b32.xlu0 %v1841, 64
        %v1858 = vpop.permute.xlu0 %1857
        %1859 = vrot.lane.b32.xlu0 %v1842, 64
        %v1860 = vpop.permute.xlu0 %1859
        %v1861 = vsel %vm829, %v1852, 0
        %v1863 = vsel %vm829, %v1854, 0
        %v1865 = vsel %vm829, %v1858, 0
        %v1867 = vsel %vm829, %v1860, 0
        %1869 = vmatprep.subr.mxu0 0.0
        %1870 = vmatpush1.xpose.msra.mxu0 0.0
        %1871 = vmatprep.subr.mxu0 0.0
        %1872 = vmatpush1.xpose.msra.mxu0 0.0
        %1873 = vmatprep.subr.mxu0 0.0
        %1874 = vmatpush1.xpose.msra.mxu0 0.0
        %1875 = vmatprep.subr.mxu0 0.0
        %1876 = vmatpush1.xpose.msra.mxu0 0.0
        %1877 = vmatprep.subr.mxu0 0.0
        %1878 = vmatpush1.xpose.msra.mxu0 0.0
        %1879 = vmatprep.subr.mxu0 0.0
        %1880 = vmatpush1.xpose.msra.mxu0 0.0
        %1881 = vmatprep.subr.mxu0 0.0
        %1882 = vmatpush1.xpose.msra.mxu0 0.0
        %1883 = vmatprep.subr.mxu0 0.0
        %1884 = vmatpush1.xpose.msra.mxu0 0.0
        %1885 = vmatprep.subr.mxu0 0.0
        %1886 = vmatpush1.xpose.msra.mxu0 0.0
        %1887 = vmatprep.subr.mxu0 0.0
        %1888 = vmatpush1.xpose.msra.mxu0 0.0
        %1889 = vmatprep.subr.mxu0 0.0
        %1890 = vmatpush1.xpose.msra.mxu0 0.0
        %1891 = vmatprep.subr.mxu0 0.0
        %1892 = vmatpush1.xpose.msra.mxu0 0.0
        %1893 = vmatprep.subr.mxu0 0.0
        %1894 = vmatpush1.xpose.msra.mxu0 0.0
        %1895 = vmatprep.subr.mxu0 0.0
        %1896 = vmatpush1.xpose.msra.mxu0 0.0
        %1897 = vmatprep.subr.mxu0 0.0
        %1898 = vmatpush1.xpose.msra.mxu0 %v1867
        %1899 = vmatprep.subr.mxu0 0.0
        %1900 = vmatpush1.xpose.msra.mxu0 %v1865
        %1901 = vmatprep.subr.mxu0 0.0
        %1902 = vmatpush2.xpose.msra.mxu0 0.0
        %1903 = vmatprep.subr.mxu0 0.0
        %1904 = vmatpush2.xpose.msra.mxu0 0.0
        %1905 = vmatprep.subr.mxu0 0.0
        %1906 = vmatpush2.xpose.msra.mxu0 0.0
        %1907 = vmatprep.subr.mxu0 0.0
        %1908 = vmatpush2.xpose.msra.mxu0 0.0
        %1909 = vmatprep.subr.mxu0 0.0
        %1910 = vmatpush2.xpose.msra.mxu0 0.0
        %1911 = vmatprep.subr.mxu0 0.0
        %1912 = vmatpush2.xpose.msra.mxu0 0.0
        %1913 = vmatprep.subr.mxu0 0.0
        %1914 = vmatpush2.xpose.msra.mxu0 0.0
        %1915 = vmatprep.subr.mxu0 0.0
        %1916 = vmatpush2.xpose.msra.mxu0 0.0
        %1917 = vmatprep.subr.mxu0 0.0
        %1918 = vmatpush2.xpose.msra.mxu0 0.0
        %1919 = vmatprep.subr.mxu0 0.0
        %1920 = vmatpush2.xpose.msra.mxu0 0.0
        %1921 = vmatprep.subr.mxu0 0.0
        %1922 = vmatpush2.xpose.msra.mxu0 0.0
        %1923 = vmatprep.subr.mxu0 0.0
        %1924 = vmatpush2.xpose.msra.mxu0 0.0
        %1925 = vmatprep.subr.mxu0 0.0
        %1926 = vmatpush2.xpose.msra.mxu0 0.0
        %1927 = vmatprep.subr.mxu0 0.0
        %1928 = vmatpush2.xpose.msra.mxu0 0.0
        %1929 = vmatprep.subr.mxu0 0.0
        %1930 = vmatpush2.xpose.msra.mxu0 0.0
        %1931 = vmatprep.subr.mxu0 0.0
        %1932 = vmatpush2.xpose.msra.mxu0 0.0
        %1933 = vmatprep.mubr.f32.mxu0 0.0
        %1934 = vmatmul.mubr.f32.gmra.mxu0 %v1861
        %v1935 = vpop.f32.mrf.mxu0
        %v1936 = vadd.f32 0.0, %v1935
        %v1937 = vpop.f32.mrf.mxu0
        %1938 = vmatprep.mubr.f32.mxu0 0.0
        %1939 = vmatmul.mubr.f32.gmra.mxu0 %v1863
        %v1940 = vpop.f32.mrf.mxu0
        %v1941 = vadd.f32 0.0, %v1940
        %v1942 = vpop.f32.mrf.mxu0
        %1943 = vdwg.mxu0
        %1946 = vrot.lane.b32.xlu0 %v1839, 64
        %v1947 = vpop.permute.xlu0 %1946
        %1948 = vrot.lane.b32.xlu0 %v1840, 64
        %v1949 = vpop.permute.xlu0 %1948
        %1952 = vrot.lane.b32.xlu0 %v1843, 64
        %v1953 = vpop.permute.xlu0 %1952
        %1954 = vrot.lane.b32.xlu0 %v1844, 64
        %v1955 = vpop.permute.xlu0 %1954
        %v1956 = vsel %vm829, %v1947, 0
        %v1958 = vsel %vm829, %v1949, 0
        %v1960 = vsel %vm829, %v1953, 0
        %v1962 = vsel %vm829, %v1955, 0
        %1964 = vmatprep.subr.mxu0 0.0
        %1965 = vmatpush1.xpose.msra.mxu0 0.0
        %1966 = vmatprep.subr.mxu0 0.0
        %1967 = vmatpush1.xpose.msra.mxu0 0.0
        %1968 = vmatprep.subr.mxu0 0.0
        %1969 = vmatpush1.xpose.msra.mxu0 0.0
        %1970 = vmatprep.subr.mxu0 0.0
        %1971 = vmatpush1.xpose.msra.mxu0 0.0
        %1972 = vmatprep.subr.mxu0 0.0
        %1973 = vmatpush1.xpose.msra.mxu0 0.0
        %1974 = vmatprep.subr.mxu0 0.0
        %1975 = vmatpush1.xpose.msra.mxu0 0.0
        %1976 = vmatprep.subr.mxu0 0.0
        %1977 = vmatpush1.xpose.msra.mxu0 0.0
        %1978 = vmatprep.subr.mxu0 0.0
        %1979 = vmatpush1.xpose.msra.mxu0 0.0
        %1980 = vmatprep.subr.mxu0 0.0
        %1981 = vmatpush1.xpose.msra.mxu0 0.0
        %1982 = vmatprep.subr.mxu0 0.0
        %1983 = vmatpush1.xpose.msra.mxu0 0.0
        %1984 = vmatprep.subr.mxu0 0.0
        %1985 = vmatpush1.xpose.msra.mxu0 0.0
        %1986 = vmatprep.subr.mxu0 0.0
        %1987 = vmatpush1.xpose.msra.mxu0 0.0
        %1988 = vmatprep.subr.mxu0 0.0
        %1989 = vmatpush1.xpose.msra.mxu0 0.0
        %1990 = vmatprep.subr.mxu0 0.0
        %1991 = vmatpush1.xpose.msra.mxu0 0.0
        %1992 = vmatprep.subr.mxu0 0.0
        %1993 = vmatpush1.xpose.msra.mxu0 %v1962
        %1994 = vmatprep.subr.mxu0 0.0
        %1995 = vmatpush1.xpose.msra.mxu0 %v1960
        %1996 = vmatprep.subr.mxu0 0.0
        %1997 = vmatpush2.xpose.msra.mxu0 0.0
        %1998 = vmatprep.subr.mxu0 0.0
        %1999 = vmatpush2.xpose.msra.mxu0 0.0
        %2000 = vmatprep.subr.mxu0 0.0
        %2001 = vmatpush2.xpose.msra.mxu0 0.0
        %2002 = vmatprep.subr.mxu0 0.0
        %2003 = vmatpush2.xpose.msra.mxu0 0.0
        %2004 = vmatprep.subr.mxu0 0.0
        %2005 = vmatpush2.xpose.msra.mxu0 0.0
        %2006 = vmatprep.subr.mxu0 0.0
        %2007 = vmatpush2.xpose.msra.mxu0 0.0
        %2008 = vmatprep.subr.mxu0 0.0
        %2009 = vmatpush2.xpose.msra.mxu0 0.0
        %2010 = vmatprep.subr.mxu0 0.0
        %2011 = vmatpush2.xpose.msra.mxu0 0.0
        %2012 = vmatprep.subr.mxu0 0.0
        %2013 = vmatpush2.xpose.msra.mxu0 0.0
        %2014 = vmatprep.subr.mxu0 0.0
        %2015 = vmatpush2.xpose.msra.mxu0 0.0
        %2016 = vmatprep.subr.mxu0 0.0
        %2017 = vmatpush2.xpose.msra.mxu0 0.0
        %2018 = vmatprep.subr.mxu0 0.0
        %2019 = vmatpush2.xpose.msra.mxu0 0.0
        %2020 = vmatprep.subr.mxu0 0.0
        %2021 = vmatpush2.xpose.msra.mxu0 0.0
        %2022 = vmatprep.subr.mxu0 0.0
        %2023 = vmatpush2.xpose.msra.mxu0 0.0
        %2024 = vmatprep.subr.mxu0 0.0
        %2025 = vmatpush2.xpose.msra.mxu0 0.0
        %2026 = vmatprep.subr.mxu0 0.0
        %2027 = vmatpush2.xpose.msra.mxu0 0.0
        %2028 = vmatprep.mubr.f32.mxu0 0.0
        %2029 = vmatmul.mubr.f32.gmra.mxu0 %v1956
        %v2030 = vpop.f32.mrf.mxu0
        %v2031 = vadd.f32 0.0, %v2030
        %v2032 = vpop.f32.mrf.mxu0
        %2033 = vmatprep.mubr.f32.mxu0 0.0
        %2034 = vmatmul.mubr.f32.gmra.mxu0 %v1958
        %v2035 = vpop.f32.mrf.mxu0
        %v2036 = vadd.f32 0.0, %v2035
        %v2037 = vpop.f32.mrf.mxu0
        %2038 = vdwg.mxu0
        %v2039 = vsel %vm1004, %v1936, -inf
        %2040 = vmax.xlane.f32.xlu0 %v2039
        %v2041 = vpop.xlane.xlu0 %2040
        %v2042 = vsel %vm1004, %v1941, -inf
        %2043 = vmax.xlane.f32.xlu0 %v2042
        %v2044 = vpop.xlane.xlu0 %2043
        %v2045 = vsel %vm1004, %v2031, -inf
        %2046 = vmax.xlane.f32.xlu0 %v2045
        %v2047 = vpop.xlane.xlu0 %2046
        %v2048 = vsel %vm1004, %v2036, -inf
        %2049 = vmax.xlane.f32.xlu0 %v2048
        %v2050 = vpop.xlane.xlu0 %2049
        %v2051 = vsub.f32 %v1936, %v2041
        %v2052 = vsub.f32 %v1941, %v2044
        %v2053 = vsub.f32 %v2031, %v2047
        %v2054 = vsub.f32 %v2036, %v2050
        %v2055 = vmul.f32 %v2051, 1.442695
        %v2056 = vpow.pop %v2055
        %v2057 = vmul.f32 %v2052, 1.442695
        %v2058 = vpow.pop %v2057
        %v2059 = vmul.f32 %v2053, 1.442695
        %v2060 = vpow.pop %v2059
        %v2061 = vmul.f32 %v2054, 1.442695
        %v2062 = vpow.pop %v2061
        %v2063 = vsel %vm1004, %v2056, 0.0
        %2064 = vadd.xlane.f32.xlu0 %v2063
        %v2065 = vpop.xlane.xlu0 %2064
        %v2066 = vsel %vm1004, %v2058, 0.0
        %2067 = vadd.xlane.f32.xlu0 %v2066
        %v2068 = vpop.xlane.xlu0 %2067
        %v2069 = vsel %vm1004, %v2060, 0.0
        %2070 = vadd.xlane.f32.xlu0 %v2069
        %v2071 = vpop.xlane.xlu0 %2070
        %v2072 = vsel %vm1004, %v2062, 0.0
        %2073 = vadd.xlane.f32.xlu0 %v2072
        %v2074 = vpop.xlane.xlu0 %2073
        %v2075 = vrcp.pop %v2065
        %v2076 = vmul.f32 %v2056, %v2075
        %v2077 = vrcp.pop %v2068
        %v2078 = vmul.f32 %v2058, %v2077
        %v2079 = vrcp.pop %v2071
        %v2080 = vmul.f32 %v2060, %v2079
        %v2081 = vrcp.pop %v2074
        %v2082 = vmul.f32 %v2062, %v2081
        %2085 = vrot.lane.b32.xlu0 %v1845, 64
        %v2086 = vpop.permute.xlu0 %2085
        %2087 = vrot.lane.b32.xlu0 %v1846, 64
        %v2088 = vpop.permute.xlu0 %2087
        %v2092 = vsel %vm1004, %v2076, 0
        %v2095 = vsel %vm1004, %v2078, 0
        %2097 = vmatprep.subr.mxu0 0.0
        %2098 = vmatpush1.msra.mxu0 0.0
        %2099 = vmatprep.subr.mxu0 0.0
        %2100 = vmatpush1.msra.mxu0 0.0
        %2101 = vmatprep.subr.mxu0 0.0
        %2102 = vmatpush1.msra.mxu0 0.0
        %2103 = vmatprep.subr.mxu0 0.0
        %2104 = vmatpush1.msra.mxu0 0.0
        %2105 = vmatprep.subr.mxu0 0.0
        %2106 = vmatpush1.msra.mxu0 0.0
        %2107 = vmatprep.subr.mxu0 0.0
        %2108 = vmatpush1.msra.mxu0 0.0
        %2109 = vmatprep.subr.mxu0 0.0
        %2110 = vmatpush1.msra.mxu0 0.0
        %2111 = vmatprep.subr.mxu0 0.0
        %2112 = vmatpush1.msra.mxu0 0.0
        %2113 = vmatprep.subr.mxu0 0.0
        %2114 = vmatpush1.msra.mxu0 0.0
        %2115 = vmatprep.subr.mxu0 0.0
        %2116 = vmatpush1.msra.mxu0 0.0
        %2117 = vmatprep.subr.mxu0 0.0
        %2118 = vmatpush1.msra.mxu0 0.0
        %2119 = vmatprep.subr.mxu0 0.0
        %2120 = vmatpush1.msra.mxu0 0.0
        %2121 = vmatprep.subr.mxu0 0.0
        %2122 = vmatpush1.msra.mxu0 0.0
        %2123 = vmatprep.subr.mxu0 0.0
        %2124 = vmatpush1.msra.mxu0 0.0
        %2125 = vmatprep.subr.mxu0 0.0
        %2126 = vmatpush1.msra.mxu0 %v2088
        %2127 = vmatprep.subr.mxu0 0.0
        %2128 = vmatpush1.msra.mxu0 %v2086
        %2129 = vmatprep.subr.mxu0 0.0
        %2130 = vmatpush2.msra.mxu0 0.0
        %2131 = vmatprep.subr.mxu0 0.0
        %2132 = vmatpush2.msra.mxu0 0.0
        %2133 = vmatprep.subr.mxu0 0.0
        %2134 = vmatpush2.msra.mxu0 0.0
        %2135 = vmatprep.subr.mxu0 0.0
        %2136 = vmatpush2.msra.mxu0 0.0
        %2137 = vmatprep.subr.mxu0 0.0
        %2138 = vmatpush2.msra.mxu0 0.0
        %2139 = vmatprep.subr.mxu0 0.0
        %2140 = vmatpush2.msra.mxu0 0.0
        %2141 = vmatprep.subr.mxu0 0.0
        %2142 = vmatpush2.msra.mxu0 0.0
        %2143 = vmatprep.subr.mxu0 0.0
        %2144 = vmatpush2.msra.mxu0 0.0
        %2145 = vmatprep.subr.mxu0 0.0
        %2146 = vmatpush2.msra.mxu0 0.0
        %2147 = vmatprep.subr.mxu0 0.0
        %2148 = vmatpush2.msra.mxu0 0.0
        %2149 = vmatprep.subr.mxu0 0.0
        %2150 = vmatpush2.msra.mxu0 0.0
        %2151 = vmatprep.subr.mxu0 0.0
        %2152 = vmatpush2.msra.mxu0 0.0
        %2153 = vmatprep.subr.mxu0 0.0
        %2154 = vmatpush2.msra.mxu0 0.0
        %2155 = vmatprep.subr.mxu0 0.0
        %2156 = vmatpush2.msra.mxu0 0.0
        %2157 = vmatprep.subr.mxu0 0.0
        %2158 = vmatpush2.msra.mxu0 0.0
        %2159 = vmatprep.subr.mxu0 0.0
        %2160 = vmatpush2.msra.mxu0 0.0
        %2161 = vmatprep.mubr.f32.mxu0 0.0
        %2162 = vmatmul.mubr.f32.gmra.mxu0 %v2092
        %v2163 = vpop.f32.mrf.mxu0
        %v2164 = vadd.f32 0.0, %v2163
        %v2165 = vpop.f32.mrf.mxu0
        %2166 = vmatprep.mubr.f32.mxu0 0.0
        %2167 = vmatmul.mubr.f32.gmra.mxu0 %v2095
        %v2168 = vpop.f32.mrf.mxu0
        %v2169 = vadd.f32 0.0, %v2168
        %v2170 = vpop.f32.mrf.mxu0
        %2171 = vdwg.mxu0
        %2174 = vrot.lane.b32.xlu0 %v1847, 64
        %v2175 = vpop.permute.xlu0 %2174
        %2176 = vrot.lane.b32.xlu0 %v1848, 64
        %v2177 = vpop.permute.xlu0 %2176
        %v2181 = vsel %vm1004, %v2080, 0
        %v2184 = vsel %vm1004, %v2082, 0
        %2186 = vmatprep.subr.mxu0 0.0
        %2187 = vmatpush1.msra.mxu0 0.0
        %2188 = vmatprep.subr.mxu0 0.0
        %2189 = vmatpush1.msra.mxu0 0.0
        %2190 = vmatprep.subr.mxu0 0.0
        %2191 = vmatpush1.msra.mxu0 0.0
        %2192 = vmatprep.subr.mxu0 0.0
        %2193 = vmatpush1.msra.mxu0 0.0
        %2194 = vmatprep.subr.mxu0 0.0
        %2195 = vmatpush1.msra.mxu0 0.0
        %2196 = vmatprep.subr.mxu0 0.0
        %2197 = vmatpush1.msra.mxu0 0.0
        %2198 = vmatprep.subr.mxu0 0.0
        %2199 = vmatpush1.msra.mxu0 0.0
        %2200 = vmatprep.subr.mxu0 0.0
        %2201 = vmatpush1.msra.mxu0 0.0
        %2202 = vmatprep.subr.mxu0 0.0
        %2203 = vmatpush1.msra.mxu0 0.0
        %2204 = vmatprep.subr.mxu0 0.0
        %2205 = vmatpush1.msra.mxu0 0.0
        %2206 = vmatprep.subr.mxu0 0.0
        %2207 = vmatpush1.msra.mxu0 0.0
        %2208 = vmatprep.subr.mxu0 0.0
        %2209 = vmatpush1.msra.mxu0 0.0
        %2210 = vmatprep.subr.mxu0 0.0
        %2211 = vmatpush1.msra.mxu0 0.0
        %2212 = vmatprep.subr.mxu0 0.0
        %2213 = vmatpush1.msra.mxu0 0.0
        %2214 = vmatprep.subr.mxu0 0.0
        %2215 = vmatpush1.msra.mxu0 %v2177
        %2216 = vmatprep.subr.mxu0 0.0
        %2217 = vmatpush1.msra.mxu0 %v2175
        %2218 = vmatprep.subr.mxu0 0.0
        %2219 = vmatpush2.msra.mxu0 0.0
        %2220 = vmatprep.subr.mxu0 0.0
        %2221 = vmatpush2.msra.mxu0 0.0
        %2222 = vmatprep.subr.mxu0 0.0
        %2223 = vmatpush2.msra.mxu0 0.0
        %2224 = vmatprep.subr.mxu0 0.0
        %2225 = vmatpush2.msra.mxu0 0.0
        %2226 = vmatprep.subr.mxu0 0.0
        %2227 = vmatpush2.msra.mxu0 0.0
        %2228 = vmatprep.subr.mxu0 0.0
        %2229 = vmatpush2.msra.mxu0 0.0
        %2230 = vmatprep.subr.mxu0 0.0
        %2231 = vmatpush2.msra.mxu0 0.0
        %2232 = vmatprep.subr.mxu0 0.0
        %2233 = vmatpush2.msra.mxu0 0.0
        %2234 = vmatprep.subr.mxu0 0.0
        %2235 = vmatpush2.msra.mxu0 0.0
        %2236 = vmatprep.subr.mxu0 0.0
        %2237 = vmatpush2.msra.mxu0 0.0
        %2238 = vmatprep.subr.mxu0 0.0
        %2239 = vmatpush2.msra.mxu0 0.0
        %2240 = vmatprep.subr.mxu0 0.0
        %2241 = vmatpush2.msra.mxu0 0.0
        %2242 = vmatprep.subr.mxu0 0.0
        %2243 = vmatpush2.msra.mxu0 0.0
        %2244 = vmatprep.subr.mxu0 0.0
        %2245 = vmatpush2.msra.mxu0 0.0
        %2246 = vmatprep.subr.mxu0 0.0
        %2247 = vmatpush2.msra.mxu0 0.0
        %2248 = vmatprep.subr.mxu0 0.0
        %2249 = vmatpush2.msra.mxu0 0.0
        %2250 = vmatprep.mubr.f32.mxu0 0.0
        %2251 = vmatmul.mubr.f32.gmra.mxu0 %v2181
        %v2252 = vpop.f32.mrf.mxu0
        %v2253 = vadd.f32 0.0, %v2252
        %v2254 = vpop.f32.mrf.mxu0
        %2255 = vmatprep.mubr.f32.mxu0 0.0
        %2256 = vmatmul.mubr.f32.gmra.mxu0 %v2184
        %v2257 = vpop.f32.mrf.mxu0
        %v2258 = vadd.f32 0.0, %v2257
        %v2259 = vpop.f32.mrf.mxu0
        %2260 = vdwg.mxu0
        %v2261 = vld [vmem:[#allocation11 + $0x40] sm:$0xff]
        %v2262 = vld [vmem:[#allocation11 + $0x48] sm:$0xff]
        %v2263 = vld [vmem:[#allocation11 + $0x50] sm:$0xff]
        %v2264 = vld [vmem:[#allocation11 + $0x58] sm:$0xff]
        %v2266 = vsel %vm829, %v2164, 0
        %v2269 = vsel %vm829, %v2169, 0
        %v2272 = vsel %vm829, %v2253, 0
        %v2275 = vsel %vm829, %v2258, 0
        %2277 = vmatprep.subr.mxu0 0.0
        %2278 = vmatpush1.msra.mxu0 0.0
        %2279 = vmatprep.subr.mxu0 0.0
        %2280 = vmatpush1.msra.mxu0 0.0
        %2281 = vmatprep.subr.mxu0 0.0
        %2282 = vmatpush1.msra.mxu0 0.0
        %2283 = vmatprep.subr.mxu0 0.0
        %2284 = vmatpush1.msra.mxu0 0.0
        %2285 = vmatprep.subr.mxu0 0.0
        %2286 = vmatpush1.msra.mxu0 0.0
        %2287 = vmatprep.subr.mxu0 0.0
        %2288 = vmatpush1.msra.mxu0 0.0
        %2289 = vmatprep.subr.mxu0 0.0
        %2290 = vmatpush1.msra.mxu0 0.0
        %2291 = vmatprep.subr.mxu0 0.0
        %2292 = vmatpush1.msra.mxu0 0.0
        %2293 = vmatprep.subr.mxu0 0.0
        %2294 = vmatpush1.msra.mxu0 0.0
        %2295 = vmatprep.subr.mxu0 0.0
        %2296 = vmatpush1.msra.mxu0 0.0
        %2297 = vmatprep.subr.mxu0 0.0
        %2298 = vmatpush1.msra.mxu0 0.0
        %2299 = vmatprep.subr.mxu0 0.0
        %2300 = vmatpush1.msra.mxu0 0.0
        %2301 = vmatprep.subr.mxu0 0.0
        %2302 = vmatpush1.msra.mxu0 %v2264
        %2303 = vmatprep.subr.mxu0 0.0
        %2304 = vmatpush1.msra.mxu0 %v2263
        %2305 = vmatprep.subr.mxu0 0.0
        %2306 = vmatpush1.msra.mxu0 %v2262
        %2307 = vmatprep.subr.mxu0 0.0
        %2308 = vmatpush1.msra.mxu0 %v2261
        %2309 = vmatprep.subr.mxu0 0.0
        %2310 = vmatpush2.msra.mxu0 0.0
        %2311 = vmatprep.subr.mxu0 0.0
        %2312 = vmatpush2.msra.mxu0 0.0
        %2313 = vmatprep.subr.mxu0 0.0
        %2314 = vmatpush2.msra.mxu0 0.0
        %2315 = vmatprep.subr.mxu0 0.0
        %2316 = vmatpush2.msra.mxu0 0.0
        %2317 = vmatprep.subr.mxu0 0.0
        %2318 = vmatpush2.msra.mxu0 0.0
        %2319 = vmatprep.subr.mxu0 0.0
        %2320 = vmatpush2.msra.mxu0 0.0
        %2321 = vmatprep.subr.mxu0 0.0
        %2322 = vmatpush2.msra.mxu0 0.0
        %2323 = vmatprep.subr.mxu0 0.0
        %2324 = vmatpush2.msra.mxu0 0.0
        %2325 = vmatprep.subr.mxu0 0.0
        %2326 = vmatpush2.msra.mxu0 0.0
        %2327 = vmatprep.subr.mxu0 0.0
        %2328 = vmatpush2.msra.mxu0 0.0
        %2329 = vmatprep.subr.mxu0 0.0
        %2330 = vmatpush2.msra.mxu0 0.0
        %2331 = vmatprep.subr.mxu0 0.0
        %2332 = vmatpush2.msra.mxu0 0.0
        %2333 = vmatprep.subr.mxu0 0.0
        %2334 = vmatpush2.msra.mxu0 0.0
        %2335 = vmatprep.subr.mxu0 0.0
        %2336 = vmatpush2.msra.mxu0 0.0
        %2337 = vmatprep.subr.mxu0 0.0
        %2338 = vmatpush2.msra.mxu0 0.0
        %2339 = vmatprep.subr.mxu0 0.0
        %2340 = vmatpush2.msra.mxu0 0.0
        %2341 = vmatprep.mubr.f32.mxu0 0.0
        %2342 = vmatmul.mubr.f32.gmra.mxu0 %v2266
        %v2343 = vpop.f32.mrf.mxu0
        %v2344 = vadd.f32 0.0, %v2343
        %v2345 = vpop.f32.mrf.mxu0
        %2346 = vmatprep.mubr.f32.mxu0 0.0
        %2347 = vmatmul.mubr.f32.gmra.mxu0 %v2269
        %v2348 = vpop.f32.mrf.mxu0
        %v2349 = vadd.f32 0.0, %v2348
        %v2350 = vpop.f32.mrf.mxu0
        %2351 = vmatprep.mubr.f32.mxu0 0.0
        %2352 = vmatmul.mubr.f32.gmra.mxu0 %v2272
        %v2353 = vpop.f32.mrf.mxu0
        %v2354 = vadd.f32 0.0, %v2353
        %v2355 = vpop.f32.mrf.mxu0
        %2356 = vmatprep.mubr.f32.mxu0 0.0
        %2357 = vmatmul.mubr.f32.gmra.mxu0 %v2275
        %v2358 = vpop.f32.mrf.mxu0
        %v2359 = vadd.f32 0.0, %v2358
        %v2360 = vpop.f32.mrf.mxu0
        %2361 = vdwg.mxu0
        %v2362 = vadd.f32 %v1819, %v2344
        %v2363 = vadd.f32 %v1824, %v2349
        %v2364 = vadd.f32 %v1829, %v2354
        %v2365 = vadd.f32 %v1834, %v2359
        %v2366 = vld [vmem:[#allocation2] sm:$0xff]
        %v2367 = vld [vmem:[#allocation2 + $0x18] sm:$0xff]
        %v2368 = vld [vmem:[#allocation2 + $0x30] sm:$0xff]
        %v2369 = vld [vmem:[#allocation2 + $0x48] sm:$0xff]
        %v2370 = vld [vmem:[#allocation2 + $0x8] sm:$0xff]
        %v2371 = vld [vmem:[#allocation2 + $0x20] sm:$0xff]
        %v2372 = vld [vmem:[#allocation2 + $0x38] sm:$0xff]
        %v2373 = vld [vmem:[#allocation2 + $0x50] sm:$0xff]
        %v2374 = vld [vmem:[#allocation2 + $0x10] sm:$0xff]
        %v2375 = vld [vmem:[#allocation2 + $0x28] sm:$0xff]
        %v2376 = vld [vmem:[#allocation2 + $0x40] sm:$0xff]
        %v2377 = vld [vmem:[#allocation2 + $0x58] sm:$0xff]
        %2380 = vrot.lane.b32.xlu0 %v2366, 32
        %v2381 = vpop.permute.xlu0 %2380
        %2382 = vrot.lane.b32.xlu0 %v2367, 32
        %v2383 = vpop.permute.xlu0 %2382
        %2386 = vrot.lane.b32.xlu0 %v2370, 32
        %v2387 = vpop.permute.xlu0 %2386
        %2388 = vrot.lane.b32.xlu0 %v2371, 32
        %v2389 = vpop.permute.xlu0 %2388
        %v2390 = vsel %vm829, %v2381, 0
        %v2392 = vsel %vm829, %v2383, 0
        %v2394 = vsel %vm829, %v2387, 0
        %v2396 = vsel %vm829, %v2389, 0
        %2398 = vmatprep.subr.mxu0 0.0
        %2399 = vmatpush1.xpose.msra.mxu0 0.0
        %2400 = vmatprep.subr.mxu0 0.0
        %2401 = vmatpush1.xpose.msra.mxu0 0.0
        %2402 = vmatprep.subr.mxu0 0.0
        %2403 = vmatpush1.xpose.msra.mxu0 0.0
        %2404 = vmatprep.subr.mxu0 0.0
        %2405 = vmatpush1.xpose.msra.mxu0 0.0
        %2406 = vmatprep.subr.mxu0 0.0
        %2407 = vmatpush1.xpose.msra.mxu0 0.0
        %2408 = vmatprep.subr.mxu0 0.0
        %2409 = vmatpush1.xpose.msra.mxu0 0.0
        %2410 = vmatprep.subr.mxu0 0.0
        %2411 = vmatpush1.xpose.msra.mxu0 0.0
        %2412 = vmatprep.subr.mxu0 0.0
        %2413 = vmatpush1.xpose.msra.mxu0 0.0
        %2414 = vmatprep.subr.mxu0 0.0
        %2415 = vmatpush1.xpose.msra.mxu0 0.0
        %2416 = vmatprep.subr.mxu0 0.0
        %2417 = vmatpush1.xpose.msra.mxu0 0.0
        %2418 = vmatprep.subr.mxu0 0.0
        %2419 = vmatpush1.xpose.msra.mxu0 0.0
        %2420 = vmatprep.subr.mxu0 0.0
        %2421 = vmatpush1.xpose.msra.mxu0 0.0
        %2422 = vmatprep.subr.mxu0 0.0
        %2423 = vmatpush1.xpose.msra.mxu0 0.0
        %2424 = vmatprep.subr.mxu0 0.0
        %2425 = vmatpush1.xpose.msra.mxu0 0.0
        %2426 = vmatprep.subr.mxu0 0.0
        %2427 = vmatpush1.xpose.msra.mxu0 %v2396
        %2428 = vmatprep.subr.mxu0 0.0
        %2429 = vmatpush1.xpose.msra.mxu0 %v2394
        %2430 = vmatprep.subr.mxu0 0.0
        %2431 = vmatpush2.xpose.msra.mxu0 0.0
        %2432 = vmatprep.subr.mxu0 0.0
        %2433 = vmatpush2.xpose.msra.mxu0 0.0
        %2434 = vmatprep.subr.mxu0 0.0
        %2435 = vmatpush2.xpose.msra.mxu0 0.0
        %2436 = vmatprep.subr.mxu0 0.0
        %2437 = vmatpush2.xpose.msra.mxu0 0.0
        %2438 = vmatprep.subr.mxu0 0.0
        %2439 = vmatpush2.xpose.msra.mxu0 0.0
        %2440 = vmatprep.subr.mxu0 0.0
        %2441 = vmatpush2.xpose.msra.mxu0 0.0
        %2442 = vmatprep.subr.mxu0 0.0
        %2443 = vmatpush2.xpose.msra.mxu0 0.0
        %2444 = vmatprep.subr.mxu0 0.0
        %2445 = vmatpush2.xpose.msra.mxu0 0.0
        %2446 = vmatprep.subr.mxu0 0.0
        %2447 = vmatpush2.xpose.msra.mxu0 0.0
        %2448 = vmatprep.subr.mxu0 0.0
        %2449 = vmatpush2.xpose.msra.mxu0 0.0
        %2450 = vmatprep.subr.mxu0 0.0
        %2451 = vmatpush2.xpose.msra.mxu0 0.0
        %2452 = vmatprep.subr.mxu0 0.0
        %2453 = vmatpush2.xpose.msra.mxu0 0.0
        %2454 = vmatprep.subr.mxu0 0.0
        %2455 = vmatpush2.xpose.msra.mxu0 0.0
        %2456 = vmatprep.subr.mxu0 0.0
        %2457 = vmatpush2.xpose.msra.mxu0 0.0
        %2458 = vmatprep.subr.mxu0 0.0
        %2459 = vmatpush2.xpose.msra.mxu0 0.0
        %2460 = vmatprep.subr.mxu0 0.0
        %2461 = vmatpush2.xpose.msra.mxu0 0.0
        %2462 = vmatprep.mubr.f32.mxu0 0.0
        %2463 = vmatmul.mubr.f32.gmra.mxu0 %v2390
        %v2464 = vpop.f32.mrf.mxu0
        %v2465 = vadd.f32 0.0, %v2464
        %v2466 = vpop.f32.mrf.mxu0
        %2467 = vmatprep.mubr.f32.mxu0 0.0
        %2468 = vmatmul.mubr.f32.gmra.mxu0 %v2392
        %v2469 = vpop.f32.mrf.mxu0
        %v2470 = vadd.f32 0.0, %v2469
        %v2471 = vpop.f32.mrf.mxu0
        %2472 = vdwg.mxu0
        %2475 = vrot.lane.b32.xlu0 %v2368, 32
        %v2476 = vpop.permute.xlu0 %2475
        %2477 = vrot.lane.b32.xlu0 %v2369, 32
        %v2478 = vpop.permute.xlu0 %2477
        %2481 = vrot.lane.b32.xlu0 %v2372, 32
        %v2482 = vpop.permute.xlu0 %2481
        %2483 = vrot.lane.b32.xlu0 %v2373, 32
        %v2484 = vpop.permute.xlu0 %2483
        %v2485 = vsel %vm829, %v2476, 0
        %v2487 = vsel %vm829, %v2478, 0
        %v2489 = vsel %vm829, %v2482, 0
        %v2491 = vsel %vm829, %v2484, 0
        %2493 = vmatprep.subr.mxu0 0.0
        %2494 = vmatpush1.xpose.msra.mxu0 0.0
        %2495 = vmatprep.subr.mxu0 0.0
        %2496 = vmatpush1.xpose.msra.mxu0 0.0
        %2497 = vmatprep.subr.mxu0 0.0
        %2498 = vmatpush1.xpose.msra.mxu0 0.0
        %2499 = vmatprep.subr.mxu0 0.0
        %2500 = vmatpush1.xpose.msra.mxu0 0.0
        %2501 = vmatprep.subr.mxu0 0.0
        %2502 = vmatpush1.xpose.msra.mxu0 0.0
        %2503 = vmatprep.subr.mxu0 0.0
        %2504 = vmatpush1.xpose.msra.mxu0 0.0
        %2505 = vmatprep.subr.mxu0 0.0
        %2506 = vmatpush1.xpose.msra.mxu0 0.0
        %2507 = vmatprep.subr.mxu0 0.0
        %2508 = vmatpush1.xpose.msra.mxu0 0.0
        %2509 = vmatprep.subr.mxu0 0.0
        %2510 = vmatpush1.xpose.msra.mxu0 0.0
        %2511 = vmatprep.subr.mxu0 0.0
        %2512 = vmatpush1.xpose.msra.mxu0 0.0
        %2513 = vmatprep.subr.mxu0 0.0
        %2514 = vmatpush1.xpose.msra.mxu0 0.0
        %2515 = vmatprep.subr.mxu0 0.0
        %2516 = vmatpush1.xpose.msra.mxu0 0.0
        %2517 = vmatprep.subr.mxu0 0.0
        %2518 = vmatpush1.xpose.msra.mxu0 0.0
        %2519 = vmatprep.subr.mxu0 0.0
        %2520 = vmatpush1.xpose.msra.mxu0 0.0
        %2521 = vmatprep.subr.mxu0 0.0
        %2522 = vmatpush1.xpose.msra.mxu0 %v2491
        %2523 = vmatprep.subr.mxu0 0.0
        %2524 = vmatpush1.xpose.msra.mxu0 %v2489
        %2525 = vmatprep.subr.mxu0 0.0
        %2526 = vmatpush2.xpose.msra.mxu0 0.0
        %2527 = vmatprep.subr.mxu0 0.0
        %2528 = vmatpush2.xpose.msra.mxu0 0.0
        %2529 = vmatprep.subr.mxu0 0.0
        %2530 = vmatpush2.xpose.msra.mxu0 0.0
        %2531 = vmatprep.subr.mxu0 0.0
        %2532 = vmatpush2.xpose.msra.mxu0 0.0
        %2533 = vmatprep.subr.mxu0 0.0
        %2534 = vmatpush2.xpose.msra.mxu0 0.0
        %2535 = vmatprep.subr.mxu0 0.0
        %2536 = vmatpush2.xpose.msra.mxu0 0.0
        %2537 = vmatprep.subr.mxu0 0.0
        %2538 = vmatpush2.xpose.msra.mxu0 0.0
        %2539 = vmatprep.subr.mxu0 0.0
        %2540 = vmatpush2.xpose.msra.mxu0 0.0
        %2541 = vmatprep.subr.mxu0 0.0
        %2542 = vmatpush2.xpose.msra.mxu0 0.0
        %2543 = vmatprep.subr.mxu0 0.0
        %2544 = vmatpush2.xpose.msra.mxu0 0.0
        %2545 = vmatprep.subr.mxu0 0.0
        %2546 = vmatpush2.xpose.msra.mxu0 0.0
        %2547 = vmatprep.subr.mxu0 0.0
        %2548 = vmatpush2.xpose.msra.mxu0 0.0
        %2549 = vmatprep.subr.mxu0 0.0
        %2550 = vmatpush2.xpose.msra.mxu0 0.0
        %2551 = vmatprep.subr.mxu0 0.0
        %2552 = vmatpush2.xpose.msra.mxu0 0.0
        %2553 = vmatprep.subr.mxu0 0.0
        %2554 = vmatpush2.xpose.msra.mxu0 0.0
        %2555 = vmatprep.subr.mxu0 0.0
        %2556 = vmatpush2.xpose.msra.mxu0 0.0
        %2557 = vmatprep.mubr.f32.mxu0 0.0
        %2558 = vmatmul.mubr.f32.gmra.mxu0 %v2485
        %v2559 = vpop.f32.mrf.mxu0
        %v2560 = vadd.f32 0.0, %v2559
        %v2561 = vpop.f32.mrf.mxu0
        %2562 = vmatprep.mubr.f32.mxu0 0.0
        %2563 = vmatmul.mubr.f32.gmra.mxu0 %v2487
        %v2564 = vpop.f32.mrf.mxu0
        %v2565 = vadd.f32 0.0, %v2564
        %v2566 = vpop.f32.mrf.mxu0
        %2567 = vdwg.mxu0
        %v2568 = vsel %vm1004, %v2465, -inf
        %2569 = vmax.xlane.f32.xlu0 %v2568
        %v2570 = vpop.xlane.xlu0 %2569
        %v2571 = vsel %vm1004, %v2470, -inf
        %2572 = vmax.xlane.f32.xlu0 %v2571
        %v2573 = vpop.xlane.xlu0 %2572
        %v2574 = vsel %vm1004, %v2560, -inf
        %2575 = vmax.xlane.f32.xlu0 %v2574
        %v2576 = vpop.xlane.xlu0 %2575
        %v2577 = vsel %vm1004, %v2565, -inf
        %2578 = vmax.xlane.f32.xlu0 %v2577
        %v2579 = vpop.xlane.xlu0 %2578
        %v2580 = vsub.f32 %v2465, %v2570
        %v2581 = vsub.f32 %v2470, %v2573
        %v2582 = vsub.f32 %v2560, %v2576
        %v2583 = vsub.f32 %v2565, %v2579
        %v2584 = vmul.f32 %v2580, 1.442695
        %v2585 = vpow.pop %v2584
        %v2586 = vmul.f32 %v2581, 1.442695
        %v2587 = vpow.pop %v2586
        %v2588 = vmul.f32 %v2582, 1.442695
        %v2589 = vpow.pop %v2588
        %v2590 = vmul.f32 %v2583, 1.442695
        %v2591 = vpow.pop %v2590
        %v2592 = vsel %vm1004, %v2585, 0.0
        %2593 = vadd.xlane.f32.xlu0 %v2592
        %v2594 = vpop.xlane.xlu0 %2593
        %v2595 = vsel %vm1004, %v2587, 0.0
        %2596 = vadd.xlane.f32.xlu0 %v2595
        %v2597 = vpop.xlane.xlu0 %2596
        %v2598 = vsel %vm1004, %v2589, 0.0
        %2599 = vadd.xlane.f32.xlu0 %v2598
        %v2600 = vpop.xlane.xlu0 %2599
        %v2601 = vsel %vm1004, %v2591, 0.0
        %2602 = vadd.xlane.f32.xlu0 %v2601
        %v2603 = vpop.xlane.xlu0 %2602
        %v2604 = vrcp.pop %v2594
        %v2605 = vmul.f32 %v2585, %v2604
        %v2606 = vrcp.pop %v2597
        %v2607 = vmul.f32 %v2587, %v2606
        %v2608 = vrcp.pop %v2600
        %v2609 = vmul.f32 %v2589, %v2608
        %v2610 = vrcp.pop %v2603
        %v2611 = vmul.f32 %v2591, %v2610
        %2614 = vrot.lane.b32.xlu0 %v2374, 32
        %v2615 = vpop.permute.xlu0 %2614
        %2616 = vrot.lane.b32.xlu0 %v2375, 32
        %v2617 = vpop.permute.xlu0 %2616
        %v2621 = vsel %vm1004, %v2605, 0
        %v2624 = vsel %vm1004, %v2607, 0
        %2626 = vmatprep.subr.mxu0 0.0
        %2627 = vmatpush1.msra.mxu0 0.0
        %2628 = vmatprep.subr.mxu0 0.0
        %2629 = vmatpush1.msra.mxu0 0.0
        %2630 = vmatprep.subr.mxu0 0.0
        %2631 = vmatpush1.msra.mxu0 0.0
        %2632 = vmatprep.subr.mxu0 0.0
        %2633 = vmatpush1.msra.mxu0 0.0
        %2634 = vmatprep.subr.mxu0 0.0
        %2635 = vmatpush1.msra.mxu0 0.0
        %2636 = vmatprep.subr.mxu0 0.0
        %2637 = vmatpush1.msra.mxu0 0.0
        %2638 = vmatprep.subr.mxu0 0.0
        %2639 = vmatpush1.msra.mxu0 0.0
        %2640 = vmatprep.subr.mxu0 0.0
        %2641 = vmatpush1.msra.mxu0 0.0
        %2642 = vmatprep.subr.mxu0 0.0
        %2643 = vmatpush1.msra.mxu0 0.0
        %2644 = vmatprep.subr.mxu0 0.0
        %2645 = vmatpush1.msra.mxu0 0.0
        %2646 = vmatprep.subr.mxu0 0.0
        %2647 = vmatpush1.msra.mxu0 0.0
        %2648 = vmatprep.subr.mxu0 0.0
        %2649 = vmatpush1.msra.mxu0 0.0
        %2650 = vmatprep.subr.mxu0 0.0
        %2651 = vmatpush1.msra.mxu0 0.0
        %2652 = vmatprep.subr.mxu0 0.0
        %2653 = vmatpush1.msra.mxu0 0.0
        %2654 = vmatprep.subr.mxu0 0.0
        %2655 = vmatpush1.msra.mxu0 %v2617
        %2656 = vmatprep.subr.mxu0 0.0
        %2657 = vmatpush1.msra.mxu0 %v2615
        %2658 = vmatprep.subr.mxu0 0.0
        %2659 = vmatpush2.msra.mxu0 0.0
        %2660 = vmatprep.subr.mxu0 0.0
        %2661 = vmatpush2.msra.mxu0 0.0
        %2662 = vmatprep.subr.mxu0 0.0
        %2663 = vmatpush2.msra.mxu0 0.0
        %2664 = vmatprep.subr.mxu0 0.0
        %2665 = vmatpush2.msra.mxu0 0.0
        %2666 = vmatprep.subr.mxu0 0.0
        %2667 = vmatpush2.msra.mxu0 0.0
        %2668 = vmatprep.subr.mxu0 0.0
        %2669 = vmatpush2.msra.mxu0 0.0
        %2670 = vmatprep.subr.mxu0 0.0
        %2671 = vmatpush2.msra.mxu0 0.0
        %2672 = vmatprep.subr.mxu0 0.0
        %2673 = vmatpush2.msra.mxu0 0.0
        %2674 = vmatprep.subr.mxu0 0.0
        %2675 = vmatpush2.msra.mxu0 0.0
        %2676 = vmatprep.subr.mxu0 0.0
        %2677 = vmatpush2.msra.mxu0 0.0
        %2678 = vmatprep.subr.mxu0 0.0
        %2679 = vmatpush2.msra.mxu0 0.0
        %2680 = vmatprep.subr.mxu0 0.0
        %2681 = vmatpush2.msra.mxu0 0.0
        %2682 = vmatprep.subr.mxu0 0.0
        %2683 = vmatpush2.msra.mxu0 0.0
        %2684 = vmatprep.subr.mxu0 0.0
        %2685 = vmatpush2.msra.mxu0 0.0
        %2686 = vmatprep.subr.mxu0 0.0
        %2687 = vmatpush2.msra.mxu0 0.0
        %2688 = vmatprep.subr.mxu0 0.0
        %2689 = vmatpush2.msra.mxu0 0.0
        %2690 = vmatprep.mubr.f32.mxu0 0.0
        %2691 = vmatmul.mubr.f32.gmra.mxu0 %v2621
        %v2692 = vpop.f32.mrf.mxu0
        %v2693 = vadd.f32 0.0, %v2692
        %v2694 = vpop.f32.mrf.mxu0
        %2695 = vmatprep.mubr.f32.mxu0 0.0
        %2696 = vmatmul.mubr.f32.gmra.mxu0 %v2624
        %v2697 = vpop.f32.mrf.mxu0
        %v2698 = vadd.f32 0.0, %v2697
        %v2699 = vpop.f32.mrf.mxu0
        %2700 = vdwg.mxu0
        %2703 = vrot.lane.b32.xlu0 %v2376, 32
        %v2704 = vpop.permute.xlu0 %2703
        %2705 = vrot.lane.b32.xlu0 %v2377, 32
        %v2706 = vpop.permute.xlu0 %2705
        %v2710 = vsel %vm1004, %v2609, 0
        %v2713 = vsel %vm1004, %v2611, 0
        %2715 = vmatprep.subr.mxu0 0.0
        %2716 = vmatpush1.msra.mxu0 0.0
        %2717 = vmatprep.subr.mxu0 0.0
        %2718 = vmatpush1.msra.mxu0 0.0
        %2719 = vmatprep.subr.mxu0 0.0
        %2720 = vmatpush1.msra.mxu0 0.0
        %2721 = vmatprep.subr.mxu0 0.0
        %2722 = vmatpush1.msra.mxu0 0.0
        %2723 = vmatprep.subr.mxu0 0.0
        %2724 = vmatpush1.msra.mxu0 0.0
        %2725 = vmatprep.subr.mxu0 0.0
        %2726 = vmatpush1.msra.mxu0 0.0
        %2727 = vmatprep.subr.mxu0 0.0
        %2728 = vmatpush1.msra.mxu0 0.0
        %2729 = vmatprep.subr.mxu0 0.0
        %2730 = vmatpush1.msra.mxu0 0.0
        %2731 = vmatprep.subr.mxu0 0.0
        %2732 = vmatpush1.msra.mxu0 0.0
        %2733 = vmatprep.subr.mxu0 0.0
        %2734 = vmatpush1.msra.mxu0 0.0
        %2735 = vmatprep.subr.mxu0 0.0
        %2736 = vmatpush1.msra.mxu0 0.0
        %2737 = vmatprep.subr.mxu0 0.0
        %2738 = vmatpush1.msra.mxu0 0.0
        %2739 = vmatprep.subr.mxu0 0.0
        %2740 = vmatpush1.msra.mxu0 0.0
        %2741 = vmatprep.subr.mxu0 0.0
        %2742 = vmatpush1.msra.mxu0 0.0
        %2743 = vmatprep.subr.mxu0 0.0
        %2744 = vmatpush1.msra.mxu0 %v2706
        %2745 = vmatprep.subr.mxu0 0.0
        %2746 = vmatpush1.msra.mxu0 %v2704
        %2747 = vmatprep.subr.mxu0 0.0
        %2748 = vmatpush2.msra.mxu0 0.0
        %2749 = vmatprep.subr.mxu0 0.0
        %2750 = vmatpush2.msra.mxu0 0.0
        %2751 = vmatprep.subr.mxu0 0.0
        %2752 = vmatpush2.msra.mxu0 0.0
        %2753 = vmatprep.subr.mxu0 0.0
        %2754 = vmatpush2.msra.mxu0 0.0
        %2755 = vmatprep.subr.mxu0 0.0
        %2756 = vmatpush2.msra.mxu0 0.0
        %2757 = vmatprep.subr.mxu0 0.0
        %2758 = vmatpush2.msra.mxu0 0.0
        %2759 = vmatprep.subr.mxu0 0.0
        %2760 = vmatpush2.msra.mxu0 0.0
        %2761 = vmatprep.subr.mxu0 0.0
        %2762 = vmatpush2.msra.mxu0 0.0
        %2763 = vmatprep.subr.mxu0 0.0
        %2764 = vmatpush2.msra.mxu0 0.0
        %2765 = vmatprep.subr.mxu0 0.0
        %2766 = vmatpush2.msra.mxu0 0.0
        %2767 = vmatprep.subr.mxu0 0.0
        %2768 = vmatpush2.msra.mxu0 0.0
        %2769 = vmatprep.subr.mxu0 0.0
        %2770 = vmatpush2.msra.mxu0 0.0
        %2771 = vmatprep.subr.mxu0 0.0
        %2772 = vmatpush2.msra.mxu0 0.0
        %2773 = vmatprep.subr.mxu0 0.0
        %2774 = vmatpush2.msra.mxu0 0.0
        %2775 = vmatprep.subr.mxu0 0.0
        %2776 = vmatpush2.msra.mxu0 0.0
        %2777 = vmatprep.subr.mxu0 0.0
        %2778 = vmatpush2.msra.mxu0 0.0
        %2779 = vmatprep.mubr.f32.mxu0 0.0
        %2780 = vmatmul.mubr.f32.gmra.mxu0 %v2710
        %v2781 = vpop.f32.mrf.mxu0
        %v2782 = vadd.f32 0.0, %v2781
        %v2783 = vpop.f32.mrf.mxu0
        %2784 = vmatprep.mubr.f32.mxu0 0.0
        %2785 = vmatmul.mubr.f32.gmra.mxu0 %v2713
        %v2786 = vpop.f32.mrf.mxu0
        %v2787 = vadd.f32 0.0, %v2786
        %v2788 = vpop.f32.mrf.mxu0
        %2789 = vdwg.mxu0
        %v2790 = vld [vmem:[#allocation11 + $0x60] sm:$0xff]
        %v2791 = vld [vmem:[#allocation11 + $0x68] sm:$0xff]
        %v2792 = vld [vmem:[#allocation11 + $0x70] sm:$0xff]
        %v2793 = vld [vmem:[#allocation11 + $0x78] sm:$0xff]
        %v2795 = vsel %vm829, %v2693, 0
        %v2798 = vsel %vm829, %v2698, 0
        %v2801 = vsel %vm829, %v2782, 0
        %v2804 = vsel %vm829, %v2787, 0
        %2806 = vmatprep.subr.mxu0 0.0
        %2807 = vmatpush1.msra.mxu0 0.0
        %2808 = vmatprep.subr.mxu0 0.0
        %2809 = vmatpush1.msra.mxu0 0.0
        %2810 = vmatprep.subr.mxu0 0.0
        %2811 = vmatpush1.msra.mxu0 0.0
        %2812 = vmatprep.subr.mxu0 0.0
        %2813 = vmatpush1.msra.mxu0 0.0
        %2814 = vmatprep.subr.mxu0 0.0
        %2815 = vmatpush1.msra.mxu0 0.0
        %2816 = vmatprep.subr.mxu0 0.0
        %2817 = vmatpush1.msra.mxu0 0.0
        %2818 = vmatprep.subr.mxu0 0.0
        %2819 = vmatpush1.msra.mxu0 0.0
        %2820 = vmatprep.subr.mxu0 0.0
        %2821 = vmatpush1.msra.mxu0 0.0
        %2822 = vmatprep.subr.mxu0 0.0
        %2823 = vmatpush1.msra.mxu0 0.0
        %2824 = vmatprep.subr.mxu0 0.0
        %2825 = vmatpush1.msra.mxu0 0.0
        %2826 = vmatprep.subr.mxu0 0.0
        %2827 = vmatpush1.msra.mxu0 0.0
        %2828 = vmatprep.subr.mxu0 0.0
        %2829 = vmatpush1.msra.mxu0 0.0
        %2830 = vmatprep.subr.mxu0 0.0
        %2831 = vmatpush1.msra.mxu0 %v2793
        %2832 = vmatprep.subr.mxu0 0.0
        %2833 = vmatpush1.msra.mxu0 %v2792
        %2834 = vmatprep.subr.mxu0 0.0
        %2835 = vmatpush1.msra.mxu0 %v2791
        %2836 = vmatprep.subr.mxu0 0.0
        %2837 = vmatpush1.msra.mxu0 %v2790
        %2838 = vmatprep.subr.mxu0 0.0
        %2839 = vmatpush2.msra.mxu0 0.0
        %2840 = vmatprep.subr.mxu0 0.0
        %2841 = vmatpush2.msra.mxu0 0.0
        %2842 = vmatprep.subr.mxu0 0.0
        %2843 = vmatpush2.msra.mxu0 0.0
        %2844 = vmatprep.subr.mxu0 0.0
        %2845 = vmatpush2.msra.mxu0 0.0
        %2846 = vmatprep.subr.mxu0 0.0
        %2847 = vmatpush2.msra.mxu0 0.0
        %2848 = vmatprep.subr.mxu0 0.0
        %2849 = vmatpush2.msra.mxu0 0.0
        %2850 = vmatprep.subr.mxu0 0.0
        %2851 = vmatpush2.msra.mxu0 0.0
        %2852 = vmatprep.subr.mxu0 0.0
        %2853 = vmatpush2.msra.mxu0 0.0
        %2854 = vmatprep.subr.mxu0 0.0
        %2855 = vmatpush2.msra.mxu0 0.0
        %2856 = vmatprep.subr.mxu0 0.0
        %2857 = vmatpush2.msra.mxu0 0.0
        %2858 = vmatprep.subr.mxu0 0.0
        %2859 = vmatpush2.msra.mxu0 0.0
        %2860 = vmatprep.subr.mxu0 0.0
        %2861 = vmatpush2.msra.mxu0 0.0
        %2862 = vmatprep.subr.mxu0 0.0
        %2863 = vmatpush2.msra.mxu0 0.0
        %2864 = vmatprep.subr.mxu0 0.0
        %2865 = vmatpush2.msra.mxu0 0.0
        %2866 = vmatprep.subr.mxu0 0.0
        %2867 = vmatpush2.msra.mxu0 0.0
        %2868 = vmatprep.subr.mxu0 0.0
        %2869 = vmatpush2.msra.mxu0 0.0
        %2870 = vmatprep.mubr.f32.mxu0 0.0
        %2871 = vmatmul.mubr.f32.gmra.mxu0 %v2795
        %v2872 = vpop.f32.mrf.mxu0
        %v2873 = vadd.f32 0.0, %v2872
        %v2874 = vpop.f32.mrf.mxu0
        %2875 = vmatprep.mubr.f32.mxu0 0.0
        %2876 = vmatmul.mubr.f32.gmra.mxu0 %v2798
        %v2877 = vpop.f32.mrf.mxu0
        %v2878 = vadd.f32 0.0, %v2877
        %v2879 = vpop.f32.mrf.mxu0
        %2880 = vmatprep.mubr.f32.mxu0 0.0
        %2881 = vmatmul.mubr.f32.gmra.mxu0 %v2801
        %v2882 = vpop.f32.mrf.mxu0
        %v2883 = vadd.f32 0.0, %v2882
        %v2884 = vpop.f32.mrf.mxu0
        %2885 = vmatprep.mubr.f32.mxu0 0.0
        %2886 = vmatmul.mubr.f32.gmra.mxu0 %v2804
        %v2887 = vpop.f32.mrf.mxu0
        %v2888 = vadd.f32 0.0, %v2887
        %v2889 = vpop.f32.mrf.mxu0
        %2890 = vdwg.mxu0
        %v2891 = vadd.f32 %v2362, %v2873
        %v2892 = vadd.f32 %v2363, %v2878
        %v2893 = vadd.f32 %v2364, %v2883
        %v2894 = vadd.f32 %v2365, %v2888
        %v2895 = vld [vmem:[%s6] sm:$0x1]
        %v2897 = vlaneseq
        %v2898 = vshrl.u32 %v2897, 7
        %v2899 = vsub.s32 0, %v2898
        %v2900 = vrot.slane %v2895, %v2899
        %v2902 = vadd.f32 %v2891, %v2900
        %v2903 = vadd.f32 %v2892, %v2900
        %v2904 = vadd.f32 %v2893, %v2900
        %v2905 = vadd.f32 %v2894, %v2900
        %v2906 = vadd.f32 %v2902, %v491
        %v2907 = vadd.f32 %v2903, %v492
        %v2908 = vadd.f32 %v2904, %v493
        %v2909 = vadd.f32 %v2905, %v494
        %2910 = vadd.xlane.f32.xlu0 %v2906
        %v2911 = vpop.xlane.xlu0 %2910
        %2912 = vadd.xlane.f32.xlu0 %v2907
        %v2913 = vpop.xlane.xlu0 %2912
        %2914 = vadd.xlane.f32.xlu0 %v2908
        %v2915 = vpop.xlane.xlu0 %2914
        %2916 = vadd.xlane.f32.xlu0 %v2909
        %v2917 = vpop.xlane.xlu0 %2916
        %v2918 = vmul.f32 %v2911, %v505
        %v2919 = vmul.f32 %v2913, %v505
        %v2920 = vmul.f32 %v2915, %v505
        %v2921 = vmul.f32 %v2917, %v505
        %v2922 = vsub.f32 %v2906, %v2918
        %v2923 = vsub.f32 %v2907, %v2919
        %v2924 = vsub.f32 %v2908, %v2920
        %v2925 = vsub.f32 %v2909, %v2921
        %v2926 = vmul.f32 %v2922, %v2922
        %v2927 = vmul.f32 %v2923, %v2923
        %v2928 = vmul.f32 %v2924, %v2924
        %v2929 = vmul.f32 %v2925, %v2925
        %2930 = vadd.xlane.f32.xlu0 %v2926
        %v2931 = vpop.xlane.xlu0 %2930
        %2932 = vadd.xlane.f32.xlu0 %v2927
        %v2933 = vpop.xlane.xlu0 %2932
        %2934 = vadd.xlane.f32.xlu0 %v2928
        %v2935 = vpop.xlane.xlu0 %2934
        %2936 = vadd.xlane.f32.xlu0 %v2929
        %v2937 = vpop.xlane.xlu0 %2936
        %v2938 = vmul.f32 %v2931, %v505
        %v2939 = vmul.f32 %v2933, %v505
        %v2940 = vmul.f32 %v2935, %v505
        %v2941 = vmul.f32 %v2937, %v505
        %v2942 = vadd.f32 %v2938, 1e-05
        %v2943 = vadd.f32 %v2939, 1e-05
        %v2944 = vadd.f32 %v2940, 1e-05
        %v2945 = vadd.f32 %v2941, 1e-05
        %v2946 = vrsqrt.pop %v2942
        %v2947 = vrsqrt.pop %v2943
        %v2948 = vrsqrt.pop %v2944
        %v2949 = vrsqrt.pop %v2945
        %v2950 = vmul.f32 %v2922, %v2946
        %v2951 = vmul.f32 %v2923, %v2947
        %v2952 = vmul.f32 %v2924, %v2948
        %v2953 = vmul.f32 %v2925, %v2949
        %v2954 = vmul.f32 %v2950, %v546
        %v2955 = vmul.f32 %v2951, %v546
        %v2956 = vmul.f32 %v2952, %v546
        %v2957 = vmul.f32 %v2953, %v546
        %v2958 = vadd.f32 %v2954, %v556
        %v2959 = vadd.f32 %v2955, %v556
        %v2960 = vadd.f32 %v2956, %v556
        %v2961 = vadd.f32 %v2957, %v556
        %v2962 = vld [vmem:[#allocation12] sm:$0xff]
        %v2963 = vld [vmem:[#allocation12 + $0x8] sm:$0xff]
        %v2964 = vld [vmem:[#allocation12 + $0x10] sm:$0xff]
        %v2965 = vld [vmem:[#allocation12 + $0x18] sm:$0xff]
        %v2966 = vld [vmem:[#allocation12 + $0x20] sm:$0xff]
        %v2967 = vld [vmem:[#allocation12 + $0x28] sm:$0xff]
        %v2968 = vld [vmem:[#allocation12 + $0x30] sm:$0xff]
        %v2969 = vld [vmem:[#allocation12 + $0x38] sm:$0xff]
        %v2970 = vld [vmem:[#allocation12 + $0x40] sm:$0xff]
        %v2971 = vld [vmem:[#allocation12 + $0x48] sm:$0xff]
        %v2972 = vld [vmem:[#allocation12 + $0x50] sm:$0xff]
        %v2973 = vld [vmem:[#allocation12 + $0x58] sm:$0xff]
        %v2974 = vld [vmem:[#allocation12 + $0x60] sm:$0xff]
        %v2975 = vld [vmem:[#allocation12 + $0x68] sm:$0xff]
        %v2976 = vld [vmem:[#allocation12 + $0x70] sm:$0xff]
        %v2977 = vld [vmem:[#allocation12 + $0x78] sm:$0xff]
        %v2978 = vld [vmem:[#allocation12 + $0x80] sm:$0xff]
        %v2979 = vld [vmem:[#allocation12 + $0x88] sm:$0xff]
        %v2980 = vld [vmem:[#allocation12 + $0x90] sm:$0xff]
        %v2981 = vld [vmem:[#allocation12 + $0x98] sm:$0xff]
        %v2982 = vld [vmem:[#allocation12 + $0xa0] sm:$0xff]
        %v2983 = vld [vmem:[#allocation12 + $0xa8] sm:$0xff]
        %v2984 = vld [vmem:[#allocation12 + $0xb0] sm:$0xff]
        %v2985 = vld [vmem:[#allocation12 + $0xb8] sm:$0xff]
        %v2986 = vld [vmem:[#allocation12 + $0xc0] sm:$0xff]
        %v2987 = vld [vmem:[#allocation12 + $0xc8] sm:$0xff]
        %v2988 = vld [vmem:[#allocation12 + $0xd0] sm:$0xff]
        %v2989 = vld [vmem:[#allocation12 + $0xd8] sm:$0xff]
        %v2990 = vld [vmem:[#allocation12 + $0xe0] sm:$0xff]
        %v2991 = vld [vmem:[#allocation12 + $0xe8] sm:$0xff]
        %v2992 = vld [vmem:[#allocation12 + $0xf0] sm:$0xff]
        %v2993 = vld [vmem:[#allocation12 + $0xf8] sm:$0xff]
        %v2994 = vld [vmem:[#allocation12 + $0x100] sm:$0xff]
        %v2995 = vld [vmem:[#allocation12 + $0x108] sm:$0xff]
        %v2996 = vld [vmem:[#allocation12 + $0x110] sm:$0xff]
        %v2997 = vld [vmem:[#allocation12 + $0x118] sm:$0xff]
        %v2998 = vld [vmem:[#allocation12 + $0x120] sm:$0xff]
        %v2999 = vld [vmem:[#allocation12 + $0x128] sm:$0xff]
        %v3000 = vld [vmem:[#allocation12 + $0x130] sm:$0xff]
        %v3001 = vld [vmem:[#allocation12 + $0x138] sm:$0xff]
        %v3002 = vld [vmem:[#allocation12 + $0x140] sm:$0xff]
        %v3003 = vld [vmem:[#allocation12 + $0x148] sm:$0xff]
        %v3004 = vld [vmem:[#allocation12 + $0x150] sm:$0xff]
        %v3005 = vld [vmem:[#allocation12 + $0x158] sm:$0xff]
        %v3006 = vld [vmem:[#allocation12 + $0x160] sm:$0xff]
        %v3007 = vld [vmem:[#allocation12 + $0x168] sm:$0xff]
        %v3008 = vld [vmem:[#allocation12 + $0x170] sm:$0xff]
        %v3009 = vld [vmem:[#allocation12 + $0x178] sm:$0xff]
        %v3010 = vld [vmem:[#allocation12 + $0x180] sm:$0xff]
        %v3011 = vld [vmem:[#allocation12 + $0x188] sm:$0xff]
        %v3012 = vld [vmem:[#allocation12 + $0x190] sm:$0xff]
        %v3013 = vld [vmem:[#allocation12 + $0x198] sm:$0xff]
        %v3014 = vld [vmem:[#allocation12 + $0x1a0] sm:$0xff]
        %v3015 = vld [vmem:[#allocation12 + $0x1a8] sm:$0xff]
        %v3016 = vld [vmem:[#allocation12 + $0x1b0] sm:$0xff]
        %v3017 = vld [vmem:[#allocation12 + $0x1b8] sm:$0xff]
        %v3018 = vld [vmem:[#allocation12 + $0x1c0] sm:$0xff]
        %v3019 = vld [vmem:[#allocation12 + $0x1c8] sm:$0xff]
        %v3020 = vld [vmem:[#allocation12 + $0x1d0] sm:$0xff]
        %v3021 = vld [vmem:[#allocation12 + $0x1d8] sm:$0xff]
        %v3022 = vld [vmem:[#allocation12 + $0x1e0] sm:$0xff]
        %v3023 = vld [vmem:[#allocation12 + $0x1e8] sm:$0xff]
        %v3024 = vld [vmem:[#allocation12 + $0x1f0] sm:$0xff]
        %v3025 = vld [vmem:[#allocation12 + $0x1f8] sm:$0xff]
        %v3026 = vld [vmem:[%s8] sm:$0xf]
        %v3028 = vlaneseq
        %v3029 = vshrl.u32 %v3028, 7
        %v3030 = vsub.s32 0, %v3029
        %v3031 = vrot.slane %v3026, %v3030
        %v3032 = vlaneseq
        %v3033 = vshrl.u32 %v3032, 7
        %v3034 = vsub.s32 1, %v3033
        %v3035 = vrot.slane %v3026, %v3034
        %v3036 = vlaneseq
        %v3037 = vshrl.u32 %v3036, 7
        %v3038 = vsub.s32 2, %v3037
        %v3039 = vrot.slane %v3026, %v3038
        %v3040 = vlaneseq
        %v3041 = vshrl.u32 %v3040, 7
        %v3042 = vsub.s32 3, %v3041
        %v3043 = vrot.slane %v3026, %v3042
        %3048 = vmatprep.subr.mxu0 %v3023
        %3049 = vmatpush1.msra.mxu0 %v3022
        %3050 = vmatprep.subr.mxu0 %v3019
        %3051 = vmatpush1.msra.mxu0 %v3018
        %3052 = vmatprep.subr.mxu0 %v3015
        %3053 = vmatpush1.msra.mxu0 %v3014
        %3054 = vmatprep.subr.mxu0 %v3011
        %3055 = vmatpush1.msra.mxu0 %v3010
        %3056 = vmatprep.subr.mxu0 %v3007
        %3057 = vmatpush1.msra.mxu0 %v3006
        %3058 = vmatprep.subr.mxu0 %v3003
        %3059 = vmatpush1.msra.mxu0 %v3002
        %3060 = vmatprep.subr.mxu0 %v2999
        %3061 = vmatpush1.msra.mxu0 %v2998
        %3062 = vmatprep.subr.mxu0 %v2995
        %3063 = vmatpush1.msra.mxu0 %v2994
        %3064 = vmatprep.subr.mxu0 %v2991
        %3065 = vmatpush1.msra.mxu0 %v2990
        %3066 = vmatprep.subr.mxu0 %v2987
        %3067 = vmatpush1.msra.mxu0 %v2986
        %3068 = vmatprep.subr.mxu0 %v2983
        %3069 = vmatpush1.msra.mxu0 %v2982
        %3070 = vmatprep.subr.mxu0 %v2979
        %3071 = vmatpush1.msra.mxu0 %v2978
        %3072 = vmatprep.subr.mxu0 %v2975
        %3073 = vmatpush1.msra.mxu0 %v2974
        %3074 = vmatprep.subr.mxu0 %v2971
        %3075 = vmatpush1.msra.mxu0 %v2970
        %3076 = vmatprep.subr.mxu0 %v2967
        %3077 = vmatpush1.msra.mxu0 %v2966
        %3078 = vmatprep.subr.mxu0 %v2963
        %3079 = vmatpush1.msra.mxu0 %v2962
        %3080 = vmatprep.subr.mxu0 0.0
        %3081 = vmatpush2.msra.mxu0 0.0
        %3082 = vmatprep.subr.mxu0 0.0
        %3083 = vmatpush2.msra.mxu0 0.0
        %3084 = vmatprep.subr.mxu0 0.0
        %3085 = vmatpush2.msra.mxu0 0.0
        %3086 = vmatprep.subr.mxu0 0.0
        %3087 = vmatpush2.msra.mxu0 0.0
        %3088 = vmatprep.subr.mxu0 0.0
        %3089 = vmatpush2.msra.mxu0 0.0
        %3090 = vmatprep.subr.mxu0 0.0
        %3091 = vmatpush2.msra.mxu0 0.0
        %3092 = vmatprep.subr.mxu0 0.0
        %3093 = vmatpush2.msra.mxu0 0.0
        %3094 = vmatprep.subr.mxu0 0.0
        %3095 = vmatpush2.msra.mxu0 0.0
        %3096 = vmatprep.subr.mxu0 0.0
        %3097 = vmatpush2.msra.mxu0 0.0
        %3098 = vmatprep.subr.mxu0 0.0
        %3099 = vmatpush2.msra.mxu0 0.0
        %3100 = vmatprep.subr.mxu0 0.0
        %3101 = vmatpush2.msra.mxu0 0.0
        %3102 = vmatprep.subr.mxu0 0.0
        %3103 = vmatpush2.msra.mxu0 0.0
        %3104 = vmatprep.subr.mxu0 0.0
        %3105 = vmatpush2.msra.mxu0 0.0
        %3106 = vmatprep.subr.mxu0 0.0
        %3107 = vmatpush2.msra.mxu0 0.0
        %3108 = vmatprep.subr.mxu0 0.0
        %3109 = vmatpush2.msra.mxu0 0.0
        %3110 = vmatprep.subr.mxu0 0.0
        %3111 = vmatpush2.msra.mxu0 0.0
        %3112 = vmatprep.mubr.f32.mxu0 0.0
        %3113 = vmatmul.mubr.f32.gmra.mxu0 %v2958
        %v3114 = vpop.f32.mrf.mxu0
        %v3115 = vadd.f32 %v3031, %v3114
        %v3116 = vpop.f32.mrf.mxu0
        %v3117 = vadd.f32 %v3035, %v3116
        %3118 = vmatprep.mubr.f32.mxu0 0.0
        %3119 = vmatmul.mubr.f32.gmra.mxu0 %v2959
        %v3120 = vpop.f32.mrf.mxu0
        %v3121 = vadd.f32 %v3031, %v3120
        %v3122 = vpop.f32.mrf.mxu0
        %v3123 = vadd.f32 %v3035, %v3122
        %3124 = vmatprep.mubr.f32.mxu0 0.0
        %3125 = vmatmul.mubr.f32.gmra.mxu0 %v2960
        %v3126 = vpop.f32.mrf.mxu0
        %v3127 = vadd.f32 %v3031, %v3126
        %v3128 = vpop.f32.mrf.mxu0
        %v3129 = vadd.f32 %v3035, %v3128
        %3130 = vmatprep.mubr.f32.mxu0 0.0
        %3131 = vmatmul.mubr.f32.gmra.mxu0 %v2961
        %v3132 = vpop.f32.mrf.mxu0
        %v3133 = vadd.f32 %v3031, %v3132
        %v3134 = vpop.f32.mrf.mxu0
        %v3135 = vadd.f32 %v3035, %v3134
        %3136 = vdwg.mxu0
        %3137 = vmatprep.subr.mxu0 %v3025
        %3138 = vmatpush1.msra.mxu0 %v3024
        %3139 = vmatprep.subr.mxu0 %v3021
        %3140 = vmatpush1.msra.mxu0 %v3020
        %3141 = vmatprep.subr.mxu0 %v3017
        %3142 = vmatpush1.msra.mxu0 %v3016
        %3143 = vmatprep.subr.mxu0 %v3013
        %3144 = vmatpush1.msra.mxu0 %v3012
        %3145 = vmatprep.subr.mxu0 %v3009
        %3146 = vmatpush1.msra.mxu0 %v3008
        %3147 = vmatprep.subr.mxu0 %v3005
        %3148 = vmatpush1.msra.mxu0 %v3004
        %3149 = vmatprep.subr.mxu0 %v3001
        %3150 = vmatpush1.msra.mxu0 %v3000
        %3151 = vmatprep.subr.mxu0 %v2997
        %3152 = vmatpush1.msra.mxu0 %v2996
        %3153 = vmatprep.subr.mxu0 %v2993
        %3154 = vmatpush1.msra.mxu0 %v2992
        %3155 = vmatprep.subr.mxu0 %v2989
        %3156 = vmatpush1.msra.mxu0 %v2988
        %3157 = vmatprep.subr.mxu0 %v2985
        %3158 = vmatpush1.msra.mxu0 %v2984
        %3159 = vmatprep.subr.mxu0 %v2981
        %3160 = vmatpush1.msra.mxu0 %v2980
        %3161 = vmatprep.subr.mxu0 %v2977
        %3162 = vmatpush1.msra.mxu0 %v2976
        %3163 = vmatprep.subr.mxu0 %v2973
        %3164 = vmatpush1.msra.mxu0 %v2972
        %3165 = vmatprep.subr.mxu0 %v2969
        %3166 = vmatpush1.msra.mxu0 %v2968
        %3167 = vmatprep.subr.mxu0 %v2965
        %3168 = vmatpush1.msra.mxu0 %v2964
        %3169 = vmatprep.subr.mxu0 0.0
        %3170 = vmatpush2.msra.mxu0 0.0
        %3171 = vmatprep.subr.mxu0 0.0
        %3172 = vmatpush2.msra.mxu0 0.0
        %3173 = vmatprep.subr.mxu0 0.0
        %3174 = vmatpush2.msra.mxu0 0.0
        %3175 = vmatprep.subr.mxu0 0.0
        %3176 = vmatpush2.msra.mxu0 0.0
        %3177 = vmatprep.subr.mxu0 0.0
        %3178 = vmatpush2.msra.mxu0 0.0
        %3179 = vmatprep.subr.mxu0 0.0
        %3180 = vmatpush2.msra.mxu0 0.0
        %3181 = vmatprep.subr.mxu0 0.0
        %3182 = vmatpush2.msra.mxu0 0.0
        %3183 = vmatprep.subr.mxu0 0.0
        %3184 = vmatpush2.msra.mxu0 0.0
        %3185 = vmatprep.subr.mxu0 0.0
        %3186 = vmatpush2.msra.mxu0 0.0
        %3187 = vmatprep.subr.mxu0 0.0
        %3188 = vmatpush2.msra.mxu0 0.0
        %3189 = vmatprep.subr.mxu0 0.0
        %3190 = vmatpush2.msra.mxu0 0.0
        %3191 = vmatprep.subr.mxu0 0.0
        %3192 = vmatpush2.msra.mxu0 0.0
        %3193 = vmatprep.subr.mxu0 0.0
        %3194 = vmatpush2.msra.mxu0 0.0
        %3195 = vmatprep.subr.mxu0 0.0
        %3196 = vmatpush2.msra.mxu0 0.0
        %3197 = vmatprep.subr.mxu0 0.0
        %3198 = vmatpush2.msra.mxu0 0.0
        %3199 = vmatprep.subr.mxu0 0.0
        %3200 = vmatpush2.msra.mxu0 0.0
        %3201 = vmatprep.mubr.f32.mxu0 0.0
        %3202 = vmatmul.mubr.f32.gmra.mxu0 %v2958
        %v3203 = vpop.f32.mrf.mxu0
        %v3204 = vadd.f32 %v3039, %v3203
        %v3205 = vpop.f32.mrf.mxu0
        %v3206 = vadd.f32 %v3043, %v3205
        %3207 = vmatprep.mubr.f32.mxu0 0.0
        %3208 = vmatmul.mubr.f32.gmra.mxu0 %v2959
        %v3209 = vpop.f32.mrf.mxu0
        %v3210 = vadd.f32 %v3039, %v3209
        %v3211 = vpop.f32.mrf.mxu0
        %v3212 = vadd.f32 %v3043, %v3211
        %3213 = vmatprep.mubr.f32.mxu0 0.0
        %3214 = vmatmul.mubr.f32.gmra.mxu0 %v2960
        %v3215 = vpop.f32.mrf.mxu0
        %v3216 = vadd.f32 %v3039, %v3215
        %v3217 = vpop.f32.mrf.mxu0
        %v3218 = vadd.f32 %v3043, %v3217
        %3219 = vmatprep.mubr.f32.mxu0 0.0
        %3220 = vmatmul.mubr.f32.gmra.mxu0 %v2961
        %v3221 = vpop.f32.mrf.mxu0
        %v3222 = vadd.f32 %v3039, %v3221
        %v3223 = vpop.f32.mrf.mxu0
        %v3224 = vadd.f32 %v3043, %v3223
        %3225 = vdwg.mxu0
        %v3226 = vmul.f32 %v3115, 0.5
        %v3227 = vmul.f32 %v3117, 0.5
        %v3228 = vmul.f32 %v3204, 0.5
        %v3229 = vmul.f32 %v3206, 0.5
        %v3230 = vmul.f32 %v3121, 0.5
        %v3231 = vmul.f32 %v3123, 0.5
        %v3232 = vmul.f32 %v3210, 0.5
        %v3233 = vmul.f32 %v3212, 0.5
        %v3234 = vmul.f32 %v3127, 0.5
        %v3235 = vmul.f32 %v3129, 0.5
        %v3236 = vmul.f32 %v3216, 0.5
        %v3237 = vmul.f32 %v3218, 0.5
        %v3238 = vmul.f32 %v3133, 0.5
        %v3239 = vmul.f32 %v3135, 0.5
        %v3240 = vmul.f32 %v3222, 0.5
        %v3241 = vmul.f32 %v3224, 0.5
        %v3242 = vmul.f32 %v3115, 0.70710677
        %v3243 = vmul.f32 %v3117, 0.70710677
        %v3244 = vmul.f32 %v3204, 0.70710677
        %v3245 = vmul.f32 %v3206, 0.70710677
        %v3246 = vmul.f32 %v3121, 0.70710677
        %v3247 = vmul.f32 %v3123, 0.70710677
        %v3248 = vmul.f32 %v3210, 0.70710677
        %v3249 = vmul.f32 %v3212, 0.70710677
        %v3250 = vmul.f32 %v3127, 0.70710677
        %v3251 = vmul.f32 %v3129, 0.70710677
        %v3252 = vmul.f32 %v3216, 0.70710677
        %v3253 = vmul.f32 %v3218, 0.70710677
        %v3254 = vmul.f32 %v3133, 0.70710677
        %v3255 = vmul.f32 %v3135, 0.70710677
        %v3256 = vmul.f32 %v3222, 0.70710677
        %v3257 = vmul.f32 %v3224, 0.70710677
        %v3258 = verf.f32.pop %v3242
        %v3259 = verf.f32.pop %v3243
        %v3260 = verf.f32.pop %v3244
        %v3261 = verf.f32.pop %v3245
        %v3262 = verf.f32.pop %v3246
        %v3263 = verf.f32.pop %v3247
        %v3264 = verf.f32.pop %v3248
        %v3265 = verf.f32.pop %v3249
        %v3266 = verf.f32.pop %v3250
        %v3267 = verf.f32.pop %v3251
        %v3268 = verf.f32.pop %v3252
        %v3269 = verf.f32.pop %v3253
        %v3270 = verf.f32.pop %v3254
        %v3271 = verf.f32.pop %v3255
        %v3272 = verf.f32.pop %v3256
        %v3273 = verf.f32.pop %v3257
        %v3274 = vadd.f32 %v3258, 1.0
        %v3275 = vadd.f32 %v3259, 1.0
        %v3276 = vadd.f32 %v3260, 1.0
        %v3277 = vadd.f32 %v3261, 1.0
        %v3278 = vadd.f32 %v3262, 1.0
        %v3279 = vadd.f32 %v3263, 1.0
        %v3280 = vadd.f32 %v3264, 1.0
        %v3281 = vadd.f32 %v3265, 1.0
        %v3282 = vadd.f32 %v3266, 1.0
        %v3283 = vadd.f32 %v3267, 1.0
        %v3284 = vadd.f32 %v3268, 1.0
        %v3285 = vadd.f32 %v3269, 1.0
        %v3286 = vadd.f32 %v3270, 1.0
        %v3287 = vadd.f32 %v3271, 1.0
        %v3288 = vadd.f32 %v3272, 1.0
        %v3289 = vadd.f32 %v3273, 1.0
        %v3290 = vmul.f32 %v3226, %v3274
        %v3291 = vmul.f32 %v3227, %v3275
        %v3292 = vmul.f32 %v3228, %v3276
        %v3293 = vmul.f32 %v3229, %v3277
        %v3294 = vmul.f32 %v3230, %v3278
        %v3295 = vmul.f32 %v3231, %v3279
        %v3296 = vmul.f32 %v3232, %v3280
        %v3297 = vmul.f32 %v3233, %v3281
        %v3298 = vmul.f32 %v3234, %v3282
        %v3299 = vmul.f32 %v3235, %v3283
        %v3300 = vmul.f32 %v3236, %v3284
        %v3301 = vmul.f32 %v3237, %v3285
        %v3302 = vmul.f32 %v3238, %v3286
        %v3303 = vmul.f32 %v3239, %v3287
        %v3304 = vmul.f32 %v3240, %v3288
        %v3305 = vmul.f32 %v3241, %v3289
        %v3306 = vld [vmem:[#allocation14] sm:$0xff]
        %v3307 = vld [vmem:[#allocation14 + $0x8] sm:$0xff]
        %v3308 = vld [vmem:[#allocation14 + $0x10] sm:$0xff]
        %v3309 = vld [vmem:[#allocation14 + $0x18] sm:$0xff]
        %v3310 = vld [vmem:[#allocation14 + $0x20] sm:$0xff]
        %v3311 = vld [vmem:[#allocation14 + $0x28] sm:$0xff]
        %v3312 = vld [vmem:[#allocation14 + $0x30] sm:$0xff]
        %v3313 = vld [vmem:[#allocation14 + $0x38] sm:$0xff]
        %v3314 = vld [vmem:[#allocation14 + $0x40] sm:$0xff]
        %v3315 = vld [vmem:[#allocation14 + $0x48] sm:$0xff]
        %v3316 = vld [vmem:[#allocation14 + $0x50] sm:$0xff]
        %v3317 = vld [vmem:[#allocation14 + $0x58] sm:$0xff]
        %v3318 = vld [vmem:[#allocation14 + $0x60] sm:$0xff]
        %v3319 = vld [vmem:[#allocation14 + $0x68] sm:$0xff]
        %v3320 = vld [vmem:[#allocation14 + $0x70] sm:$0xff]
        %v3321 = vld [vmem:[#allocation14 + $0x78] sm:$0xff]
        %v3322 = vld [vmem:[#allocation14 + $0x80] sm:$0xff]
        %v3323 = vld [vmem:[#allocation14 + $0x88] sm:$0xff]
        %v3324 = vld [vmem:[#allocation14 + $0x90] sm:$0xff]
        %v3325 = vld [vmem:[#allocation14 + $0x98] sm:$0xff]
        %v3326 = vld [vmem:[#allocation14 + $0xa0] sm:$0xff]
        %v3327 = vld [vmem:[#allocation14 + $0xa8] sm:$0xff]
        %v3328 = vld [vmem:[#allocation14 + $0xb0] sm:$0xff]
        %v3329 = vld [vmem:[#allocation14 + $0xb8] sm:$0xff]
        %v3330 = vld [vmem:[#allocation14 + $0xc0] sm:$0xff]
        %v3331 = vld [vmem:[#allocation14 + $0xc8] sm:$0xff]
        %v3332 = vld [vmem:[#allocation14 + $0xd0] sm:$0xff]
        %v3333 = vld [vmem:[#allocation14 + $0xd8] sm:$0xff]
        %v3334 = vld [vmem:[#allocation14 + $0xe0] sm:$0xff]
        %v3335 = vld [vmem:[#allocation14 + $0xe8] sm:$0xff]
        %v3336 = vld [vmem:[#allocation14 + $0xf0] sm:$0xff]
        %v3337 = vld [vmem:[#allocation14 + $0xf8] sm:$0xff]
        %v3338 = vld [vmem:[#allocation14 + $0x100] sm:$0xff]
        %v3339 = vld [vmem:[#allocation14 + $0x108] sm:$0xff]
        %v3340 = vld [vmem:[#allocation14 + $0x110] sm:$0xff]
        %v3341 = vld [vmem:[#allocation14 + $0x118] sm:$0xff]
        %v3342 = vld [vmem:[#allocation14 + $0x120] sm:$0xff]
        %v3343 = vld [vmem:[#allocation14 + $0x128] sm:$0xff]
        %v3344 = vld [vmem:[#allocation14 + $0x130] sm:$0xff]
        %v3345 = vld [vmem:[#allocation14 + $0x138] sm:$0xff]
        %v3346 = vld [vmem:[#allocation14 + $0x140] sm:$0xff]
        %v3347 = vld [vmem:[#allocation14 + $0x148] sm:$0xff]
        %v3348 = vld [vmem:[#allocation14 + $0x150] sm:$0xff]
        %v3349 = vld [vmem:[#allocation14 + $0x158] sm:$0xff]
        %v3350 = vld [vmem:[#allocation14 + $0x160] sm:$0xff]
        %v3351 = vld [vmem:[#allocation14 + $0x168] sm:$0xff]
        %v3352 = vld [vmem:[#allocation14 + $0x170] sm:$0xff]
        %v3353 = vld [vmem:[#allocation14 + $0x178] sm:$0xff]
        %v3354 = vld [vmem:[#allocation14 + $0x180] sm:$0xff]
        %v3355 = vld [vmem:[#allocation14 + $0x188] sm:$0xff]
        %v3356 = vld [vmem:[#allocation14 + $0x190] sm:$0xff]
        %v3357 = vld [vmem:[#allocation14 + $0x198] sm:$0xff]
        %v3358 = vld [vmem:[#allocation14 + $0x1a0] sm:$0xff]
        %v3359 = vld [vmem:[#allocation14 + $0x1a8] sm:$0xff]
        %v3360 = vld [vmem:[#allocation14 + $0x1b0] sm:$0xff]
        %v3361 = vld [vmem:[#allocation14 + $0x1b8] sm:$0xff]
        %v3362 = vld [vmem:[#allocation14 + $0x1c0] sm:$0xff]
        %v3363 = vld [vmem:[#allocation14 + $0x1c8] sm:$0xff]
        %v3364 = vld [vmem:[#allocation14 + $0x1d0] sm:$0xff]
        %v3365 = vld [vmem:[#allocation14 + $0x1d8] sm:$0xff]
        %v3366 = vld [vmem:[#allocation14 + $0x1e0] sm:$0xff]
        %v3367 = vld [vmem:[#allocation14 + $0x1e8] sm:$0xff]
        %v3368 = vld [vmem:[#allocation14 + $0x1f0] sm:$0xff]
        %v3369 = vld [vmem:[#allocation14 + $0x1f8] sm:$0xff]
        %v3370 = vld [vmem:[%s10] sm:$0x1]
        %v3372 = vlaneseq
        %v3373 = vshrl.u32 %v3372, 7
        %v3374 = vsub.s32 0, %v3373
        %v3375 = vrot.slane %v3370, %v3374
        %3377 = vmatprep.subr.mxu0 0.0
        %3378 = vmatpush1.msra.mxu0 %v3321
        %3379 = vmatprep.subr.mxu0 0.0
        %3380 = vmatpush1.msra.mxu0 %v3320
        %3381 = vmatprep.subr.mxu0 0.0
        %3382 = vmatpush1.msra.mxu0 %v3319
        %3383 = vmatprep.subr.mxu0 0.0
        %3384 = vmatpush1.msra.mxu0 %v3318
        %3385 = vmatprep.subr.mxu0 0.0
        %3386 = vmatpush1.msra.mxu0 %v3317
        %3387 = vmatprep.subr.mxu0 0.0
        %3388 = vmatpush1.msra.mxu0 %v3316
        %3389 = vmatprep.subr.mxu0 0.0
        %3390 = vmatpush1.msra.mxu0 %v3315
        %3391 = vmatprep.subr.mxu0 0.0
        %3392 = vmatpush1.msra.mxu0 %v3314
        %3393 = vmatprep.subr.mxu0 0.0
        %3394 = vmatpush1.msra.mxu0 %v3313
        %3395 = vmatprep.subr.mxu0 0.0
        %3396 = vmatpush1.msra.mxu0 %v3312
        %3397 = vmatprep.subr.mxu0 0.0
        %3398 = vmatpush1.msra.mxu0 %v3311
        %3399 = vmatprep.subr.mxu0 0.0
        %3400 = vmatpush1.msra.mxu0 %v3310
        %3401 = vmatprep.subr.mxu0 0.0
        %3402 = vmatpush1.msra.mxu0 %v3309
        %3403 = vmatprep.subr.mxu0 0.0
        %3404 = vmatpush1.msra.mxu0 %v3308
        %3405 = vmatprep.subr.mxu0 0.0
        %3406 = vmatpush1.msra.mxu0 %v3307
        %3407 = vmatprep.subr.mxu0 0.0
        %3408 = vmatpush1.msra.mxu0 %v3306
        %3409 = vmatprep.subr.mxu0 0.0
        %3410 = vmatpush2.msra.mxu0 %v3337
        %3411 = vmatprep.subr.mxu0 0.0
        %3412 = vmatpush2.msra.mxu0 %v3336
        %3413 = vmatprep.subr.mxu0 0.0
        %3414 = vmatpush2.msra.mxu0 %v3335
        %3415 = vmatprep.subr.mxu0 0.0
        %3416 = vmatpush2.msra.mxu0 %v3334
        %3417 = vmatprep.subr.mxu0 0.0
        %3418 = vmatpush2.msra.mxu0 %v3333
        %3419 = vmatprep.subr.mxu0 0.0
        %3420 = vmatpush2.msra.mxu0 %v3332
        %3421 = vmatprep.subr.mxu0 0.0
        %3422 = vmatpush2.msra.mxu0 %v3331
        %3423 = vmatprep.subr.mxu0 0.0
        %3424 = vmatpush2.msra.mxu0 %v3330
        %3425 = vmatprep.subr.mxu0 0.0
        %3426 = vmatpush2.msra.mxu0 %v3329
        %3427 = vmatprep.subr.mxu0 0.0
        %3428 = vmatpush2.msra.mxu0 %v3328
        %3429 = vmatprep.subr.mxu0 0.0
        %3430 = vmatpush2.msra.mxu0 %v3327
        %3431 = vmatprep.subr.mxu0 0.0
        %3432 = vmatpush2.msra.mxu0 %v3326
        %3433 = vmatprep.subr.mxu0 0.0
        %3434 = vmatpush2.msra.mxu0 %v3325
        %3435 = vmatprep.subr.mxu0 0.0
        %3436 = vmatpush2.msra.mxu0 %v3324
        %3437 = vmatprep.subr.mxu0 0.0
        %3438 = vmatpush2.msra.mxu0 %v3323
        %3439 = vmatprep.subr.mxu0 0.0
        %3440 = vmatpush2.msra.mxu0 %v3322
        %3441 = vmatprep.mubr.f32.mxu0 %v3291
        %3442 = vmatmul.mubr.f32.gmra.mxu0 %v3290
        %v3443 = vpop.f32.mrf.mxu0
        %v3444 = vadd.f32 %v3375, %v3443
        %v3445 = vpop.f32.mrf.mxu0
        %3446 = vmatprep.mubr.f32.mxu0 %v3295
        %3447 = vmatmul.mubr.f32.gmra.mxu0 %v3294
        %v3448 = vpop.f32.mrf.mxu0
        %v3449 = vadd.f32 %v3375, %v3448
        %v3450 = vpop.f32.mrf.mxu0
        %3451 = vmatprep.mubr.f32.mxu0 %v3299
        %3452 = vmatmul.mubr.f32.gmra.mxu0 %v3298
        %v3453 = vpop.f32.mrf.mxu0
        %v3454 = vadd.f32 %v3375, %v3453
        %v3455 = vpop.f32.mrf.mxu0
        %3456 = vmatprep.mubr.f32.mxu0 %v3303
        %3457 = vmatmul.mubr.f32.gmra.mxu0 %v3302
        %v3458 = vpop.f32.mrf.mxu0
        %v3459 = vadd.f32 %v3375, %v3458
        %v3460 = vpop.f32.mrf.mxu0
        %3461 = vdwg.mxu0
        %3462 = vmatprep.subr.mxu0 0.0
        %3463 = vmatpush1.msra.mxu0 %v3353
        %3464 = vmatprep.subr.mxu0 0.0
        %3465 = vmatpush1.msra.mxu0 %v3352
        %3466 = vmatprep.subr.mxu0 0.0
        %3467 = vmatpush1.msra.mxu0 %v3351
        %3468 = vmatprep.subr.mxu0 0.0
        %3469 = vmatpush1.msra.mxu0 %v3350
        %3470 = vmatprep.subr.mxu0 0.0
        %3471 = vmatpush1.msra.mxu0 %v3349
        %3472 = vmatprep.subr.mxu0 0.0
        %3473 = vmatpush1.msra.mxu0 %v3348
        %3474 = vmatprep.subr.mxu0 0.0
        %3475 = vmatpush1.msra.mxu0 %v3347
        %3476 = vmatprep.subr.mxu0 0.0
        %3477 = vmatpush1.msra.mxu0 %v3346
        %3478 = vmatprep.subr.mxu0 0.0
        %3479 = vmatpush1.msra.mxu0 %v3345
        %3480 = vmatprep.subr.mxu0 0.0
        %3481 = vmatpush1.msra.mxu0 %v3344
        %3482 = vmatprep.subr.mxu0 0.0
        %3483 = vmatpush1.msra.mxu0 %v3343
        %3484 = vmatprep.subr.mxu0 0.0
        %3485 = vmatpush1.msra.mxu0 %v3342
        %3486 = vmatprep.subr.mxu0 0.0
        %3487 = vmatpush1.msra.mxu0 %v3341
        %3488 = vmatprep.subr.mxu0 0.0
        %3489 = vmatpush1.msra.mxu0 %v3340
        %3490 = vmatprep.subr.mxu0 0.0
        %3491 = vmatpush1.msra.mxu0 %v3339
        %3492 = vmatprep.subr.mxu0 0.0
        %3493 = vmatpush1.msra.mxu0 %v3338
        %3494 = vmatprep.subr.mxu0 0.0
        %3495 = vmatpush2.msra.mxu0 %v3369
        %3496 = vmatprep.subr.mxu0 0.0
        %3497 = vmatpush2.msra.mxu0 %v3368
        %3498 = vmatprep.subr.mxu0 0.0
        %3499 = vmatpush2.msra.mxu0 %v3367
        %3500 = vmatprep.subr.mxu0 0.0
        %3501 = vmatpush2.msra.mxu0 %v3366
        %3502 = vmatprep.subr.mxu0 0.0
        %3503 = vmatpush2.msra.mxu0 %v3365
        %3504 = vmatprep.subr.mxu0 0.0
        %3505 = vmatpush2.msra.mxu0 %v3364
        %3506 = vmatprep.subr.mxu0 0.0
        %3507 = vmatpush2.msra.mxu0 %v3363
        %3508 = vmatprep.subr.mxu0 0.0
        %3509 = vmatpush2.msra.mxu0 %v3362
        %3510 = vmatprep.subr.mxu0 0.0
        %3511 = vmatpush2.msra.mxu0 %v3361
        %3512 = vmatprep.subr.mxu0 0.0
        %3513 = vmatpush2.msra.mxu0 %v3360
        %3514 = vmatprep.subr.mxu0 0.0
        %3515 = vmatpush2.msra.mxu0 %v3359
        %3516 = vmatprep.subr.mxu0 0.0
        %3517 = vmatpush2.msra.mxu0 %v3358
        %3518 = vmatprep.subr.mxu0 0.0
        %3519 = vmatpush2.msra.mxu0 %v3357
        %3520 = vmatprep.subr.mxu0 0.0
        %3521 = vmatpush2.msra.mxu0 %v3356
        %3522 = vmatprep.subr.mxu0 0.0
        %3523 = vmatpush2.msra.mxu0 %v3355
        %3524 = vmatprep.subr.mxu0 0.0
        %3525 = vmatpush2.msra.mxu0 %v3354
        %3526 = vmatprep.mubr.f32.mxu0 %v3293
        %3527 = vmatmul.mubr.f32.gmra.mxu0 %v3292
        %v3528 = vpop.f32.mrf.mxu0
        %v3529 = vadd.f32 %v3444, %v3528
        %v3530 = vpop.f32.mrf.mxu0
        %3531 = vmatprep.mubr.f32.mxu0 %v3297
        %3532 = vmatmul.mubr.f32.gmra.mxu0 %v3296
        %v3533 = vpop.f32.mrf.mxu0
        %v3534 = vadd.f32 %v3449, %v3533
        %v3535 = vpop.f32.mrf.mxu0
        %3536 = vmatprep.mubr.f32.mxu0 %v3301
        %3537 = vmatmul.mubr.f32.gmra.mxu0 %v3300
        %v3538 = vpop.f32.mrf.mxu0
        %v3539 = vadd.f32 %v3454, %v3538
        %v3540 = vpop.f32.mrf.mxu0
        %3541 = vmatprep.mubr.f32.mxu0 %v3305
        %3542 = vmatmul.mubr.f32.gmra.mxu0 %v3304
        %v3543 = vpop.f32.mrf.mxu0
        %v3544 = vadd.f32 %v3459, %v3543
        %v3545 = vpop.f32.mrf.mxu0
        %3546 = vdwg.mxu0
        %v3547 = vadd.f32 %v3529, %v2906
        %v3548 = vadd.f32 %v3534, %v2907
        %v3549 = vadd.f32 %v3539, %v2908
        %v3550 = vadd.f32 %v3544, %v2909
        %3551 = vst [vmem:[%s488] sm:$0xff] %v3547
        %3552 = vst [vmem:[%s488 + $0x8] sm:$0xff] %v3548
        %3553 = vst [vmem:[%s488 + $0x10] sm:$0xff] %v3549
        %3554 = vst [vmem:[%s488 + $0x18] sm:$0xff] %v3550
        %s3555 = sand.u32 %s275, 1
        %s3556 = scalar_lea.sflag [#allocation5], %s3555
        %s3557 = sand.u32 %s275, 1
        %s3558 = smul.addr %s3557, 32
        %s3559 = scalar_lea.vmem [#allocation15], %s3558
        // Predicated region
        $region93: #{tpu_custom_call.1} parent=63 // pred_check
          %p3560 = pneg %p285
        $region94: #{tpu_custom_call.1} parent=63 // pred_check_branch
          %3562 = sbr.rel (%p3560) target = $region96
        $region95: #{tpu_custom_call.1} parent=63 // pred_region
          %s3563 = smul.u32 2, %s31
          %s3565 = ssub.s32 512, 512
          %3566 = vsyncadd %s3556, %s3565
          %s3567 = smul.addr %s3563, 2
          %s3568 = smul.addr %s3567, 128
          %s3569 = scalar_lea.hbm %s11, %s3568
          %s3570 = sshll.u32 %s3559, 4
          %s3571 = int_to_ptr.vmem [resolvable:$true] %s3570
          %3576 = dma.vmem_to_hbm [thread:$0]  %s3571, 512, %s3569, %s3556, 128, 128, 8
        $region96: #{tpu_custom_call.1} parent=63 // pred_fallthru
          _
      $region64: #{tpu_custom_call.1} parent=5 // pred_fallthru
        _
      %p3577 = scmp.le.s32.totalorder 2, %s26
      // Predicated region
      $region97: #{tpu_custom_call.1} parent=5 // pred_check
        %p3578 = pneg %p3577
      $region98: #{tpu_custom_call.1} parent=5 // pred_check_branch
        %3580 = sbr.rel (%p3578) target = $region100
      $region99: #{tpu_custom_call.1} parent=5 // pred_region
        %s3581 = ssub.s32 %s26, 2
        // Predicated region
        $region101: #{tpu_custom_call.1} parent=99 // pred_check
          %p3582 = pneg %p291
        $region102: #{tpu_custom_call.1} parent=99 // pred_check_branch
          %3584 = sbr.rel (%p3582) target = $region104
        $region103: #{tpu_custom_call.1} parent=99 // pred_region
          %s3585 = sand.u32 %s276, 1
          %s3586 = scalar_lea.sflag [#allocation5], %s3585
          %s3587 = sand.u32 %s276, 1
          %s3588 = smul.addr %s3587, 32
          %s3589 = scalar_lea.vmem [#allocation15], %s3588
          %3590 = dma.done %s3586, 512
        $region104: #{tpu_custom_call.1} parent=99 // pred_fallthru
          _
      $region100: #{tpu_custom_call.1} parent=5 // pred_fallthru
        _
    $region6: #{tpu_custom_call.1} parent=1 // loop_footer
      %s30 = sadd.s32 1, %s26
    $region7: #{tpu_custom_call.1} parent=1 // loop_footer_branch
      %25 = sbr.rel target = $region3
    $region8: #{tpu_custom_call.1} parent=1 // loop_exit
      _
    %3591 = vsyncpa [#allocation4], 1
    %s3592 = scalar_lea.sflag [#allocation4], 1
    %3593 = vsyncpa %s3592, 1
    %3594 = vsyncpa [#allocation7], 1
    %3595 = vsyncpa [#allocation10], 1
    %3596 = vsyncpa [#allocation13], 1
    %3597 = vsyncpa [#allocation5], 1
    %s3598 = scalar_lea.sflag [#allocation5], 1
    %3599 = vsyncpa %s3598, 1

</llo_original>
